<compile_context>
chip_gen: v6e
topology: v6e:2x2x1
jax: 0.10.0
libtpu: 0.0.40
codegen_flags: <defaults>
</compile_context>

<pallas_src>
import functools

import jax
import jax.numpy as jnp
from jax.experimental import pallas as pl
from jax.experimental.pallas import tpu as pltpu


# ----------------------------- Pallas kernels ------------------------------

def _conv_leaky_kernel(x_ref, w_ref, o_ref):
    # (tm, K) @ (K, Cout) on the MXU (bf16 in, f32 acc), then LeakyReLU(0.2).
    acc = jnp.dot(x_ref[...], w_ref[...], preferred_element_type=jnp.float32)
    o_ref[...] = jnp.where(acc > 0, acc, 0.2 * acc).astype(o_ref.dtype)


def _conv_bn_leaky_kernel(x_ref, w_ref, g_ref, b_ref, o_ref, acc_ref, *, eps):
    # Grid = (Cout tiles [parallel], K tiles [arbitrary]).
    # Accumulate the conv output for the full batch (all M rows) of this channel
    # tile in f32 VMEM, then apply BatchNorm (batch statistics) + LeakyReLU once.
    k = pl.program_id(1)

    @pl.when(k == 0)
    def _():
        acc_ref[...] = jnp.zeros_like(acc_ref)

    acc_ref[...] += jnp.dot(x_ref[...], w_ref[...],
                            preferred_element_type=jnp.float32)

    @pl.when(k == pl.num_programs(1) - 1)
    def _():
        x = acc_ref[...]                                        # (M, tc) f32
        mean = jnp.mean(x, axis=0, keepdims=True)
        var = jnp.mean((x - mean) ** 2, axis=0, keepdims=True)  # biased (training BN)
        scale = g_ref[...] * jax.lax.rsqrt(var + eps)
        shift = b_ref[...] - mean * scale
        y = x * scale + shift
        o_ref[...] = jnp.where(y > 0, y, 0.2 * y).astype(o_ref.dtype)


def _conv_bn_leaky_head_kernel(x_ref, w_ref, g_ref, b_ref, w5_ref, sel_ref,
                               o_ref, acc_ref, *, eps):
    # Layer 4 (conv + BN + LeakyReLU) fused with layer 5:
    # the final Conv(512->1, k4, s1, p0) over the 4x4 map is a per-sample dot
    # product of the layer-4 activation with w5, followed by sigmoid.
    k = pl.program_id(0)

    @pl.when(k == 0)
    def _():
        acc_ref[...] = jnp.zeros_like(acc_ref)

    acc_ref[...] += jnp.dot(x_ref[...], w_ref[...],
                            preferred_element_type=jnp.float32)

    @pl.when(k == pl.num_programs(0) - 1)
    def _():
        x = acc_ref[...]                                        # (N*16, 512) f32
        mean = jnp.mean(x, axis=0, keepdims=True)
        var = jnp.mean((x - mean) ** 2, axis=0, keepdims=True)
        scale = g_ref[...] * jax.lax.rsqrt(var + eps)
        shift = b_ref[...] - mean * scale
        y = x * scale + shift
        y = jnp.where(y > 0, y, 0.2 * y)
        # Layer 5: elementwise-mask with the (row-aligned) w5, segment-sum per
        # sample via a tiny selection matmul, reduce over channels, sigmoid.
        masked = y * w5_ref[...]                                # (N*16, 512)
        per_sample = jnp.dot(sel_ref[...], masked,
                             preferred_element_type=jnp.float32)  # (N, 512)
        logit = jnp.sum(per_sample, axis=1, keepdims=True)      # (N, 1)
        o_ref[...] = jax.nn.sigmoid(logit)


# ----------------------------- Pallas wrappers ------------------------------

def _pick_tile(m):
    for t in (512, 256, 128, 64, 32, 16, 8):
        if m % t == 0:
            return t
    return m


def fused_conv_leaky(cols, w):
    """Layer 1: conv-as-matmul + LeakyReLU.  M tiled as a parallel grid axis."""
    m, k = cols.shape
    c = w.shape[1]
    tm = _pick_tile(m)
    return pl.pallas_call(
        _conv_leaky_kernel,
        out_shape=jax.ShapeDtypeStruct((m, c), jnp.bfloat16),
        grid_spec=pltpu.PrefetchScalarGridSpec(
            num_scalar_prefetch=0,
            grid=(m // tm,),
            in_specs=[
                pl.BlockSpec((tm, k), lambda i: (i, 0)),
                pl.BlockSpec((k, c), lambda i: (0, 0)),
            ],
            out_specs=pl.BlockSpec((tm, c), lambda i: (i, 0)),
        ),
        compiler_params=pltpu.CompilerParams(dimension_semantics=("parallel",)),
    )(cols, w)


def fused_conv_bn_leaky(cols, w, gamma, beta, *, eps=1e-5, tc=128):
    """Layers 2-3: conv + BN(batch stats) + LeakyReLU in ONE kernel.

    Grid = (Cout tiles [parallel], K tiles [arbitrary]); the full conv output
    (all M rows) of each channel tile is accumulated in an f32 VMEM scratch.
    """
    m, k = cols.shape
    c = w.shape[1]
    tc = min(tc, c)
    tk = 512 if k <= 1024 else 1024
    kernel = functools.partial(_conv_bn_leaky_kernel, eps=eps)
    return pl.pallas_call(
        kernel,
        out_shape=jax.ShapeDtypeStruct((m, c), jnp.bfloat16),
        grid_spec=pltpu.PrefetchScalarGridSpec(
            num_scalar_prefetch=0,
            grid=(c // tc, k // tk),
            in_specs=[
                pl.BlockSpec((m, tk), lambda j, kk: (0, kk)),
                pl.BlockSpec((tk, tc), lambda j, kk: (kk, j)),
                pl.BlockSpec((1, tc), lambda j, kk: (0, j)),
                pl.BlockSpec((1, tc), lambda j, kk: (0, j)),
            ],
            out_specs=pl.BlockSpec((m, tc), lambda j, kk: (0, j)),
            scratch_shapes=[pltpu.VMEM((m, tc), jnp.float32)],
        ),
        compiler_params=pltpu.CompilerParams(
            dimension_semantics=("parallel", "arbitrary")),
    )(cols, w, gamma, beta)


def fused_conv_bn_leaky_head(cols, w, gamma, beta, w5_full, sel, *, eps=1e-5):
    """Layer 4 (conv + BN + LeakyReLU) fused with layer 5 (conv->1 + sigmoid)."""
    m, k = cols.shape
    c = w.shape[1]
    n = sel.shape[0]
    tk = 1024
    kernel = functools.partial(_conv_bn_leaky_head_kernel, eps=eps)
    return pl.pallas_call(
        kernel,
        out_shape=jax.ShapeDtypeStruct((n, 1), jnp.float32),
        grid_spec=pltpu.PrefetchScalarGridSpec(
            num_scalar_prefetch=0,
            grid=(k // tk,),
            in_specs=[
                pl.BlockSpec((m, tk), lambda kk: (0, kk)),
                pl.BlockSpec((tk, c), lambda kk: (kk, 0)),
                pl.BlockSpec((1, c), lambda kk: (0, 0)),
                pl.BlockSpec((1, c), lambda kk: (0, 0)),
                pl.BlockSpec((m, c), lambda kk: (0, 0)),
                pl.BlockSpec((n, m), lambda kk: (0, 0)),
            ],
            out_specs=pl.BlockSpec((n, 1), lambda kk: (0, 0)),
            scratch_shapes=[pltpu.VMEM((m, c), jnp.float32)],
        ),
        compiler_params=pltpu.CompilerParams(dimension_semantics=("arbitrary",)),
    )(cols, w, gamma, beta, w5_full, sel)


# ------------------------------- JAX glue -----------------------------------

def im2col(x_nhwc, k, stride, pad):
    """Extract conv patches. Returns ((N*OH*OW, k*k*C), OH, OW), order (kh, kw, c)."""
    n, h, w, c = x_nhwc.shape
    xp = jnp.pad(x_nhwc, ((0, 0), (pad, pad), (pad, pad), (0, 0)))
    oh = (h + 2 * pad - k) // stride + 1
    ow = (w + 2 * pad - k) // stride + 1
    cols = []
    for kh in range(k):
        for kw in range(k):
            cols.append(
                xp[:, kh:kh + stride * oh:stride, kw:kw + stride * ow:stride, :]
            )
    patches = jnp.stack(cols, axis=3)           # (N, OH, OW, k*k, C)
    return patches.reshape(n * oh * ow, k * k * c), oh, ow


def init_params(key):
    """Deterministic synthetic weights (conv ~ N(0, 0.02), BN gamma ~ N(1, 0.02))."""
    ks = jax.random.split(key, 8)

    def conv_w(k, cout, cin, pad_k_to=None):
        w = 0.02 * jax.random.normal(k, (cout, cin, 4, 4), jnp.float32)  # torch layout
        # -> (KH, KW, Cin, Cout) -> (KH*KW*Cin, Cout), matches im2col patch order
        w = jnp.transpose(w, (2, 3, 1, 0)).reshape(4 * 4 * cin, cout)
        if pad_k_to is not None:
            w = jnp.pad(w, ((0, pad_k_to - w.shape[0]), (0, 0)))
        return w.astype(jnp.bfloat16)

    # Layer-5 weight kept as f32, laid out (kh*kw, cin) to line up with the
    # row order of the layer-4 output (n*16 + oh*4 + ow rows, channels last).
    w5 = 0.02 * jax.random.normal(ks[4], (1, 512, 4, 4), jnp.float32)
    w5_mat = jnp.transpose(w5[0], (1, 2, 0)).reshape(16, 512)

    p = {
        "w1": conv_w(ks[0], 64, 3, pad_k_to=128),   # K padded 48 -> 128
        "w2": conv_w(ks[1], 128, 64),
        "w3": conv_w(ks[2], 256, 128),
        "w4": conv_w(ks[3], 512, 256),
        "w5": w5_mat,
        "g2": 1.0 + 0.02 * jax.random.normal(ks[5], (1, 128), jnp.float32),
        "b2": jnp.zeros((1, 128), jnp.float32),
        "g3": 1.0 + 0.02 * jax.random.normal(ks[6], (1, 256), jnp.float32),
        "b3": jnp.zeros((1, 256), jnp.float32),
        "g4": 1.0 + 0.02 * jax.random.normal(ks[7], (1, 512), jnp.float32),
        "b4": jnp.zeros((1, 512), jnp.float32),
    }
    return p


def discriminator_forward(x_nchw, params):
    """Exact semantics of Discriminator.forward (BatchNorm in training mode)."""
    eps = 1e-5
    n = x_nchw.shape[0]
    x = jnp.transpose(x_nchw, (0, 2, 3, 1)).astype(jnp.bfloat16)  # NHWC bf16

    # Layer 1: Conv(3->64, k4 s2 p1, no bias) + LeakyReLU(0.2). K padded to 128.
    cols, oh, ow = im2col(x, 4, 2, 1)
    cols = jnp.pad(cols, ((0, 0), (0, params["w1"].shape[0] - cols.shape[1])))
    y = fused_conv_leaky(cols, params["w1"])
    x = y.reshape(n, oh, ow, 64)

    # Layers 2-3: Conv(k4 s2 p1) + BN(batch stats) + LeakyReLU, one fused kernel each.
    for idx, cout in ((2, 128), (3, 256)):
        cols, oh, ow = im2col(x, 4, 2, 1)
        y = fused_conv_bn_leaky(cols, params[f"w{idx}"],
                                params[f"g{idx}"], params[f"b{idx}"], eps=eps)
        x = y.reshape(n, oh, ow, cout)

    # Layer 4: Conv(256->512, k4 s2 p1) + BN + LeakyReLU, fused with
    # Layer 5: Conv(512->1, k4 s1 p0) + Sigmoid, then view(-1, 1).
    cols, oh, ow = im2col(x, 4, 2, 1)
    rows_per_sample = oh * ow                                   # 16 (4x4 map)
    w5_full = jnp.tile(params["w5"], (n, 1))                    # (N*16, 512) f32
    sel = jnp.repeat(jnp.eye(n, dtype=jnp.float32),
                     rows_per_sample, axis=1)                   # (N, N*16)
    out = fused_conv_bn_leaky_head(cols, params["w4"],
                                   params["g4"], params["b4"],
                                   w5_full, sel, eps=eps)
    return out                                                  # (N, 1)


if __name__ == "__main__":
    key = jax.random.PRNGKey(0)
    k_x, k_p = jax.random.split(key)
    # DCGAN discriminator geometry requires 64x64 spatial input (64->32->16->8->4->1).
    x = jax.random.normal(k_x, (2, 3, 64, 64), jnp.float32)
    params = init_params(k_p)

    fwd = jax.jit(discriminator_forward)
    out = jax.block_until_ready(fwd(x, params))
    assert out.shape == (2, 1), out.shape
    assert bool(jnp.all(jnp.isfinite(out)))
    print("KERNEL_OK")
</pallas_src>

<mosaic_0001>
module attributes {stable_mosaic.version = 11 : i64} {
  func.func @_conv_leaky_kernel(%arg0: i32, %arg1: memref<512x128xbf16, #tpu.memory_space<vmem>>, %arg2: memref<128x64xbf16, #tpu.memory_space<vmem>>, %arg3: memref<512x64xbf16, #tpu.memory_space<vmem>>) attributes {dimension_semantics = [#tpu.dimension_semantics<parallel>], iteration_bounds = array<i64: 4>, scalar_prefetch = 0 : i64, scratch_operands = 0 : i64, tpu.core_type = #tpu.core_type<tc>, window_params = [{transform_indices = @transform_0, window_bounds = array<i64: 512, 128>}, {pipeline_mode = #tpu.pipeline_mode<synchronous>, transform_indices = @transform_1, window_bounds = array<i64: 128, 64>}, {transform_indices = @transform_2, window_bounds = array<i64: 512, 64>}]} {
    %c0 = arith.constant 0 : index
    %c0_0 = arith.constant 0 : index
    %0 = vector.load %arg1[%c0, %c0_0] : memref<512x128xbf16, #tpu.memory_space<vmem>>, vector<512x128xbf16>
    %c0_1 = arith.constant 0 : index
    %c0_2 = arith.constant 0 : index
    %1 = vector.load %arg2[%c0_1, %c0_2] : memref<128x64xbf16, #tpu.memory_space<vmem>>, vector<128x64xbf16>
    %cst = arith.constant dense<0.000000e+00> : vector<512x64xf32>
    %2 = tpu.matmul %0, %1, %cst {dimension_numbers = #tpu.dot_dimension_numbers<[1], [0], [0], [1], [0, 0, 1, 1], [], []>} : vector<512x128xbf16>, vector<128x64xbf16>, vector<512x64xf32> -> vector<512x64xf32>
    %cst_3 = arith.constant 0.000000e+00 : f32
    %3 = vector.broadcast %cst_3 : f32 to vector<512x64xf32>
    %4 = arith.cmpf ogt, %2, %3 : vector<512x64xf32>
    %cst_4 = arith.constant 2.000000e-01 : f32
    %5 = vector.broadcast %cst_4 : f32 to vector<512x64xf32>
    %6 = arith.mulf %5, %2 : vector<512x64xf32>
    %7 = arith.select %4, %2, %6 : vector<512x64xi1>, vector<512x64xf32>
    %8 = arith.truncf %7 : vector<512x64xf32> to vector<512x64xbf16>
    %c0_5 = arith.constant 0 : index
    %c0_6 = arith.constant 0 : index
    %9 = vector.load %arg3[%c0_5, %c0_6] : memref<512x64xbf16, #tpu.memory_space<vmem>>, vector<512x64xbf16>
    tpu.vector_store %arg3[%c0_5, %c0_6], %8 {strides = array<i32>} : memref<512x64xbf16, #tpu.memory_space<vmem>>, vector<512x64xbf16>,
    return
  }
  func.func @transform_0(%arg0: i32) -> (i32, i32) {
    %c0_i32 = arith.constant 0 : i32
    %c0_i32_0 = arith.constant 0 : i32
    return %arg0, %c0_i32 : i32, i32
  }
  func.func @transform_1(%arg0: i32) -> (i32, i32) {
    %c0_i32 = arith.constant 0 : i32
    %c0_i32_0 = arith.constant 0 : i32
    %c0_i32_1 = arith.constant 0 : i32
    return %c0_i32, %c0_i32_0 : i32, i32
  }
  func.func @transform_2(%arg0: i32) -> (i32, i32) {
    %c0_i32 = arith.constant 0 : i32
    %c0_i32_0 = arith.constant 0 : i32
    return %arg0, %c0_i32 : i32, i32
  }
}

module attributes {stable_mosaic.version = 11 : i64} {
  func.func @_conv_bn_leaky_kernel(%arg0: i32, %arg1: i32, %arg2: memref<512x512xbf16, #tpu.memory_space<vmem>>, %arg3: memref<512x128xbf16, #tpu.memory_space<vmem>>, %arg4: memref<1x128xf32, #tpu.memory_space<vmem>>, %arg5: memref<1x128xf32, #tpu.memory_space<vmem>>, %arg6: memref<512x128xbf16, #tpu.memory_space<vmem>>, %arg7: memref<512x128xf32, #tpu.memory_space<vmem>>) attributes {dimension_semantics = [#tpu.dimension_semantics<parallel>, #tpu.dimension_semantics<arbitrary>], iteration_bounds = array<i64: 1, 2>, scalar_prefetch = 0 : i64, scratch_operands = 1 : i64, tpu.core_type = #tpu.core_type<tc>, window_params = [{transform_indices = @transform_0, window_bounds = array<i64: 512, 512>}, {transform_indices = @transform_1, window_bounds = array<i64: 512, 128>}, {transform_indices = @transform_2, window_bounds = array<i64: 1, 128>}, {transform_indices = @transform_3, window_bounds = array<i64: 1, 128>}, {transform_indices = @transform_4, window_bounds = array<i64: 512, 128>}]} {
    %c0_i32 = arith.constant 0 : i32
    %0 = arith.cmpi eq, %arg1, %c0_i32 : i32
    %1 = arith.extui %0 : i1 to i32
    %c0_i32_0 = arith.constant 0 : i32
    %2 = arith.cmpi ne, %1, %c0_i32_0 : i32
    scf.if %2 {
      %cst_9 = arith.constant 0.000000e+00 : f32
      %12 = vector.broadcast %cst_9 : f32 to vector<512x128xf32>
      %c0_10 = arith.constant 0 : index
      %c0_11 = arith.constant 0 : index
      %13 = vector.load %arg7[%c0_10, %c0_11] : memref<512x128xf32, #tpu.memory_space<vmem>>, vector<512x128xf32>
      tpu.vector_store %arg7[%c0_10, %c0_11], %12 {strides = array<i32>} : memref<512x128xf32, #tpu.memory_space<vmem>>, vector<512x128xf32>,
    } else {
    }
    %c0 = arith.constant 0 : index
    %c0_1 = arith.constant 0 : index
    %3 = vector.load %arg7[%c0, %c0_1] : memref<512x128xf32, #tpu.memory_space<vmem>>, vector<512x128xf32>
    %c0_2 = arith.constant 0 : index
    %c0_3 = arith.constant 0 : index
    %4 = vector.load %arg2[%c0_2, %c0_3] : memref<512x512xbf16, #tpu.memory_space<vmem>>, vector<512x512xbf16>
    %c0_4 = arith.constant 0 : index
    %c0_5 = arith.constant 0 : index
    %5 = vector.load %arg3[%c0_4, %c0_5] : memref<512x128xbf16, #tpu.memory_space<vmem>>, vector<512x128xbf16>
    %cst = arith.constant dense<0.000000e+00> : vector<512x128xf32>
    %6 = tpu.matmul %4, %5, %cst {dimension_numbers = #tpu.dot_dimension_numbers<[1], [0], [0], [1], [0, 0, 1, 1], [], []>} : vector<512x512xbf16>, vector<512x128xbf16>, vector<512x128xf32> -> vector<512x128xf32>
    %7 = arith.addf %3, %6 : vector<512x128xf32>
    %c0_6 = arith.constant 0 : index
    %c0_7 = arith.constant 0 : index
    %8 = vector.load %arg7[%c0_6, %c0_7] : memref<512x128xf32, #tpu.memory_space<vmem>>, vector<512x128xf32>
    tpu.vector_store %arg7[%c0_6, %c0_7], %7 {strides = array<i32>} : memref<512x128xf32, #tpu.memory_space<vmem>>, vector<512x128xf32>,
    %c1_i32 = arith.constant 1 : i32
    %9 = arith.cmpi eq, %arg1, %c1_i32 : i32
    %10 = arith.extui %9 : i1 to i32
    %c0_i32_8 = arith.constant 0 : i32
    %11 = arith.cmpi ne, %10, %c0_i32_8 : i32
    scf.if %11 {
      %c0_9 = arith.constant 0 : index
      %c0_10 = arith.constant 0 : index
      %12 = vector.load %arg7[%c0_9, %c0_10] : memref<512x128xf32, #tpu.memory_space<vmem>>, vector<512x128xf32>
      %cst_11 = arith.constant dense<0.000000e+00> : vector<128xf32>
      %13 = vector.multi_reduction <add>, %12, %cst_11 [0] : vector<512x128xf32> to vector<128xf32>
      %14 = vector.shape_cast %13 : vector<128xf32> to vector<1x128xf32>
      %cst_12 = arith.constant 5.120000e+02 : f32
      %15 = vector.broadcast %cst_12 : f32 to vector<1x128xf32>
      %16 = arith.divf %14, %15 : vector<1x128xf32>
      %17 = vector.broadcast %16 : vector<1x128xf32> to vector<512x128xf32>
      %18 = arith.subf %12, %17 : vector<512x128xf32>
      %19 = arith.mulf %18, %18 : vector<512x128xf32>
      %cst_13 = arith.constant dense<0.000000e+00> : vector<128xf32>
      %20 = vector.multi_reduction <add>, %19, %cst_13 [0] : vector<512x128xf32> to vector<128xf32>
      %21 = vector.shape_cast %20 : vector<128xf32> to vector<1x128xf32>
      %cst_14 = arith.constant 5.120000e+02 : f32
      %22 = vector.broadcast %cst_14 : f32 to vector<1x128xf32>
      %23 = arith.divf %21, %22 : vector<1x128xf32>
      %c0_15 = arith.constant 0 : index
      %c0_16 = arith.constant 0 : index
      %24 = vector.load %arg4[%c0_15, %c0_16] : memref<1x128xf32, #tpu.memory_space<vmem>>, vector<1x128xf32>
      %cst_17 = arith.constant 9.99999974E-6 : f32
      %25 = vector.broadcast %cst_17 : f32 to vector<1x128xf32>
      %26 = arith.addf %23, %25 : vector<1x128xf32>
      %27 = math.rsqrt %26 : vector<1x128xf32>
      %28 = arith.mulf %24, %27 : vector<1x128xf32>
      %c0_18 = arith.constant 0 : index
      %c0_19 = arith.constant 0 : index
      %29 = vector.load %arg5[%c0_18, %c0_19] : memref<1x128xf32, #tpu.memory_space<vmem>>, vector<1x128xf32>
      %30 = arith.mulf %16, %28 : vector<1x128xf32>
      %31 = arith.subf %29, %30 : vector<1x128xf32>
      %32 = vector.broadcast %28 : vector<1x128xf32> to vector<512x128xf32>
      %33 = arith.mulf %12, %32 : vector<512x128xf32>
      %34 = vector.broadcast %31 : vector<1x128xf32> to vector<512x128xf32>
      %35 = arith.addf %33, %34 : vector<512x128xf32>
      %cst_20 = arith.constant 0.000000e+00 : f32
      %36 = vector.broadcast %cst_20 : f32 to vector<512x128xf32>
      %37 = arith.cmpf ogt, %35, %36 : vector<512x128xf32>
      %cst_21 = arith.constant 2.000000e-01 : f32
      %38 = vector.broadcast %cst_21 : f32 to vector<512x128xf32>
      %39 = arith.mulf %38, %35 : vector<512x128xf32>
      %40 = arith.select %37, %35, %39 : vector<512x128xi1>, vector<512x128xf32>
      %41 = arith.truncf %40 : vector<512x128xf32> to vector<512x128xbf16>
      %c0_22 = arith.constant 0 : index
      %c0_23 = arith.constant 0 : index
      %42 = vector.load %arg6[%c0_22, %c0_23] : memref<512x128xbf16, #tpu.memory_space<vmem>>, vector<512x128xbf16>
      tpu.vector_store %arg6[%c0_22, %c0_23], %41 {strides = array<i32>} : memref<512x128xbf16, #tpu.memory_space<vmem>>, vector<512x128xbf16>,
    } else {
    }
    return
  }
  func.func @transform_0(%arg0: i32, %arg1: i32) -> (i32, i32) {
    %c0_i32 = arith.constant 0 : i32
    %c0_i32_0 = arith.constant 0 : i32
    return %c0_i32, %arg1 : i32, i32
  }
  func.func @transform_1(%arg0: i32, %arg1: i32) -> (i32, i32) {
    %c0_i32 = arith.constant 0 : i32
    return %arg1, %arg0 : i32, i32
  }
  func.func @transform_2(%arg0: i32, %arg1: i32) -> (i32, i32) {
    %c0_i32 = arith.constant 0 : i32
    %c0_i32_0 = arith.constant 0 : i32
    return %c0_i32, %arg0 : i32, i32
  }
  func.func @transform_3(%arg0: i32, %arg1: i32) -> (i32, i32) {
    %c0_i32 = arith.constant 0 : i32
    %c0_i32_0 = arith.constant 0 : i32
    return %c0_i32, %arg0 : i32, i32
  }
  func.func @transform_4(%arg0: i32, %arg1: i32) -> (i32, i32) {
    %c0_i32 = arith.constant 0 : i32
    %c0_i32_0 = arith.constant 0 : i32
    return %c0_i32, %arg0 : i32, i32
  }
}

module attributes {stable_mosaic.version = 11 : i64} {
  func.func @_conv_bn_leaky_kernel(%arg0: i32, %arg1: i32, %arg2: memref<128x1024xbf16, #tpu.memory_space<vmem>>, %arg3: memref<1024x128xbf16, #tpu.memory_space<vmem>>, %arg4: memref<1x128xf32, #tpu.memory_space<vmem>>, %arg5: memref<1x128xf32, #tpu.memory_space<vmem>>, %arg6: memref<128x128xbf16, #tpu.memory_space<vmem>>, %arg7: memref<128x128xf32, #tpu.memory_space<vmem>>) attributes {dimension_semantics = [#tpu.dimension_semantics<parallel>, #tpu.dimension_semantics<arbitrary>], iteration_bounds = array<i64: 2, 2>, scalar_prefetch = 0 : i64, scratch_operands = 1 : i64, tpu.core_type = #tpu.core_type<tc>, window_params = [{transform_indices = @transform_0, window_bounds = array<i64: 128, 1024>}, {transform_indices = @transform_1, window_bounds = array<i64: 1024, 128>}, {transform_indices = @transform_2, window_bounds = array<i64: 1, 128>}, {transform_indices = @transform_3, window_bounds = array<i64: 1, 128>}, {transform_indices = @transform_4, window_bounds = array<i64: 128, 128>}]} {
    %c0_i32 = arith.constant 0 : i32
    %0 = arith.cmpi eq, %arg1, %c0_i32 : i32
    %1 = arith.extui %0 : i1 to i32
    %c0_i32_0 = arith.constant 0 : i32
    %2 = arith.cmpi ne, %1, %c0_i32_0 : i32
    scf.if %2 {
      %cst_9 = arith.constant 0.000000e+00 : f32
      %12 = vector.broadcast %cst_9 : f32 to vector<128x128xf32>
      %c0_10 = arith.constant 0 : index
      %c0_11 = arith.constant 0 : index
      %13 = vector.load %arg7[%c0_10, %c0_11] : memref<128x128xf32, #tpu.memory_space<vmem>>, vector<128x128xf32>
      tpu.vector_store %arg7[%c0_10, %c0_11], %12 {strides = array<i32>} : memref<128x128xf32, #tpu.memory_space<vmem>>, vector<128x128xf32>,
    } else {
    }
    %c0 = arith.constant 0 : index
    %c0_1 = arith.constant 0 : index
    %3 = vector.load %arg7[%c0, %c0_1] : memref<128x128xf32, #tpu.memory_space<vmem>>, vector<128x128xf32>
    %c0_2 = arith.constant 0 : index
    %c0_3 = arith.constant 0 : index
    %4 = vector.load %arg2[%c0_2, %c0_3] : memref<128x1024xbf16, #tpu.memory_space<vmem>>, vector<128x1024xbf16>
    %c0_4 = arith.constant 0 : index
    %c0_5 = arith.constant 0 : index
    %5 = vector.load %arg3[%c0_4, %c0_5] : memref<1024x128xbf16, #tpu.memory_space<vmem>>, vector<1024x128xbf16>
    %cst = arith.constant dense<0.000000e+00> : vector<128x128xf32>
    %6 = tpu.matmul %4, %5, %cst {dimension_numbers = #tpu.dot_dimension_numbers<[1], [0], [0], [1], [0, 0, 1, 1], [], []>} : vector<128x1024xbf16>, vector<1024x128xbf16>, vector<128x128xf32> -> vector<128x128xf32>
    %7 = arith.addf %3, %6 : vector<128x128xf32>
    %c0_6 = arith.constant 0 : index
    %c0_7 = arith.constant 0 : index
    %8 = vector.load %arg7[%c0_6, %c0_7] : memref<128x128xf32, #tpu.memory_space<vmem>>, vector<128x128xf32>
    tpu.vector_store %arg7[%c0_6, %c0_7], %7 {strides = array<i32>} : memref<128x128xf32, #tpu.memory_space<vmem>>, vector<128x128xf32>,
    %c1_i32 = arith.constant 1 : i32
    %9 = arith.cmpi eq, %arg1, %c1_i32 : i32
    %10 = arith.extui %9 : i1 to i32
    %c0_i32_8 = arith.constant 0 : i32
    %11 = arith.cmpi ne, %10, %c0_i32_8 : i32
    scf.if %11 {
      %c0_9 = arith.constant 0 : index
      %c0_10 = arith.constant 0 : index
      %12 = vector.load %arg7[%c0_9, %c0_10] : memref<128x128xf32, #tpu.memory_space<vmem>>, vector<128x128xf32>
      %cst_11 = arith.constant dense<0.000000e+00> : vector<128xf32>
      %13 = vector.multi_reduction <add>, %12, %cst_11 [0] : vector<128x128xf32> to vector<128xf32>
      %14 = vector.shape_cast %13 : vector<128xf32> to vector<1x128xf32>
      %cst_12 = arith.constant 1.280000e+02 : f32
      %15 = vector.broadcast %cst_12 : f32 to vector<1x128xf32>
      %16 = arith.divf %14, %15 : vector<1x128xf32>
      %17 = vector.broadcast %16 : vector<1x128xf32> to vector<128x128xf32>
      %18 = arith.subf %12, %17 : vector<128x128xf32>
      %19 = arith.mulf %18, %18 : vector<128x128xf32>
      %cst_13 = arith.constant dense<0.000000e+00> : vector<128xf32>
      %20 = vector.multi_reduction <add>, %19, %cst_13 [0] : vector<128x128xf32> to vector<128xf32>
      %21 = vector.shape_cast %20 : vector<128xf32> to vector<1x128xf32>
      %cst_14 = arith.constant 1.280000e+02 : f32
      %22 = vector.broadcast %cst_14 : f32 to vector<1x128xf32>
      %23 = arith.divf %21, %22 : vector<1x128xf32>
      %c0_15 = arith.constant 0 : index
      %c0_16 = arith.constant 0 : index
      %24 = vector.load %arg4[%c0_15, %c0_16] : memref<1x128xf32, #tpu.memory_space<vmem>>, vector<1x128xf32>
      %cst_17 = arith.constant 9.99999974E-6 : f32
      %25 = vector.broadcast %cst_17 : f32 to vector<1x128xf32>
      %26 = arith.addf %23, %25 : vector<1x128xf32>
      %27 = math.rsqrt %26 : vector<1x128xf32>
      %28 = arith.mulf %24, %27 : vector<1x128xf32>
      %c0_18 = arith.constant 0 : index
      %c0_19 = arith.constant 0 : index
      %29 = vector.load %arg5[%c0_18, %c0_19] : memref<1x128xf32, #tpu.memory_space<vmem>>, vector<1x128xf32>
      %30 = arith.mulf %16, %28 : vector<1x128xf32>
      %31 = arith.subf %29, %30 : vector<1x128xf32>
      %32 = vector.broadcast %28 : vector<1x128xf32> to vector<128x128xf32>
      %33 = arith.mulf %12, %32 : vector<128x128xf32>
      %34 = vector.broadcast %31 : vector<1x128xf32> to vector<128x128xf32>
      %35 = arith.addf %33, %34 : vector<128x128xf32>
      %cst_20 = arith.constant 0.000000e+00 : f32
      %36 = vector.broadcast %cst_20 : f32 to vector<128x128xf32>
      %37 = arith.cmpf ogt, %35, %36 : vector<128x128xf32>
      %cst_21 = arith.constant 2.000000e-01 : f32
      %38 = vector.broadcast %cst_21 : f32 to vector<128x128xf32>
      %39 = arith.mulf %38, %35 : vector<128x128xf32>
      %40 = arith.select %37, %35, %39 : vector<128x128xi1>, vector<128x128xf32>
      %41 = arith.truncf %40 : vector<128x128xf32> to vector<128x128xbf16>
      %c0_22 = arith.constant 0 : index
      %c0_23 = arith.constant 0 : index
      %42 = vector.load %arg6[%c0_22, %c0_23] : memref<128x128xbf16, #tpu.memory_space<vmem>>, vector<128x128xbf16>
      tpu.vector_store %arg6[%c0_22, %c0_23], %41 {strides = array<i32>} : memref<128x128xbf16, #tpu.memory_space<vmem>>, vector<128x128xbf16>,
    } else {
    }
    return
  }
  func.func @transform_0(%arg0: i32, %arg1: i32) -> (i32, i32) {
    %c0_i32 = arith.constant 0 : i32
    %c0_i32_0 = arith.constant 0 : i32
    return %c0_i32, %arg1 : i32, i32
  }
  func.func @transform_1(%arg0: i32, %arg1: i32) -> (i32, i32) {
    %c0_i32 = arith.constant 0 : i32
    return %arg1, %arg0 : i32, i32
  }
  func.func @transform_2(%arg0: i32, %arg1: i32) -> (i32, i32) {
    %c0_i32 = arith.constant 0 : i32
    %c0_i32_0 = arith.constant 0 : i32
    return %c0_i32, %arg0 : i32, i32
  }
  func.func @transform_3(%arg0: i32, %arg1: i32) -> (i32, i32) {
    %c0_i32 = arith.constant 0 : i32
    %c0_i32_0 = arith.constant 0 : i32
    return %c0_i32, %arg0 : i32, i32
  }
  func.func @transform_4(%arg0: i32, %arg1: i32) -> (i32, i32) {
    %c0_i32 = arith.constant 0 : i32
    %c0_i32_0 = arith.constant 0 : i32
    return %c0_i32, %arg0 : i32, i32
  }
}

module attributes {stable_mosaic.version = 11 : i64} {
  func.func @_conv_bn_leaky_head_kernel(%arg0: i32, %arg1: memref<32x1024xbf16, #tpu.memory_space<vmem>>, %arg2: memref<1024x512xbf16, #tpu.memory_space<vmem>>, %arg3: memref<1x512xf32, #tpu.memory_space<vmem>>, %arg4: memref<1x512xf32, #tpu.memory_space<vmem>>, %arg5: memref<32x512xf32, #tpu.memory_space<vmem>>, %arg6: memref<2x32xf32, #tpu.memory_space<vmem>>, %arg7: memref<2x1xf32, #tpu.memory_space<vmem>>, %arg8: memref<32x512xf32, #tpu.memory_space<vmem>>) attributes {dimension_semantics = [#tpu.dimension_semantics<arbitrary>], iteration_bounds = array<i64: 4>, scalar_prefetch = 0 : i64, scratch_operands = 1 : i64, tpu.core_type = #tpu.core_type<tc>, window_params = [{transform_indices = @transform_0, window_bounds = array<i64: 32, 1024>}, {transform_indices = @transform_1, window_bounds = array<i64: 1024, 512>}, {pipeline_mode = #tpu.pipeline_mode<synchronous>, transform_indices = @transform_2, window_bounds = array<i64: 1, 512>}, {pipeline_mode = #tpu.pipeline_mode<synchronous>, transform_indices = @transform_3, window_bounds = array<i64: 1, 512>}, {pipeline_mode = #tpu.pipeline_mode<synchronous>, transform_indices = @transform_4, window_bounds = array<i64: 32, 512>}, {pipeline_mode = #tpu.pipeline_mode<synchronous>, transform_indices = @transform_5, window_bounds = array<i64: 2, 32>}, {pipeline_mode = #tpu.pipeline_mode<synchronous>, transform_indices = @transform_6, window_bounds = array<i64: 2, 1>}]} {
    %c0_i32 = arith.constant 0 : i32
    %0 = arith.cmpi eq, %arg0, %c0_i32 : i32
    %1 = arith.extui %0 : i1 to i32
    %c0_i32_0 = arith.constant 0 : i32
    %2 = arith.cmpi ne, %1, %c0_i32_0 : i32
    scf.if %2 {
      %cst_9 = arith.constant 0.000000e+00 : f32
      %12 = vector.broadcast %cst_9 : f32 to vector<32x512xf32>
      %c0_10 = arith.constant 0 : index
      %c0_11 = arith.constant 0 : index
      %13 = vector.load %arg8[%c0_10, %c0_11] : memref<32x512xf32, #tpu.memory_space<vmem>>, vector<32x512xf32>
      tpu.vector_store %arg8[%c0_10, %c0_11], %12 {strides = array<i32>} : memref<32x512xf32, #tpu.memory_space<vmem>>, vector<32x512xf32>,
    } else {
    }
    %c0 = arith.constant 0 : index
    %c0_1 = arith.constant 0 : index
    %3 = vector.load %arg8[%c0, %c0_1] : memref<32x512xf32, #tpu.memory_space<vmem>>, vector<32x512xf32>
    %c0_2 = arith.constant 0 : index
    %c0_3 = arith.constant 0 : index
    %4 = vector.load %arg1[%c0_2, %c0_3] : memref<32x1024xbf16, #tpu.memory_space<vmem>>, vector<32x1024xbf16>
    %c0_4 = arith.constant 0 : index
    %c0_5 = arith.constant 0 : index
    %5 = vector.load %arg2[%c0_4, %c0_5] : memref<1024x512xbf16, #tpu.memory_space<vmem>>, vector<1024x512xbf16>
    %cst = arith.constant dense<0.000000e+00> : vector<32x512xf32>
    %6 = tpu.matmul %4, %5, %cst {dimension_numbers = #tpu.dot_dimension_numbers<[1], [0], [0], [1], [0, 0, 1, 1], [], []>} : vector<32x1024xbf16>, vector<1024x512xbf16>, vector<32x512xf32> -> vector<32x512xf32>
    %7 = arith.addf %3, %6 : vector<32x512xf32>
    %c0_6 = arith.constant 0 : index
    %c0_7 = arith.constant 0 : index
    %8 = vector.load %arg8[%c0_6, %c0_7] : memref<32x512xf32, #tpu.memory_space<vmem>>, vector<32x512xf32>
    tpu.vector_store %arg8[%c0_6, %c0_7], %7 {strides = array<i32>} : memref<32x512xf32, #tpu.memory_space<vmem>>, vector<32x512xf32>,
    %c3_i32 = arith.constant 3 : i32
    %9 = arith.cmpi eq, %arg0, %c3_i32 : i32
    %10 = arith.extui %9 : i1 to i32
    %c0_i32_8 = arith.constant 0 : i32
    %11 = arith.cmpi ne, %10, %c0_i32_8 : i32
    scf.if %11 {
      %c0_9 = arith.constant 0 : index
      %c0_10 = arith.constant 0 : index
      %12 = vector.load %arg8[%c0_9, %c0_10] : memref<32x512xf32, #tpu.memory_space<vmem>>, vector<32x512xf32>
      %cst_11 = arith.constant dense<0.000000e+00> : vector<512xf32>
      %13 = vector.multi_reduction <add>, %12, %cst_11 [0] : vector<32x512xf32> to vector<512xf32>
      %14 = vector.shape_cast %13 : vector<512xf32> to vector<1x512xf32>
      %cst_12 = arith.constant 3.200000e+01 : f32
      %15 = vector.broadcast %cst_12 : f32 to vector<1x512xf32>
      %16 = arith.divf %14, %15 : vector<1x512xf32>
      %17 = vector.broadcast %16 : vector<1x512xf32> to vector<32x512xf32>
      %18 = arith.subf %12, %17 : vector<32x512xf32>
      %19 = arith.mulf %18, %18 : vector<32x512xf32>
      %cst_13 = arith.constant dense<0.000000e+00> : vector<512xf32>
      %20 = vector.multi_reduction <add>, %19, %cst_13 [0] : vector<32x512xf32> to vector<512xf32>
      %21 = vector.shape_cast %20 : vector<512xf32> to vector<1x512xf32>
      %cst_14 = arith.constant 3.200000e+01 : f32
      %22 = vector.broadcast %cst_14 : f32 to vector<1x512xf32>
      %23 = arith.divf %21, %22 : vector<1x512xf32>
      %c0_15 = arith.constant 0 : index
      %c0_16 = arith.constant 0 : index
      %24 = vector.load %arg3[%c0_15, %c0_16] : memref<1x512xf32, #tpu.memory_space<vmem>>, vector<1x512xf32>
      %cst_17 = arith.constant 9.99999974E-6 : f32
      %25 = vector.broadcast %cst_17 : f32 to vector<1x512xf32>
      %26 = arith.addf %23, %25 : vector<1x512xf32>
      %27 = math.rsqrt %26 : vector<1x512xf32>
      %28 = arith.mulf %24, %27 : vector<1x512xf32>
      %c0_18 = arith.constant 0 : index
      %c0_19 = arith.constant 0 : index
      %29 = vector.load %arg4[%c0_18, %c0_19] : memref<1x512xf32, #tpu.memory_space<vmem>>, vector<1x512xf32>
      %30 = arith.mulf %16, %28 : vector<1x512xf32>
      %31 = arith.subf %29, %30 : vector<1x512xf32>
      %32 = vector.broadcast %28 : vector<1x512xf32> to vector<32x512xf32>
      %33 = arith.mulf %12, %32 : vector<32x512xf32>
      %34 = vector.broadcast %31 : vector<1x512xf32> to vector<32x512xf32>
      %35 = arith.addf %33, %34 : vector<32x512xf32>
      %cst_20 = arith.constant 0.000000e+00 : f32
      %36 = vector.broadcast %cst_20 : f32 to vector<32x512xf32>
      %37 = arith.cmpf ogt, %35, %36 : vector<32x512xf32>
      %cst_21 = arith.constant 2.000000e-01 : f32
      %38 = vector.broadcast %cst_21 : f32 to vector<32x512xf32>
      %39 = arith.mulf %38, %35 : vector<32x512xf32>
      %40 = arith.select %37, %35, %39 : vector<32x512xi1>, vector<32x512xf32>
      %c0_22 = arith.constant 0 : index
      %c0_23 = arith.constant 0 : index
      %41 = vector.load %arg5[%c0_22, %c0_23] : memref<32x512xf32, #tpu.memory_space<vmem>>, vector<32x512xf32>
      %42 = arith.mulf %40, %41 : vector<32x512xf32>
      %c0_24 = arith.constant 0 : index
      %c0_25 = arith.constant 0 : index
      %43 = vector.load %arg6[%c0_24, %c0_25] : memref<2x32xf32, #tpu.memory_space<vmem>>, vector<2x32xf32>
      %cst_26 = arith.constant dense<0.000000e+00> : vector<2x512xf32>
      %44 = tpu.matmul %43, %42, %cst_26 {dimension_numbers = #tpu.dot_dimension_numbers<[1], [0], [0], [1], [0, 0, 1, 1], [], []>} : vector<2x32xf32>, vector<32x512xf32>, vector<2x512xf32> -> vector<2x512xf32>
      %cst_27 = arith.constant dense<0.000000e+00> : vector<2xf32>
      %45 = vector.multi_reduction <add>, %44, %cst_27 [1] : vector<2x512xf32> to vector<2xf32>
      %46 = vector.shape_cast %45 : vector<2xf32> to vector<2x1xf32>
      %47 = arith.negf %46 : vector<2x1xf32>
      %48 = math.exp %47 : vector<2x1xf32>
      %cst_28 = arith.constant 1.000000e+00 : f32
      %49 = vector.broadcast %cst_28 : f32 to vector<2x1xf32>
      %50 = arith.addf %49, %48 : vector<2x1xf32>
      %51 = arith.divf %49, %50 : vector<2x1xf32>
      %c0_29 = arith.constant 0 : index
      %c0_30 = arith.constant 0 : index
      %52 = vector.load %arg7[%c0_29, %c0_30] : memref<2x1xf32, #tpu.memory_space<vmem>>, vector<2x1xf32>
      tpu.vector_store %arg7[%c0_29, %c0_30], %51 {strides = array<i32>} : memref<2x1xf32, #tpu.memory_space<vmem>>, vector<2x1xf32>,
    } else {
    }
    return
  }
  func.func @transform_0(%arg0: i32) -> (i32, i32) {
    %c0_i32 = arith.constant 0 : i32
    %c0_i32_0 = arith.constant 0 : i32
    return %c0_i32, %arg0 : i32, i32
  }
  func.func @transform_1(%arg0: i32) -> (i32, i32) {
    %c0_i32 = arith.constant 0 : i32
    %c0_i32_0 = arith.constant 0 : i32
    return %arg0, %c0_i32 : i32, i32
  }
  func.func @transform_2(%arg0: i32) -> (i32, i32) {
    %c0_i32 = arith.constant 0 : i32
    %c0_i32_0 = arith.constant 0 : i32
    %c0_i32_1 = arith.constant 0 : i32
    return %c0_i32, %c0_i32_0 : i32, i32
  }
  func.func @transform_3(%arg0: i32) -> (i32, i32) {
    %c0_i32 = arith.constant 0 : i32
    %c0_i32_0 = arith.constant 0 : i32
    %c0_i32_1 = arith.constant 0 : i32
    return %c0_i32, %c0_i32_0 : i32, i32
  }
  func.func @transform_4(%arg0: i32) -> (i32, i32) {
    %c0_i32 = arith.constant 0 : i32
    %c0_i32_0 = arith.constant 0 : i32
    %c0_i32_1 = arith.constant 0 : i32
    return %c0_i32, %c0_i32_0 : i32, i32
  }
  func.func @transform_5(%arg0: i32) -> (i32, i32) {
    %c0_i32 = arith.constant 0 : i32
    %c0_i32_0 = arith.constant 0 : i32
    %c0_i32_1 = arith.constant 0 : i32
    return %c0_i32, %c0_i32_0 : i32, i32
  }
  func.func @transform_6(%arg0: i32) -> (i32, i32) {
    %c0_i32 = arith.constant 0 : i32
    %c0_i32_0 = arith.constant 0 : i32
    %c0_i32_1 = arith.constant 0 : i32
    return %c0_i32, %c0_i32_0 : i32, i32
  }
}

</mosaic_0001>

<llo_original>
// kernel: discriminator_forward.4
$region0: #{discriminator_forward.4}
  #allocation0 [shape = 'u32[]', space=smem, size = 0x4, offset = 0x4, fixed_abs, tag = 'smem constant byte address 0x4 - core index']
  #allocation1 [shape = 'u32[144,128]{1,0:T(1,128)}', space=vmem, size = 0x12000, scoped, tag = 'internal scratch']
  %s0 = inlined_call_operand.vmem [shape: bf16[2048,128], index: 0, kind: input, shape index: {}]
  %s1 = inlined_call_operand.vmem [shape: bf16[128,64], index: 1, kind: input, shape index: {}]
  %s2 = inlined_call_operand.vmem [shape: bf16[2048,64], index: 2, kind: output, shape index: {}]
  %s3 = sld [smem:[#allocation0]]
  $region41: #{discriminator_forward.4} parent=0
    _
  %s5 = ssub.s32 1, %s3
  %s6 = scalar_select 0, %s5, %s3
  loop: start=0, step=1, limit=6
  $region2: #{discriminator_forward.4} parent=0 // loop_pre_header
    _
  $region3: #{discriminator_forward.4} parent=0 // loop_header
    %s8 = sphi 0, %s12
    %p9 = scmp.ge.s32.totalorder %s8, 6
    %s18 = sphi 0, %s20
    %s21 = sphi 0, %s18
    %s22 = sphi 0, %s21
    %s38 = sphi 0, %s22
    %s42 = sphi 0, %s42
    %s44 = sphi 0, %s42
    %s45 = sphi 0, %s44
    %s59 = sphi 0, %s45
    %s65 = sphi 0, %s67
    %s68 = sphi 0, %s65
    %s69 = sphi 0, %s68
    %s85 = sphi 0, %s69
  $region4: #{discriminator_forward.4} parent=0 // loop_header_branch
    %11 = sbr.rel (%p9) target = $region8
  $region5: #{discriminator_forward.4} parent=0 // loop_body
    %s13 = ssub.s32 %s8, 1
    %s14 = ssub.s32 %s8, 2
    %s15 = sadd.s32 %s8, 1
    %s16 = ssub.s32 %s8, %s15
    %p17 = scmp.eq.s32.totalorder %s16, 0
    %s19 = sadd.s32 %s18, 1
    %s20 = scalar_select %p17, %s18, %s19
    %p23 = pneg %p17
    %p24 = scmp.eq.s32.totalorder %s8, 3
    %p25 = por %p23, %p24
    %p26 = scmp.ne.s32.totalorder %s18, %s21
    %p27 = scmp.eq.s32.totalorder %s8, 0
    %p28 = por %p26, %p27
    %p29 = scmp.ne.s32.totalorder %s18, %s21
    %p30 = scmp.eq.s32.totalorder %s13, 3
    %p31 = por %p29, %p30
    %p32 = scmp.ne.s32.totalorder %s21, %s22
    %p33 = scmp.eq.s32.totalorder %s13, 0
    %p34 = por %p32, %p33
    %p35 = scmp.ne.s32.totalorder %s21, %s22
    %p36 = scmp.eq.s32.totalorder %s14, 3
    %p37 = por %p35, %p36
    %p39 = scmp.ne.s32.totalorder %s22, %s38
    %p40 = scmp.eq.s32.totalorder %s14, 0
    %p41 = por %p39, %p40
    %s43 = sadd.s32 %s42, 1
    %p46 = scmp.eq.s32.totalorder %s8, 3
    %p47 = scmp.ne.s32.totalorder %s42, %s44
    %p48 = scmp.eq.s32.totalorder %s8, 0
    %p49 = por %p47, %p48
    %p50 = scmp.ne.s32.totalorder %s42, %s44
    %p51 = scmp.eq.s32.totalorder %s13, 3
    %p52 = por %p50, %p51
    %p53 = scmp.ne.s32.totalorder %s44, %s45
    %p54 = scmp.eq.s32.totalorder %s13, 0
    %p55 = por %p53, %p54
    %p56 = scmp.ne.s32.totalorder %s44, %s45
    %p57 = scmp.eq.s32.totalorder %s14, 3
    %p58 = por %p56, %p57
    %p60 = scmp.ne.s32.totalorder %s45, %s59
    %p61 = scmp.eq.s32.totalorder %s14, 0
    %p62 = por %p60, %p61
    %s63 = ssub.s32 %s8, %s15
    %p64 = scmp.eq.s32.totalorder %s63, 0
    %s66 = sadd.s32 %s65, 1
    %s67 = scalar_select %p64, %s65, %s66
    %p70 = pneg %p64
    %p71 = scmp.eq.s32.totalorder %s8, 3
    %p72 = por %p70, %p71
    %p73 = scmp.ne.s32.totalorder %s65, %s68
    %p74 = scmp.eq.s32.totalorder %s8, 0
    %p75 = por %p73, %p74
    %p76 = scmp.ne.s32.totalorder %s65, %s68
    %p77 = scmp.eq.s32.totalorder %s13, 3
    %p78 = por %p76, %p77
    %p79 = scmp.ne.s32.totalorder %s68, %s69
    %p80 = scmp.eq.s32.totalorder %s13, 0
    %p81 = por %p79, %p80
    %p82 = scmp.ne.s32.totalorder %s68, %s69
    %p83 = scmp.eq.s32.totalorder %s14, 3
    %p84 = por %p82, %p83
    %p86 = scmp.ne.s32.totalorder %s69, %s85
    %p87 = scmp.eq.s32.totalorder %s14, 0
    %p88 = por %p86, %p87
    %p89 = scmp.le.s32.totalorder 1, %s8
    %p90 = scmp.lt.s32.totalorder %s8, 5
    %p91 = pnand %p89, %p90
    %p92 = pneg %p91
    // Predicated region
    $region9: #{discriminator_forward.4} parent=5 // pred_check
      _
    $region10: #{discriminator_forward.4} parent=5 // pred_check_branch
      %94 = sbr.rel (%p91) target = $region12
    $region11: #{discriminator_forward.4} parent=5 // pred_region
      %s95 = ssub.s32 %s8, 1
      // Predicated region
      $region13: #{discriminator_forward.4} parent=11 // pred_check
        %p96 = pneg %p55
      $region14: #{discriminator_forward.4} parent=11 // pred_check_branch
        %98 = sbr.rel (%p96) target = $region16
      $region15: #{discriminator_forward.4} parent=11 // pred_region
        _
      $region16: #{discriminator_forward.4} parent=11 // pred_fallthru
        _
    $region12: #{discriminator_forward.4} parent=5 // pred_fallthru
      _
    %p99 = scmp.lt.s32.totalorder %s8, 4
    // Predicated region
    $region17: #{discriminator_forward.4} parent=5 // pred_check
      %p100 = pneg %p99
    $region18: #{discriminator_forward.4} parent=5 // pred_check_branch
      %102 = sbr.rel (%p100) target = $region20
    $region19: #{discriminator_forward.4} parent=5 // pred_region
      // Predicated region
      $region21: #{discriminator_forward.4} parent=19 // pred_check
        %p103 = pneg %p28
      $region22: #{discriminator_forward.4} parent=19 // pred_check_branch
        %105 = sbr.rel (%p103) target = $region24
      $region23: #{discriminator_forward.4} parent=19 // pred_region
        %s106 = smul.u32 64, %s8
        %p107 = scmp.lt.s32.totalorder %s106, 255
        %s108 = scalar_select %p107, %s106, 255
        %s109 = smul.addr %s108, 4
        %s110 = scalar_lea.vmem %s0, %s109
        %s111 = smul.u32 64, %s8
      $region24: #{discriminator_forward.4} parent=19 // pred_fallthru
        _
    $region20: #{discriminator_forward.4} parent=5 // pred_fallthru
      _
    %p112 = scmp.le.s32.totalorder 1, %s8
    %p113 = scmp.lt.s32.totalorder %s8, 5
    %p114 = pnand %p112, %p113
    %p115 = pneg %p114
    // Predicated region
    $region25: #{discriminator_forward.4} parent=5 // pred_check
      _
    $region26: #{discriminator_forward.4} parent=5 // pred_check_branch
      %117 = sbr.rel (%p114) target = $region28
    $region27: #{discriminator_forward.4} parent=5 // pred_region
      %s118 = ssub.s32 %s8, 1
      %s119 = smul.u32 64, %s13
      %p120 = scmp.lt.s32.totalorder %s119, 255
      %s121 = scalar_select %p120, %s119, 255
      %s122 = smul.addr %s121, 4
      %s123 = scalar_lea.vmem %s0, %s122
      %p124 = pneg %p34
      %p125 = pneg %p31
      %p126 = pneg %p55
      %p127 = pneg %p52
      %p128 = pneg %p81
      %p129 = pneg %p78
      %s130 = smul.u32 64, %s13
      %p131 = scmp.lt.s32.totalorder %s130, 255
      %s132 = scalar_select %p131, %s130, 255
      %s133 = smul.addr %s132, 4
      %s134 = scalar_lea.vmem %s2, %s133
      %s135 = smul.u32 64, %s13
      %p136 = scmp.lt.s32.totalorder %s135, 255
      %s137 = scalar_select %p136, %s135, 255
      %s138 = smul.addr %s137, 4
      %s139 = scalar_lea.vmem %s0, %s138
      %s140 = smul.u32 64, %s13
      %s141 = smul.u32 64, %s13
      %p142 = scmp.lt.s32.totalorder %s141, 255
      %s143 = scalar_select %p142, %s141, 255
      %s144 = smul.addr %s143, 4
      %s145 = scalar_lea.vmem %s2, %s144
      %s146 = smul.u32 64, %s13
      %v148 = vld [vmem:[%s139] sm:$0xf]
      %v149 = vld [vmem:[%s139 + $0x4] sm:$0xf]
      %v150 = vld [vmem:[%s139 + $0x8] sm:$0xf]
      %v151 = vld [vmem:[%s139 + $0xc] sm:$0xf]
      %v152 = vld [vmem:[%s139 + $0x10] sm:$0xf]
      %v153 = vld [vmem:[%s139 + $0x14] sm:$0xf]
      %v154 = vld [vmem:[%s139 + $0x18] sm:$0xf]
      %v155 = vld [vmem:[%s139 + $0x1c] sm:$0xf]
      %v156 = vld [vmem:[%s139 + $0x20] sm:$0xf]
      %v157 = vld [vmem:[%s139 + $0x24] sm:$0xf]
      %v158 = vld [vmem:[%s139 + $0x28] sm:$0xf]
      %v159 = vld [vmem:[%s139 + $0x2c] sm:$0xf]
      %v160 = vld [vmem:[%s139 + $0x30] sm:$0xf]
      %v161 = vld [vmem:[%s139 + $0x34] sm:$0xf]
      %v162 = vld [vmem:[%s139 + $0x38] sm:$0xf]
      %v163 = vld [vmem:[%s139 + $0x3c] sm:$0xf]
      %v164 = vld [vmem:[%s139 + $0x40] sm:$0xf]
      %v165 = vld [vmem:[%s139 + $0x44] sm:$0xf]
      %v166 = vld [vmem:[%s139 + $0x48] sm:$0xf]
      %v167 = vld [vmem:[%s139 + $0x4c] sm:$0xf]
      %v168 = vld [vmem:[%s139 + $0x50] sm:$0xf]
      %v169 = vld [vmem:[%s139 + $0x54] sm:$0xf]
      %v170 = vld [vmem:[%s139 + $0x58] sm:$0xf]
      %v171 = vld [vmem:[%s139 + $0x5c] sm:$0xf]
      %v172 = vld [vmem:[%s139 + $0x60] sm:$0xf]
      %v173 = vld [vmem:[%s139 + $0x64] sm:$0xf]
      %v174 = vld [vmem:[%s139 + $0x68] sm:$0xf]
      %v175 = vld [vmem:[%s139 + $0x6c] sm:$0xf]
      %v176 = vld [vmem:[%s139 + $0x70] sm:$0xf]
      %v177 = vld [vmem:[%s139 + $0x74] sm:$0xf]
      %v178 = vld [vmem:[%s139 + $0x78] sm:$0xf]
      %v179 = vld [vmem:[%s139 + $0x7c] sm:$0xf]
      %v180 = vld [vmem:[%s139 + $0x80] sm:$0xf]
      %v181 = vld [vmem:[%s139 + $0x84] sm:$0xf]
      %v182 = vld [vmem:[%s139 + $0x88] sm:$0xf]
      %v183 = vld [vmem:[%s139 + $0x8c] sm:$0xf]
      %v184 = vld [vmem:[%s139 + $0x90] sm:$0xf]
      %v185 = vld [vmem:[%s139 + $0x94] sm:$0xf]
      %v186 = vld [vmem:[%s139 + $0x98] sm:$0xf]
      %v187 = vld [vmem:[%s139 + $0x9c] sm:$0xf]
      %v188 = vld [vmem:[%s139 + $0xa0] sm:$0xf]
      %v189 = vld [vmem:[%s139 + $0xa4] sm:$0xf]
      %v190 = vld [vmem:[%s139 + $0xa8] sm:$0xf]
      %v191 = vld [vmem:[%s139 + $0xac] sm:$0xf]
      %v192 = vld [vmem:[%s139 + $0xb0] sm:$0xf]
      %v193 = vld [vmem:[%s139 + $0xb4] sm:$0xf]
      %v194 = vld [vmem:[%s139 + $0xb8] sm:$0xf]
      %v195 = vld [vmem:[%s139 + $0xbc] sm:$0xf]
      %v196 = vld [vmem:[%s139 + $0xc0] sm:$0xf]
      %v197 = vld [vmem:[%s139 + $0xc4] sm:$0xf]
      %v198 = vld [vmem:[%s139 + $0xc8] sm:$0xf]
      %v199 = vld [vmem:[%s139 + $0xcc] sm:$0xf]
      %v200 = vld [vmem:[%s139 + $0xd0] sm:$0xf]
      %v201 = vld [vmem:[%s139 + $0xd4] sm:$0xf]
      %v202 = vld [vmem:[%s139 + $0xd8] sm:$0xf]
      %v203 = vld [vmem:[%s139 + $0xdc] sm:$0xf]
      %v204 = vld [vmem:[%s139 + $0xe0] sm:$0xf]
      %v205 = vld [vmem:[%s139 + $0xe4] sm:$0xf]
      %v206 = vld [vmem:[%s139 + $0xe8] sm:$0xf]
      %v207 = vld [vmem:[%s139 + $0xec] sm:$0xf]
      %v208 = vld [vmem:[%s139 + $0xf0] sm:$0xf]
      %v209 = vld [vmem:[%s139 + $0xf4] sm:$0xf]
      %v210 = vld [vmem:[%s139 + $0xf8] sm:$0xf]
      %v211 = vld [vmem:[%s139 + $0xfc] sm:$0xf]
      %v212 = vld [vmem:[%s1] sm:$0xf]
      %v213 = vld [vmem:[%s1 + $0x4] sm:$0xf]
      %v214 = vld [vmem:[%s1 + $0x8] sm:$0xf]
      %v215 = vld [vmem:[%s1 + $0xc] sm:$0xf]
      %v216 = vld [vmem:[%s1 + $0x10] sm:$0xf]
      %v217 = vld [vmem:[%s1 + $0x14] sm:$0xf]
      %v218 = vld [vmem:[%s1 + $0x18] sm:$0xf]
      %v219 = vld [vmem:[%s1 + $0x1c] sm:$0xf]
      %v220 = vld [vmem:[%s1 + $0x20] sm:$0xf]
      %v221 = vld [vmem:[%s1 + $0x24] sm:$0xf]
      %v222 = vld [vmem:[%s1 + $0x28] sm:$0xf]
      %v223 = vld [vmem:[%s1 + $0x2c] sm:$0xf]
      %v224 = vld [vmem:[%s1 + $0x30] sm:$0xf]
      %v225 = vld [vmem:[%s1 + $0x34] sm:$0xf]
      %v226 = vld [vmem:[%s1 + $0x38] sm:$0xf]
      %v227 = vld [vmem:[%s1 + $0x3c] sm:$0xf]
      %v292 = vunpack.c.l.b16 %v148
      %v293 = vunpack.c.l.b16 %v149
      %v294 = vunpack.c.l.b16 %v150
      %v295 = vunpack.c.l.b16 %v151
      %v296 = vunpack.c.l.b16 %v152
      %v297 = vunpack.c.l.b16 %v153
      %v298 = vunpack.c.l.b16 %v154
      %v299 = vunpack.c.l.b16 %v155
      %v300 = vunpack.c.l.b16 %v156
      %v301 = vunpack.c.l.b16 %v157
      %v302 = vunpack.c.l.b16 %v158
      %v303 = vunpack.c.l.b16 %v159
      %v304 = vunpack.c.l.b16 %v160
      %v305 = vunpack.c.l.b16 %v161
      %v306 = vunpack.c.l.b16 %v162
      %v307 = vunpack.c.l.b16 %v163
      %v308 = vunpack.c.l.b16 %v164
      %v309 = vunpack.c.l.b16 %v165
      %v310 = vunpack.c.l.b16 %v166
      %v311 = vunpack.c.l.b16 %v167
      %v312 = vunpack.c.l.b16 %v168
      %v313 = vunpack.c.l.b16 %v169
      %v314 = vunpack.c.l.b16 %v170
      %v315 = vunpack.c.l.b16 %v171
      %v316 = vunpack.c.l.b16 %v172
      %v317 = vunpack.c.l.b16 %v173
      %v318 = vunpack.c.l.b16 %v174
      %v319 = vunpack.c.l.b16 %v175
      %v320 = vunpack.c.l.b16 %v176
      %v321 = vunpack.c.l.b16 %v177
      %v322 = vunpack.c.l.b16 %v178
      %v323 = vunpack.c.l.b16 %v179
      %v324 = vunpack.c.l.b16 %v180
      %v325 = vunpack.c.l.b16 %v181
      %v326 = vunpack.c.l.b16 %v182
      %v327 = vunpack.c.l.b16 %v183
      %v328 = vunpack.c.l.b16 %v184
      %v329 = vunpack.c.l.b16 %v185
      %v330 = vunpack.c.l.b16 %v186
      %v331 = vunpack.c.l.b16 %v187
      %v332 = vunpack.c.l.b16 %v188
      %v333 = vunpack.c.l.b16 %v189
      %v334 = vunpack.c.l.b16 %v190
      %v335 = vunpack.c.l.b16 %v191
      %v336 = vunpack.c.l.b16 %v192
      %v337 = vunpack.c.l.b16 %v193
      %v338 = vunpack.c.l.b16 %v194
      %v339 = vunpack.c.l.b16 %v195
      %v340 = vunpack.c.l.b16 %v196
      %v341 = vunpack.c.l.b16 %v197
      %v342 = vunpack.c.l.b16 %v198
      %v343 = vunpack.c.l.b16 %v199
      %v344 = vunpack.c.l.b16 %v200
      %v345 = vunpack.c.l.b16 %v201
      %v346 = vunpack.c.l.b16 %v202
      %v347 = vunpack.c.l.b16 %v203
      %v348 = vunpack.c.l.b16 %v204
      %v349 = vunpack.c.l.b16 %v205
      %v350 = vunpack.c.l.b16 %v206
      %v351 = vunpack.c.l.b16 %v207
      %v352 = vunpack.c.l.b16 %v208
      %v353 = vunpack.c.l.b16 %v209
      %v354 = vunpack.c.l.b16 %v210
      %v355 = vunpack.c.l.b16 %v211
      %v356 = vpack.c.b16 %v293, %v292
      %v357 = vpack.c.b16 %v295, %v294
      %v358 = vpack.c.b16 %v297, %v296
      %v359 = vpack.c.b16 %v299, %v298
      %v360 = vpack.c.b16 %v301, %v300
      %v361 = vpack.c.b16 %v303, %v302
      %v362 = vpack.c.b16 %v305, %v304
      %v363 = vpack.c.b16 %v307, %v306
      %v364 = vpack.c.b16 %v309, %v308
      %v365 = vpack.c.b16 %v311, %v310
      %v366 = vpack.c.b16 %v313, %v312
      %v367 = vpack.c.b16 %v315, %v314
      %v368 = vpack.c.b16 %v317, %v316
      %v369 = vpack.c.b16 %v319, %v318
      %v370 = vpack.c.b16 %v321, %v320
      %v371 = vpack.c.b16 %v323, %v322
      %v372 = vpack.c.b16 %v325, %v324
      %v373 = vpack.c.b16 %v327, %v326
      %v374 = vpack.c.b16 %v329, %v328
      %v375 = vpack.c.b16 %v331, %v330
      %v376 = vpack.c.b16 %v333, %v332
      %v377 = vpack.c.b16 %v335, %v334
      %v378 = vpack.c.b16 %v337, %v336
      %v379 = vpack.c.b16 %v339, %v338
      %v380 = vpack.c.b16 %v341, %v340
      %v381 = vpack.c.b16 %v343, %v342
      %v382 = vpack.c.b16 %v345, %v344
      %v383 = vpack.c.b16 %v347, %v346
      %v384 = vpack.c.b16 %v349, %v348
      %v385 = vpack.c.b16 %v351, %v350
      %v386 = vpack.c.b16 %v353, %v352
      %v387 = vpack.c.b16 %v355, %v354
      %v436 = vunpack.c.l.b16 %v212
      %v437 = vunpack.c.l.b16 %v213
      %v438 = vunpack.c.l.b16 %v214
      %v439 = vunpack.c.l.b16 %v215
      %v440 = vunpack.c.l.b16 %v216
      %v441 = vunpack.c.l.b16 %v217
      %v442 = vunpack.c.l.b16 %v218
      %v443 = vunpack.c.l.b16 %v219
      %v444 = vunpack.c.l.b16 %v220
      %v445 = vunpack.c.l.b16 %v221
      %v446 = vunpack.c.l.b16 %v222
      %v447 = vunpack.c.l.b16 %v223
      %v448 = vunpack.c.l.b16 %v224
      %v449 = vunpack.c.l.b16 %v225
      %v450 = vunpack.c.l.b16 %v226
      %v451 = vunpack.c.l.b16 %v227
      %v452 = vpack.c.b16 %v437, %v436
      %v453 = vpack.c.b16 %v439, %v438
      %v454 = vpack.c.b16 %v441, %v440
      %v455 = vpack.c.b16 %v443, %v442
      %v456 = vpack.c.b16 %v445, %v444
      %v457 = vpack.c.b16 %v447, %v446
      %v458 = vpack.c.b16 %v449, %v448
      %v459 = vpack.c.b16 %v451, %v450
      %468 = vmatprep.subr.bf16.mxu0 0
      %469 = vmatpush1.bf16.msra.mxu0 %v459
      %470 = vmatprep.subr.bf16.mxu0 0
      %471 = vmatpush1.bf16.msra.mxu0 %v458
      %472 = vmatprep.subr.bf16.mxu0 0
      %473 = vmatpush1.bf16.msra.mxu0 %v457
      %474 = vmatprep.subr.bf16.mxu0 0
      %475 = vmatpush1.bf16.msra.mxu0 %v456
      %476 = vmatprep.subr.bf16.mxu0 0
      %477 = vmatpush1.bf16.msra.mxu0 %v455
      %478 = vmatprep.subr.bf16.mxu0 0
      %479 = vmatpush1.bf16.msra.mxu0 %v454
      %480 = vmatprep.subr.bf16.mxu0 0
      %481 = vmatpush1.bf16.msra.mxu0 %v453
      %482 = vmatprep.subr.bf16.mxu0 0
      %483 = vmatpush1.bf16.msra.mxu0 %v452
      %484 = vmatprep.subr.bf16.mxu0 0
      %485 = vmatpush2.bf16.msra.mxu0 0
      %486 = vmatprep.subr.bf16.mxu0 0
      %487 = vmatpush2.bf16.msra.mxu0 0
      %488 = vmatprep.subr.bf16.mxu0 0
      %489 = vmatpush2.bf16.msra.mxu0 0
      %490 = vmatprep.subr.bf16.mxu0 0
      %491 = vmatpush2.bf16.msra.mxu0 0
      %492 = vmatprep.subr.bf16.mxu0 0
      %493 = vmatpush2.bf16.msra.mxu0 0
      %494 = vmatprep.subr.bf16.mxu0 0
      %495 = vmatpush2.bf16.msra.mxu0 0
      %496 = vmatprep.subr.bf16.mxu0 0
      %497 = vmatpush2.bf16.msra.mxu0 0
      %498 = vmatprep.subr.bf16.mxu0 0
      %499 = vmatpush2.bf16.msra.mxu0 0
      %500 = vmatprep.mubr.bf16.mxu0 0
      %501 = vmatmul.mubr.bf16.gmra.mxu0 %v356
      %v502 = vpop.f32.mrf.mxu0
      %v503 = vadd.f32 0.0, %v502
      %v504 = vpop.f32.mrf.mxu0
      %v505 = vpop.f32.mrf.mxu0
      %v506 = vadd.f32 0.0, %v505
      %v507 = vpop.f32.mrf.mxu0
      %508 = vmatprep.mubr.bf16.mxu0 0
      %509 = vmatmul.mubr.bf16.gmra.mxu0 %v357
      %v510 = vpop.f32.mrf.mxu0
      %v511 = vadd.f32 0.0, %v510
      %v512 = vpop.f32.mrf.mxu0
      %v513 = vpop.f32.mrf.mxu0
      %v514 = vadd.f32 0.0, %v513
      %v515 = vpop.f32.mrf.mxu0
      %516 = vmatprep.mubr.bf16.mxu0 0
      %517 = vmatmul.mubr.bf16.gmra.mxu0 %v358
      %v518 = vpop.f32.mrf.mxu0
      %v519 = vadd.f32 0.0, %v518
      %v520 = vpop.f32.mrf.mxu0
      %v521 = vpop.f32.mrf.mxu0
      %v522 = vadd.f32 0.0, %v521
      %v523 = vpop.f32.mrf.mxu0
      %524 = vmatprep.mubr.bf16.mxu0 0
      %525 = vmatmul.mubr.bf16.gmra.mxu0 %v359
      %v526 = vpop.f32.mrf.mxu0
      %v527 = vadd.f32 0.0, %v526
      %v528 = vpop.f32.mrf.mxu0
      %v529 = vpop.f32.mrf.mxu0
      %v530 = vadd.f32 0.0, %v529
      %v531 = vpop.f32.mrf.mxu0
      %532 = vmatprep.mubr.bf16.mxu0 0
      %533 = vmatmul.mubr.bf16.gmra.mxu0 %v360
      %v534 = vpop.f32.mrf.mxu0
      %v535 = vadd.f32 0.0, %v534
      %v536 = vpop.f32.mrf.mxu0
      %v537 = vpop.f32.mrf.mxu0
      %v538 = vadd.f32 0.0, %v537
      %v539 = vpop.f32.mrf.mxu0
      %540 = vmatprep.mubr.bf16.mxu0 0
      %541 = vmatmul.mubr.bf16.gmra.mxu0 %v361
      %v542 = vpop.f32.mrf.mxu0
      %v543 = vadd.f32 0.0, %v542
      %v544 = vpop.f32.mrf.mxu0
      %v545 = vpop.f32.mrf.mxu0
      %v546 = vadd.f32 0.0, %v545
      %v547 = vpop.f32.mrf.mxu0
      %548 = vmatprep.mubr.bf16.mxu0 0
      %549 = vmatmul.mubr.bf16.gmra.mxu0 %v362
      %v550 = vpop.f32.mrf.mxu0
      %v551 = vadd.f32 0.0, %v550
      %v552 = vpop.f32.mrf.mxu0
      %v553 = vpop.f32.mrf.mxu0
      %v554 = vadd.f32 0.0, %v553
      %v555 = vpop.f32.mrf.mxu0
      %556 = vmatprep.mubr.bf16.mxu0 0
      %557 = vmatmul.mubr.bf16.gmra.mxu0 %v363
      %v558 = vpop.f32.mrf.mxu0
      %v559 = vadd.f32 0.0, %v558
      %v560 = vpop.f32.mrf.mxu0
      %v561 = vpop.f32.mrf.mxu0
      %v562 = vadd.f32 0.0, %v561
      %v563 = vpop.f32.mrf.mxu0
      %564 = vmatprep.mubr.bf16.mxu0 0
      %565 = vmatmul.mubr.bf16.gmra.mxu0 %v364
      %v566 = vpop.f32.mrf.mxu0
      %v567 = vadd.f32 0.0, %v566
      %v568 = vpop.f32.mrf.mxu0
      %v569 = vpop.f32.mrf.mxu0
      %v570 = vadd.f32 0.0, %v569
      %v571 = vpop.f32.mrf.mxu0
      %572 = vmatprep.mubr.bf16.mxu0 0
      %573 = vmatmul.mubr.bf16.gmra.mxu0 %v365
      %v574 = vpop.f32.mrf.mxu0
      %v575 = vadd.f32 0.0, %v574
      %v576 = vpop.f32.mrf.mxu0
      %v577 = vpop.f32.mrf.mxu0
      %v578 = vadd.f32 0.0, %v577
      %v579 = vpop.f32.mrf.mxu0
      %580 = vmatprep.mubr.bf16.mxu0 0
      %581 = vmatmul.mubr.bf16.gmra.mxu0 %v366
      %v582 = vpop.f32.mrf.mxu0
      %v583 = vadd.f32 0.0, %v582
      %v584 = vpop.f32.mrf.mxu0
      %v585 = vpop.f32.mrf.mxu0
      %v586 = vadd.f32 0.0, %v585
      %v587 = vpop.f32.mrf.mxu0
      %588 = vmatprep.mubr.bf16.mxu0 0
      %589 = vmatmul.mubr.bf16.gmra.mxu0 %v367
      %v590 = vpop.f32.mrf.mxu0
      %v591 = vadd.f32 0.0, %v590
      %v592 = vpop.f32.mrf.mxu0
      %v593 = vpop.f32.mrf.mxu0
      %v594 = vadd.f32 0.0, %v593
      %v595 = vpop.f32.mrf.mxu0
      %596 = vmatprep.mubr.bf16.mxu0 0
      %597 = vmatmul.mubr.bf16.gmra.mxu0 %v368
      %v598 = vpop.f32.mrf.mxu0
      %v599 = vadd.f32 0.0, %v598
      %v600 = vpop.f32.mrf.mxu0
      %v601 = vpop.f32.mrf.mxu0
      %v602 = vadd.f32 0.0, %v601
      %v603 = vpop.f32.mrf.mxu0
      %604 = vmatprep.mubr.bf16.mxu0 0
      %605 = vmatmul.mubr.bf16.gmra.mxu0 %v369
      %v606 = vpop.f32.mrf.mxu0
      %v607 = vadd.f32 0.0, %v606
      %v608 = vpop.f32.mrf.mxu0
      %v609 = vpop.f32.mrf.mxu0
      %v610 = vadd.f32 0.0, %v609
      %v611 = vpop.f32.mrf.mxu0
      %612 = vmatprep.mubr.bf16.mxu0 0
      %613 = vmatmul.mubr.bf16.gmra.mxu0 %v370
      %v614 = vpop.f32.mrf.mxu0
      %v615 = vadd.f32 0.0, %v614
      %v616 = vpop.f32.mrf.mxu0
      %v617 = vpop.f32.mrf.mxu0
      %v618 = vadd.f32 0.0, %v617
      %v619 = vpop.f32.mrf.mxu0
      %620 = vmatprep.mubr.bf16.mxu0 0
      %621 = vmatmul.mubr.bf16.gmra.mxu0 %v371
      %v622 = vpop.f32.mrf.mxu0
      %v623 = vadd.f32 0.0, %v622
      %v624 = vpop.f32.mrf.mxu0
      %v625 = vpop.f32.mrf.mxu0
      %v626 = vadd.f32 0.0, %v625
      %v627 = vpop.f32.mrf.mxu0
      %628 = vmatprep.mubr.bf16.mxu0 0
      %629 = vmatmul.mubr.bf16.gmra.mxu0 %v372
      %v630 = vpop.f32.mrf.mxu0
      %v631 = vadd.f32 0.0, %v630
      %v632 = vpop.f32.mrf.mxu0
      %v633 = vpop.f32.mrf.mxu0
      %v634 = vadd.f32 0.0, %v633
      %v635 = vpop.f32.mrf.mxu0
      %636 = vmatprep.mubr.bf16.mxu0 0
      %637 = vmatmul.mubr.bf16.gmra.mxu0 %v373
      %v638 = vpop.f32.mrf.mxu0
      %v639 = vadd.f32 0.0, %v638
      %v640 = vpop.f32.mrf.mxu0
      %v641 = vpop.f32.mrf.mxu0
      %v642 = vadd.f32 0.0, %v641
      %v643 = vpop.f32.mrf.mxu0
      %644 = vmatprep.mubr.bf16.mxu0 0
      %645 = vmatmul.mubr.bf16.gmra.mxu0 %v374
      %v646 = vpop.f32.mrf.mxu0
      %v647 = vadd.f32 0.0, %v646
      %v648 = vpop.f32.mrf.mxu0
      %v649 = vpop.f32.mrf.mxu0
      %v650 = vadd.f32 0.0, %v649
      %v651 = vpop.f32.mrf.mxu0
      %652 = vmatprep.mubr.bf16.mxu0 0
      %653 = vmatmul.mubr.bf16.gmra.mxu0 %v375
      %v654 = vpop.f32.mrf.mxu0
      %v655 = vadd.f32 0.0, %v654
      %v656 = vpop.f32.mrf.mxu0
      %v657 = vpop.f32.mrf.mxu0
      %v658 = vadd.f32 0.0, %v657
      %v659 = vpop.f32.mrf.mxu0
      %660 = vmatprep.mubr.bf16.mxu0 0
      %661 = vmatmul.mubr.bf16.gmra.mxu0 %v376
      %v662 = vpop.f32.mrf.mxu0
      %v663 = vadd.f32 0.0, %v662
      %v664 = vpop.f32.mrf.mxu0
      %v665 = vpop.f32.mrf.mxu0
      %v666 = vadd.f32 0.0, %v665
      %v667 = vpop.f32.mrf.mxu0
      %668 = vmatprep.mubr.bf16.mxu0 0
      %669 = vmatmul.mubr.bf16.gmra.mxu0 %v377
      %v670 = vpop.f32.mrf.mxu0
      %v671 = vadd.f32 0.0, %v670
      %v672 = vpop.f32.mrf.mxu0
      %v673 = vpop.f32.mrf.mxu0
      %v674 = vadd.f32 0.0, %v673
      %v675 = vpop.f32.mrf.mxu0
      %676 = vmatprep.mubr.bf16.mxu0 0
      %677 = vmatmul.mubr.bf16.gmra.mxu0 %v378
      %v678 = vpop.f32.mrf.mxu0
      %v679 = vadd.f32 0.0, %v678
      %v680 = vpop.f32.mrf.mxu0
      %v681 = vpop.f32.mrf.mxu0
      %v682 = vadd.f32 0.0, %v681
      %v683 = vpop.f32.mrf.mxu0
      %684 = vmatprep.mubr.bf16.mxu0 0
      %685 = vmatmul.mubr.bf16.gmra.mxu0 %v379
      %v686 = vpop.f32.mrf.mxu0
      %v687 = vadd.f32 0.0, %v686
      %v688 = vpop.f32.mrf.mxu0
      %v689 = vpop.f32.mrf.mxu0
      %v690 = vadd.f32 0.0, %v689
      %v691 = vpop.f32.mrf.mxu0
      %692 = vmatprep.mubr.bf16.mxu0 0
      %693 = vmatmul.mubr.bf16.gmra.mxu0 %v380
      %v694 = vpop.f32.mrf.mxu0
      %v695 = vadd.f32 0.0, %v694
      %v696 = vpop.f32.mrf.mxu0
      %v697 = vpop.f32.mrf.mxu0
      %v698 = vadd.f32 0.0, %v697
      %v699 = vpop.f32.mrf.mxu0
      %700 = vmatprep.mubr.bf16.mxu0 0
      %701 = vmatmul.mubr.bf16.gmra.mxu0 %v381
      %v702 = vpop.f32.mrf.mxu0
      %v703 = vadd.f32 0.0, %v702
      %v704 = vpop.f32.mrf.mxu0
      %v705 = vpop.f32.mrf.mxu0
      %v706 = vadd.f32 0.0, %v705
      %v707 = vpop.f32.mrf.mxu0
      %708 = vmatprep.mubr.bf16.mxu0 0
      %709 = vmatmul.mubr.bf16.gmra.mxu0 %v382
      %v710 = vpop.f32.mrf.mxu0
      %v711 = vadd.f32 0.0, %v710
      %v712 = vpop.f32.mrf.mxu0
      %v713 = vpop.f32.mrf.mxu0
      %v714 = vadd.f32 0.0, %v713
      %v715 = vpop.f32.mrf.mxu0
      %716 = vmatprep.mubr.bf16.mxu0 0
      %717 = vmatmul.mubr.bf16.gmra.mxu0 %v383
      %v718 = vpop.f32.mrf.mxu0
      %v719 = vadd.f32 0.0, %v718
      %v720 = vpop.f32.mrf.mxu0
      %v721 = vpop.f32.mrf.mxu0
      %v722 = vadd.f32 0.0, %v721
      %v723 = vpop.f32.mrf.mxu0
      %724 = vmatprep.mubr.bf16.mxu0 0
      %725 = vmatmul.mubr.bf16.gmra.mxu0 %v384
      %v726 = vpop.f32.mrf.mxu0
      %v727 = vadd.f32 0.0, %v726
      %v728 = vpop.f32.mrf.mxu0
      %v729 = vpop.f32.mrf.mxu0
      %v730 = vadd.f32 0.0, %v729
      %v731 = vpop.f32.mrf.mxu0
      %732 = vmatprep.mubr.bf16.mxu0 0
      %733 = vmatmul.mubr.bf16.gmra.mxu0 %v385
      %v734 = vpop.f32.mrf.mxu0
      %v735 = vadd.f32 0.0, %v734
      %v736 = vpop.f32.mrf.mxu0
      %v737 = vpop.f32.mrf.mxu0
      %v738 = vadd.f32 0.0, %v737
      %v739 = vpop.f32.mrf.mxu0
      %740 = vmatprep.mubr.bf16.mxu0 0
      %741 = vmatmul.mubr.bf16.gmra.mxu0 %v386
      %v742 = vpop.f32.mrf.mxu0
      %v743 = vadd.f32 0.0, %v742
      %v744 = vpop.f32.mrf.mxu0
      %v745 = vpop.f32.mrf.mxu0
      %v746 = vadd.f32 0.0, %v745
      %v747 = vpop.f32.mrf.mxu0
      %748 = vmatprep.mubr.bf16.mxu0 0
      %749 = vmatmul.mubr.bf16.gmra.mxu0 %v387
      %v750 = vpop.f32.mrf.mxu0
      %v751 = vadd.f32 0.0, %v750
      %v752 = vpop.f32.mrf.mxu0
      %v753 = vpop.f32.mrf.mxu0
      %v754 = vadd.f32 0.0, %v753
      %v755 = vpop.f32.mrf.mxu0
      %756 = vdwg.mxu0
      %vm757 = vcmp.gt.f32.partialorder %v503, 0.0
      %vm758 = vcmp.gt.f32.partialorder %v506, 0.0
      %vm759 = vcmp.gt.f32.partialorder %v511, 0.0
      %vm760 = vcmp.gt.f32.partialorder %v514, 0.0
      %vm761 = vcmp.gt.f32.partialorder %v519, 0.0
      %vm762 = vcmp.gt.f32.partialorder %v522, 0.0
      %vm763 = vcmp.gt.f32.partialorder %v527, 0.0
      %vm764 = vcmp.gt.f32.partialorder %v530, 0.0
      %vm765 = vcmp.gt.f32.partialorder %v535, 0.0
      %vm766 = vcmp.gt.f32.partialorder %v538, 0.0
      %vm767 = vcmp.gt.f32.partialorder %v543, 0.0
      %vm768 = vcmp.gt.f32.partialorder %v546, 0.0
      %vm769 = vcmp.gt.f32.partialorder %v551, 0.0
      %vm770 = vcmp.gt.f32.partialorder %v554, 0.0
      %vm771 = vcmp.gt.f32.partialorder %v559, 0.0
      %vm772 = vcmp.gt.f32.partialorder %v562, 0.0
      %vm773 = vcmp.gt.f32.partialorder %v567, 0.0
      %vm774 = vcmp.gt.f32.partialorder %v570, 0.0
      %vm775 = vcmp.gt.f32.partialorder %v575, 0.0
      %vm776 = vcmp.gt.f32.partialorder %v578, 0.0
      %vm777 = vcmp.gt.f32.partialorder %v583, 0.0
      %vm778 = vcmp.gt.f32.partialorder %v586, 0.0
      %vm779 = vcmp.gt.f32.partialorder %v591, 0.0
      %vm780 = vcmp.gt.f32.partialorder %v594, 0.0
      %vm781 = vcmp.gt.f32.partialorder %v599, 0.0
      %vm782 = vcmp.gt.f32.partialorder %v602, 0.0
      %vm783 = vcmp.gt.f32.partialorder %v607, 0.0
      %vm784 = vcmp.gt.f32.partialorder %v610, 0.0
      %vm785 = vcmp.gt.f32.partialorder %v615, 0.0
      %vm786 = vcmp.gt.f32.partialorder %v618, 0.0
      %vm787 = vcmp.gt.f32.partialorder %v623, 0.0
      %vm788 = vcmp.gt.f32.partialorder %v626, 0.0
      %vm789 = vcmp.gt.f32.partialorder %v631, 0.0
      %vm790 = vcmp.gt.f32.partialorder %v634, 0.0
      %vm791 = vcmp.gt.f32.partialorder %v639, 0.0
      %vm792 = vcmp.gt.f32.partialorder %v642, 0.0
      %vm793 = vcmp.gt.f32.partialorder %v647, 0.0
      %vm794 = vcmp.gt.f32.partialorder %v650, 0.0
      %vm795 = vcmp.gt.f32.partialorder %v655, 0.0
      %vm796 = vcmp.gt.f32.partialorder %v658, 0.0
      %vm797 = vcmp.gt.f32.partialorder %v663, 0.0
      %vm798 = vcmp.gt.f32.partialorder %v666, 0.0
      %vm799 = vcmp.gt.f32.partialorder %v671, 0.0
      %vm800 = vcmp.gt.f32.partialorder %v674, 0.0
      %vm801 = vcmp.gt.f32.partialorder %v679, 0.0
      %vm802 = vcmp.gt.f32.partialorder %v682, 0.0
      %vm803 = vcmp.gt.f32.partialorder %v687, 0.0
      %vm804 = vcmp.gt.f32.partialorder %v690, 0.0
      %vm805 = vcmp.gt.f32.partialorder %v695, 0.0
      %vm806 = vcmp.gt.f32.partialorder %v698, 0.0
      %vm807 = vcmp.gt.f32.partialorder %v703, 0.0
      %vm808 = vcmp.gt.f32.partialorder %v706, 0.0
      %vm809 = vcmp.gt.f32.partialorder %v711, 0.0
      %vm810 = vcmp.gt.f32.partialorder %v714, 0.0
      %vm811 = vcmp.gt.f32.partialorder %v719, 0.0
      %vm812 = vcmp.gt.f32.partialorder %v722, 0.0
      %vm813 = vcmp.gt.f32.partialorder %v727, 0.0
      %vm814 = vcmp.gt.f32.partialorder %v730, 0.0
      %vm815 = vcmp.gt.f32.partialorder %v735, 0.0
      %vm816 = vcmp.gt.f32.partialorder %v738, 0.0
      %vm817 = vcmp.gt.f32.partialorder %v743, 0.0
      %vm818 = vcmp.gt.f32.partialorder %v746, 0.0
      %vm819 = vcmp.gt.f32.partialorder %v751, 0.0
      %vm820 = vcmp.gt.f32.partialorder %v754, 0.0
      %v821 = vmul.f32 %v503, 0.2
      %v822 = vmul.f32 %v506, 0.2
      %v823 = vmul.f32 %v511, 0.2
      %v824 = vmul.f32 %v514, 0.2
      %v825 = vmul.f32 %v519, 0.2
      %v826 = vmul.f32 %v522, 0.2
      %v827 = vmul.f32 %v527, 0.2
      %v828 = vmul.f32 %v530, 0.2
      %v829 = vmul.f32 %v535, 0.2
      %v830 = vmul.f32 %v538, 0.2
      %v831 = vmul.f32 %v543, 0.2
      %v832 = vmul.f32 %v546, 0.2
      %v833 = vmul.f32 %v551, 0.2
      %v834 = vmul.f32 %v554, 0.2
      %v835 = vmul.f32 %v559, 0.2
      %v836 = vmul.f32 %v562, 0.2
      %v837 = vmul.f32 %v567, 0.2
      %v838 = vmul.f32 %v570, 0.2
      %v839 = vmul.f32 %v575, 0.2
      %v840 = vmul.f32 %v578, 0.2
      %v841 = vmul.f32 %v583, 0.2
      %v842 = vmul.f32 %v586, 0.2
      %v843 = vmul.f32 %v591, 0.2
      %v844 = vmul.f32 %v594, 0.2
      %v845 = vmul.f32 %v599, 0.2
      %v846 = vmul.f32 %v602, 0.2
      %v847 = vmul.f32 %v607, 0.2
      %v848 = vmul.f32 %v610, 0.2
      %v849 = vmul.f32 %v615, 0.2
      %v850 = vmul.f32 %v618, 0.2
      %v851 = vmul.f32 %v623, 0.2
      %v852 = vmul.f32 %v626, 0.2
      %v853 = vmul.f32 %v631, 0.2
      %v854 = vmul.f32 %v634, 0.2
      %v855 = vmul.f32 %v639, 0.2
      %v856 = vmul.f32 %v642, 0.2
      %v857 = vmul.f32 %v647, 0.2
      %v858 = vmul.f32 %v650, 0.2
      %v859 = vmul.f32 %v655, 0.2
      %v860 = vmul.f32 %v658, 0.2
      %v861 = vmul.f32 %v663, 0.2
      %v862 = vmul.f32 %v666, 0.2
      %v863 = vmul.f32 %v671, 0.2
      %v864 = vmul.f32 %v674, 0.2
      %v865 = vmul.f32 %v679, 0.2
      %v866 = vmul.f32 %v682, 0.2
      %v867 = vmul.f32 %v687, 0.2
      %v868 = vmul.f32 %v690, 0.2
      %v869 = vmul.f32 %v695, 0.2
      %v870 = vmul.f32 %v698, 0.2
      %v871 = vmul.f32 %v703, 0.2
      %v872 = vmul.f32 %v706, 0.2
      %v873 = vmul.f32 %v711, 0.2
      %v874 = vmul.f32 %v714, 0.2
      %v875 = vmul.f32 %v719, 0.2
      %v876 = vmul.f32 %v722, 0.2
      %v877 = vmul.f32 %v727, 0.2
      %v878 = vmul.f32 %v730, 0.2
      %v879 = vmul.f32 %v735, 0.2
      %v880 = vmul.f32 %v738, 0.2
      %v881 = vmul.f32 %v743, 0.2
      %v882 = vmul.f32 %v746, 0.2
      %v883 = vmul.f32 %v751, 0.2
      %v884 = vmul.f32 %v754, 0.2
      %v885 = vsel %vm757, %v503, %v821
      %v886 = vsel %vm758, %v506, %v822
      %v887 = vsel %vm759, %v511, %v823
      %v888 = vsel %vm760, %v514, %v824
      %v889 = vsel %vm761, %v519, %v825
      %v890 = vsel %vm762, %v522, %v826
      %v891 = vsel %vm763, %v527, %v827
      %v892 = vsel %vm764, %v530, %v828
      %v893 = vsel %vm765, %v535, %v829
      %v894 = vsel %vm766, %v538, %v830
      %v895 = vsel %vm767, %v543, %v831
      %v896 = vsel %vm768, %v546, %v832
      %v897 = vsel %vm769, %v551, %v833
      %v898 = vsel %vm770, %v554, %v834
      %v899 = vsel %vm771, %v559, %v835
      %v900 = vsel %vm772, %v562, %v836
      %v901 = vsel %vm773, %v567, %v837
      %v902 = vsel %vm774, %v570, %v838
      %v903 = vsel %vm775, %v575, %v839
      %v904 = vsel %vm776, %v578, %v840
      %v905 = vsel %vm777, %v583, %v841
      %v906 = vsel %vm778, %v586, %v842
      %v907 = vsel %vm779, %v591, %v843
      %v908 = vsel %vm780, %v594, %v844
      %v909 = vsel %vm781, %v599, %v845
      %v910 = vsel %vm782, %v602, %v846
      %v911 = vsel %vm783, %v607, %v847
      %v912 = vsel %vm784, %v610, %v848
      %v913 = vsel %vm785, %v615, %v849
      %v914 = vsel %vm786, %v618, %v850
      %v915 = vsel %vm787, %v623, %v851
      %v916 = vsel %vm788, %v626, %v852
      %v917 = vsel %vm789, %v631, %v853
      %v918 = vsel %vm790, %v634, %v854
      %v919 = vsel %vm791, %v639, %v855
      %v920 = vsel %vm792, %v642, %v856
      %v921 = vsel %vm793, %v647, %v857
      %v922 = vsel %vm794, %v650, %v858
      %v923 = vsel %vm795, %v655, %v859
      %v924 = vsel %vm796, %v658, %v860
      %v925 = vsel %vm797, %v663, %v861
      %v926 = vsel %vm798, %v666, %v862
      %v927 = vsel %vm799, %v671, %v863
      %v928 = vsel %vm800, %v674, %v864
      %v929 = vsel %vm801, %v679, %v865
      %v930 = vsel %vm802, %v682, %v866
      %v931 = vsel %vm803, %v687, %v867
      %v932 = vsel %vm804, %v690, %v868
      %v933 = vsel %vm805, %v695, %v869
      %v934 = vsel %vm806, %v698, %v870
      %v935 = vsel %vm807, %v703, %v871
      %v936 = vsel %vm808, %v706, %v872
      %v937 = vsel %vm809, %v711, %v873
      %v938 = vsel %vm810, %v714, %v874
      %v939 = vsel %vm811, %v719, %v875
      %v940 = vsel %vm812, %v722, %v876
      %v941 = vsel %vm813, %v727, %v877
      %v942 = vsel %vm814, %v730, %v878
      %v943 = vsel %vm815, %v735, %v879
      %v944 = vsel %vm816, %v738, %v880
      %v945 = vsel %vm817, %v743, %v881
      %v946 = vsel %vm818, %v746, %v882
      %v947 = vsel %vm819, %v751, %v883
      %v948 = vsel %vm820, %v754, %v884
      %v949 = vpack.c.bf16 %v886, %v885
      %v950 = vpack.c.bf16 %v888, %v887
      %v951 = vpack.c.bf16 %v890, %v889
      %v952 = vpack.c.bf16 %v892, %v891
      %v953 = vpack.c.bf16 %v894, %v893
      %v954 = vpack.c.bf16 %v896, %v895
      %v955 = vpack.c.bf16 %v898, %v897
      %v956 = vpack.c.bf16 %v900, %v899
      %v957 = vpack.c.bf16 %v902, %v901
      %v958 = vpack.c.bf16 %v904, %v903
      %v959 = vpack.c.bf16 %v906, %v905
      %v960 = vpack.c.bf16 %v908, %v907
      %v961 = vpack.c.bf16 %v910, %v909
      %v962 = vpack.c.bf16 %v912, %v911
      %v963 = vpack.c.bf16 %v914, %v913
      %v964 = vpack.c.bf16 %v916, %v915
      %v965 = vpack.c.bf16 %v918, %v917
      %v966 = vpack.c.bf16 %v920, %v919
      %v967 = vpack.c.bf16 %v922, %v921
      %v968 = vpack.c.bf16 %v924, %v923
      %v969 = vpack.c.bf16 %v926, %v925
      %v970 = vpack.c.bf16 %v928, %v927
      %v971 = vpack.c.bf16 %v930, %v929
      %v972 = vpack.c.bf16 %v932, %v931
      %v973 = vpack.c.bf16 %v934, %v933
      %v974 = vpack.c.bf16 %v936, %v935
      %v975 = vpack.c.bf16 %v938, %v937
      %v976 = vpack.c.bf16 %v940, %v939
      %v977 = vpack.c.bf16 %v942, %v941
      %v978 = vpack.c.bf16 %v944, %v943
      %v979 = vpack.c.bf16 %v946, %v945
      %v980 = vpack.c.bf16 %v948, %v947
      %v1013 = vunpack.c.l.b16 %v949
      %v1014 = vunpack.c.h.b16 %v949
      %v1015 = vunpack.c.l.b16 %v950
      %v1016 = vunpack.c.h.b16 %v950
      %v1017 = vunpack.c.l.b16 %v951
      %v1018 = vunpack.c.h.b16 %v951
      %v1019 = vunpack.c.l.b16 %v952
      %v1020 = vunpack.c.h.b16 %v952
      %v1021 = vunpack.c.l.b16 %v953
      %v1022 = vunpack.c.h.b16 %v953
      %v1023 = vunpack.c.l.b16 %v954
      %v1024 = vunpack.c.h.b16 %v954
      %v1025 = vunpack.c.l.b16 %v955
      %v1026 = vunpack.c.h.b16 %v955
      %v1027 = vunpack.c.l.b16 %v956
      %v1028 = vunpack.c.h.b16 %v956
      %v1029 = vunpack.c.l.b16 %v957
      %v1030 = vunpack.c.h.b16 %v957
      %v1031 = vunpack.c.l.b16 %v958
      %v1032 = vunpack.c.h.b16 %v958
      %v1033 = vunpack.c.l.b16 %v959
      %v1034 = vunpack.c.h.b16 %v959
      %v1035 = vunpack.c.l.b16 %v960
      %v1036 = vunpack.c.h.b16 %v960
      %v1037 = vunpack.c.l.b16 %v961
      %v1038 = vunpack.c.h.b16 %v961
      %v1039 = vunpack.c.l.b16 %v962
      %v1040 = vunpack.c.h.b16 %v962
      %v1041 = vunpack.c.l.b16 %v963
      %v1042 = vunpack.c.h.b16 %v963
      %v1043 = vunpack.c.l.b16 %v964
      %v1044 = vunpack.c.h.b16 %v964
      %v1045 = vunpack.c.l.b16 %v965
      %v1046 = vunpack.c.h.b16 %v965
      %v1047 = vunpack.c.l.b16 %v966
      %v1048 = vunpack.c.h.b16 %v966
      %v1049 = vunpack.c.l.b16 %v967
      %v1050 = vunpack.c.h.b16 %v967
      %v1051 = vunpack.c.l.b16 %v968
      %v1052 = vunpack.c.h.b16 %v968
      %v1053 = vunpack.c.l.b16 %v969
      %v1054 = vunpack.c.h.b16 %v969
      %v1055 = vunpack.c.l.b16 %v970
      %v1056 = vunpack.c.h.b16 %v970
      %v1057 = vunpack.c.l.b16 %v971
      %v1058 = vunpack.c.h.b16 %v971
      %v1059 = vunpack.c.l.b16 %v972
      %v1060 = vunpack.c.h.b16 %v972
      %v1061 = vunpack.c.l.b16 %v973
      %v1062 = vunpack.c.h.b16 %v973
      %v1063 = vunpack.c.l.b16 %v974
      %v1064 = vunpack.c.h.b16 %v974
      %v1065 = vunpack.c.l.b16 %v975
      %v1066 = vunpack.c.h.b16 %v975
      %v1067 = vunpack.c.l.b16 %v976
      %v1068 = vunpack.c.h.b16 %v976
      %v1069 = vunpack.c.l.b16 %v977
      %v1070 = vunpack.c.h.b16 %v977
      %v1071 = vunpack.c.l.b16 %v978
      %v1072 = vunpack.c.h.b16 %v978
      %v1073 = vunpack.c.l.b16 %v979
      %v1074 = vunpack.c.h.b16 %v979
      %v1075 = vunpack.c.l.b16 %v980
      %v1076 = vunpack.c.h.b16 %v980
      %v1077 = vpack.c.b16 %v1013, %v1013
      %v1078 = vpack.c.b16 %v1014, %v1014
      %v1079 = vpack.c.b16 %v1015, %v1015
      %v1080 = vpack.c.b16 %v1016, %v1016
      %v1081 = vpack.c.b16 %v1017, %v1017
      %v1082 = vpack.c.b16 %v1018, %v1018
      %v1083 = vpack.c.b16 %v1019, %v1019
      %v1084 = vpack.c.b16 %v1020, %v1020
      %v1085 = vpack.c.b16 %v1021, %v1021
      %v1086 = vpack.c.b16 %v1022, %v1022
      %v1087 = vpack.c.b16 %v1023, %v1023
      %v1088 = vpack.c.b16 %v1024, %v1024
      %v1089 = vpack.c.b16 %v1025, %v1025
      %v1090 = vpack.c.b16 %v1026, %v1026
      %v1091 = vpack.c.b16 %v1027, %v1027
      %v1092 = vpack.c.b16 %v1028, %v1028
      %v1093 = vpack.c.b16 %v1029, %v1029
      %v1094 = vpack.c.b16 %v1030, %v1030
      %v1095 = vpack.c.b16 %v1031, %v1031
      %v1096 = vpack.c.b16 %v1032, %v1032
      %v1097 = vpack.c.b16 %v1033, %v1033
      %v1098 = vpack.c.b16 %v1034, %v1034
      %v1099 = vpack.c.b16 %v1035, %v1035
      %v1100 = vpack.c.b16 %v1036, %v1036
      %v1101 = vpack.c.b16 %v1037, %v1037
      %v1102 = vpack.c.b16 %v1038, %v1038
      %v1103 = vpack.c.b16 %v1039, %v1039
      %v1104 = vpack.c.b16 %v1040, %v1040
      %v1105 = vpack.c.b16 %v1041, %v1041
      %v1106 = vpack.c.b16 %v1042, %v1042
      %v1107 = vpack.c.b16 %v1043, %v1043
      %v1108 = vpack.c.b16 %v1044, %v1044
      %v1109 = vpack.c.b16 %v1045, %v1045
      %v1110 = vpack.c.b16 %v1046, %v1046
      %v1111 = vpack.c.b16 %v1047, %v1047
      %v1112 = vpack.c.b16 %v1048, %v1048
      %v1113 = vpack.c.b16 %v1049, %v1049
      %v1114 = vpack.c.b16 %v1050, %v1050
      %v1115 = vpack.c.b16 %v1051, %v1051
      %v1116 = vpack.c.b16 %v1052, %v1052
      %v1117 = vpack.c.b16 %v1053, %v1053
      %v1118 = vpack.c.b16 %v1054, %v1054
      %v1119 = vpack.c.b16 %v1055, %v1055
      %v1120 = vpack.c.b16 %v1056, %v1056
      %v1121 = vpack.c.b16 %v1057, %v1057
      %v1122 = vpack.c.b16 %v1058, %v1058
      %v1123 = vpack.c.b16 %v1059, %v1059
      %v1124 = vpack.c.b16 %v1060, %v1060
      %v1125 = vpack.c.b16 %v1061, %v1061
      %v1126 = vpack.c.b16 %v1062, %v1062
      %v1127 = vpack.c.b16 %v1063, %v1063
      %v1128 = vpack.c.b16 %v1064, %v1064
      %v1129 = vpack.c.b16 %v1065, %v1065
      %v1130 = vpack.c.b16 %v1066, %v1066
      %v1131 = vpack.c.b16 %v1067, %v1067
      %v1132 = vpack.c.b16 %v1068, %v1068
      %v1133 = vpack.c.b16 %v1069, %v1069
      %v1134 = vpack.c.b16 %v1070, %v1070
      %v1135 = vpack.c.b16 %v1071, %v1071
      %v1136 = vpack.c.b16 %v1072, %v1072
      %v1137 = vpack.c.b16 %v1073, %v1073
      %v1138 = vpack.c.b16 %v1074, %v1074
      %v1139 = vpack.c.b16 %v1075, %v1075
      %v1140 = vpack.c.b16 %v1076, %v1076
      %vm1205 = vcmask 519168
      %1206 = vst.msk [vmem:[%s145] sm:$0xf] %vm1205, %v1077
      %1207 = vst.msk [vmem:[%s145 + $0x4] sm:$0xf] %vm1205, %v1078
      %1208 = vst.msk [vmem:[%s145 + $0x8] sm:$0xf] %vm1205, %v1079
      %1209 = vst.msk [vmem:[%s145 + $0xc] sm:$0xf] %vm1205, %v1080
      %1210 = vst.msk [vmem:[%s145 + $0x10] sm:$0xf] %vm1205, %v1081
      %1211 = vst.msk [vmem:[%s145 + $0x14] sm:$0xf] %vm1205, %v1082
      %1212 = vst.msk [vmem:[%s145 + $0x18] sm:$0xf] %vm1205, %v1083
      %1213 = vst.msk [vmem:[%s145 + $0x1c] sm:$0xf] %vm1205, %v1084
      %1214 = vst.msk [vmem:[%s145 + $0x20] sm:$0xf] %vm1205, %v1085
      %1215 = vst.msk [vmem:[%s145 + $0x24] sm:$0xf] %vm1205, %v1086
      %1216 = vst.msk [vmem:[%s145 + $0x28] sm:$0xf] %vm1205, %v1087
      %1217 = vst.msk [vmem:[%s145 + $0x2c] sm:$0xf] %vm1205, %v1088
      %1218 = vst.msk [vmem:[%s145 + $0x30] sm:$0xf] %vm1205, %v1089
      %1219 = vst.msk [vmem:[%s145 + $0x34] sm:$0xf] %vm1205, %v1090
      %1220 = vst.msk [vmem:[%s145 + $0x38] sm:$0xf] %vm1205, %v1091
      %1221 = vst.msk [vmem:[%s145 + $0x3c] sm:$0xf] %vm1205, %v1092
      %1222 = vst.msk [vmem:[%s145 + $0x40] sm:$0xf] %vm1205, %v1093
      %1223 = vst.msk [vmem:[%s145 + $0x44] sm:$0xf] %vm1205, %v1094
      %1224 = vst.msk [vmem:[%s145 + $0x48] sm:$0xf] %vm1205, %v1095
      %1225 = vst.msk [vmem:[%s145 + $0x4c] sm:$0xf] %vm1205, %v1096
      %1226 = vst.msk [vmem:[%s145 + $0x50] sm:$0xf] %vm1205, %v1097
      %1227 = vst.msk [vmem:[%s145 + $0x54] sm:$0xf] %vm1205, %v1098
      %1228 = vst.msk [vmem:[%s145 + $0x58] sm:$0xf] %vm1205, %v1099
      %1229 = vst.msk [vmem:[%s145 + $0x5c] sm:$0xf] %vm1205, %v1100
      %1230 = vst.msk [vmem:[%s145 + $0x60] sm:$0xf] %vm1205, %v1101
      %1231 = vst.msk [vmem:[%s145 + $0x64] sm:$0xf] %vm1205, %v1102
      %1232 = vst.msk [vmem:[%s145 + $0x68] sm:$0xf] %vm1205, %v1103
      %1233 = vst.msk [vmem:[%s145 + $0x6c] sm:$0xf] %vm1205, %v1104
      %1234 = vst.msk [vmem:[%s145 + $0x70] sm:$0xf] %vm1205, %v1105
      %1235 = vst.msk [vmem:[%s145 + $0x74] sm:$0xf] %vm1205, %v1106
      %1236 = vst.msk [vmem:[%s145 + $0x78] sm:$0xf] %vm1205, %v1107
      %1237 = vst.msk [vmem:[%s145 + $0x7c] sm:$0xf] %vm1205, %v1108
      %1238 = vst.msk [vmem:[%s145 + $0x80] sm:$0xf] %vm1205, %v1109
      %1239 = vst.msk [vmem:[%s145 + $0x84] sm:$0xf] %vm1205, %v1110
      %1240 = vst.msk [vmem:[%s145 + $0x88] sm:$0xf] %vm1205, %v1111
      %1241 = vst.msk [vmem:[%s145 + $0x8c] sm:$0xf] %vm1205, %v1112
      %1242 = vst.msk [vmem:[%s145 + $0x90] sm:$0xf] %vm1205, %v1113
      %1243 = vst.msk [vmem:[%s145 + $0x94] sm:$0xf] %vm1205, %v1114
      %1244 = vst.msk [vmem:[%s145 + $0x98] sm:$0xf] %vm1205, %v1115
      %1245 = vst.msk [vmem:[%s145 + $0x9c] sm:$0xf] %vm1205, %v1116
      %1246 = vst.msk [vmem:[%s145 + $0xa0] sm:$0xf] %vm1205, %v1117
      %1247 = vst.msk [vmem:[%s145 + $0xa4] sm:$0xf] %vm1205, %v1118
      %1248 = vst.msk [vmem:[%s145 + $0xa8] sm:$0xf] %vm1205, %v1119
      %1249 = vst.msk [vmem:[%s145 + $0xac] sm:$0xf] %vm1205, %v1120
      %1250 = vst.msk [vmem:[%s145 + $0xb0] sm:$0xf] %vm1205, %v1121
      %1251 = vst.msk [vmem:[%s145 + $0xb4] sm:$0xf] %vm1205, %v1122
      %1252 = vst.msk [vmem:[%s145 + $0xb8] sm:$0xf] %vm1205, %v1123
      %1253 = vst.msk [vmem:[%s145 + $0xbc] sm:$0xf] %vm1205, %v1124
      %1254 = vst.msk [vmem:[%s145 + $0xc0] sm:$0xf] %vm1205, %v1125
      %1255 = vst.msk [vmem:[%s145 + $0xc4] sm:$0xf] %vm1205, %v1126
      %1256 = vst.msk [vmem:[%s145 + $0xc8] sm:$0xf] %vm1205, %v1127
      %1257 = vst.msk [vmem:[%s145 + $0xcc] sm:$0xf] %vm1205, %v1128
      %1258 = vst.msk [vmem:[%s145 + $0xd0] sm:$0xf] %vm1205, %v1129
      %1259 = vst.msk [vmem:[%s145 + $0xd4] sm:$0xf] %vm1205, %v1130
      %1260 = vst.msk [vmem:[%s145 + $0xd8] sm:$0xf] %vm1205, %v1131
      %1261 = vst.msk [vmem:[%s145 + $0xdc] sm:$0xf] %vm1205, %v1132
      %1262 = vst.msk [vmem:[%s145 + $0xe0] sm:$0xf] %vm1205, %v1133
      %1263 = vst.msk [vmem:[%s145 + $0xe4] sm:$0xf] %vm1205, %v1134
      %1264 = vst.msk [vmem:[%s145 + $0xe8] sm:$0xf] %vm1205, %v1135
      %1265 = vst.msk [vmem:[%s145 + $0xec] sm:$0xf] %vm1205, %v1136
      %1266 = vst.msk [vmem:[%s145 + $0xf0] sm:$0xf] %vm1205, %v1137
      %1267 = vst.msk [vmem:[%s145 + $0xf4] sm:$0xf] %vm1205, %v1138
      %1268 = vst.msk [vmem:[%s145 + $0xf8] sm:$0xf] %vm1205, %v1139
      %1269 = vst.msk [vmem:[%s145 + $0xfc] sm:$0xf] %vm1205, %v1140
      %s1270 = smul.u32 64, %s13
      %p1271 = scmp.lt.s32.totalorder %s1270, 255
      %s1272 = scalar_select %p1271, %s1270, 255
      %s1273 = smul.addr %s1272, 4
      %s1274 = scalar_lea.vmem %s2, %s1273
      // Predicated region
      $region29: #{discriminator_forward.4} parent=27 // pred_check
        %p1275 = pneg %p78
      $region30: #{discriminator_forward.4} parent=27 // pred_check_branch
        %1277 = sbr.rel (%p1275) target = $region32
      $region31: #{discriminator_forward.4} parent=27 // pred_region
        %s1278 = smul.u32 64, %s13
      $region32: #{discriminator_forward.4} parent=27 // pred_fallthru
        _
    $region28: #{discriminator_forward.4} parent=5 // pred_fallthru
      _
    %p1279 = scmp.le.s32.totalorder 2, %s8
    // Predicated region
    $region33: #{discriminator_forward.4} parent=5 // pred_check
      %p1280 = pneg %p1279
    $region34: #{discriminator_forward.4} parent=5 // pred_check_branch
      %1282 = sbr.rel (%p1280) target = $region36
    $region35: #{discriminator_forward.4} parent=5 // pred_region
      %s1283 = ssub.s32 %s8, 2
      // Predicated region
      $region37: #{discriminator_forward.4} parent=35 // pred_check
        %p1284 = pneg %p84
      $region38: #{discriminator_forward.4} parent=35 // pred_check_branch
        %1286 = sbr.rel (%p1284) target = $region40
      $region39: #{discriminator_forward.4} parent=35 // pred_region
        %s1287 = smul.u32 64, %s14
        %p1288 = scmp.lt.s32.totalorder %s1287, 255
        %s1289 = scalar_select %p1288, %s1287, 255
        %s1290 = smul.addr %s1289, 4
        %s1291 = scalar_lea.vmem %s2, %s1290
      $region40: #{discriminator_forward.4} parent=35 // pred_fallthru
        _
    $region36: #{discriminator_forward.4} parent=5 // pred_fallthru
      _
  $region6: #{discriminator_forward.4} parent=0 // loop_footer
    %s12 = sadd.s32 1, %s8
  $region7: #{discriminator_forward.4} parent=0 // loop_footer_branch
    %7 = sbr.rel target = $region3
  $region8: #{discriminator_forward.4} parent=0 // loop_exit
    _

// kernel: discriminator_forward.5
$region0: #{discriminator_forward.5}
  #allocation0 [shape = 'u32[]', space=smem, size = 0x4, offset = 0x4, fixed_abs, tag = 'smem constant byte address 0x4 - core index']
  #allocation1 [shape = 'u32[144,128]{1,0:T(1,128)}', space=vmem, size = 0x12000, scoped, tag = 'internal scratch']
  #allocation2 [shape = 'f32[512,128]{1,0:T(8,128)}', space=vmem, size = 0x40000, scoped, tag = 'scratch operand']
  %s0 = inlined_call_operand.vmem [shape: bf16[512,1024], index: 0, kind: input, shape index: {}]
  %s1 = inlined_call_operand.vmem [shape: bf16[1024,128], index: 1, kind: input, shape index: {}]
  %s2 = inlined_call_operand.vmem [shape: f32[1,128], index: 2, kind: input, shape index: {}]
  %s3 = inlined_call_operand.vmem [shape: f32[1,128], index: 3, kind: input, shape index: {}]
  %s4 = inlined_call_operand.vmem [shape: bf16[512,128], index: 4, kind: output, shape index: {}]
  %s5 = sld [smem:[#allocation0]]
  $region80: #{discriminator_forward.5} parent=0
    _
  %s7 = ssub.s32 1, %s5
  %s8 = scalar_select 0, %s7, %s5
  $region1: #{discriminator_forward.5} parent=0
    #allocation3 [shape = 'u8[1048576]{0}', space=vmem, size = 0x100000, scoped, tag = 'input window, operand 0']
    loop: start=0, step=1, limit=4
    $region2: #{discriminator_forward.5} parent=1 // loop_pre_header
      _
    $region3: #{discriminator_forward.5} parent=1 // loop_header
      %s10 = sphi 0, %s14
      %p11 = scmp.ge.s32.totalorder %s10, 4
      %s17 = sphi 0, %s29
      %s18 = sphi 0, %s25
      %s19 = sphi 0, %s17
      %s20 = sphi 0, %s18
      %s21 = sphi 0, %s19
      %s22 = sphi 0, %s20
      %s32 = sphi 0, %s34
      %s35 = sphi 0, %s32
      %s36 = sphi 0, %s35
      %s52 = sphi 0, %s36
      %s60 = sphi 0, %s62
      %s63 = sphi 0, %s60
      %s64 = sphi 0, %s63
      %s80 = sphi 0, %s64
      %s86 = sphi 0, %s88
      %s89 = sphi 0, %s86
      %s90 = sphi 0, %s89
      %s106 = sphi 0, %s90
      %s112 = sphi 0, %s114
      %s115 = sphi 0, %s112
      %s116 = sphi 0, %s115
      %s132 = sphi 0, %s116
      %s138 = sphi 0, %s140
      %s141 = sphi 0, %s138
      %s142 = sphi 0, %s141
      %s158 = sphi 0, %s142
    $region4: #{discriminator_forward.5} parent=1 // loop_header_branch
      %13 = sbr.rel (%p11) target = $region8
    $region5: #{discriminator_forward.5} parent=1 // loop_body
      %s15 = ssub.s32 %s10, 1
      %s16 = ssub.s32 %s10, 2
      %s23 = sadd.s32 1, %s18
      %p24 = scmp.ge.s32.totalorder %s23, 2
      %s25 = scalar_select %p24, 0, %s23
      %s26 = sadd.s32 1, %s17
      %s27 = scalar_select %p24, %s26, %s17
      %p28 = scmp.ge.s32.totalorder %s27, 1
      %s29 = scalar_select %p28, 0, %s27
      %s30 = ssub.s32 %s18, %s25
      %p31 = scmp.eq.s32.totalorder %s30, 0
      %s33 = sadd.s32 %s32, 1
      %s34 = scalar_select %p31, %s32, %s33
      %p37 = pneg %p31
      %p38 = scmp.eq.s32.totalorder %s10, 1
      %p39 = por %p37, %p38
      %p40 = scmp.ne.s32.totalorder %s32, %s35
      %p41 = scmp.eq.s32.totalorder %s10, 0
      %p42 = por %p40, %p41
      %p43 = scmp.ne.s32.totalorder %s32, %s35
      %p44 = scmp.eq.s32.totalorder %s15, 1
      %p45 = por %p43, %p44
      %p46 = scmp.ne.s32.totalorder %s35, %s36
      %p47 = scmp.eq.s32.totalorder %s15, 0
      %p48 = por %p46, %p47
      %p49 = scmp.ne.s32.totalorder %s35, %s36
      %p50 = scmp.eq.s32.totalorder %s16, 1
      %p51 = por %p49, %p50
      %p53 = scmp.ne.s32.totalorder %s36, %s52
      %p54 = scmp.eq.s32.totalorder %s16, 0
      %p55 = por %p53, %p54
      %s56 = ssub.s32 %s18, %s25
      %s57 = ssub.s32 %s17, %s29
      %s58 = sor.u32 %s56, %s57
      %p59 = scmp.eq.s32.totalorder %s58, 0
      %s61 = sadd.s32 %s60, 1
      %s62 = scalar_select %p59, %s60, %s61
      %p65 = pneg %p59
      %p66 = scmp.eq.s32.totalorder %s10, 1
      %p67 = por %p65, %p66
      %p68 = scmp.ne.s32.totalorder %s60, %s63
      %p69 = scmp.eq.s32.totalorder %s10, 0
      %p70 = por %p68, %p69
      %p71 = scmp.ne.s32.totalorder %s60, %s63
      %p72 = scmp.eq.s32.totalorder %s15, 1
      %p73 = por %p71, %p72
      %p74 = scmp.ne.s32.totalorder %s63, %s64
      %p75 = scmp.eq.s32.totalorder %s15, 0
      %p76 = por %p74, %p75
      %p77 = scmp.ne.s32.totalorder %s63, %s64
      %p78 = scmp.eq.s32.totalorder %s16, 1
      %p79 = por %p77, %p78
      %p81 = scmp.ne.s32.totalorder %s64, %s80
      %p82 = scmp.eq.s32.totalorder %s16, 0
      %p83 = por %p81, %p82
      %s84 = ssub.s32 %s17, %s29
      %p85 = scmp.eq.s32.totalorder %s84, 0
      %s87 = sadd.s32 %s86, 1
      %s88 = scalar_select %p85, %s86, %s87
      %p91 = pneg %p85
      %p92 = scmp.eq.s32.totalorder %s10, 1
      %p93 = por %p91, %p92
      %p94 = scmp.ne.s32.totalorder %s86, %s89
      %p95 = scmp.eq.s32.totalorder %s10, 0
      %p96 = por %p94, %p95
      %p97 = scmp.ne.s32.totalorder %s86, %s89
      %p98 = scmp.eq.s32.totalorder %s15, 1
      %p99 = por %p97, %p98
      %p100 = scmp.ne.s32.totalorder %s89, %s90
      %p101 = scmp.eq.s32.totalorder %s15, 0
      %p102 = por %p100, %p101
      %p103 = scmp.ne.s32.totalorder %s89, %s90
      %p104 = scmp.eq.s32.totalorder %s16, 1
      %p105 = por %p103, %p104
      %p107 = scmp.ne.s32.totalorder %s90, %s106
      %p108 = scmp.eq.s32.totalorder %s16, 0
      %p109 = por %p107, %p108
      %s110 = ssub.s32 %s17, %s29
      %p111 = scmp.eq.s32.totalorder %s110, 0
      %s113 = sadd.s32 %s112, 1
      %s114 = scalar_select %p111, %s112, %s113
      %p117 = pneg %p111
      %p118 = scmp.eq.s32.totalorder %s10, 1
      %p119 = por %p117, %p118
      %p120 = scmp.ne.s32.totalorder %s112, %s115
      %p121 = scmp.eq.s32.totalorder %s10, 0
      %p122 = por %p120, %p121
      %p123 = scmp.ne.s32.totalorder %s112, %s115
      %p124 = scmp.eq.s32.totalorder %s15, 1
      %p125 = por %p123, %p124
      %p126 = scmp.ne.s32.totalorder %s115, %s116
      %p127 = scmp.eq.s32.totalorder %s15, 0
      %p128 = por %p126, %p127
      %p129 = scmp.ne.s32.totalorder %s115, %s116
      %p130 = scmp.eq.s32.totalorder %s16, 1
      %p131 = por %p129, %p130
      %p133 = scmp.ne.s32.totalorder %s116, %s132
      %p134 = scmp.eq.s32.totalorder %s16, 0
      %p135 = por %p133, %p134
      %s136 = ssub.s32 %s17, %s29
      %p137 = scmp.eq.s32.totalorder %s136, 0
      %s139 = sadd.s32 %s138, 1
      %s140 = scalar_select %p137, %s138, %s139
      %p143 = pneg %p137
      %p144 = scmp.eq.s32.totalorder %s10, 1
      %p145 = por %p143, %p144
      %p146 = scmp.ne.s32.totalorder %s138, %s141
      %p147 = scmp.eq.s32.totalorder %s10, 0
      %p148 = por %p146, %p147
      %p149 = scmp.ne.s32.totalorder %s138, %s141
      %p150 = scmp.eq.s32.totalorder %s15, 1
      %p151 = por %p149, %p150
      %p152 = scmp.ne.s32.totalorder %s141, %s142
      %p153 = scmp.eq.s32.totalorder %s15, 0
      %p154 = por %p152, %p153
      %p155 = scmp.ne.s32.totalorder %s141, %s142
      %p156 = scmp.eq.s32.totalorder %s16, 1
      %p157 = por %p155, %p156
      %p159 = scmp.ne.s32.totalorder %s142, %s158
      %p160 = scmp.eq.s32.totalorder %s16, 0
      %p161 = por %p159, %p160
      %p162 = scmp.le.s32.totalorder 1, %s10
      %p163 = scmp.lt.s32.totalorder %s10, 3
      %p164 = pnand %p162, %p163
      %p165 = pneg %p164
      // Predicated region
      $region9: #{discriminator_forward.5} parent=5 // pred_check
        _
      $region10: #{discriminator_forward.5} parent=5 // pred_check_branch
        %167 = sbr.rel (%p164) target = $region12
      $region11: #{discriminator_forward.5} parent=5 // pred_region
        %s168 = ssub.s32 %s10, 1
        // Predicated region
        $region13: #{discriminator_forward.5} parent=11 // pred_check
          %p169 = pneg %p102
        $region14: #{discriminator_forward.5} parent=11 // pred_check_branch
          %171 = sbr.rel (%p169) target = $region16
        $region15: #{discriminator_forward.5} parent=11 // pred_region
          %p172 = scmp.lt.s32.totalorder %s19, 0
          %s173 = scalar_select %p172, %s19, 0
          %s174 = scalar_lea.vmem %s2, %s173
        $region16: #{discriminator_forward.5} parent=11 // pred_fallthru
          _
        // Predicated region
        $region17: #{discriminator_forward.5} parent=11 // pred_check
          %p175 = pneg %p128
        $region18: #{discriminator_forward.5} parent=11 // pred_check_branch
          %177 = sbr.rel (%p175) target = $region20
        $region19: #{discriminator_forward.5} parent=11 // pred_region
          %p178 = scmp.lt.s32.totalorder %s19, 0
          %s179 = scalar_select %p178, %s19, 0
          %s180 = scalar_lea.vmem %s3, %s179
        $region20: #{discriminator_forward.5} parent=11 // pred_fallthru
          _
      $region12: #{discriminator_forward.5} parent=5 // pred_fallthru
        _
      %p181 = scmp.lt.s32.totalorder %s10, 2
      // Predicated region
      $region21: #{discriminator_forward.5} parent=5 // pred_check
        %p182 = pneg %p181
      $region22: #{discriminator_forward.5} parent=5 // pred_check_branch
        %184 = sbr.rel (%p182) target = $region24
      $region23: #{discriminator_forward.5} parent=5 // pred_region
        // Predicated region
        $region25: #{discriminator_forward.5} parent=23 // pred_check
          %p185 = pneg %p42
        $region26: #{discriminator_forward.5} parent=23 // pred_check_branch
          %187 = sbr.rel (%p185) target = $region28
        $region27: #{discriminator_forward.5} parent=23 // pred_region
          %s188 = sand.u32 %s32, 1
          %s189 = sand.u32 %s32, 1
          %s190 = smul.addr %s189, 1024
          %s191 = scalar_lea.vmem [#allocation3], %s190
          %s192 = smul.u32 4, %s18
          %s193 = smul.addr %s192, 4
          %s194 = scalar_lea.vmem %s0, %s193
          // Predicated region
          $region29: #{discriminator_forward.5} parent=27 // pred_check
            _
          $region30: #{discriminator_forward.5} parent=27 // pred_check_branch
            %196 = sbr.rel (0) target = $region32
          $region31: #{discriminator_forward.5} parent=27 // pred_region
            // Predicated region
            $region33: #{discriminator_forward.5} parent=31 // pred_check
              _
            $region34: #{discriminator_forward.5} parent=31 // pred_check_branch
              %198 = sbr.rel (0) target = $region36
            $region35: #{discriminator_forward.5} parent=31 // pred_region
              loop: start=0, step=1, limit=1
              $region37: #{discriminator_forward.5} parent=35 // loop_pre_header
                _
              $region38: #{discriminator_forward.5} parent=35 // loop_header
                %s200 = sphi 0, %s204
                %p201 = scmp.ge.s32.totalorder %s200, 1
                %s205 = sphi %s194, %s194
                %s206 = sphi %s191, %s191
              $region39: #{discriminator_forward.5} parent=35 // loop_header_branch
                %203 = sbr.rel (%p201) target = $region43
              $region40: #{discriminator_forward.5} parent=35 // loop_body
                %v207 = vld [vmem:[%s205] sm:$0xff]
                %208 = vst [vmem:[%s206] sm:$0xff] %v207
                %v209 = vld [vmem:[%s205 + $0x8] sm:$0xff]
                %210 = vst [vmem:[%s206 + $0x8] sm:$0xff] %v209
                %v211 = vld [vmem:[%s205 + $0x20] sm:$0xff]
                %212 = vst [vmem:[%s206 + $0x10] sm:$0xff] %v211
                %v213 = vld [vmem:[%s205 + $0x28] sm:$0xff]
                %214 = vst [vmem:[%s206 + $0x18] sm:$0xff] %v213
                %v215 = vld [vmem:[%s205 + $0x40] sm:$0xff]
                %216 = vst [vmem:[%s206 + $0x20] sm:$0xff] %v215
                %v217 = vld [vmem:[%s205 + $0x48] sm:$0xff]
                %218 = vst [vmem:[%s206 + $0x28] sm:$0xff] %v217
                %v219 = vld [vmem:[%s205 + $0x60] sm:$0xff]
                %220 = vst [vmem:[%s206 + $0x30] sm:$0xff] %v219
                %v221 = vld [vmem:[%s205 + $0x68] sm:$0xff]
                %222 = vst [vmem:[%s206 + $0x38] sm:$0xff] %v221
                %v223 = vld [vmem:[%s205 + $0x80] sm:$0xff]
                %224 = vst [vmem:[%s206 + $0x40] sm:$0xff] %v223
                %v225 = vld [vmem:[%s205 + $0x88] sm:$0xff]
                %226 = vst [vmem:[%s206 + $0x48] sm:$0xff] %v225
                %v227 = vld [vmem:[%s205 + $0xa0] sm:$0xff]
                %228 = vst [vmem:[%s206 + $0x50] sm:$0xff] %v227
                %v229 = vld [vmem:[%s205 + $0xa8] sm:$0xff]
                %230 = vst [vmem:[%s206 + $0x58] sm:$0xff] %v229
                %v231 = vld [vmem:[%s205 + $0xc0] sm:$0xff]
                %232 = vst [vmem:[%s206 + $0x60] sm:$0xff] %v231
                %v233 = vld [vmem:[%s205 + $0xc8] sm:$0xff]
                %234 = vst [vmem:[%s206 + $0x68] sm:$0xff] %v233
                %v235 = vld [vmem:[%s205 + $0xe0] sm:$0xff]
                %236 = vst [vmem:[%s206 + $0x70] sm:$0xff] %v235
                %v237 = vld [vmem:[%s205 + $0xe8] sm:$0xff]
                %238 = vst [vmem:[%s206 + $0x78] sm:$0xff] %v237
                %v239 = vld [vmem:[%s205 + $0x100] sm:$0xff]
                %240 = vst [vmem:[%s206 + $0x80] sm:$0xff] %v239
                %v241 = vld [vmem:[%s205 + $0x108] sm:$0xff]
                %242 = vst [vmem:[%s206 + $0x88] sm:$0xff] %v241
                %v243 = vld [vmem:[%s205 + $0x120] sm:$0xff]
                %244 = vst [vmem:[%s206 + $0x90] sm:$0xff] %v243
                %v245 = vld [vmem:[%s205 + $0x128] sm:$0xff]
                %246 = vst [vmem:[%s206 + $0x98] sm:$0xff] %v245
                %v247 = vld [vmem:[%s205 + $0x140] sm:$0xff]
                %248 = vst [vmem:[%s206 + $0xa0] sm:$0xff] %v247
                %v249 = vld [vmem:[%s205 + $0x148] sm:$0xff]
                %250 = vst [vmem:[%s206 + $0xa8] sm:$0xff] %v249
                %v251 = vld [vmem:[%s205 + $0x160] sm:$0xff]
                %252 = vst [vmem:[%s206 + $0xb0] sm:$0xff] %v251
                %v253 = vld [vmem:[%s205 + $0x168] sm:$0xff]
                %254 = vst [vmem:[%s206 + $0xb8] sm:$0xff] %v253
                %v255 = vld [vmem:[%s205 + $0x180] sm:$0xff]
                %256 = vst [vmem:[%s206 + $0xc0] sm:$0xff] %v255
                %v257 = vld [vmem:[%s205 + $0x188] sm:$0xff]
                %258 = vst [vmem:[%s206 + $0xc8] sm:$0xff] %v257
                %v259 = vld [vmem:[%s205 + $0x1a0] sm:$0xff]
                %260 = vst [vmem:[%s206 + $0xd0] sm:$0xff] %v259
                %v261 = vld [vmem:[%s205 + $0x1a8] sm:$0xff]
                %262 = vst [vmem:[%s206 + $0xd8] sm:$0xff] %v261
                %v263 = vld [vmem:[%s205 + $0x1c0] sm:$0xff]
                %264 = vst [vmem:[%s206 + $0xe0] sm:$0xff] %v263
                %v265 = vld [vmem:[%s205 + $0x1c8] sm:$0xff]
                %266 = vst [vmem:[%s206 + $0xe8] sm:$0xff] %v265
                %v267 = vld [vmem:[%s205 + $0x1e0] sm:$0xff]
                %268 = vst [vmem:[%s206 + $0xf0] sm:$0xff] %v267
                %v269 = vld [vmem:[%s205 + $0x1e8] sm:$0xff]
                %270 = vst [vmem:[%s206 + $0xf8] sm:$0xff] %v269
                %v271 = vld [vmem:[%s205 + $0x200] sm:$0xff]
                %272 = vst [vmem:[%s206 + $0x100] sm:$0xff] %v271
                %v273 = vld [vmem:[%s205 + $0x208] sm:$0xff]
                %274 = vst [vmem:[%s206 + $0x108] sm:$0xff] %v273
                %v275 = vld [vmem:[%s205 + $0x220] sm:$0xff]
                %276 = vst [vmem:[%s206 + $0x110] sm:$0xff] %v275
                %v277 = vld [vmem:[%s205 + $0x228] sm:$0xff]
                %278 = vst [vmem:[%s206 + $0x118] sm:$0xff] %v277
                %v279 = vld [vmem:[%s205 + $0x240] sm:$0xff]
                %280 = vst [vmem:[%s206 + $0x120] sm:$0xff] %v279
                %v281 = vld [vmem:[%s205 + $0x248] sm:$0xff]
                %282 = vst [vmem:[%s206 + $0x128] sm:$0xff] %v281
                %v283 = vld [vmem:[%s205 + $0x260] sm:$0xff]
                %284 = vst [vmem:[%s206 + $0x130] sm:$0xff] %v283
                %v285 = vld [vmem:[%s205 + $0x268] sm:$0xff]
                %286 = vst [vmem:[%s206 + $0x138] sm:$0xff] %v285
                %v287 = vld [vmem:[%s205 + $0x280] sm:$0xff]
                %288 = vst [vmem:[%s206 + $0x140] sm:$0xff] %v287
                %v289 = vld [vmem:[%s205 + $0x288] sm:$0xff]
                %290 = vst [vmem:[%s206 + $0x148] sm:$0xff] %v289
                %v291 = vld [vmem:[%s205 + $0x2a0] sm:$0xff]
                %292 = vst [vmem:[%s206 + $0x150] sm:$0xff] %v291
                %v293 = vld [vmem:[%s205 + $0x2a8] sm:$0xff]
                %294 = vst [vmem:[%s206 + $0x158] sm:$0xff] %v293
                %v295 = vld [vmem:[%s205 + $0x2c0] sm:$0xff]
                %296 = vst [vmem:[%s206 + $0x160] sm:$0xff] %v295
                %v297 = vld [vmem:[%s205 + $0x2c8] sm:$0xff]
                %298 = vst [vmem:[%s206 + $0x168] sm:$0xff] %v297
                %v299 = vld [vmem:[%s205 + $0x2e0] sm:$0xff]
                %300 = vst [vmem:[%s206 + $0x170] sm:$0xff] %v299
                %v301 = vld [vmem:[%s205 + $0x2e8] sm:$0xff]
                %302 = vst [vmem:[%s206 + $0x178] sm:$0xff] %v301
                %v303 = vld [vmem:[%s205 + $0x300] sm:$0xff]
                %304 = vst [vmem:[%s206 + $0x180] sm:$0xff] %v303
                %v305 = vld [vmem:[%s205 + $0x308] sm:$0xff]
                %306 = vst [vmem:[%s206 + $0x188] sm:$0xff] %v305
                %v307 = vld [vmem:[%s205 + $0x320] sm:$0xff]
                %308 = vst [vmem:[%s206 + $0x190] sm:$0xff] %v307
                %v309 = vld [vmem:[%s205 + $0x328] sm:$0xff]
                %310 = vst [vmem:[%s206 + $0x198] sm:$0xff] %v309
                %v311 = vld [vmem:[%s205 + $0x340] sm:$0xff]
                %312 = vst [vmem:[%s206 + $0x1a0] sm:$0xff] %v311
                %v313 = vld [vmem:[%s205 + $0x348] sm:$0xff]
                %314 = vst [vmem:[%s206 + $0x1a8] sm:$0xff] %v313
                %v315 = vld [vmem:[%s205 + $0x360] sm:$0xff]
                %316 = vst [vmem:[%s206 + $0x1b0] sm:$0xff] %v315
                %v317 = vld [vmem:[%s205 + $0x368] sm:$0xff]
                %318 = vst [vmem:[%s206 + $0x1b8] sm:$0xff] %v317
                %v319 = vld [vmem:[%s205 + $0x380] sm:$0xff]
                %320 = vst [vmem:[%s206 + $0x1c0] sm:$0xff] %v319
                %v321 = vld [vmem:[%s205 + $0x388] sm:$0xff]
                %322 = vst [vmem:[%s206 + $0x1c8] sm:$0xff] %v321
                %v323 = vld [vmem:[%s205 + $0x3a0] sm:$0xff]
                %324 = vst [vmem:[%s206 + $0x1d0] sm:$0xff] %v323
                %v325 = vld [vmem:[%s205 + $0x3a8] sm:$0xff]
                %326 = vst [vmem:[%s206 + $0x1d8] sm:$0xff] %v325
                %v327 = vld [vmem:[%s205 + $0x3c0] sm:$0xff]
                %328 = vst [vmem:[%s206 + $0x1e0] sm:$0xff] %v327
                %v329 = vld [vmem:[%s205 + $0x3c8] sm:$0xff]
                %330 = vst [vmem:[%s206 + $0x1e8] sm:$0xff] %v329
                %v331 = vld [vmem:[%s205 + $0x3e0] sm:$0xff]
                %332 = vst [vmem:[%s206 + $0x1f0] sm:$0xff] %v331
                %v333 = vld [vmem:[%s205 + $0x3e8] sm:$0xff]
                %334 = vst [vmem:[%s206 + $0x1f8] sm:$0xff] %v333
                %v335 = vld [vmem:[%s205 + $0x400] sm:$0xff]
                %336 = vst [vmem:[%s206 + $0x200] sm:$0xff] %v335
                %v337 = vld [vmem:[%s205 + $0x408] sm:$0xff]
                %338 = vst [vmem:[%s206 + $0x208] sm:$0xff] %v337
                %v339 = vld [vmem:[%s205 + $0x420] sm:$0xff]
                %340 = vst [vmem:[%s206 + $0x210] sm:$0xff] %v339
                %v341 = vld [vmem:[%s205 + $0x428] sm:$0xff]
                %342 = vst [vmem:[%s206 + $0x218] sm:$0xff] %v341
                %v343 = vld [vmem:[%s205 + $0x440] sm:$0xff]
                %344 = vst [vmem:[%s206 + $0x220] sm:$0xff] %v343
                %v345 = vld [vmem:[%s205 + $0x448] sm:$0xff]
                %346 = vst [vmem:[%s206 + $0x228] sm:$0xff] %v345
                %v347 = vld [vmem:[%s205 + $0x460] sm:$0xff]
                %348 = vst [vmem:[%s206 + $0x230] sm:$0xff] %v347
                %v349 = vld [vmem:[%s205 + $0x468] sm:$0xff]
                %350 = vst [vmem:[%s206 + $0x238] sm:$0xff] %v349
                %v351 = vld [vmem:[%s205 + $0x480] sm:$0xff]
                %352 = vst [vmem:[%s206 + $0x240] sm:$0xff] %v351
                %v353 = vld [vmem:[%s205 + $0x488] sm:$0xff]
                %354 = vst [vmem:[%s206 + $0x248] sm:$0xff] %v353
                %v355 = vld [vmem:[%s205 + $0x4a0] sm:$0xff]
                %356 = vst [vmem:[%s206 + $0x250] sm:$0xff] %v355
                %v357 = vld [vmem:[%s205 + $0x4a8] sm:$0xff]
                %358 = vst [vmem:[%s206 + $0x258] sm:$0xff] %v357
                %v359 = vld [vmem:[%s205 + $0x4c0] sm:$0xff]
                %360 = vst [vmem:[%s206 + $0x260] sm:$0xff] %v359
                %v361 = vld [vmem:[%s205 + $0x4c8] sm:$0xff]
                %362 = vst [vmem:[%s206 + $0x268] sm:$0xff] %v361
                %v363 = vld [vmem:[%s205 + $0x4e0] sm:$0xff]
                %364 = vst [vmem:[%s206 + $0x270] sm:$0xff] %v363
                %v365 = vld [vmem:[%s205 + $0x4e8] sm:$0xff]
                %366 = vst [vmem:[%s206 + $0x278] sm:$0xff] %v365
                %v367 = vld [vmem:[%s205 + $0x500] sm:$0xff]
                %368 = vst [vmem:[%s206 + $0x280] sm:$0xff] %v367
                %v369 = vld [vmem:[%s205 + $0x508] sm:$0xff]
                %370 = vst [vmem:[%s206 + $0x288] sm:$0xff] %v369
                %v371 = vld [vmem:[%s205 + $0x520] sm:$0xff]
                %372 = vst [vmem:[%s206 + $0x290] sm:$0xff] %v371
                %v373 = vld [vmem:[%s205 + $0x528] sm:$0xff]
                %374 = vst [vmem:[%s206 + $0x298] sm:$0xff] %v373
                %v375 = vld [vmem:[%s205 + $0x540] sm:$0xff]
                %376 = vst [vmem:[%s206 + $0x2a0] sm:$0xff] %v375
                %v377 = vld [vmem:[%s205 + $0x548] sm:$0xff]
                %378 = vst [vmem:[%s206 + $0x2a8] sm:$0xff] %v377
                %v379 = vld [vmem:[%s205 + $0x560] sm:$0xff]
                %380 = vst [vmem:[%s206 + $0x2b0] sm:$0xff] %v379
                %v381 = vld [vmem:[%s205 + $0x568] sm:$0xff]
                %382 = vst [vmem:[%s206 + $0x2b8] sm:$0xff] %v381
                %v383 = vld [vmem:[%s205 + $0x580] sm:$0xff]
                %384 = vst [vmem:[%s206 + $0x2c0] sm:$0xff] %v383
                %v385 = vld [vmem:[%s205 + $0x588] sm:$0xff]
                %386 = vst [vmem:[%s206 + $0x2c8] sm:$0xff] %v385
                %v387 = vld [vmem:[%s205 + $0x5a0] sm:$0xff]
                %388 = vst [vmem:[%s206 + $0x2d0] sm:$0xff] %v387
                %v389 = vld [vmem:[%s205 + $0x5a8] sm:$0xff]
                %390 = vst [vmem:[%s206 + $0x2d8] sm:$0xff] %v389
                %v391 = vld [vmem:[%s205 + $0x5c0] sm:$0xff]
                %392 = vst [vmem:[%s206 + $0x2e0] sm:$0xff] %v391
                %v393 = vld [vmem:[%s205 + $0x5c8] sm:$0xff]
                %394 = vst [vmem:[%s206 + $0x2e8] sm:$0xff] %v393
                %v395 = vld [vmem:[%s205 + $0x5e0] sm:$0xff]
                %396 = vst [vmem:[%s206 + $0x2f0] sm:$0xff] %v395
                %v397 = vld [vmem:[%s205 + $0x5e8] sm:$0xff]
                %398 = vst [vmem:[%s206 + $0x2f8] sm:$0xff] %v397
                %v399 = vld [vmem:[%s205 + $0x600] sm:$0xff]
                %400 = vst [vmem:[%s206 + $0x300] sm:$0xff] %v399
                %v401 = vld [vmem:[%s205 + $0x608] sm:$0xff]
                %402 = vst [vmem:[%s206 + $0x308] sm:$0xff] %v401
                %v403 = vld [vmem:[%s205 + $0x620] sm:$0xff]
                %404 = vst [vmem:[%s206 + $0x310] sm:$0xff] %v403
                %v405 = vld [vmem:[%s205 + $0x628] sm:$0xff]
                %406 = vst [vmem:[%s206 + $0x318] sm:$0xff] %v405
                %v407 = vld [vmem:[%s205 + $0x640] sm:$0xff]
                %408 = vst [vmem:[%s206 + $0x320] sm:$0xff] %v407
                %v409 = vld [vmem:[%s205 + $0x648] sm:$0xff]
                %410 = vst [vmem:[%s206 + $0x328] sm:$0xff] %v409
                %v411 = vld [vmem:[%s205 + $0x660] sm:$0xff]
                %412 = vst [vmem:[%s206 + $0x330] sm:$0xff] %v411
                %v413 = vld [vmem:[%s205 + $0x668] sm:$0xff]
                %414 = vst [vmem:[%s206 + $0x338] sm:$0xff] %v413
                %v415 = vld [vmem:[%s205 + $0x680] sm:$0xff]
                %416 = vst [vmem:[%s206 + $0x340] sm:$0xff] %v415
                %v417 = vld [vmem:[%s205 + $0x688] sm:$0xff]
                %418 = vst [vmem:[%s206 + $0x348] sm:$0xff] %v417
                %v419 = vld [vmem:[%s205 + $0x6a0] sm:$0xff]
                %420 = vst [vmem:[%s206 + $0x350] sm:$0xff] %v419
                %v421 = vld [vmem:[%s205 + $0x6a8] sm:$0xff]
                %422 = vst [vmem:[%s206 + $0x358] sm:$0xff] %v421
                %v423 = vld [vmem:[%s205 + $0x6c0] sm:$0xff]
                %424 = vst [vmem:[%s206 + $0x360] sm:$0xff] %v423
                %v425 = vld [vmem:[%s205 + $0x6c8] sm:$0xff]
                %426 = vst [vmem:[%s206 + $0x368] sm:$0xff] %v425
                %v427 = vld [vmem:[%s205 + $0x6e0] sm:$0xff]
                %428 = vst [vmem:[%s206 + $0x370] sm:$0xff] %v427
                %v429 = vld [vmem:[%s205 + $0x6e8] sm:$0xff]
                %430 = vst [vmem:[%s206 + $0x378] sm:$0xff] %v429
                %v431 = vld [vmem:[%s205 + $0x700] sm:$0xff]
                %432 = vst [vmem:[%s206 + $0x380] sm:$0xff] %v431
                %v433 = vld [vmem:[%s205 + $0x708] sm:$0xff]
                %434 = vst [vmem:[%s206 + $0x388] sm:$0xff] %v433
                %v435 = vld [vmem:[%s205 + $0x720] sm:$0xff]
                %436 = vst [vmem:[%s206 + $0x390] sm:$0xff] %v435
                %v437 = vld [vmem:[%s205 + $0x728] sm:$0xff]
                %438 = vst [vmem:[%s206 + $0x398] sm:$0xff] %v437
                %v439 = vld [vmem:[%s205 + $0x740] sm:$0xff]
                %440 = vst [vmem:[%s206 + $0x3a0] sm:$0xff] %v439
                %v441 = vld [vmem:[%s205 + $0x748] sm:$0xff]
                %442 = vst [vmem:[%s206 + $0x3a8] sm:$0xff] %v441
                %v443 = vld [vmem:[%s205 + $0x760] sm:$0xff]
                %444 = vst [vmem:[%s206 + $0x3b0] sm:$0xff] %v443
                %v445 = vld [vmem:[%s205 + $0x768] sm:$0xff]
                %446 = vst [vmem:[%s206 + $0x3b8] sm:$0xff] %v445
                %v447 = vld [vmem:[%s205 + $0x780] sm:$0xff]
                %448 = vst [vmem:[%s206 + $0x3c0] sm:$0xff] %v447
                %v449 = vld [vmem:[%s205 + $0x788] sm:$0xff]
                %450 = vst [vmem:[%s206 + $0x3c8] sm:$0xff] %v449
                %v451 = vld [vmem:[%s205 + $0x7a0] sm:$0xff]
                %452 = vst [vmem:[%s206 + $0x3d0] sm:$0xff] %v451
                %v453 = vld [vmem:[%s205 + $0x7a8] sm:$0xff]
                %454 = vst [vmem:[%s206 + $0x3d8] sm:$0xff] %v453
                %v455 = vld [vmem:[%s205 + $0x7c0] sm:$0xff]
                %456 = vst [vmem:[%s206 + $0x3e0] sm:$0xff] %v455
                %v457 = vld [vmem:[%s205 + $0x7c8] sm:$0xff]
                %458 = vst [vmem:[%s206 + $0x3e8] sm:$0xff] %v457
                %v459 = vld [vmem:[%s205 + $0x7e0] sm:$0xff]
                %460 = vst [vmem:[%s206 + $0x3f0] sm:$0xff] %v459
                %v461 = vld [vmem:[%s205 + $0x7e8] sm:$0xff]
                %462 = vst [vmem:[%s206 + $0x3f8] sm:$0xff] %v461
              $region41: #{discriminator_forward.5} parent=35 // loop_footer
                %s204 = sadd.s32 1, %s200
              $region42: #{discriminator_forward.5} parent=35 // loop_footer_branch
                %199 = sbr.rel target = $region38
              $region43: #{discriminator_forward.5} parent=35 // loop_exit
                _
            $region36: #{discriminator_forward.5} parent=31 // pred_fallthru
              _
            // Predicated region
            $region44: #{discriminator_forward.5} parent=31 // pred_check
              _
            $region45: #{discriminator_forward.5} parent=31 // pred_check_branch
              %464 = sbr.rel target = $region47
            $region46: #{discriminator_forward.5} parent=31 // pred_region
              _
            $region47: #{discriminator_forward.5} parent=31 // pred_fallthru
              _
          $region32: #{discriminator_forward.5} parent=27 // pred_fallthru
            _
          %465 = vnop
        $region28: #{discriminator_forward.5} parent=23 // pred_fallthru
          _
        // Predicated region
        $region48: #{discriminator_forward.5} parent=23 // pred_check
          %p466 = pneg %p70
        $region49: #{discriminator_forward.5} parent=23 // pred_check_branch
          %468 = sbr.rel (%p466) target = $region51
        $region50: #{discriminator_forward.5} parent=23 // pred_region
          %s469 = smul.u32 64, %s18
          %p470 = scmp.lt.s32.totalorder %s469, 127
          %s471 = scalar_select %p470, %s469, 127
          %p472 = scmp.lt.s32.totalorder %s17, 0
          %s473 = scalar_select %p472, %s17, 0
          %s474 = sadd.s32 %s473, %s471
          %s475 = smul.addr %s474, 4
          %s476 = scalar_lea.vmem %s1, %s475
          %s477 = smul.u32 64, %s18
        $region51: #{discriminator_forward.5} parent=23 // pred_fallthru
          _
      $region24: #{discriminator_forward.5} parent=5 // pred_fallthru
        _
      %p478 = scmp.le.s32.totalorder 1, %s10
      %p479 = scmp.lt.s32.totalorder %s10, 3
      %p480 = pnand %p478, %p479
      %p481 = pneg %p480
      // Predicated region
      $region52: #{discriminator_forward.5} parent=5 // pred_check
        _
      $region53: #{discriminator_forward.5} parent=5 // pred_check_branch
        %483 = sbr.rel (%p480) target = $region55
      $region54: #{discriminator_forward.5} parent=5 // pred_region
        %s484 = ssub.s32 %s10, 1
        %s485 = sand.u32 %s35, 1
        %s486 = sand.u32 %s35, 1
        %s487 = smul.addr %s486, 1024
        %s488 = scalar_lea.vmem [#allocation3], %s487
        // Predicated region
        $region56: #{discriminator_forward.5} parent=54 // pred_check
          %p489 = pneg %p48
        $region57: #{discriminator_forward.5} parent=54 // pred_check_branch
          %491 = sbr.rel (%p489) target = $region59
        $region58: #{discriminator_forward.5} parent=54 // pred_region
          _
        $region59: #{discriminator_forward.5} parent=54 // pred_fallthru
          _
        %s492 = sand.u32 %s35, 1
        %s493 = sand.u32 %s35, 1
        %s494 = smul.addr %s493, 1024
        %s495 = scalar_lea.vmem [#allocation3], %s494
        %p496 = pneg %p48
        %p497 = pneg %p45
        %s498 = smul.u32 64, %s20
        %p499 = scmp.lt.s32.totalorder %s498, 127
        %s500 = scalar_select %p499, %s498, 127
        %p501 = scmp.lt.s32.totalorder %s19, 0
        %s502 = scalar_select %p501, %s19, 0
        %s503 = sadd.s32 %s502, %s500
        %s504 = smul.addr %s503, 4
        %s505 = scalar_lea.vmem %s1, %s504
        %p506 = pneg %p76
        %p507 = pneg %p73
        %p508 = scmp.lt.s32.totalorder %s19, 0
        %s509 = scalar_select %p508, %s19, 0
        %s510 = scalar_lea.vmem %s2, %s509
        %p511 = pneg %p102
        %p512 = pneg %p99
        %p513 = scmp.lt.s32.totalorder %s19, 0
        %s514 = scalar_select %p513, %s19, 0
        %s515 = scalar_lea.vmem %s3, %s514
        %p516 = pneg %p128
        %p517 = pneg %p125
        %p518 = pneg %p154
        %p519 = pneg %p151
        %p520 = scmp.lt.s32.totalorder %s19, 0
        %s521 = scalar_select %p520, %s19, 0
        %s522 = smul.addr %s521, 4
        %s523 = scalar_lea.vmem %s4, %s522
        %s524 = smul.u32 4, %s20
        %s525 = smul.u32 64, %s20
        %p526 = scmp.lt.s32.totalorder %s525, 127
        %s527 = scalar_select %p526, %s525, 127
        %p528 = scmp.lt.s32.totalorder %s19, 0
        %s529 = scalar_select %p528, %s19, 0
        %s530 = sadd.s32 %s529, %s527
        %s531 = smul.addr %s530, 4
        %s532 = scalar_lea.vmem %s1, %s531
        %s533 = smul.u32 64, %s20
        %p534 = scmp.lt.s32.totalorder %s19, 0
        %s535 = scalar_select %p534, %s19, 0
        %s536 = scalar_lea.vmem %s2, %s535
        %p537 = scmp.lt.s32.totalorder %s19, 0
        %s538 = scalar_select %p537, %s19, 0
        %s539 = scalar_lea.vmem %s3, %s538
        %p540 = scmp.lt.s32.totalorder %s19, 0
        %s541 = scalar_select %p540, %s19, 0
        %s542 = smul.addr %s541, 4
        %s543 = scalar_lea.vmem %s4, %s542
        %p545 = scmp.eq.s32.totalorder %s20, 0
        // Predicated region
        $region60: #{discriminator_forward.5} parent=54 // pred_check
          %p546 = pneg %p545
        $region61: #{discriminator_forward.5} parent=54 // pred_check_branch
          %548 = sbr.rel (%p546) target = $region63
        $region62: #{discriminator_forward.5} parent=54 // pred_region
          %549 = vst [vmem:[#allocation2] sm:$0xff] 0.0
          %550 = vst [vmem:[#allocation2 + $0x8] sm:$0xff] 0.0
          %551 = vst [vmem:[#allocation2 + $0x10] sm:$0xff] 0.0
          %552 = vst [vmem:[#allocation2 + $0x18] sm:$0xff] 0.0
          %553 = vst [vmem:[#allocation2 + $0x20] sm:$0xff] 0.0
          %554 = vst [vmem:[#allocation2 + $0x28] sm:$0xff] 0.0
          %555 = vst [vmem:[#allocation2 + $0x30] sm:$0xff] 0.0
          %556 = vst [vmem:[#allocation2 + $0x38] sm:$0xff] 0.0
          %557 = vst [vmem:[#allocation2 + $0x40] sm:$0xff] 0.0
          %558 = vst [vmem:[#allocation2 + $0x48] sm:$0xff] 0.0
          %559 = vst [vmem:[#allocation2 + $0x50] sm:$0xff] 0.0
          %560 = vst [vmem:[#allocation2 + $0x58] sm:$0xff] 0.0
          %561 = vst [vmem:[#allocation2 + $0x60] sm:$0xff] 0.0
          %562 = vst [vmem:[#allocation2 + $0x68] sm:$0xff] 0.0
          %563 = vst [vmem:[#allocation2 + $0x70] sm:$0xff] 0.0
          %564 = vst [vmem:[#allocation2 + $0x78] sm:$0xff] 0.0
          %565 = vst [vmem:[#allocation2 + $0x80] sm:$0xff] 0.0
          %566 = vst [vmem:[#allocation2 + $0x88] sm:$0xff] 0.0
          %567 = vst [vmem:[#allocation2 + $0x90] sm:$0xff] 0.0
          %568 = vst [vmem:[#allocation2 + $0x98] sm:$0xff] 0.0
          %569 = vst [vmem:[#allocation2 + $0xa0] sm:$0xff] 0.0
          %570 = vst [vmem:[#allocation2 + $0xa8] sm:$0xff] 0.0
          %571 = vst [vmem:[#allocation2 + $0xb0] sm:$0xff] 0.0
          %572 = vst [vmem:[#allocation2 + $0xb8] sm:$0xff] 0.0
          %573 = vst [vmem:[#allocation2 + $0xc0] sm:$0xff] 0.0
          %574 = vst [vmem:[#allocation2 + $0xc8] sm:$0xff] 0.0
          %575 = vst [vmem:[#allocation2 + $0xd0] sm:$0xff] 0.0
          %576 = vst [vmem:[#allocation2 + $0xd8] sm:$0xff] 0.0
          %577 = vst [vmem:[#allocation2 + $0xe0] sm:$0xff] 0.0
          %578 = vst [vmem:[#allocation2 + $0xe8] sm:$0xff] 0.0
          %579 = vst [vmem:[#allocation2 + $0xf0] sm:$0xff] 0.0
          %580 = vst [vmem:[#allocation2 + $0xf8] sm:$0xff] 0.0
          %581 = vst [vmem:[#allocation2 + $0x100] sm:$0xff] 0.0
          %582 = vst [vmem:[#allocation2 + $0x108] sm:$0xff] 0.0
          %583 = vst [vmem:[#allocation2 + $0x110] sm:$0xff] 0.0
          %584 = vst [vmem:[#allocation2 + $0x118] sm:$0xff] 0.0
          %585 = vst [vmem:[#allocation2 + $0x120] sm:$0xff] 0.0
          %586 = vst [vmem:[#allocation2 + $0x128] sm:$0xff] 0.0
          %587 = vst [vmem:[#allocation2 + $0x130] sm:$0xff] 0.0
          %588 = vst [vmem:[#allocation2 + $0x138] sm:$0xff] 0.0
          %589 = vst [vmem:[#allocation2 + $0x140] sm:$0xff] 0.0
          %590 = vst [vmem:[#allocation2 + $0x148] sm:$0xff] 0.0
          %591 = vst [vmem:[#allocation2 + $0x150] sm:$0xff] 0.0
          %592 = vst [vmem:[#allocation2 + $0x158] sm:$0xff] 0.0
          %593 = vst [vmem:[#allocation2 + $0x160] sm:$0xff] 0.0
          %594 = vst [vmem:[#allocation2 + $0x168] sm:$0xff] 0.0
          %595 = vst [vmem:[#allocation2 + $0x170] sm:$0xff] 0.0
          %596 = vst [vmem:[#allocation2 + $0x178] sm:$0xff] 0.0
          %597 = vst [vmem:[#allocation2 + $0x180] sm:$0xff] 0.0
          %598 = vst [vmem:[#allocation2 + $0x188] sm:$0xff] 0.0
          %599 = vst [vmem:[#allocation2 + $0x190] sm:$0xff] 0.0
          %600 = vst [vmem:[#allocation2 + $0x198] sm:$0xff] 0.0
          %601 = vst [vmem:[#allocation2 + $0x1a0] sm:$0xff] 0.0
          %602 = vst [vmem:[#allocation2 + $0x1a8] sm:$0xff] 0.0
          %603 = vst [vmem:[#allocation2 + $0x1b0] sm:$0xff] 0.0
          %604 = vst [vmem:[#allocation2 + $0x1b8] sm:$0xff] 0.0
          %605 = vst [vmem:[#allocation2 + $0x1c0] sm:$0xff] 0.0
          %606 = vst [vmem:[#allocation2 + $0x1c8] sm:$0xff] 0.0
          %607 = vst [vmem:[#allocation2 + $0x1d0] sm:$0xff] 0.0
          %608 = vst [vmem:[#allocation2 + $0x1d8] sm:$0xff] 0.0
          %609 = vst [vmem:[#allocation2 + $0x1e0] sm:$0xff] 0.0
          %610 = vst [vmem:[#allocation2 + $0x1e8] sm:$0xff] 0.0
          %611 = vst [vmem:[#allocation2 + $0x1f0] sm:$0xff] 0.0
          %612 = vst [vmem:[#allocation2 + $0x1f8] sm:$0xff] 0.0
        $region63: #{discriminator_forward.5} parent=54 // pred_fallthru
          _
        %v613 = vld [vmem:[#allocation2] sm:$0xff]
        %v614 = vld [vmem:[#allocation2 + $0x8] sm:$0xff]
        %v615 = vld [vmem:[#allocation2 + $0x10] sm:$0xff]
        %v616 = vld [vmem:[#allocation2 + $0x18] sm:$0xff]
        %v617 = vld [vmem:[#allocation2 + $0x20] sm:$0xff]
        %v618 = vld [vmem:[#allocation2 + $0x28] sm:$0xff]
        %v619 = vld [vmem:[#allocation2 + $0x30] sm:$0xff]
        %v620 = vld [vmem:[#allocation2 + $0x38] sm:$0xff]
        %v621 = vld [vmem:[#allocation2 + $0x40] sm:$0xff]
        %v622 = vld [vmem:[#allocation2 + $0x48] sm:$0xff]
        %v623 = vld [vmem:[#allocation2 + $0x50] sm:$0xff]
        %v624 = vld [vmem:[#allocation2 + $0x58] sm:$0xff]
        %v625 = vld [vmem:[#allocation2 + $0x60] sm:$0xff]
        %v626 = vld [vmem:[#allocation2 + $0x68] sm:$0xff]
        %v627 = vld [vmem:[#allocation2 + $0x70] sm:$0xff]
        %v628 = vld [vmem:[#allocation2 + $0x78] sm:$0xff]
        %v629 = vld [vmem:[#allocation2 + $0x80] sm:$0xff]
        %v630 = vld [vmem:[#allocation2 + $0x88] sm:$0xff]
        %v631 = vld [vmem:[#allocation2 + $0x90] sm:$0xff]
        %v632 = vld [vmem:[#allocation2 + $0x98] sm:$0xff]
        %v633 = vld [vmem:[#allocation2 + $0xa0] sm:$0xff]
        %v634 = vld [vmem:[#allocation2 + $0xa8] sm:$0xff]
        %v635 = vld [vmem:[#allocation2 + $0xb0] sm:$0xff]
        %v636 = vld [vmem:[#allocation2 + $0xb8] sm:$0xff]
        %v637 = vld [vmem:[#allocation2 + $0xc0] sm:$0xff]
        %v638 = vld [vmem:[#allocation2 + $0xc8] sm:$0xff]
        %v639 = vld [vmem:[#allocation2 + $0xd0] sm:$0xff]
        %v640 = vld [vmem:[#allocation2 + $0xd8] sm:$0xff]
        %v641 = vld [vmem:[#allocation2 + $0xe0] sm:$0xff]
        %v642 = vld [vmem:[#allocation2 + $0xe8] sm:$0xff]
        %v643 = vld [vmem:[#allocation2 + $0xf0] sm:$0xff]
        %v644 = vld [vmem:[#allocation2 + $0xf8] sm:$0xff]
        %v645 = vld [vmem:[#allocation2 + $0x100] sm:$0xff]
        %v646 = vld [vmem:[#allocation2 + $0x108] sm:$0xff]
        %v647 = vld [vmem:[#allocation2 + $0x110] sm:$0xff]
        %v648 = vld [vmem:[#allocation2 + $0x118] sm:$0xff]
        %v649 = vld [vmem:[#allocation2 + $0x120] sm:$0xff]
        %v650 = vld [vmem:[#allocation2 + $0x128] sm:$0xff]
        %v651 = vld [vmem:[#allocation2 + $0x130] sm:$0xff]
        %v652 = vld [vmem:[#allocation2 + $0x138] sm:$0xff]
        %v653 = vld [vmem:[#allocation2 + $0x140] sm:$0xff]
        %v654 = vld [vmem:[#allocation2 + $0x148] sm:$0xff]
        %v655 = vld [vmem:[#allocation2 + $0x150] sm:$0xff]
        %v656 = vld [vmem:[#allocation2 + $0x158] sm:$0xff]
        %v657 = vld [vmem:[#allocation2 + $0x160] sm:$0xff]
        %v658 = vld [vmem:[#allocation2 + $0x168] sm:$0xff]
        %v659 = vld [vmem:[#allocation2 + $0x170] sm:$0xff]
        %v660 = vld [vmem:[#allocation2 + $0x178] sm:$0xff]
        %v661 = vld [vmem:[#allocation2 + $0x180] sm:$0xff]
        %v662 = vld [vmem:[#allocation2 + $0x188] sm:$0xff]
        %v663 = vld [vmem:[#allocation2 + $0x190] sm:$0xff]
        %v664 = vld [vmem:[#allocation2 + $0x198] sm:$0xff]
        %v665 = vld [vmem:[#allocation2 + $0x1a0] sm:$0xff]
        %v666 = vld [vmem:[#allocation2 + $0x1a8] sm:$0xff]
        %v667 = vld [vmem:[#allocation2 + $0x1b0] sm:$0xff]
        %v668 = vld [vmem:[#allocation2 + $0x1b8] sm:$0xff]
        %v669 = vld [vmem:[#allocation2 + $0x1c0] sm:$0xff]
        %v670 = vld [vmem:[#allocation2 + $0x1c8] sm:$0xff]
        %v671 = vld [vmem:[#allocation2 + $0x1d0] sm:$0xff]
        %v672 = vld [vmem:[#allocation2 + $0x1d8] sm:$0xff]
        %v673 = vld [vmem:[#allocation2 + $0x1e0] sm:$0xff]
        %v674 = vld [vmem:[#allocation2 + $0x1e8] sm:$0xff]
        %v675 = vld [vmem:[#allocation2 + $0x1f0] sm:$0xff]
        %v676 = vld [vmem:[#allocation2 + $0x1f8] sm:$0xff]
        %v677 = vld [vmem:[%s488] sm:$0xff]
        %v678 = vld [vmem:[%s488 + $0x8] sm:$0xff]
        %v679 = vld [vmem:[%s488 + $0x10] sm:$0xff]
        %v680 = vld [vmem:[%s488 + $0x18] sm:$0xff]
        %v681 = vld [vmem:[%s488 + $0x20] sm:$0xff]
        %v682 = vld [vmem:[%s488 + $0x28] sm:$0xff]
        %v683 = vld [vmem:[%s488 + $0x30] sm:$0xff]
        %v684 = vld [vmem:[%s488 + $0x38] sm:$0xff]
        %v685 = vld [vmem:[%s488 + $0x40] sm:$0xff]
        %v686 = vld [vmem:[%s488 + $0x48] sm:$0xff]
        %v687 = vld [vmem:[%s488 + $0x50] sm:$0xff]
        %v688 = vld [vmem:[%s488 + $0x58] sm:$0xff]
        %v689 = vld [vmem:[%s488 + $0x60] sm:$0xff]
        %v690 = vld [vmem:[%s488 + $0x68] sm:$0xff]
        %v691 = vld [vmem:[%s488 + $0x70] sm:$0xff]
        %v692 = vld [vmem:[%s488 + $0x78] sm:$0xff]
        %v693 = vld [vmem:[%s488 + $0x80] sm:$0xff]
        %v694 = vld [vmem:[%s488 + $0x88] sm:$0xff]
        %v695 = vld [vmem:[%s488 + $0x90] sm:$0xff]
        %v696 = vld [vmem:[%s488 + $0x98] sm:$0xff]
        %v697 = vld [vmem:[%s488 + $0xa0] sm:$0xff]
        %v698 = vld [vmem:[%s488 + $0xa8] sm:$0xff]
        %v699 = vld [vmem:[%s488 + $0xb0] sm:$0xff]
        %v700 = vld [vmem:[%s488 + $0xb8] sm:$0xff]
        %v701 = vld [vmem:[%s488 + $0xc0] sm:$0xff]
        %v702 = vld [vmem:[%s488 + $0xc8] sm:$0xff]
        %v703 = vld [vmem:[%s488 + $0xd0] sm:$0xff]
        %v704 = vld [vmem:[%s488 + $0xd8] sm:$0xff]
        %v705 = vld [vmem:[%s488 + $0xe0] sm:$0xff]
        %v706 = vld [vmem:[%s488 + $0xe8] sm:$0xff]
        %v707 = vld [vmem:[%s488 + $0xf0] sm:$0xff]
        %v708 = vld [vmem:[%s488 + $0xf8] sm:$0xff]
        %v709 = vld [vmem:[%s488 + $0x100] sm:$0xff]
        %v710 = vld [vmem:[%s488 + $0x108] sm:$0xff]
        %v711 = vld [vmem:[%s488 + $0x110] sm:$0xff]
        %v712 = vld [vmem:[%s488 + $0x118] sm:$0xff]
        %v713 = vld [vmem:[%s488 + $0x120] sm:$0xff]
        %v714 = vld [vmem:[%s488 + $0x128] sm:$0xff]
        %v715 = vld [vmem:[%s488 + $0x130] sm:$0xff]
        %v716 = vld [vmem:[%s488 + $0x138] sm:$0xff]
        %v717 = vld [vmem:[%s488 + $0x140] sm:$0xff]
        %v718 = vld [vmem:[%s488 + $0x148] sm:$0xff]
        %v719 = vld [vmem:[%s488 + $0x150] sm:$0xff]
        %v720 = vld [vmem:[%s488 + $0x158] sm:$0xff]
        %v721 = vld [vmem:[%s488 + $0x160] sm:$0xff]
        %v722 = vld [vmem:[%s488 + $0x168] sm:$0xff]
        %v723 = vld [vmem:[%s488 + $0x170] sm:$0xff]
        %v724 = vld [vmem:[%s488 + $0x178] sm:$0xff]
        %v725 = vld [vmem:[%s488 + $0x180] sm:$0xff]
        %v726 = vld [vmem:[%s488 + $0x188] sm:$0xff]
        %v727 = vld [vmem:[%s488 + $0x190] sm:$0xff]
        %v728 = vld [vmem:[%s488 + $0x198] sm:$0xff]
        %v729 = vld [vmem:[%s488 + $0x1a0] sm:$0xff]
        %v730 = vld [vmem:[%s488 + $0x1a8] sm:$0xff]
        %v731 = vld [vmem:[%s488 + $0x1b0] sm:$0xff]
        %v732 = vld [vmem:[%s488 + $0x1b8] sm:$0xff]
        %v733 = vld [vmem:[%s488 + $0x1c0] sm:$0xff]
        %v734 = vld [vmem:[%s488 + $0x1c8] sm:$0xff]
        %v735 = vld [vmem:[%s488 + $0x1d0] sm:$0xff]
        %v736 = vld [vmem:[%s488 + $0x1d8] sm:$0xff]
        %v737 = vld [vmem:[%s488 + $0x1e0] sm:$0xff]
        %v738 = vld [vmem:[%s488 + $0x1e8] sm:$0xff]
        %v739 = vld [vmem:[%s488 + $0x1f0] sm:$0xff]
        %v740 = vld [vmem:[%s488 + $0x1f8] sm:$0xff]
        %v741 = vld [vmem:[%s488 + $0x200] sm:$0xff]
        %v742 = vld [vmem:[%s488 + $0x208] sm:$0xff]
        %v743 = vld [vmem:[%s488 + $0x210] sm:$0xff]
        %v744 = vld [vmem:[%s488 + $0x218] sm:$0xff]
        %v745 = vld [vmem:[%s488 + $0x220] sm:$0xff]
        %v746 = vld [vmem:[%s488 + $0x228] sm:$0xff]
        %v747 = vld [vmem:[%s488 + $0x230] sm:$0xff]
        %v748 = vld [vmem:[%s488 + $0x238] sm:$0xff]
        %v749 = vld [vmem:[%s488 + $0x240] sm:$0xff]
        %v750 = vld [vmem:[%s488 + $0x248] sm:$0xff]
        %v751 = vld [vmem:[%s488 + $0x250] sm:$0xff]
        %v752 = vld [vmem:[%s488 + $0x258] sm:$0xff]
        %v753 = vld [vmem:[%s488 + $0x260] sm:$0xff]
        %v754 = vld [vmem:[%s488 + $0x268] sm:$0xff]
        %v755 = vld [vmem:[%s488 + $0x270] sm:$0xff]
        %v756 = vld [vmem:[%s488 + $0x278] sm:$0xff]
        %v757 = vld [vmem:[%s488 + $0x280] sm:$0xff]
        %v758 = vld [vmem:[%s488 + $0x288] sm:$0xff]
        %v759 = vld [vmem:[%s488 + $0x290] sm:$0xff]
        %v760 = vld [vmem:[%s488 + $0x298] sm:$0xff]
        %v761 = vld [vmem:[%s488 + $0x2a0] sm:$0xff]
        %v762 = vld [vmem:[%s488 + $0x2a8] sm:$0xff]
        %v763 = vld [vmem:[%s488 + $0x2b0] sm:$0xff]
        %v764 = vld [vmem:[%s488 + $0x2b8] sm:$0xff]
        %v765 = vld [vmem:[%s488 + $0x2c0] sm:$0xff]
        %v766 = vld [vmem:[%s488 + $0x2c8] sm:$0xff]
        %v767 = vld [vmem:[%s488 + $0x2d0] sm:$0xff]
        %v768 = vld [vmem:[%s488 + $0x2d8] sm:$0xff]
        %v769 = vld [vmem:[%s488 + $0x2e0] sm:$0xff]
        %v770 = vld [vmem:[%s488 + $0x2e8] sm:$0xff]
        %v771 = vld [vmem:[%s488 + $0x2f0] sm:$0xff]
        %v772 = vld [vmem:[%s488 + $0x2f8] sm:$0xff]
        %v773 = vld [vmem:[%s488 + $0x300] sm:$0xff]
        %v774 = vld [vmem:[%s488 + $0x308] sm:$0xff]
        %v775 = vld [vmem:[%s488 + $0x310] sm:$0xff]
        %v776 = vld [vmem:[%s488 + $0x318] sm:$0xff]
        %v777 = vld [vmem:[%s488 + $0x320] sm:$0xff]
        %v778 = vld [vmem:[%s488 + $0x328] sm:$0xff]
        %v779 = vld [vmem:[%s488 + $0x330] sm:$0xff]
        %v780 = vld [vmem:[%s488 + $0x338] sm:$0xff]
        %v781 = vld [vmem:[%s488 + $0x340] sm:$0xff]
        %v782 = vld [vmem:[%s488 + $0x348] sm:$0xff]
        %v783 = vld [vmem:[%s488 + $0x350] sm:$0xff]
        %v784 = vld [vmem:[%s488 + $0x358] sm:$0xff]
        %v785 = vld [vmem:[%s488 + $0x360] sm:$0xff]
        %v786 = vld [vmem:[%s488 + $0x368] sm:$0xff]
        %v787 = vld [vmem:[%s488 + $0x370] sm:$0xff]
        %v788 = vld [vmem:[%s488 + $0x378] sm:$0xff]
        %v789 = vld [vmem:[%s488 + $0x380] sm:$0xff]
        %v790 = vld [vmem:[%s488 + $0x388] sm:$0xff]
        %v791 = vld [vmem:[%s488 + $0x390] sm:$0xff]
        %v792 = vld [vmem:[%s488 + $0x398] sm:$0xff]
        %v793 = vld [vmem:[%s488 + $0x3a0] sm:$0xff]
        %v794 = vld [vmem:[%s488 + $0x3a8] sm:$0xff]
        %v795 = vld [vmem:[%s488 + $0x3b0] sm:$0xff]
        %v796 = vld [vmem:[%s488 + $0x3b8] sm:$0xff]
        %v797 = vld [vmem:[%s488 + $0x3c0] sm:$0xff]
        %v798 = vld [vmem:[%s488 + $0x3c8] sm:$0xff]
        %v799 = vld [vmem:[%s488 + $0x3d0] sm:$0xff]
        %v800 = vld [vmem:[%s488 + $0x3d8] sm:$0xff]
        %v801 = vld [vmem:[%s488 + $0x3e0] sm:$0xff]
        %v802 = vld [vmem:[%s488 + $0x3e8] sm:$0xff]
        %v803 = vld [vmem:[%s488 + $0x3f0] sm:$0xff]
        %v804 = vld [vmem:[%s488 + $0x3f8] sm:$0xff]
        %v805 = vld [vmem:[%s532] sm:$0xf]
        %v806 = vld [vmem:[%s532 + $0x4] sm:$0xf]
        %v807 = vld [vmem:[%s532 + $0x8] sm:$0xf]
        %v808 = vld [vmem:[%s532 + $0xc] sm:$0xf]
        %v809 = vld [vmem:[%s532 + $0x10] sm:$0xf]
        %v810 = vld [vmem:[%s532 + $0x14] sm:$0xf]
        %v811 = vld [vmem:[%s532 + $0x18] sm:$0xf]
        %v812 = vld [vmem:[%s532 + $0x1c] sm:$0xf]
        %v813 = vld [vmem:[%s532 + $0x20] sm:$0xf]
        %v814 = vld [vmem:[%s532 + $0x24] sm:$0xf]
        %v815 = vld [vmem:[%s532 + $0x28] sm:$0xf]
        %v816 = vld [vmem:[%s532 + $0x2c] sm:$0xf]
        %v817 = vld [vmem:[%s532 + $0x30] sm:$0xf]
        %v818 = vld [vmem:[%s532 + $0x34] sm:$0xf]
        %v819 = vld [vmem:[%s532 + $0x38] sm:$0xf]
        %v820 = vld [vmem:[%s532 + $0x3c] sm:$0xf]
        %v821 = vld [vmem:[%s532 + $0x40] sm:$0xf]
        %v822 = vld [vmem:[%s532 + $0x44] sm:$0xf]
        %v823 = vld [vmem:[%s532 + $0x48] sm:$0xf]
        %v824 = vld [vmem:[%s532 + $0x4c] sm:$0xf]
        %v825 = vld [vmem:[%s532 + $0x50] sm:$0xf]
        %v826 = vld [vmem:[%s532 + $0x54] sm:$0xf]
        %v827 = vld [vmem:[%s532 + $0x58] sm:$0xf]
        %v828 = vld [vmem:[%s532 + $0x5c] sm:$0xf]
        %v829 = vld [vmem:[%s532 + $0x60] sm:$0xf]
        %v830 = vld [vmem:[%s532 + $0x64] sm:$0xf]
        %v831 = vld [vmem:[%s532 + $0x68] sm:$0xf]
        %v832 = vld [vmem:[%s532 + $0x6c] sm:$0xf]
        %v833 = vld [vmem:[%s532 + $0x70] sm:$0xf]
        %v834 = vld [vmem:[%s532 + $0x74] sm:$0xf]
        %v835 = vld [vmem:[%s532 + $0x78] sm:$0xf]
        %v836 = vld [vmem:[%s532 + $0x7c] sm:$0xf]
        %v837 = vld [vmem:[%s532 + $0x80] sm:$0xf]
        %v838 = vld [vmem:[%s532 + $0x84] sm:$0xf]
        %v839 = vld [vmem:[%s532 + $0x88] sm:$0xf]
        %v840 = vld [vmem:[%s532 + $0x8c] sm:$0xf]
        %v841 = vld [vmem:[%s532 + $0x90] sm:$0xf]
        %v842 = vld [vmem:[%s532 + $0x94] sm:$0xf]
        %v843 = vld [vmem:[%s532 + $0x98] sm:$0xf]
        %v844 = vld [vmem:[%s532 + $0x9c] sm:$0xf]
        %v845 = vld [vmem:[%s532 + $0xa0] sm:$0xf]
        %v846 = vld [vmem:[%s532 + $0xa4] sm:$0xf]
        %v847 = vld [vmem:[%s532 + $0xa8] sm:$0xf]
        %v848 = vld [vmem:[%s532 + $0xac] sm:$0xf]
        %v849 = vld [vmem:[%s532 + $0xb0] sm:$0xf]
        %v850 = vld [vmem:[%s532 + $0xb4] sm:$0xf]
        %v851 = vld [vmem:[%s532 + $0xb8] sm:$0xf]
        %v852 = vld [vmem:[%s532 + $0xbc] sm:$0xf]
        %v853 = vld [vmem:[%s532 + $0xc0] sm:$0xf]
        %v854 = vld [vmem:[%s532 + $0xc4] sm:$0xf]
        %v855 = vld [vmem:[%s532 + $0xc8] sm:$0xf]
        %v856 = vld [vmem:[%s532 + $0xcc] sm:$0xf]
        %v857 = vld [vmem:[%s532 + $0xd0] sm:$0xf]
        %v858 = vld [vmem:[%s532 + $0xd4] sm:$0xf]
        %v859 = vld [vmem:[%s532 + $0xd8] sm:$0xf]
        %v860 = vld [vmem:[%s532 + $0xdc] sm:$0xf]
        %v861 = vld [vmem:[%s532 + $0xe0] sm:$0xf]
        %v862 = vld [vmem:[%s532 + $0xe4] sm:$0xf]
        %v863 = vld [vmem:[%s532 + $0xe8] sm:$0xf]
        %v864 = vld [vmem:[%s532 + $0xec] sm:$0xf]
        %v865 = vld [vmem:[%s532 + $0xf0] sm:$0xf]
        %v866 = vld [vmem:[%s532 + $0xf4] sm:$0xf]
        %v867 = vld [vmem:[%s532 + $0xf8] sm:$0xf]
        %v868 = vld [vmem:[%s532 + $0xfc] sm:$0xf]
        %v997 = vunpack.c.l.b16 %v677
        %v998 = vunpack.c.h.b16 %v677
        %v999 = vunpack.c.l.b16 %v678
        %v1000 = vunpack.c.h.b16 %v678
        %v1001 = vunpack.c.l.b16 %v679
        %v1002 = vunpack.c.h.b16 %v679
        %v1003 = vunpack.c.l.b16 %v680
        %v1004 = vunpack.c.h.b16 %v680
        %v1005 = vunpack.c.l.b16 %v681
        %v1006 = vunpack.c.h.b16 %v681
        %v1007 = vunpack.c.l.b16 %v682
        %v1008 = vunpack.c.h.b16 %v682
        %v1009 = vunpack.c.l.b16 %v683
        %v1010 = vunpack.c.h.b16 %v683
        %v1011 = vunpack.c.l.b16 %v684
        %v1012 = vunpack.c.h.b16 %v684
        %v1013 = vunpack.c.l.b16 %v685
        %v1014 = vunpack.c.h.b16 %v685
        %v1015 = vunpack.c.l.b16 %v686
        %v1016 = vunpack.c.h.b16 %v686
        %v1017 = vunpack.c.l.b16 %v687
        %v1018 = vunpack.c.h.b16 %v687
        %v1019 = vunpack.c.l.b16 %v688
        %v1020 = vunpack.c.h.b16 %v688
        %v1021 = vunpack.c.l.b16 %v689
        %v1022 = vunpack.c.h.b16 %v689
        %v1023 = vunpack.c.l.b16 %v690
        %v1024 = vunpack.c.h.b16 %v690
        %v1025 = vunpack.c.l.b16 %v691
        %v1026 = vunpack.c.h.b16 %v691
        %v1027 = vunpack.c.l.b16 %v692
        %v1028 = vunpack.c.h.b16 %v692
        %v1029 = vunpack.c.l.b16 %v693
        %v1030 = vunpack.c.h.b16 %v693
        %v1031 = vunpack.c.l.b16 %v694
        %v1032 = vunpack.c.h.b16 %v694
        %v1033 = vunpack.c.l.b16 %v695
        %v1034 = vunpack.c.h.b16 %v695
        %v1035 = vunpack.c.l.b16 %v696
        %v1036 = vunpack.c.h.b16 %v696
        %v1037 = vunpack.c.l.b16 %v697
        %v1038 = vunpack.c.h.b16 %v697
        %v1039 = vunpack.c.l.b16 %v698
        %v1040 = vunpack.c.h.b16 %v698
        %v1041 = vunpack.c.l.b16 %v699
        %v1042 = vunpack.c.h.b16 %v699
        %v1043 = vunpack.c.l.b16 %v700
        %v1044 = vunpack.c.h.b16 %v700
        %v1045 = vunpack.c.l.b16 %v701
        %v1046 = vunpack.c.h.b16 %v701
        %v1047 = vunpack.c.l.b16 %v702
        %v1048 = vunpack.c.h.b16 %v702
        %v1049 = vunpack.c.l.b16 %v703
        %v1050 = vunpack.c.h.b16 %v703
        %v1051 = vunpack.c.l.b16 %v704
        %v1052 = vunpack.c.h.b16 %v704
        %v1053 = vunpack.c.l.b16 %v705
        %v1054 = vunpack.c.h.b16 %v705
        %v1055 = vunpack.c.l.b16 %v706
        %v1056 = vunpack.c.h.b16 %v706
        %v1057 = vunpack.c.l.b16 %v707
        %v1058 = vunpack.c.h.b16 %v707
        %v1059 = vunpack.c.l.b16 %v708
        %v1060 = vunpack.c.h.b16 %v708
        %v1061 = vunpack.c.l.b16 %v709
        %v1062 = vunpack.c.h.b16 %v709
        %v1063 = vunpack.c.l.b16 %v710
        %v1064 = vunpack.c.h.b16 %v710
        %v1065 = vunpack.c.l.b16 %v711
        %v1066 = vunpack.c.h.b16 %v711
        %v1067 = vunpack.c.l.b16 %v712
        %v1068 = vunpack.c.h.b16 %v712
        %v1069 = vunpack.c.l.b16 %v713
        %v1070 = vunpack.c.h.b16 %v713
        %v1071 = vunpack.c.l.b16 %v714
        %v1072 = vunpack.c.h.b16 %v714
        %v1073 = vunpack.c.l.b16 %v715
        %v1074 = vunpack.c.h.b16 %v715
        %v1075 = vunpack.c.l.b16 %v716
        %v1076 = vunpack.c.h.b16 %v716
        %v1077 = vunpack.c.l.b16 %v717
        %v1078 = vunpack.c.h.b16 %v717
        %v1079 = vunpack.c.l.b16 %v718
        %v1080 = vunpack.c.h.b16 %v718
        %v1081 = vunpack.c.l.b16 %v719
        %v1082 = vunpack.c.h.b16 %v719
        %v1083 = vunpack.c.l.b16 %v720
        %v1084 = vunpack.c.h.b16 %v720
        %v1085 = vunpack.c.l.b16 %v721
        %v1086 = vunpack.c.h.b16 %v721
        %v1087 = vunpack.c.l.b16 %v722
        %v1088 = vunpack.c.h.b16 %v722
        %v1089 = vunpack.c.l.b16 %v723
        %v1090 = vunpack.c.h.b16 %v723
        %v1091 = vunpack.c.l.b16 %v724
        %v1092 = vunpack.c.h.b16 %v724
        %v1093 = vunpack.c.l.b16 %v725
        %v1094 = vunpack.c.h.b16 %v725
        %v1095 = vunpack.c.l.b16 %v726
        %v1096 = vunpack.c.h.b16 %v726
        %v1097 = vunpack.c.l.b16 %v727
        %v1098 = vunpack.c.h.b16 %v727
        %v1099 = vunpack.c.l.b16 %v728
        %v1100 = vunpack.c.h.b16 %v728
        %v1101 = vunpack.c.l.b16 %v729
        %v1102 = vunpack.c.h.b16 %v729
        %v1103 = vunpack.c.l.b16 %v730
        %v1104 = vunpack.c.h.b16 %v730
        %v1105 = vunpack.c.l.b16 %v731
        %v1106 = vunpack.c.h.b16 %v731
        %v1107 = vunpack.c.l.b16 %v732
        %v1108 = vunpack.c.h.b16 %v732
        %v1109 = vunpack.c.l.b16 %v733
        %v1110 = vunpack.c.h.b16 %v733
        %v1111 = vunpack.c.l.b16 %v734
        %v1112 = vunpack.c.h.b16 %v734
        %v1113 = vunpack.c.l.b16 %v735
        %v1114 = vunpack.c.h.b16 %v735
        %v1115 = vunpack.c.l.b16 %v736
        %v1116 = vunpack.c.h.b16 %v736
        %v1117 = vunpack.c.l.b16 %v737
        %v1118 = vunpack.c.h.b16 %v737
        %v1119 = vunpack.c.l.b16 %v738
        %v1120 = vunpack.c.h.b16 %v738
        %v1121 = vunpack.c.l.b16 %v739
        %v1122 = vunpack.c.h.b16 %v739
        %v1123 = vunpack.c.l.b16 %v740
        %v1124 = vunpack.c.h.b16 %v740
        %v1125 = vunpack.c.l.b16 %v741
        %v1126 = vunpack.c.h.b16 %v741
        %v1127 = vunpack.c.l.b16 %v742
        %v1128 = vunpack.c.h.b16 %v742
        %v1129 = vunpack.c.l.b16 %v743
        %v1130 = vunpack.c.h.b16 %v743
        %v1131 = vunpack.c.l.b16 %v744
        %v1132 = vunpack.c.h.b16 %v744
        %v1133 = vunpack.c.l.b16 %v745
        %v1134 = vunpack.c.h.b16 %v745
        %v1135 = vunpack.c.l.b16 %v746
        %v1136 = vunpack.c.h.b16 %v746
        %v1137 = vunpack.c.l.b16 %v747
        %v1138 = vunpack.c.h.b16 %v747
        %v1139 = vunpack.c.l.b16 %v748
        %v1140 = vunpack.c.h.b16 %v748
        %v1141 = vunpack.c.l.b16 %v749
        %v1142 = vunpack.c.h.b16 %v749
        %v1143 = vunpack.c.l.b16 %v750
        %v1144 = vunpack.c.h.b16 %v750
        %v1145 = vunpack.c.l.b16 %v751
        %v1146 = vunpack.c.h.b16 %v751
        %v1147 = vunpack.c.l.b16 %v752
        %v1148 = vunpack.c.h.b16 %v752
        %v1149 = vunpack.c.l.b16 %v753
        %v1150 = vunpack.c.h.b16 %v753
        %v1151 = vunpack.c.l.b16 %v754
        %v1152 = vunpack.c.h.b16 %v754
        %v1153 = vunpack.c.l.b16 %v755
        %v1154 = vunpack.c.h.b16 %v755
        %v1155 = vunpack.c.l.b16 %v756
        %v1156 = vunpack.c.h.b16 %v756
        %v1157 = vunpack.c.l.b16 %v757
        %v1158 = vunpack.c.h.b16 %v757
        %v1159 = vunpack.c.l.b16 %v758
        %v1160 = vunpack.c.h.b16 %v758
        %v1161 = vunpack.c.l.b16 %v759
        %v1162 = vunpack.c.h.b16 %v759
        %v1163 = vunpack.c.l.b16 %v760
        %v1164 = vunpack.c.h.b16 %v760
        %v1165 = vunpack.c.l.b16 %v761
        %v1166 = vunpack.c.h.b16 %v761
        %v1167 = vunpack.c.l.b16 %v762
        %v1168 = vunpack.c.h.b16 %v762
        %v1169 = vunpack.c.l.b16 %v763
        %v1170 = vunpack.c.h.b16 %v763
        %v1171 = vunpack.c.l.b16 %v764
        %v1172 = vunpack.c.h.b16 %v764
        %v1173 = vunpack.c.l.b16 %v765
        %v1174 = vunpack.c.h.b16 %v765
        %v1175 = vunpack.c.l.b16 %v766
        %v1176 = vunpack.c.h.b16 %v766
        %v1177 = vunpack.c.l.b16 %v767
        %v1178 = vunpack.c.h.b16 %v767
        %v1179 = vunpack.c.l.b16 %v768
        %v1180 = vunpack.c.h.b16 %v768
        %v1181 = vunpack.c.l.b16 %v769
        %v1182 = vunpack.c.h.b16 %v769
        %v1183 = vunpack.c.l.b16 %v770
        %v1184 = vunpack.c.h.b16 %v770
        %v1185 = vunpack.c.l.b16 %v771
        %v1186 = vunpack.c.h.b16 %v771
        %v1187 = vunpack.c.l.b16 %v772
        %v1188 = vunpack.c.h.b16 %v772
        %v1189 = vunpack.c.l.b16 %v773
        %v1190 = vunpack.c.h.b16 %v773
        %v1191 = vunpack.c.l.b16 %v774
        %v1192 = vunpack.c.h.b16 %v774
        %v1193 = vunpack.c.l.b16 %v775
        %v1194 = vunpack.c.h.b16 %v775
        %v1195 = vunpack.c.l.b16 %v776
        %v1196 = vunpack.c.h.b16 %v776
        %v1197 = vunpack.c.l.b16 %v777
        %v1198 = vunpack.c.h.b16 %v777
        %v1199 = vunpack.c.l.b16 %v778
        %v1200 = vunpack.c.h.b16 %v778
        %v1201 = vunpack.c.l.b16 %v779
        %v1202 = vunpack.c.h.b16 %v779
        %v1203 = vunpack.c.l.b16 %v780
        %v1204 = vunpack.c.h.b16 %v780
        %v1205 = vunpack.c.l.b16 %v781
        %v1206 = vunpack.c.h.b16 %v781
        %v1207 = vunpack.c.l.b16 %v782
        %v1208 = vunpack.c.h.b16 %v782
        %v1209 = vunpack.c.l.b16 %v783
        %v1210 = vunpack.c.h.b16 %v783
        %v1211 = vunpack.c.l.b16 %v784
        %v1212 = vunpack.c.h.b16 %v784
        %v1213 = vunpack.c.l.b16 %v785
        %v1214 = vunpack.c.h.b16 %v785
        %v1215 = vunpack.c.l.b16 %v786
        %v1216 = vunpack.c.h.b16 %v786
        %v1217 = vunpack.c.l.b16 %v787
        %v1218 = vunpack.c.h.b16 %v787
        %v1219 = vunpack.c.l.b16 %v788
        %v1220 = vunpack.c.h.b16 %v788
        %v1221 = vunpack.c.l.b16 %v789
        %v1222 = vunpack.c.h.b16 %v789
        %v1223 = vunpack.c.l.b16 %v790
        %v1224 = vunpack.c.h.b16 %v790
        %v1225 = vunpack.c.l.b16 %v791
        %v1226 = vunpack.c.h.b16 %v791
        %v1227 = vunpack.c.l.b16 %v792
        %v1228 = vunpack.c.h.b16 %v792
        %v1229 = vunpack.c.l.b16 %v793
        %v1230 = vunpack.c.h.b16 %v793
        %v1231 = vunpack.c.l.b16 %v794
        %v1232 = vunpack.c.h.b16 %v794
        %v1233 = vunpack.c.l.b16 %v795
        %v1234 = vunpack.c.h.b16 %v795
        %v1235 = vunpack.c.l.b16 %v796
        %v1236 = vunpack.c.h.b16 %v796
        %v1237 = vunpack.c.l.b16 %v797
        %v1238 = vunpack.c.h.b16 %v797
        %v1239 = vunpack.c.l.b16 %v798
        %v1240 = vunpack.c.h.b16 %v798
        %v1241 = vunpack.c.l.b16 %v799
        %v1242 = vunpack.c.h.b16 %v799
        %v1243 = vunpack.c.l.b16 %v800
        %v1244 = vunpack.c.h.b16 %v800
        %v1245 = vunpack.c.l.b16 %v801
        %v1246 = vunpack.c.h.b16 %v801
        %v1247 = vunpack.c.l.b16 %v802
        %v1248 = vunpack.c.h.b16 %v802
        %v1249 = vunpack.c.l.b16 %v803
        %v1250 = vunpack.c.h.b16 %v803
        %v1251 = vunpack.c.l.b16 %v804
        %v1252 = vunpack.c.h.b16 %v804
        %v1253 = vpack.c.b16 %v1001, %v997
        %v1254 = vpack.c.b16 %v1002, %v998
        %v1255 = vpack.c.b16 %v1003, %v999
        %v1256 = vpack.c.b16 %v1004, %v1000
        %v1257 = vpack.c.b16 %v1009, %v1005
        %v1258 = vpack.c.b16 %v1010, %v1006
        %v1259 = vpack.c.b16 %v1011, %v1007
        %v1260 = vpack.c.b16 %v1012, %v1008
        %v1261 = vpack.c.b16 %v1017, %v1013
        %v1262 = vpack.c.b16 %v1018, %v1014
        %v1263 = vpack.c.b16 %v1019, %v1015
        %v1264 = vpack.c.b16 %v1020, %v1016
        %v1265 = vpack.c.b16 %v1025, %v1021
        %v1266 = vpack.c.b16 %v1026, %v1022
        %v1267 = vpack.c.b16 %v1027, %v1023
        %v1268 = vpack.c.b16 %v1028, %v1024
        %v1269 = vpack.c.b16 %v1033, %v1029
        %v1270 = vpack.c.b16 %v1034, %v1030
        %v1271 = vpack.c.b16 %v1035, %v1031
        %v1272 = vpack.c.b16 %v1036, %v1032
        %v1273 = vpack.c.b16 %v1041, %v1037
        %v1274 = vpack.c.b16 %v1042, %v1038
        %v1275 = vpack.c.b16 %v1043, %v1039
        %v1276 = vpack.c.b16 %v1044, %v1040
        %v1277 = vpack.c.b16 %v1049, %v1045
        %v1278 = vpack.c.b16 %v1050, %v1046
        %v1279 = vpack.c.b16 %v1051, %v1047
        %v1280 = vpack.c.b16 %v1052, %v1048
        %v1281 = vpack.c.b16 %v1057, %v1053
        %v1282 = vpack.c.b16 %v1058, %v1054
        %v1283 = vpack.c.b16 %v1059, %v1055
        %v1284 = vpack.c.b16 %v1060, %v1056
        %v1285 = vpack.c.b16 %v1065, %v1061
        %v1286 = vpack.c.b16 %v1066, %v1062
        %v1287 = vpack.c.b16 %v1067, %v1063
        %v1288 = vpack.c.b16 %v1068, %v1064
        %v1289 = vpack.c.b16 %v1073, %v1069
        %v1290 = vpack.c.b16 %v1074, %v1070
        %v1291 = vpack.c.b16 %v1075, %v1071
        %v1292 = vpack.c.b16 %v1076, %v1072
        %v1293 = vpack.c.b16 %v1081, %v1077
        %v1294 = vpack.c.b16 %v1082, %v1078
        %v1295 = vpack.c.b16 %v1083, %v1079
        %v1296 = vpack.c.b16 %v1084, %v1080
        %v1297 = vpack.c.b16 %v1089, %v1085
        %v1298 = vpack.c.b16 %v1090, %v1086
        %v1299 = vpack.c.b16 %v1091, %v1087
        %v1300 = vpack.c.b16 %v1092, %v1088
        %v1301 = vpack.c.b16 %v1097, %v1093
        %v1302 = vpack.c.b16 %v1098, %v1094
        %v1303 = vpack.c.b16 %v1099, %v1095
        %v1304 = vpack.c.b16 %v1100, %v1096
        %v1305 = vpack.c.b16 %v1105, %v1101
        %v1306 = vpack.c.b16 %v1106, %v1102
        %v1307 = vpack.c.b16 %v1107, %v1103
        %v1308 = vpack.c.b16 %v1108, %v1104
        %v1309 = vpack.c.b16 %v1113, %v1109
        %v1310 = vpack.c.b16 %v1114, %v1110
        %v1311 = vpack.c.b16 %v1115, %v1111
        %v1312 = vpack.c.b16 %v1116, %v1112
        %v1313 = vpack.c.b16 %v1121, %v1117
        %v1314 = vpack.c.b16 %v1122, %v1118
        %v1315 = vpack.c.b16 %v1123, %v1119
        %v1316 = vpack.c.b16 %v1124, %v1120
        %v1317 = vpack.c.b16 %v1129, %v1125
        %v1318 = vpack.c.b16 %v1130, %v1126
        %v1319 = vpack.c.b16 %v1131, %v1127
        %v1320 = vpack.c.b16 %v1132, %v1128
        %v1321 = vpack.c.b16 %v1137, %v1133
        %v1322 = vpack.c.b16 %v1138, %v1134
        %v1323 = vpack.c.b16 %v1139, %v1135
        %v1324 = vpack.c.b16 %v1140, %v1136
        %v1325 = vpack.c.b16 %v1145, %v1141
        %v1326 = vpack.c.b16 %v1146, %v1142
        %v1327 = vpack.c.b16 %v1147, %v1143
        %v1328 = vpack.c.b16 %v1148, %v1144
        %v1329 = vpack.c.b16 %v1153, %v1149
        %v1330 = vpack.c.b16 %v1154, %v1150
        %v1331 = vpack.c.b16 %v1155, %v1151
        %v1332 = vpack.c.b16 %v1156, %v1152
        %v1333 = vpack.c.b16 %v1161, %v1157
        %v1334 = vpack.c.b16 %v1162, %v1158
        %v1335 = vpack.c.b16 %v1163, %v1159
        %v1336 = vpack.c.b16 %v1164, %v1160
        %v1337 = vpack.c.b16 %v1169, %v1165
        %v1338 = vpack.c.b16 %v1170, %v1166
        %v1339 = vpack.c.b16 %v1171, %v1167
        %v1340 = vpack.c.b16 %v1172, %v1168
        %v1341 = vpack.c.b16 %v1177, %v1173
        %v1342 = vpack.c.b16 %v1178, %v1174
        %v1343 = vpack.c.b16 %v1179, %v1175
        %v1344 = vpack.c.b16 %v1180, %v1176
        %v1345 = vpack.c.b16 %v1185, %v1181
        %v1346 = vpack.c.b16 %v1186, %v1182
        %v1347 = vpack.c.b16 %v1187, %v1183
        %v1348 = vpack.c.b16 %v1188, %v1184
        %v1349 = vpack.c.b16 %v1193, %v1189
        %v1350 = vpack.c.b16 %v1194, %v1190
        %v1351 = vpack.c.b16 %v1195, %v1191
        %v1352 = vpack.c.b16 %v1196, %v1192
        %v1353 = vpack.c.b16 %v1201, %v1197
        %v1354 = vpack.c.b16 %v1202, %v1198
        %v1355 = vpack.c.b16 %v1203, %v1199
        %v1356 = vpack.c.b16 %v1204, %v1200
        %v1357 = vpack.c.b16 %v1209, %v1205
        %v1358 = vpack.c.b16 %v1210, %v1206
        %v1359 = vpack.c.b16 %v1211, %v1207
        %v1360 = vpack.c.b16 %v1212, %v1208
        %v1361 = vpack.c.b16 %v1217, %v1213
        %v1362 = vpack.c.b16 %v1218, %v1214
        %v1363 = vpack.c.b16 %v1219, %v1215
        %v1364 = vpack.c.b16 %v1220, %v1216
        %v1365 = vpack.c.b16 %v1225, %v1221
        %v1366 = vpack.c.b16 %v1226, %v1222
        %v1367 = vpack.c.b16 %v1227, %v1223
        %v1368 = vpack.c.b16 %v1228, %v1224
        %v1369 = vpack.c.b16 %v1233, %v1229
        %v1370 = vpack.c.b16 %v1234, %v1230
        %v1371 = vpack.c.b16 %v1235, %v1231
        %v1372 = vpack.c.b16 %v1236, %v1232
        %v1373 = vpack.c.b16 %v1241, %v1237
        %v1374 = vpack.c.b16 %v1242, %v1238
        %v1375 = vpack.c.b16 %v1243, %v1239
        %v1376 = vpack.c.b16 %v1244, %v1240
        %v1377 = vpack.c.b16 %v1249, %v1245
        %v1378 = vpack.c.b16 %v1250, %v1246
        %v1379 = vpack.c.b16 %v1251, %v1247
        %v1380 = vpack.c.b16 %v1252, %v1248
        %v1573 = vunpack.c.l.b16 %v805
        %v1574 = vunpack.c.l.b16 %v806
        %v1575 = vunpack.c.l.b16 %v807
        %v1576 = vunpack.c.l.b16 %v808
        %v1577 = vunpack.c.l.b16 %v809
        %v1578 = vunpack.c.l.b16 %v810
        %v1579 = vunpack.c.l.b16 %v811
        %v1580 = vunpack.c.l.b16 %v812
        %v1581 = vunpack.c.l.b16 %v813
        %v1582 = vunpack.c.l.b16 %v814
        %v1583 = vunpack.c.l.b16 %v815
        %v1584 = vunpack.c.l.b16 %v816
        %v1585 = vunpack.c.l.b16 %v817
        %v1586 = vunpack.c.l.b16 %v818
        %v1587 = vunpack.c.l.b16 %v819
        %v1588 = vunpack.c.l.b16 %v820
        %v1589 = vunpack.c.l.b16 %v821
        %v1590 = vunpack.c.l.b16 %v822
        %v1591 = vunpack.c.l.b16 %v823
        %v1592 = vunpack.c.l.b16 %v824
        %v1593 = vunpack.c.l.b16 %v825
        %v1594 = vunpack.c.l.b16 %v826
        %v1595 = vunpack.c.l.b16 %v827
        %v1596 = vunpack.c.l.b16 %v828
        %v1597 = vunpack.c.l.b16 %v829
        %v1598 = vunpack.c.l.b16 %v830
        %v1599 = vunpack.c.l.b16 %v831
        %v1600 = vunpack.c.l.b16 %v832
        %v1601 = vunpack.c.l.b16 %v833
        %v1602 = vunpack.c.l.b16 %v834
        %v1603 = vunpack.c.l.b16 %v835
        %v1604 = vunpack.c.l.b16 %v836
        %v1605 = vunpack.c.l.b16 %v837
        %v1606 = vunpack.c.l.b16 %v838
        %v1607 = vunpack.c.l.b16 %v839
        %v1608 = vunpack.c.l.b16 %v840
        %v1609 = vunpack.c.l.b16 %v841
        %v1610 = vunpack.c.l.b16 %v842
        %v1611 = vunpack.c.l.b16 %v843
        %v1612 = vunpack.c.l.b16 %v844
        %v1613 = vunpack.c.l.b16 %v845
        %v1614 = vunpack.c.l.b16 %v846
        %v1615 = vunpack.c.l.b16 %v847
        %v1616 = vunpack.c.l.b16 %v848
        %v1617 = vunpack.c.l.b16 %v849
        %v1618 = vunpack.c.l.b16 %v850
        %v1619 = vunpack.c.l.b16 %v851
        %v1620 = vunpack.c.l.b16 %v852
        %v1621 = vunpack.c.l.b16 %v853
        %v1622 = vunpack.c.l.b16 %v854
        %v1623 = vunpack.c.l.b16 %v855
        %v1624 = vunpack.c.l.b16 %v856
        %v1625 = vunpack.c.l.b16 %v857
        %v1626 = vunpack.c.l.b16 %v858
        %v1627 = vunpack.c.l.b16 %v859
        %v1628 = vunpack.c.l.b16 %v860
        %v1629 = vunpack.c.l.b16 %v861
        %v1630 = vunpack.c.l.b16 %v862
        %v1631 = vunpack.c.l.b16 %v863
        %v1632 = vunpack.c.l.b16 %v864
        %v1633 = vunpack.c.l.b16 %v865
        %v1634 = vunpack.c.l.b16 %v866
        %v1635 = vunpack.c.l.b16 %v867
        %v1636 = vunpack.c.l.b16 %v868
        %v1637 = vpack.c.b16 %v1574, %v1573
        %v1638 = vpack.c.b16 %v1576, %v1575
        %v1639 = vpack.c.b16 %v1578, %v1577
        %v1640 = vpack.c.b16 %v1580, %v1579
        %v1641 = vpack.c.b16 %v1582, %v1581
        %v1642 = vpack.c.b16 %v1584, %v1583
        %v1643 = vpack.c.b16 %v1586, %v1585
        %v1644 = vpack.c.b16 %v1588, %v1587
        %v1645 = vpack.c.b16 %v1590, %v1589
        %v1646 = vpack.c.b16 %v1592, %v1591
        %v1647 = vpack.c.b16 %v1594, %v1593
        %v1648 = vpack.c.b16 %v1596, %v1595
        %v1649 = vpack.c.b16 %v1598, %v1597
        %v1650 = vpack.c.b16 %v1600, %v1599
        %v1651 = vpack.c.b16 %v1602, %v1601
        %v1652 = vpack.c.b16 %v1604, %v1603
        %v1653 = vpack.c.b16 %v1606, %v1605
        %v1654 = vpack.c.b16 %v1608, %v1607
        %v1655 = vpack.c.b16 %v1610, %v1609
        %v1656 = vpack.c.b16 %v1612, %v1611
        %v1657 = vpack.c.b16 %v1614, %v1613
        %v1658 = vpack.c.b16 %v1616, %v1615
        %v1659 = vpack.c.b16 %v1618, %v1617
        %v1660 = vpack.c.b16 %v1620, %v1619
        %v1661 = vpack.c.b16 %v1622, %v1621
        %v1662 = vpack.c.b16 %v1624, %v1623
        %v1663 = vpack.c.b16 %v1626, %v1625
        %v1664 = vpack.c.b16 %v1628, %v1627
        %v1665 = vpack.c.b16 %v1630, %v1629
        %v1666 = vpack.c.b16 %v1632, %v1631
        %v1667 = vpack.c.b16 %v1634, %v1633
        %v1668 = vpack.c.b16 %v1636, %v1635
        %1701 = vmatprep.subr.bf16.mxu0 0
        %1702 = vmatpush1.bf16.msra.mxu0 %v1644
        %1703 = vmatprep.subr.bf16.mxu0 0
        %1704 = vmatpush1.bf16.msra.mxu0 %v1643
        %1705 = vmatprep.subr.bf16.mxu0 0
        %1706 = vmatpush1.bf16.msra.mxu0 %v1642
        %1707 = vmatprep.subr.bf16.mxu0 0
        %1708 = vmatpush1.bf16.msra.mxu0 %v1641
        %1709 = vmatprep.subr.bf16.mxu0 0
        %1710 = vmatpush1.bf16.msra.mxu0 %v1640
        %1711 = vmatprep.subr.bf16.mxu0 0
        %1712 = vmatpush1.bf16.msra.mxu0 %v1639
        %1713 = vmatprep.subr.bf16.mxu0 0
        %1714 = vmatpush1.bf16.msra.mxu0 %v1638
        %1715 = vmatprep.subr.bf16.mxu0 0
        %1716 = vmatpush1.bf16.msra.mxu0 %v1637
        %1717 = vmatprep.subr.bf16.mxu0 0
        %1718 = vmatpush2.bf16.msra.mxu0 %v1652
        %1719 = vmatprep.subr.bf16.mxu0 0
        %1720 = vmatpush2.bf16.msra.mxu0 %v1651
        %1721 = vmatprep.subr.bf16.mxu0 0
        %1722 = vmatpush2.bf16.msra.mxu0 %v1650
        %1723 = vmatprep.subr.bf16.mxu0 0
        %1724 = vmatpush2.bf16.msra.mxu0 %v1649
        %1725 = vmatprep.subr.bf16.mxu0 0
        %1726 = vmatpush2.bf16.msra.mxu0 %v1648
        %1727 = vmatprep.subr.bf16.mxu0 0
        %1728 = vmatpush2.bf16.msra.mxu0 %v1647
        %1729 = vmatprep.subr.bf16.mxu0 0
        %1730 = vmatpush2.bf16.msra.mxu0 %v1646
        %1731 = vmatprep.subr.bf16.mxu0 0
        %1732 = vmatpush2.bf16.msra.mxu0 %v1645
        %1733 = vmatprep.mubr.bf16.mxu0 %v1254
        %1734 = vmatmul.mubr.bf16.gmra.mxu0 %v1253
        %v1735 = vpop.f32.mrf.mxu0
        %v1736 = vadd.f32 0.0, %v1735
        %v1737 = vpop.f32.mrf.mxu0
        %v1738 = vpop.f32.mrf.mxu0
        %v1739 = vadd.f32 0.0, %v1738
        %v1740 = vpop.f32.mrf.mxu0
        %1741 = vmatprep.mubr.bf16.mxu0 %v1258
        %1742 = vmatmul.mubr.bf16.gmra.mxu0 %v1257
        %v1743 = vpop.f32.mrf.mxu0
        %v1744 = vadd.f32 0.0, %v1743
        %v1745 = vpop.f32.mrf.mxu0
        %v1746 = vpop.f32.mrf.mxu0
        %v1747 = vadd.f32 0.0, %v1746
        %v1748 = vpop.f32.mrf.mxu0
        %1749 = vmatprep.mubr.bf16.mxu0 %v1262
        %1750 = vmatmul.mubr.bf16.gmra.mxu0 %v1261
        %v1751 = vpop.f32.mrf.mxu0
        %v1752 = vadd.f32 0.0, %v1751
        %v1753 = vpop.f32.mrf.mxu0
        %v1754 = vpop.f32.mrf.mxu0
        %v1755 = vadd.f32 0.0, %v1754
        %v1756 = vpop.f32.mrf.mxu0
        %1757 = vmatprep.mubr.bf16.mxu0 %v1266
        %1758 = vmatmul.mubr.bf16.gmra.mxu0 %v1265
        %v1759 = vpop.f32.mrf.mxu0
        %v1760 = vadd.f32 0.0, %v1759
        %v1761 = vpop.f32.mrf.mxu0
        %v1762 = vpop.f32.mrf.mxu0
        %v1763 = vadd.f32 0.0, %v1762
        %v1764 = vpop.f32.mrf.mxu0
        %1765 = vmatprep.mubr.bf16.mxu0 %v1270
        %1766 = vmatmul.mubr.bf16.gmra.mxu0 %v1269
        %v1767 = vpop.f32.mrf.mxu0
        %v1768 = vadd.f32 0.0, %v1767
        %v1769 = vpop.f32.mrf.mxu0
        %v1770 = vpop.f32.mrf.mxu0
        %v1771 = vadd.f32 0.0, %v1770
        %v1772 = vpop.f32.mrf.mxu0
        %1773 = vmatprep.mubr.bf16.mxu0 %v1274
        %1774 = vmatmul.mubr.bf16.gmra.mxu0 %v1273
        %v1775 = vpop.f32.mrf.mxu0
        %v1776 = vadd.f32 0.0, %v1775
        %v1777 = vpop.f32.mrf.mxu0
        %v1778 = vpop.f32.mrf.mxu0
        %v1779 = vadd.f32 0.0, %v1778
        %v1780 = vpop.f32.mrf.mxu0
        %1781 = vmatprep.mubr.bf16.mxu0 %v1278
        %1782 = vmatmul.mubr.bf16.gmra.mxu0 %v1277
        %v1783 = vpop.f32.mrf.mxu0
        %v1784 = vadd.f32 0.0, %v1783
        %v1785 = vpop.f32.mrf.mxu0
        %v1786 = vpop.f32.mrf.mxu0
        %v1787 = vadd.f32 0.0, %v1786
        %v1788 = vpop.f32.mrf.mxu0
        %1789 = vmatprep.mubr.bf16.mxu0 %v1282
        %1790 = vmatmul.mubr.bf16.gmra.mxu0 %v1281
        %v1791 = vpop.f32.mrf.mxu0
        %v1792 = vadd.f32 0.0, %v1791
        %v1793 = vpop.f32.mrf.mxu0
        %v1794 = vpop.f32.mrf.mxu0
        %v1795 = vadd.f32 0.0, %v1794
        %v1796 = vpop.f32.mrf.mxu0
        %1797 = vmatprep.mubr.bf16.mxu0 %v1286
        %1798 = vmatmul.mubr.bf16.gmra.mxu0 %v1285
        %v1799 = vpop.f32.mrf.mxu0
        %v1800 = vadd.f32 0.0, %v1799
        %v1801 = vpop.f32.mrf.mxu0
        %v1802 = vpop.f32.mrf.mxu0
        %v1803 = vadd.f32 0.0, %v1802
        %v1804 = vpop.f32.mrf.mxu0
        %1805 = vmatprep.mubr.bf16.mxu0 %v1290
        %1806 = vmatmul.mubr.bf16.gmra.mxu0 %v1289
        %v1807 = vpop.f32.mrf.mxu0
        %v1808 = vadd.f32 0.0, %v1807
        %v1809 = vpop.f32.mrf.mxu0
        %v1810 = vpop.f32.mrf.mxu0
        %v1811 = vadd.f32 0.0, %v1810
        %v1812 = vpop.f32.mrf.mxu0
        %1813 = vmatprep.mubr.bf16.mxu0 %v1294
        %1814 = vmatmul.mubr.bf16.gmra.mxu0 %v1293
        %v1815 = vpop.f32.mrf.mxu0
        %v1816 = vadd.f32 0.0, %v1815
        %v1817 = vpop.f32.mrf.mxu0
        %v1818 = vpop.f32.mrf.mxu0
        %v1819 = vadd.f32 0.0, %v1818
        %v1820 = vpop.f32.mrf.mxu0
        %1821 = vmatprep.mubr.bf16.mxu0 %v1298
        %1822 = vmatmul.mubr.bf16.gmra.mxu0 %v1297
        %v1823 = vpop.f32.mrf.mxu0
        %v1824 = vadd.f32 0.0, %v1823
        %v1825 = vpop.f32.mrf.mxu0
        %v1826 = vpop.f32.mrf.mxu0
        %v1827 = vadd.f32 0.0, %v1826
        %v1828 = vpop.f32.mrf.mxu0
        %1829 = vmatprep.mubr.bf16.mxu0 %v1302
        %1830 = vmatmul.mubr.bf16.gmra.mxu0 %v1301
        %v1831 = vpop.f32.mrf.mxu0
        %v1832 = vadd.f32 0.0, %v1831
        %v1833 = vpop.f32.mrf.mxu0
        %v1834 = vpop.f32.mrf.mxu0
        %v1835 = vadd.f32 0.0, %v1834
        %v1836 = vpop.f32.mrf.mxu0
        %1837 = vmatprep.mubr.bf16.mxu0 %v1306
        %1838 = vmatmul.mubr.bf16.gmra.mxu0 %v1305
        %v1839 = vpop.f32.mrf.mxu0
        %v1840 = vadd.f32 0.0, %v1839
        %v1841 = vpop.f32.mrf.mxu0
        %v1842 = vpop.f32.mrf.mxu0
        %v1843 = vadd.f32 0.0, %v1842
        %v1844 = vpop.f32.mrf.mxu0
        %1845 = vmatprep.mubr.bf16.mxu0 %v1310
        %1846 = vmatmul.mubr.bf16.gmra.mxu0 %v1309
        %v1847 = vpop.f32.mrf.mxu0
        %v1848 = vadd.f32 0.0, %v1847
        %v1849 = vpop.f32.mrf.mxu0
        %v1850 = vpop.f32.mrf.mxu0
        %v1851 = vadd.f32 0.0, %v1850
        %v1852 = vpop.f32.mrf.mxu0
        %1853 = vmatprep.mubr.bf16.mxu0 %v1314
        %1854 = vmatmul.mubr.bf16.gmra.mxu0 %v1313
        %v1855 = vpop.f32.mrf.mxu0
        %v1856 = vadd.f32 0.0, %v1855
        %v1857 = vpop.f32.mrf.mxu0
        %v1858 = vpop.f32.mrf.mxu0
        %v1859 = vadd.f32 0.0, %v1858
        %v1860 = vpop.f32.mrf.mxu0
        %1861 = vmatprep.mubr.bf16.mxu0 %v1318
        %1862 = vmatmul.mubr.bf16.gmra.mxu0 %v1317
        %v1863 = vpop.f32.mrf.mxu0
        %v1864 = vadd.f32 0.0, %v1863
        %v1865 = vpop.f32.mrf.mxu0
        %v1866 = vpop.f32.mrf.mxu0
        %v1867 = vadd.f32 0.0, %v1866
        %v1868 = vpop.f32.mrf.mxu0
        %1869 = vmatprep.mubr.bf16.mxu0 %v1322
        %1870 = vmatmul.mubr.bf16.gmra.mxu0 %v1321
        %v1871 = vpop.f32.mrf.mxu0
        %v1872 = vadd.f32 0.0, %v1871
        %v1873 = vpop.f32.mrf.mxu0
        %v1874 = vpop.f32.mrf.mxu0
        %v1875 = vadd.f32 0.0, %v1874
        %v1876 = vpop.f32.mrf.mxu0
        %1877 = vmatprep.mubr.bf16.mxu0 %v1326
        %1878 = vmatmul.mubr.bf16.gmra.mxu0 %v1325
        %v1879 = vpop.f32.mrf.mxu0
        %v1880 = vadd.f32 0.0, %v1879
        %v1881 = vpop.f32.mrf.mxu0
        %v1882 = vpop.f32.mrf.mxu0
        %v1883 = vadd.f32 0.0, %v1882
        %v1884 = vpop.f32.mrf.mxu0
        %1885 = vmatprep.mubr.bf16.mxu0 %v1330
        %1886 = vmatmul.mubr.bf16.gmra.mxu0 %v1329
        %v1887 = vpop.f32.mrf.mxu0
        %v1888 = vadd.f32 0.0, %v1887
        %v1889 = vpop.f32.mrf.mxu0
        %v1890 = vpop.f32.mrf.mxu0
        %v1891 = vadd.f32 0.0, %v1890
        %v1892 = vpop.f32.mrf.mxu0
        %1893 = vmatprep.mubr.bf16.mxu0 %v1334
        %1894 = vmatmul.mubr.bf16.gmra.mxu0 %v1333
        %v1895 = vpop.f32.mrf.mxu0
        %v1896 = vadd.f32 0.0, %v1895
        %v1897 = vpop.f32.mrf.mxu0
        %v1898 = vpop.f32.mrf.mxu0
        %v1899 = vadd.f32 0.0, %v1898
        %v1900 = vpop.f32.mrf.mxu0
        %1901 = vmatprep.mubr.bf16.mxu0 %v1338
        %1902 = vmatmul.mubr.bf16.gmra.mxu0 %v1337
        %v1903 = vpop.f32.mrf.mxu0
        %v1904 = vadd.f32 0.0, %v1903
        %v1905 = vpop.f32.mrf.mxu0
        %v1906 = vpop.f32.mrf.mxu0
        %v1907 = vadd.f32 0.0, %v1906
        %v1908 = vpop.f32.mrf.mxu0
        %1909 = vmatprep.mubr.bf16.mxu0 %v1342
        %1910 = vmatmul.mubr.bf16.gmra.mxu0 %v1341
        %v1911 = vpop.f32.mrf.mxu0
        %v1912 = vadd.f32 0.0, %v1911
        %v1913 = vpop.f32.mrf.mxu0
        %v1914 = vpop.f32.mrf.mxu0
        %v1915 = vadd.f32 0.0, %v1914
        %v1916 = vpop.f32.mrf.mxu0
        %1917 = vmatprep.mubr.bf16.mxu0 %v1346
        %1918 = vmatmul.mubr.bf16.gmra.mxu0 %v1345
        %v1919 = vpop.f32.mrf.mxu0
        %v1920 = vadd.f32 0.0, %v1919
        %v1921 = vpop.f32.mrf.mxu0
        %v1922 = vpop.f32.mrf.mxu0
        %v1923 = vadd.f32 0.0, %v1922
        %v1924 = vpop.f32.mrf.mxu0
        %1925 = vmatprep.mubr.bf16.mxu0 %v1350
        %1926 = vmatmul.mubr.bf16.gmra.mxu0 %v1349
        %v1927 = vpop.f32.mrf.mxu0
        %v1928 = vadd.f32 0.0, %v1927
        %v1929 = vpop.f32.mrf.mxu0
        %v1930 = vpop.f32.mrf.mxu0
        %v1931 = vadd.f32 0.0, %v1930
        %v1932 = vpop.f32.mrf.mxu0
        %1933 = vmatprep.mubr.bf16.mxu0 %v1354
        %1934 = vmatmul.mubr.bf16.gmra.mxu0 %v1353
        %v1935 = vpop.f32.mrf.mxu0
        %v1936 = vadd.f32 0.0, %v1935
        %v1937 = vpop.f32.mrf.mxu0
        %v1938 = vpop.f32.mrf.mxu0
        %v1939 = vadd.f32 0.0, %v1938
        %v1940 = vpop.f32.mrf.mxu0
        %1941 = vmatprep.mubr.bf16.mxu0 %v1358
        %1942 = vmatmul.mubr.bf16.gmra.mxu0 %v1357
        %v1943 = vpop.f32.mrf.mxu0
        %v1944 = vadd.f32 0.0, %v1943
        %v1945 = vpop.f32.mrf.mxu0
        %v1946 = vpop.f32.mrf.mxu0
        %v1947 = vadd.f32 0.0, %v1946
        %v1948 = vpop.f32.mrf.mxu0
        %1949 = vmatprep.mubr.bf16.mxu0 %v1362
        %1950 = vmatmul.mubr.bf16.gmra.mxu0 %v1361
        %v1951 = vpop.f32.mrf.mxu0
        %v1952 = vadd.f32 0.0, %v1951
        %v1953 = vpop.f32.mrf.mxu0
        %v1954 = vpop.f32.mrf.mxu0
        %v1955 = vadd.f32 0.0, %v1954
        %v1956 = vpop.f32.mrf.mxu0
        %1957 = vmatprep.mubr.bf16.mxu0 %v1366
        %1958 = vmatmul.mubr.bf16.gmra.mxu0 %v1365
        %v1959 = vpop.f32.mrf.mxu0
        %v1960 = vadd.f32 0.0, %v1959
        %v1961 = vpop.f32.mrf.mxu0
        %v1962 = vpop.f32.mrf.mxu0
        %v1963 = vadd.f32 0.0, %v1962
        %v1964 = vpop.f32.mrf.mxu0
        %1965 = vmatprep.mubr.bf16.mxu0 %v1370
        %1966 = vmatmul.mubr.bf16.gmra.mxu0 %v1369
        %v1967 = vpop.f32.mrf.mxu0
        %v1968 = vadd.f32 0.0, %v1967
        %v1969 = vpop.f32.mrf.mxu0
        %v1970 = vpop.f32.mrf.mxu0
        %v1971 = vadd.f32 0.0, %v1970
        %v1972 = vpop.f32.mrf.mxu0
        %1973 = vmatprep.mubr.bf16.mxu0 %v1374
        %1974 = vmatmul.mubr.bf16.gmra.mxu0 %v1373
        %v1975 = vpop.f32.mrf.mxu0
        %v1976 = vadd.f32 0.0, %v1975
        %v1977 = vpop.f32.mrf.mxu0
        %v1978 = vpop.f32.mrf.mxu0
        %v1979 = vadd.f32 0.0, %v1978
        %v1980 = vpop.f32.mrf.mxu0
        %1981 = vmatprep.mubr.bf16.mxu0 %v1378
        %1982 = vmatmul.mubr.bf16.gmra.mxu0 %v1377
        %v1983 = vpop.f32.mrf.mxu0
        %v1984 = vadd.f32 0.0, %v1983
        %v1985 = vpop.f32.mrf.mxu0
        %v1986 = vpop.f32.mrf.mxu0
        %v1987 = vadd.f32 0.0, %v1986
        %v1988 = vpop.f32.mrf.mxu0
        %1989 = vdwg.mxu0
        %1990 = vmatprep.subr.bf16.mxu0 0
        %1991 = vmatpush1.bf16.msra.mxu0 %v1660
        %1992 = vmatprep.subr.bf16.mxu0 0
        %1993 = vmatpush1.bf16.msra.mxu0 %v1659
        %1994 = vmatprep.subr.bf16.mxu0 0
        %1995 = vmatpush1.bf16.msra.mxu0 %v1658
        %1996 = vmatprep.subr.bf16.mxu0 0
        %1997 = vmatpush1.bf16.msra.mxu0 %v1657
        %1998 = vmatprep.subr.bf16.mxu0 0
        %1999 = vmatpush1.bf16.msra.mxu0 %v1656
        %2000 = vmatprep.subr.bf16.mxu0 0
        %2001 = vmatpush1.bf16.msra.mxu0 %v1655
        %2002 = vmatprep.subr.bf16.mxu0 0
        %2003 = vmatpush1.bf16.msra.mxu0 %v1654
        %2004 = vmatprep.subr.bf16.mxu0 0
        %2005 = vmatpush1.bf16.msra.mxu0 %v1653
        %2006 = vmatprep.subr.bf16.mxu0 0
        %2007 = vmatpush2.bf16.msra.mxu0 %v1668
        %2008 = vmatprep.subr.bf16.mxu0 0
        %2009 = vmatpush2.bf16.msra.mxu0 %v1667
        %2010 = vmatprep.subr.bf16.mxu0 0
        %2011 = vmatpush2.bf16.msra.mxu0 %v1666
        %2012 = vmatprep.subr.bf16.mxu0 0
        %2013 = vmatpush2.bf16.msra.mxu0 %v1665
        %2014 = vmatprep.subr.bf16.mxu0 0
        %2015 = vmatpush2.bf16.msra.mxu0 %v1664
        %2016 = vmatprep.subr.bf16.mxu0 0
        %2017 = vmatpush2.bf16.msra.mxu0 %v1663
        %2018 = vmatprep.subr.bf16.mxu0 0
        %2019 = vmatpush2.bf16.msra.mxu0 %v1662
        %2020 = vmatprep.subr.bf16.mxu0 0
        %2021 = vmatpush2.bf16.msra.mxu0 %v1661
        %2022 = vmatprep.mubr.bf16.mxu0 %v1256
        %2023 = vmatmul.mubr.bf16.gmra.mxu0 %v1255
        %v2024 = vpop.f32.mrf.mxu0
        %v2025 = vadd.f32 %v1736, %v2024
        %v2026 = vpop.f32.mrf.mxu0
        %v2027 = vpop.f32.mrf.mxu0
        %v2028 = vadd.f32 %v1739, %v2027
        %v2029 = vpop.f32.mrf.mxu0
        %2030 = vmatprep.mubr.bf16.mxu0 %v1260
        %2031 = vmatmul.mubr.bf16.gmra.mxu0 %v1259
        %v2032 = vpop.f32.mrf.mxu0
        %v2033 = vadd.f32 %v1744, %v2032
        %v2034 = vpop.f32.mrf.mxu0
        %v2035 = vpop.f32.mrf.mxu0
        %v2036 = vadd.f32 %v1747, %v2035
        %v2037 = vpop.f32.mrf.mxu0
        %2038 = vmatprep.mubr.bf16.mxu0 %v1264
        %2039 = vmatmul.mubr.bf16.gmra.mxu0 %v1263
        %v2040 = vpop.f32.mrf.mxu0
        %v2041 = vadd.f32 %v1752, %v2040
        %v2042 = vpop.f32.mrf.mxu0
        %v2043 = vpop.f32.mrf.mxu0
        %v2044 = vadd.f32 %v1755, %v2043
        %v2045 = vpop.f32.mrf.mxu0
        %2046 = vmatprep.mubr.bf16.mxu0 %v1268
        %2047 = vmatmul.mubr.bf16.gmra.mxu0 %v1267
        %v2048 = vpop.f32.mrf.mxu0
        %v2049 = vadd.f32 %v1760, %v2048
        %v2050 = vpop.f32.mrf.mxu0
        %v2051 = vpop.f32.mrf.mxu0
        %v2052 = vadd.f32 %v1763, %v2051
        %v2053 = vpop.f32.mrf.mxu0
        %2054 = vmatprep.mubr.bf16.mxu0 %v1272
        %2055 = vmatmul.mubr.bf16.gmra.mxu0 %v1271
        %v2056 = vpop.f32.mrf.mxu0
        %v2057 = vadd.f32 %v1768, %v2056
        %v2058 = vpop.f32.mrf.mxu0
        %v2059 = vpop.f32.mrf.mxu0
        %v2060 = vadd.f32 %v1771, %v2059
        %v2061 = vpop.f32.mrf.mxu0
        %2062 = vmatprep.mubr.bf16.mxu0 %v1276
        %2063 = vmatmul.mubr.bf16.gmra.mxu0 %v1275
        %v2064 = vpop.f32.mrf.mxu0
        %v2065 = vadd.f32 %v1776, %v2064
        %v2066 = vpop.f32.mrf.mxu0
        %v2067 = vpop.f32.mrf.mxu0
        %v2068 = vadd.f32 %v1779, %v2067
        %v2069 = vpop.f32.mrf.mxu0
        %2070 = vmatprep.mubr.bf16.mxu0 %v1280
        %2071 = vmatmul.mubr.bf16.gmra.mxu0 %v1279
        %v2072 = vpop.f32.mrf.mxu0
        %v2073 = vadd.f32 %v1784, %v2072
        %v2074 = vpop.f32.mrf.mxu0
        %v2075 = vpop.f32.mrf.mxu0
        %v2076 = vadd.f32 %v1787, %v2075
        %v2077 = vpop.f32.mrf.mxu0
        %2078 = vmatprep.mubr.bf16.mxu0 %v1284
        %2079 = vmatmul.mubr.bf16.gmra.mxu0 %v1283
        %v2080 = vpop.f32.mrf.mxu0
        %v2081 = vadd.f32 %v1792, %v2080
        %v2082 = vpop.f32.mrf.mxu0
        %v2083 = vpop.f32.mrf.mxu0
        %v2084 = vadd.f32 %v1795, %v2083
        %v2085 = vpop.f32.mrf.mxu0
        %2086 = vmatprep.mubr.bf16.mxu0 %v1288
        %2087 = vmatmul.mubr.bf16.gmra.mxu0 %v1287
        %v2088 = vpop.f32.mrf.mxu0
        %v2089 = vadd.f32 %v1800, %v2088
        %v2090 = vpop.f32.mrf.mxu0
        %v2091 = vpop.f32.mrf.mxu0
        %v2092 = vadd.f32 %v1803, %v2091
        %v2093 = vpop.f32.mrf.mxu0
        %2094 = vmatprep.mubr.bf16.mxu0 %v1292
        %2095 = vmatmul.mubr.bf16.gmra.mxu0 %v1291
        %v2096 = vpop.f32.mrf.mxu0
        %v2097 = vadd.f32 %v1808, %v2096
        %v2098 = vpop.f32.mrf.mxu0
        %v2099 = vpop.f32.mrf.mxu0
        %v2100 = vadd.f32 %v1811, %v2099
        %v2101 = vpop.f32.mrf.mxu0
        %2102 = vmatprep.mubr.bf16.mxu0 %v1296
        %2103 = vmatmul.mubr.bf16.gmra.mxu0 %v1295
        %v2104 = vpop.f32.mrf.mxu0
        %v2105 = vadd.f32 %v1816, %v2104
        %v2106 = vpop.f32.mrf.mxu0
        %v2107 = vpop.f32.mrf.mxu0
        %v2108 = vadd.f32 %v1819, %v2107
        %v2109 = vpop.f32.mrf.mxu0
        %2110 = vmatprep.mubr.bf16.mxu0 %v1300
        %2111 = vmatmul.mubr.bf16.gmra.mxu0 %v1299
        %v2112 = vpop.f32.mrf.mxu0
        %v2113 = vadd.f32 %v1824, %v2112
        %v2114 = vpop.f32.mrf.mxu0
        %v2115 = vpop.f32.mrf.mxu0
        %v2116 = vadd.f32 %v1827, %v2115
        %v2117 = vpop.f32.mrf.mxu0
        %2118 = vmatprep.mubr.bf16.mxu0 %v1304
        %2119 = vmatmul.mubr.bf16.gmra.mxu0 %v1303
        %v2120 = vpop.f32.mrf.mxu0
        %v2121 = vadd.f32 %v1832, %v2120
        %v2122 = vpop.f32.mrf.mxu0
        %v2123 = vpop.f32.mrf.mxu0
        %v2124 = vadd.f32 %v1835, %v2123
        %v2125 = vpop.f32.mrf.mxu0
        %2126 = vmatprep.mubr.bf16.mxu0 %v1308
        %2127 = vmatmul.mubr.bf16.gmra.mxu0 %v1307
        %v2128 = vpop.f32.mrf.mxu0
        %v2129 = vadd.f32 %v1840, %v2128
        %v2130 = vpop.f32.mrf.mxu0
        %v2131 = vpop.f32.mrf.mxu0
        %v2132 = vadd.f32 %v1843, %v2131
        %v2133 = vpop.f32.mrf.mxu0
        %2134 = vmatprep.mubr.bf16.mxu0 %v1312
        %2135 = vmatmul.mubr.bf16.gmra.mxu0 %v1311
        %v2136 = vpop.f32.mrf.mxu0
        %v2137 = vadd.f32 %v1848, %v2136
        %v2138 = vpop.f32.mrf.mxu0
        %v2139 = vpop.f32.mrf.mxu0
        %v2140 = vadd.f32 %v1851, %v2139
        %v2141 = vpop.f32.mrf.mxu0
        %2142 = vmatprep.mubr.bf16.mxu0 %v1316
        %2143 = vmatmul.mubr.bf16.gmra.mxu0 %v1315
        %v2144 = vpop.f32.mrf.mxu0
        %v2145 = vadd.f32 %v1856, %v2144
        %v2146 = vpop.f32.mrf.mxu0
        %v2147 = vpop.f32.mrf.mxu0
        %v2148 = vadd.f32 %v1859, %v2147
        %v2149 = vpop.f32.mrf.mxu0
        %2150 = vmatprep.mubr.bf16.mxu0 %v1320
        %2151 = vmatmul.mubr.bf16.gmra.mxu0 %v1319
        %v2152 = vpop.f32.mrf.mxu0
        %v2153 = vadd.f32 %v1864, %v2152
        %v2154 = vpop.f32.mrf.mxu0
        %v2155 = vpop.f32.mrf.mxu0
        %v2156 = vadd.f32 %v1867, %v2155
        %v2157 = vpop.f32.mrf.mxu0
        %2158 = vmatprep.mubr.bf16.mxu0 %v1324
        %2159 = vmatmul.mubr.bf16.gmra.mxu0 %v1323
        %v2160 = vpop.f32.mrf.mxu0
        %v2161 = vadd.f32 %v1872, %v2160
        %v2162 = vpop.f32.mrf.mxu0
        %v2163 = vpop.f32.mrf.mxu0
        %v2164 = vadd.f32 %v1875, %v2163
        %v2165 = vpop.f32.mrf.mxu0
        %2166 = vmatprep.mubr.bf16.mxu0 %v1328
        %2167 = vmatmul.mubr.bf16.gmra.mxu0 %v1327
        %v2168 = vpop.f32.mrf.mxu0
        %v2169 = vadd.f32 %v1880, %v2168
        %v2170 = vpop.f32.mrf.mxu0
        %v2171 = vpop.f32.mrf.mxu0
        %v2172 = vadd.f32 %v1883, %v2171
        %v2173 = vpop.f32.mrf.mxu0
        %2174 = vmatprep.mubr.bf16.mxu0 %v1332
        %2175 = vmatmul.mubr.bf16.gmra.mxu0 %v1331
        %v2176 = vpop.f32.mrf.mxu0
        %v2177 = vadd.f32 %v1888, %v2176
        %v2178 = vpop.f32.mrf.mxu0
        %v2179 = vpop.f32.mrf.mxu0
        %v2180 = vadd.f32 %v1891, %v2179
        %v2181 = vpop.f32.mrf.mxu0
        %2182 = vmatprep.mubr.bf16.mxu0 %v1336
        %2183 = vmatmul.mubr.bf16.gmra.mxu0 %v1335
        %v2184 = vpop.f32.mrf.mxu0
        %v2185 = vadd.f32 %v1896, %v2184
        %v2186 = vpop.f32.mrf.mxu0
        %v2187 = vpop.f32.mrf.mxu0
        %v2188 = vadd.f32 %v1899, %v2187
        %v2189 = vpop.f32.mrf.mxu0
        %2190 = vmatprep.mubr.bf16.mxu0 %v1340
        %2191 = vmatmul.mubr.bf16.gmra.mxu0 %v1339
        %v2192 = vpop.f32.mrf.mxu0
        %v2193 = vadd.f32 %v1904, %v2192
        %v2194 = vpop.f32.mrf.mxu0
        %v2195 = vpop.f32.mrf.mxu0
        %v2196 = vadd.f32 %v1907, %v2195
        %v2197 = vpop.f32.mrf.mxu0
        %2198 = vmatprep.mubr.bf16.mxu0 %v1344
        %2199 = vmatmul.mubr.bf16.gmra.mxu0 %v1343
        %v2200 = vpop.f32.mrf.mxu0
        %v2201 = vadd.f32 %v1912, %v2200
        %v2202 = vpop.f32.mrf.mxu0
        %v2203 = vpop.f32.mrf.mxu0
        %v2204 = vadd.f32 %v1915, %v2203
        %v2205 = vpop.f32.mrf.mxu0
        %2206 = vmatprep.mubr.bf16.mxu0 %v1348
        %2207 = vmatmul.mubr.bf16.gmra.mxu0 %v1347
        %v2208 = vpop.f32.mrf.mxu0
        %v2209 = vadd.f32 %v1920, %v2208
        %v2210 = vpop.f32.mrf.mxu0
        %v2211 = vpop.f32.mrf.mxu0
        %v2212 = vadd.f32 %v1923, %v2211
        %v2213 = vpop.f32.mrf.mxu0
        %2214 = vmatprep.mubr.bf16.mxu0 %v1352
        %2215 = vmatmul.mubr.bf16.gmra.mxu0 %v1351
        %v2216 = vpop.f32.mrf.mxu0
        %v2217 = vadd.f32 %v1928, %v2216
        %v2218 = vpop.f32.mrf.mxu0
        %v2219 = vpop.f32.mrf.mxu0
        %v2220 = vadd.f32 %v1931, %v2219
        %v2221 = vpop.f32.mrf.mxu0
        %2222 = vmatprep.mubr.bf16.mxu0 %v1356
        %2223 = vmatmul.mubr.bf16.gmra.mxu0 %v1355
        %v2224 = vpop.f32.mrf.mxu0
        %v2225 = vadd.f32 %v1936, %v2224
        %v2226 = vpop.f32.mrf.mxu0
        %v2227 = vpop.f32.mrf.mxu0
        %v2228 = vadd.f32 %v1939, %v2227
        %v2229 = vpop.f32.mrf.mxu0
        %2230 = vmatprep.mubr.bf16.mxu0 %v1360
        %2231 = vmatmul.mubr.bf16.gmra.mxu0 %v1359
        %v2232 = vpop.f32.mrf.mxu0
        %v2233 = vadd.f32 %v1944, %v2232
        %v2234 = vpop.f32.mrf.mxu0
        %v2235 = vpop.f32.mrf.mxu0
        %v2236 = vadd.f32 %v1947, %v2235
        %v2237 = vpop.f32.mrf.mxu0
        %2238 = vmatprep.mubr.bf16.mxu0 %v1364
        %2239 = vmatmul.mubr.bf16.gmra.mxu0 %v1363
        %v2240 = vpop.f32.mrf.mxu0
        %v2241 = vadd.f32 %v1952, %v2240
        %v2242 = vpop.f32.mrf.mxu0
        %v2243 = vpop.f32.mrf.mxu0
        %v2244 = vadd.f32 %v1955, %v2243
        %v2245 = vpop.f32.mrf.mxu0
        %2246 = vmatprep.mubr.bf16.mxu0 %v1368
        %2247 = vmatmul.mubr.bf16.gmra.mxu0 %v1367
        %v2248 = vpop.f32.mrf.mxu0
        %v2249 = vadd.f32 %v1960, %v2248
        %v2250 = vpop.f32.mrf.mxu0
        %v2251 = vpop.f32.mrf.mxu0
        %v2252 = vadd.f32 %v1963, %v2251
        %v2253 = vpop.f32.mrf.mxu0
        %2254 = vmatprep.mubr.bf16.mxu0 %v1372
        %2255 = vmatmul.mubr.bf16.gmra.mxu0 %v1371
        %v2256 = vpop.f32.mrf.mxu0
        %v2257 = vadd.f32 %v1968, %v2256
        %v2258 = vpop.f32.mrf.mxu0
        %v2259 = vpop.f32.mrf.mxu0
        %v2260 = vadd.f32 %v1971, %v2259
        %v2261 = vpop.f32.mrf.mxu0
        %2262 = vmatprep.mubr.bf16.mxu0 %v1376
        %2263 = vmatmul.mubr.bf16.gmra.mxu0 %v1375
        %v2264 = vpop.f32.mrf.mxu0
        %v2265 = vadd.f32 %v1976, %v2264
        %v2266 = vpop.f32.mrf.mxu0
        %v2267 = vpop.f32.mrf.mxu0
        %v2268 = vadd.f32 %v1979, %v2267
        %v2269 = vpop.f32.mrf.mxu0
        %2270 = vmatprep.mubr.bf16.mxu0 %v1380
        %2271 = vmatmul.mubr.bf16.gmra.mxu0 %v1379
        %v2272 = vpop.f32.mrf.mxu0
        %v2273 = vadd.f32 %v1984, %v2272
        %v2274 = vpop.f32.mrf.mxu0
        %v2275 = vpop.f32.mrf.mxu0
        %v2276 = vadd.f32 %v1987, %v2275
        %v2277 = vpop.f32.mrf.mxu0
        %2278 = vdwg.mxu0
        %v2279 = vadd.f32 %v613, %v2025
        %v2280 = vadd.f32 %v614, %v2028
        %v2281 = vadd.f32 %v615, %v2033
        %v2282 = vadd.f32 %v616, %v2036
        %v2283 = vadd.f32 %v617, %v2041
        %v2284 = vadd.f32 %v618, %v2044
        %v2285 = vadd.f32 %v619, %v2049
        %v2286 = vadd.f32 %v620, %v2052
        %v2287 = vadd.f32 %v621, %v2057
        %v2288 = vadd.f32 %v622, %v2060
        %v2289 = vadd.f32 %v623, %v2065
        %v2290 = vadd.f32 %v624, %v2068
        %v2291 = vadd.f32 %v625, %v2073
        %v2292 = vadd.f32 %v626, %v2076
        %v2293 = vadd.f32 %v627, %v2081
        %v2294 = vadd.f32 %v628, %v2084
        %v2295 = vadd.f32 %v629, %v2089
        %v2296 = vadd.f32 %v630, %v2092
        %v2297 = vadd.f32 %v631, %v2097
        %v2298 = vadd.f32 %v632, %v2100
        %v2299 = vadd.f32 %v633, %v2105
        %v2300 = vadd.f32 %v634, %v2108
        %v2301 = vadd.f32 %v635, %v2113
        %v2302 = vadd.f32 %v636, %v2116
        %v2303 = vadd.f32 %v637, %v2121
        %v2304 = vadd.f32 %v638, %v2124
        %v2305 = vadd.f32 %v639, %v2129
        %v2306 = vadd.f32 %v640, %v2132
        %v2307 = vadd.f32 %v641, %v2137
        %v2308 = vadd.f32 %v642, %v2140
        %v2309 = vadd.f32 %v643, %v2145
        %v2310 = vadd.f32 %v644, %v2148
        %v2311 = vadd.f32 %v645, %v2153
        %v2312 = vadd.f32 %v646, %v2156
        %v2313 = vadd.f32 %v647, %v2161
        %v2314 = vadd.f32 %v648, %v2164
        %v2315 = vadd.f32 %v649, %v2169
        %v2316 = vadd.f32 %v650, %v2172
        %v2317 = vadd.f32 %v651, %v2177
        %v2318 = vadd.f32 %v652, %v2180
        %v2319 = vadd.f32 %v653, %v2185
        %v2320 = vadd.f32 %v654, %v2188
        %v2321 = vadd.f32 %v655, %v2193
        %v2322 = vadd.f32 %v656, %v2196
        %v2323 = vadd.f32 %v657, %v2201
        %v2324 = vadd.f32 %v658, %v2204
        %v2325 = vadd.f32 %v659, %v2209
        %v2326 = vadd.f32 %v660, %v2212
        %v2327 = vadd.f32 %v661, %v2217
        %v2328 = vadd.f32 %v662, %v2220
        %v2329 = vadd.f32 %v663, %v2225
        %v2330 = vadd.f32 %v664, %v2228
        %v2331 = vadd.f32 %v665, %v2233
        %v2332 = vadd.f32 %v666, %v2236
        %v2333 = vadd.f32 %v667, %v2241
        %v2334 = vadd.f32 %v668, %v2244
        %v2335 = vadd.f32 %v669, %v2249
        %v2336 = vadd.f32 %v670, %v2252
        %v2337 = vadd.f32 %v671, %v2257
        %v2338 = vadd.f32 %v672, %v2260
        %v2339 = vadd.f32 %v673, %v2265
        %v2340 = vadd.f32 %v674, %v2268
        %v2341 = vadd.f32 %v675, %v2273
        %v2342 = vadd.f32 %v676, %v2276
        %2343 = vst [vmem:[#allocation2] sm:$0xff] %v2279
        %2344 = vst [vmem:[#allocation2 + $0x8] sm:$0xff] %v2280
        %2345 = vst [vmem:[#allocation2 + $0x10] sm:$0xff] %v2281
        %2346 = vst [vmem:[#allocation2 + $0x18] sm:$0xff] %v2282
        %2347 = vst [vmem:[#allocation2 + $0x20] sm:$0xff] %v2283
        %2348 = vst [vmem:[#allocation2 + $0x28] sm:$0xff] %v2284
        %2349 = vst [vmem:[#allocation2 + $0x30] sm:$0xff] %v2285
        %2350 = vst [vmem:[#allocation2 + $0x38] sm:$0xff] %v2286
        %2351 = vst [vmem:[#allocation2 + $0x40] sm:$0xff] %v2287
        %2352 = vst [vmem:[#allocation2 + $0x48] sm:$0xff] %v2288
        %2353 = vst [vmem:[#allocation2 + $0x50] sm:$0xff] %v2289
        %2354 = vst [vmem:[#allocation2 + $0x58] sm:$0xff] %v2290
        %2355 = vst [vmem:[#allocation2 + $0x60] sm:$0xff] %v2291
        %2356 = vst [vmem:[#allocation2 + $0x68] sm:$0xff] %v2292
        %2357 = vst [vmem:[#allocation2 + $0x70] sm:$0xff] %v2293
        %2358 = vst [vmem:[#allocation2 + $0x78] sm:$0xff] %v2294
        %2359 = vst [vmem:[#allocation2 + $0x80] sm:$0xff] %v2295
        %2360 = vst [vmem:[#allocation2 + $0x88] sm:$0xff] %v2296
        %2361 = vst [vmem:[#allocation2 + $0x90] sm:$0xff] %v2297
        %2362 = vst [vmem:[#allocation2 + $0x98] sm:$0xff] %v2298
        %2363 = vst [vmem:[#allocation2 + $0xa0] sm:$0xff] %v2299
        %2364 = vst [vmem:[#allocation2 + $0xa8] sm:$0xff] %v2300
        %2365 = vst [vmem:[#allocation2 + $0xb0] sm:$0xff] %v2301
        %2366 = vst [vmem:[#allocation2 + $0xb8] sm:$0xff] %v2302
        %2367 = vst [vmem:[#allocation2 + $0xc0] sm:$0xff] %v2303
        %2368 = vst [vmem:[#allocation2 + $0xc8] sm:$0xff] %v2304
        %2369 = vst [vmem:[#allocation2 + $0xd0] sm:$0xff] %v2305
        %2370 = vst [vmem:[#allocation2 + $0xd8] sm:$0xff] %v2306
        %2371 = vst [vmem:[#allocation2 + $0xe0] sm:$0xff] %v2307
        %2372 = vst [vmem:[#allocation2 + $0xe8] sm:$0xff] %v2308
        %2373 = vst [vmem:[#allocation2 + $0xf0] sm:$0xff] %v2309
        %2374 = vst [vmem:[#allocation2 + $0xf8] sm:$0xff] %v2310
        %2375 = vst [vmem:[#allocation2 + $0x100] sm:$0xff] %v2311
        %2376 = vst [vmem:[#allocation2 + $0x108] sm:$0xff] %v2312
        %2377 = vst [vmem:[#allocation2 + $0x110] sm:$0xff] %v2313
        %2378 = vst [vmem:[#allocation2 + $0x118] sm:$0xff] %v2314
        %2379 = vst [vmem:[#allocation2 + $0x120] sm:$0xff] %v2315
        %2380 = vst [vmem:[#allocation2 + $0x128] sm:$0xff] %v2316
        %2381 = vst [vmem:[#allocation2 + $0x130] sm:$0xff] %v2317
        %2382 = vst [vmem:[#allocation2 + $0x138] sm:$0xff] %v2318
        %2383 = vst [vmem:[#allocation2 + $0x140] sm:$0xff] %v2319
        %2384 = vst [vmem:[#allocation2 + $0x148] sm:$0xff] %v2320
        %2385 = vst [vmem:[#allocation2 + $0x150] sm:$0xff] %v2321
        %2386 = vst [vmem:[#allocation2 + $0x158] sm:$0xff] %v2322
        %2387 = vst [vmem:[#allocation2 + $0x160] sm:$0xff] %v2323
        %2388 = vst [vmem:[#allocation2 + $0x168] sm:$0xff] %v2324
        %2389 = vst [vmem:[#allocation2 + $0x170] sm:$0xff] %v2325
        %2390 = vst [vmem:[#allocation2 + $0x178] sm:$0xff] %v2326
        %2391 = vst [vmem:[#allocation2 + $0x180] sm:$0xff] %v2327
        %2392 = vst [vmem:[#allocation2 + $0x188] sm:$0xff] %v2328
        %2393 = vst [vmem:[#allocation2 + $0x190] sm:$0xff] %v2329
        %2394 = vst [vmem:[#allocation2 + $0x198] sm:$0xff] %v2330
        %2395 = vst [vmem:[#allocation2 + $0x1a0] sm:$0xff] %v2331
        %2396 = vst [vmem:[#allocation2 + $0x1a8] sm:$0xff] %v2332
        %2397 = vst [vmem:[#allocation2 + $0x1b0] sm:$0xff] %v2333
        %2398 = vst [vmem:[#allocation2 + $0x1b8] sm:$0xff] %v2334
        %2399 = vst [vmem:[#allocation2 + $0x1c0] sm:$0xff] %v2335
        %2400 = vst [vmem:[#allocation2 + $0x1c8] sm:$0xff] %v2336
        %2401 = vst [vmem:[#allocation2 + $0x1d0] sm:$0xff] %v2337
        %2402 = vst [vmem:[#allocation2 + $0x1d8] sm:$0xff] %v2338
        %2403 = vst [vmem:[#allocation2 + $0x1e0] sm:$0xff] %v2339
        %2404 = vst [vmem:[#allocation2 + $0x1e8] sm:$0xff] %v2340
        %2405 = vst [vmem:[#allocation2 + $0x1f0] sm:$0xff] %v2341
        %2406 = vst [vmem:[#allocation2 + $0x1f8] sm:$0xff] %v2342
        %p2407 = scmp.eq.s32.totalorder %s20, 1
        // Predicated region
        $region64: #{discriminator_forward.5} parent=54 // pred_check
          %p2408 = pneg %p2407
        $region65: #{discriminator_forward.5} parent=54 // pred_check_branch
          %2410 = sbr.rel (%p2408) target = $region67
        $region66: #{discriminator_forward.5} parent=54 // pred_region
          %v2411 = vld [vmem:[#allocation2] sm:$0xff]
          %v2412 = vld [vmem:[#allocation2 + $0x8] sm:$0xff]
          %v2413 = vld [vmem:[#allocation2 + $0x10] sm:$0xff]
          %v2414 = vld [vmem:[#allocation2 + $0x18] sm:$0xff]
          %v2415 = vld [vmem:[#allocation2 + $0x20] sm:$0xff]
          %v2416 = vld [vmem:[#allocation2 + $0x28] sm:$0xff]
          %v2417 = vld [vmem:[#allocation2 + $0x30] sm:$0xff]
          %v2418 = vld [vmem:[#allocation2 + $0x38] sm:$0xff]
          %v2419 = vld [vmem:[#allocation2 + $0x40] sm:$0xff]
          %v2420 = vld [vmem:[#allocation2 + $0x48] sm:$0xff]
          %v2421 = vld [vmem:[#allocation2 + $0x50] sm:$0xff]
          %v2422 = vld [vmem:[#allocation2 + $0x58] sm:$0xff]
          %v2423 = vld [vmem:[#allocation2 + $0x60] sm:$0xff]
          %v2424 = vld [vmem:[#allocation2 + $0x68] sm:$0xff]
          %v2425 = vld [vmem:[#allocation2 + $0x70] sm:$0xff]
          %v2426 = vld [vmem:[#allocation2 + $0x78] sm:$0xff]
          %v2427 = vld [vmem:[#allocation2 + $0x80] sm:$0xff]
          %v2428 = vld [vmem:[#allocation2 + $0x88] sm:$0xff]
          %v2429 = vld [vmem:[#allocation2 + $0x90] sm:$0xff]
          %v2430 = vld [vmem:[#allocation2 + $0x98] sm:$0xff]
          %v2431 = vld [vmem:[#allocation2 + $0xa0] sm:$0xff]
          %v2432 = vld [vmem:[#allocation2 + $0xa8] sm:$0xff]
          %v2433 = vld [vmem:[#allocation2 + $0xb0] sm:$0xff]
          %v2434 = vld [vmem:[#allocation2 + $0xb8] sm:$0xff]
          %v2435 = vld [vmem:[#allocation2 + $0xc0] sm:$0xff]
          %v2436 = vld [vmem:[#allocation2 + $0xc8] sm:$0xff]
          %v2437 = vld [vmem:[#allocation2 + $0xd0] sm:$0xff]
          %v2438 = vld [vmem:[#allocation2 + $0xd8] sm:$0xff]
          %v2439 = vld [vmem:[#allocation2 + $0xe0] sm:$0xff]
          %v2440 = vld [vmem:[#allocation2 + $0xe8] sm:$0xff]
          %v2441 = vld [vmem:[#allocation2 + $0xf0] sm:$0xff]
          %v2442 = vld [vmem:[#allocation2 + $0xf8] sm:$0xff]
          %v2443 = vld [vmem:[#allocation2 + $0x100] sm:$0xff]
          %v2444 = vld [vmem:[#allocation2 + $0x108] sm:$0xff]
          %v2445 = vld [vmem:[#allocation2 + $0x110] sm:$0xff]
          %v2446 = vld [vmem:[#allocation2 + $0x118] sm:$0xff]
          %v2447 = vld [vmem:[#allocation2 + $0x120] sm:$0xff]
          %v2448 = vld [vmem:[#allocation2 + $0x128] sm:$0xff]
          %v2449 = vld [vmem:[#allocation2 + $0x130] sm:$0xff]
          %v2450 = vld [vmem:[#allocation2 + $0x138] sm:$0xff]
          %v2451 = vld [vmem:[#allocation2 + $0x140] sm:$0xff]
          %v2452 = vld [vmem:[#allocation2 + $0x148] sm:$0xff]
          %v2453 = vld [vmem:[#allocation2 + $0x150] sm:$0xff]
          %v2454 = vld [vmem:[#allocation2 + $0x158] sm:$0xff]
          %v2455 = vld [vmem:[#allocation2 + $0x160] sm:$0xff]
          %v2456 = vld [vmem:[#allocation2 + $0x168] sm:$0xff]
          %v2457 = vld [vmem:[#allocation2 + $0x170] sm:$0xff]
          %v2458 = vld [vmem:[#allocation2 + $0x178] sm:$0xff]
          %v2459 = vld [vmem:[#allocation2 + $0x180] sm:$0xff]
          %v2460 = vld [vmem:[#allocation2 + $0x188] sm:$0xff]
          %v2461 = vld [vmem:[#allocation2 + $0x190] sm:$0xff]
          %v2462 = vld [vmem:[#allocation2 + $0x198] sm:$0xff]
          %v2463 = vld [vmem:[#allocation2 + $0x1a0] sm:$0xff]
          %v2464 = vld [vmem:[#allocation2 + $0x1a8] sm:$0xff]
          %v2465 = vld [vmem:[#allocation2 + $0x1b0] sm:$0xff]
          %v2466 = vld [vmem:[#allocation2 + $0x1b8] sm:$0xff]
          %v2467 = vld [vmem:[#allocation2 + $0x1c0] sm:$0xff]
          %v2468 = vld [vmem:[#allocation2 + $0x1c8] sm:$0xff]
          %v2469 = vld [vmem:[#allocation2 + $0x1d0] sm:$0xff]
          %v2470 = vld [vmem:[#allocation2 + $0x1d8] sm:$0xff]
          %v2471 = vld [vmem:[#allocation2 + $0x1e0] sm:$0xff]
          %v2472 = vld [vmem:[#allocation2 + $0x1e8] sm:$0xff]
          %v2473 = vld [vmem:[#allocation2 + $0x1f0] sm:$0xff]
          %v2474 = vld [vmem:[#allocation2 + $0x1f8] sm:$0xff]
          %v2475 = vadd.f32 %v2411, %v2412
          %v2476 = vadd.f32 %v2475, %v2413
          %v2477 = vadd.f32 %v2476, %v2414
          %v2478 = vadd.f32 %v2477, %v2415
          %v2479 = vadd.f32 %v2478, %v2416
          %v2480 = vadd.f32 %v2479, %v2417
          %v2481 = vadd.f32 %v2480, %v2418
          %v2482 = vadd.f32 %v2481, %v2419
          %v2483 = vadd.f32 %v2482, %v2420
          %v2484 = vadd.f32 %v2483, %v2421
          %v2485 = vadd.f32 %v2484, %v2422
          %v2486 = vadd.f32 %v2485, %v2423
          %v2487 = vadd.f32 %v2486, %v2424
          %v2488 = vadd.f32 %v2487, %v2425
          %v2489 = vadd.f32 %v2488, %v2426
          %v2490 = vadd.f32 %v2489, %v2427
          %v2491 = vadd.f32 %v2490, %v2428
          %v2492 = vadd.f32 %v2491, %v2429
          %v2493 = vadd.f32 %v2492, %v2430
          %v2494 = vadd.f32 %v2493, %v2431
          %v2495 = vadd.f32 %v2494, %v2432
          %v2496 = vadd.f32 %v2495, %v2433
          %v2497 = vadd.f32 %v2496, %v2434
          %v2498 = vadd.f32 %v2497, %v2435
          %v2499 = vadd.f32 %v2498, %v2436
          %v2500 = vadd.f32 %v2499, %v2437
          %v2501 = vadd.f32 %v2500, %v2438
          %v2502 = vadd.f32 %v2501, %v2439
          %v2503 = vadd.f32 %v2502, %v2440
          %v2504 = vadd.f32 %v2503, %v2441
          %v2505 = vadd.f32 %v2504, %v2442
          %v2506 = vadd.f32 %v2505, %v2443
          %v2507 = vadd.f32 %v2506, %v2444
          %v2508 = vadd.f32 %v2507, %v2445
          %v2509 = vadd.f32 %v2508, %v2446
          %v2510 = vadd.f32 %v2509, %v2447
          %v2511 = vadd.f32 %v2510, %v2448
          %v2512 = vadd.f32 %v2511, %v2449
          %v2513 = vadd.f32 %v2512, %v2450
          %v2514 = vadd.f32 %v2513, %v2451
          %v2515 = vadd.f32 %v2514, %v2452
          %v2516 = vadd.f32 %v2515, %v2453
          %v2517 = vadd.f32 %v2516, %v2454
          %v2518 = vadd.f32 %v2517, %v2455
          %v2519 = vadd.f32 %v2518, %v2456
          %v2520 = vadd.f32 %v2519, %v2457
          %v2521 = vadd.f32 %v2520, %v2458
          %v2522 = vadd.f32 %v2521, %v2459
          %v2523 = vadd.f32 %v2522, %v2460
          %v2524 = vadd.f32 %v2523, %v2461
          %v2525 = vadd.f32 %v2524, %v2462
          %v2526 = vadd.f32 %v2525, %v2463
          %v2527 = vadd.f32 %v2526, %v2464
          %v2528 = vadd.f32 %v2527, %v2465
          %v2529 = vadd.f32 %v2528, %v2466
          %v2530 = vadd.f32 %v2529, %v2467
          %v2531 = vadd.f32 %v2530, %v2468
          %v2532 = vadd.f32 %v2531, %v2469
          %v2533 = vadd.f32 %v2532, %v2470
          %v2534 = vadd.f32 %v2533, %v2471
          %v2535 = vadd.f32 %v2534, %v2472
          %v2536 = vadd.f32 %v2535, %v2473
          %v2537 = vadd.f32 %v2536, %v2474
          %v2538 = vrot.slane %v2537, 4
          %v2539 = vadd.f32 %v2537, %v2538
          %v2540 = vrot.slane %v2539, 2
          %v2541 = vadd.f32 %v2539, %v2540
          %v2542 = vrot.slane %v2541, 1
          %v2543 = vadd.f32 %v2541, %v2542
          %v2544 = vrcp.pop 512.0
          %v2545 = vmul.f32 %v2543, %v2544
          %v2546 = vsub.f32 %v2411, %v2545
          %v2547 = vsub.f32 %v2412, %v2545
          %v2548 = vsub.f32 %v2413, %v2545
          %v2549 = vsub.f32 %v2414, %v2545
          %v2550 = vsub.f32 %v2415, %v2545
          %v2551 = vsub.f32 %v2416, %v2545
          %v2552 = vsub.f32 %v2417, %v2545
          %v2553 = vsub.f32 %v2418, %v2545
          %v2554 = vsub.f32 %v2419, %v2545
          %v2555 = vsub.f32 %v2420, %v2545
          %v2556 = vsub.f32 %v2421, %v2545
          %v2557 = vsub.f32 %v2422, %v2545
          %v2558 = vsub.f32 %v2423, %v2545
          %v2559 = vsub.f32 %v2424, %v2545
          %v2560 = vsub.f32 %v2425, %v2545
          %v2561 = vsub.f32 %v2426, %v2545
          %v2562 = vsub.f32 %v2427, %v2545
          %v2563 = vsub.f32 %v2428, %v2545
          %v2564 = vsub.f32 %v2429, %v2545
          %v2565 = vsub.f32 %v2430, %v2545
          %v2566 = vsub.f32 %v2431, %v2545
          %v2567 = vsub.f32 %v2432, %v2545
          %v2568 = vsub.f32 %v2433, %v2545
          %v2569 = vsub.f32 %v2434, %v2545
          %v2570 = vsub.f32 %v2435, %v2545
          %v2571 = vsub.f32 %v2436, %v2545
          %v2572 = vsub.f32 %v2437, %v2545
          %v2573 = vsub.f32 %v2438, %v2545
          %v2574 = vsub.f32 %v2439, %v2545
          %v2575 = vsub.f32 %v2440, %v2545
          %v2576 = vsub.f32 %v2441, %v2545
          %v2577 = vsub.f32 %v2442, %v2545
          %v2578 = vsub.f32 %v2443, %v2545
          %v2579 = vsub.f32 %v2444, %v2545
          %v2580 = vsub.f32 %v2445, %v2545
          %v2581 = vsub.f32 %v2446, %v2545
          %v2582 = vsub.f32 %v2447, %v2545
          %v2583 = vsub.f32 %v2448, %v2545
          %v2584 = vsub.f32 %v2449, %v2545
          %v2585 = vsub.f32 %v2450, %v2545
          %v2586 = vsub.f32 %v2451, %v2545
          %v2587 = vsub.f32 %v2452, %v2545
          %v2588 = vsub.f32 %v2453, %v2545
          %v2589 = vsub.f32 %v2454, %v2545
          %v2590 = vsub.f32 %v2455, %v2545
          %v2591 = vsub.f32 %v2456, %v2545
          %v2592 = vsub.f32 %v2457, %v2545
          %v2593 = vsub.f32 %v2458, %v2545
          %v2594 = vsub.f32 %v2459, %v2545
          %v2595 = vsub.f32 %v2460, %v2545
          %v2596 = vsub.f32 %v2461, %v2545
          %v2597 = vsub.f32 %v2462, %v2545
          %v2598 = vsub.f32 %v2463, %v2545
          %v2599 = vsub.f32 %v2464, %v2545
          %v2600 = vsub.f32 %v2465, %v2545
          %v2601 = vsub.f32 %v2466, %v2545
          %v2602 = vsub.f32 %v2467, %v2545
          %v2603 = vsub.f32 %v2468, %v2545
          %v2604 = vsub.f32 %v2469, %v2545
          %v2605 = vsub.f32 %v2470, %v2545
          %v2606 = vsub.f32 %v2471, %v2545
          %v2607 = vsub.f32 %v2472, %v2545
          %v2608 = vsub.f32 %v2473, %v2545
          %v2609 = vsub.f32 %v2474, %v2545
          %v2610 = vmul.f32 %v2546, %v2546
          %v2611 = vmul.f32 %v2547, %v2547
          %v2612 = vmul.f32 %v2548, %v2548
          %v2613 = vmul.f32 %v2549, %v2549
          %v2614 = vmul.f32 %v2550, %v2550
          %v2615 = vmul.f32 %v2551, %v2551
          %v2616 = vmul.f32 %v2552, %v2552
          %v2617 = vmul.f32 %v2553, %v2553
          %v2618 = vmul.f32 %v2554, %v2554
          %v2619 = vmul.f32 %v2555, %v2555
          %v2620 = vmul.f32 %v2556, %v2556
          %v2621 = vmul.f32 %v2557, %v2557
          %v2622 = vmul.f32 %v2558, %v2558
          %v2623 = vmul.f32 %v2559, %v2559
          %v2624 = vmul.f32 %v2560, %v2560
          %v2625 = vmul.f32 %v2561, %v2561
          %v2626 = vmul.f32 %v2562, %v2562
          %v2627 = vmul.f32 %v2563, %v2563
          %v2628 = vmul.f32 %v2564, %v2564
          %v2629 = vmul.f32 %v2565, %v2565
          %v2630 = vmul.f32 %v2566, %v2566
          %v2631 = vmul.f32 %v2567, %v2567
          %v2632 = vmul.f32 %v2568, %v2568
          %v2633 = vmul.f32 %v2569, %v2569
          %v2634 = vmul.f32 %v2570, %v2570
          %v2635 = vmul.f32 %v2571, %v2571
          %v2636 = vmul.f32 %v2572, %v2572
          %v2637 = vmul.f32 %v2573, %v2573
          %v2638 = vmul.f32 %v2574, %v2574
          %v2639 = vmul.f32 %v2575, %v2575
          %v2640 = vmul.f32 %v2576, %v2576
          %v2641 = vmul.f32 %v2577, %v2577
          %v2642 = vmul.f32 %v2578, %v2578
          %v2643 = vmul.f32 %v2579, %v2579
          %v2644 = vmul.f32 %v2580, %v2580
          %v2645 = vmul.f32 %v2581, %v2581
          %v2646 = vmul.f32 %v2582, %v2582
          %v2647 = vmul.f32 %v2583, %v2583
          %v2648 = vmul.f32 %v2584, %v2584
          %v2649 = vmul.f32 %v2585, %v2585
          %v2650 = vmul.f32 %v2586, %v2586
          %v2651 = vmul.f32 %v2587, %v2587
          %v2652 = vmul.f32 %v2588, %v2588
          %v2653 = vmul.f32 %v2589, %v2589
          %v2654 = vmul.f32 %v2590, %v2590
          %v2655 = vmul.f32 %v2591, %v2591
          %v2656 = vmul.f32 %v2592, %v2592
          %v2657 = vmul.f32 %v2593, %v2593
          %v2658 = vmul.f32 %v2594, %v2594
          %v2659 = vmul.f32 %v2595, %v2595
          %v2660 = vmul.f32 %v2596, %v2596
          %v2661 = vmul.f32 %v2597, %v2597
          %v2662 = vmul.f32 %v2598, %v2598
          %v2663 = vmul.f32 %v2599, %v2599
          %v2664 = vmul.f32 %v2600, %v2600
          %v2665 = vmul.f32 %v2601, %v2601
          %v2666 = vmul.f32 %v2602, %v2602
          %v2667 = vmul.f32 %v2603, %v2603
          %v2668 = vmul.f32 %v2604, %v2604
          %v2669 = vmul.f32 %v2605, %v2605
          %v2670 = vmul.f32 %v2606, %v2606
          %v2671 = vmul.f32 %v2607, %v2607
          %v2672 = vmul.f32 %v2608, %v2608
          %v2673 = vmul.f32 %v2609, %v2609
          %v2674 = vadd.f32 %v2610, %v2611
          %v2675 = vadd.f32 %v2674, %v2612
          %v2676 = vadd.f32 %v2675, %v2613
          %v2677 = vadd.f32 %v2676, %v2614
          %v2678 = vadd.f32 %v2677, %v2615
          %v2679 = vadd.f32 %v2678, %v2616
          %v2680 = vadd.f32 %v2679, %v2617
          %v2681 = vadd.f32 %v2680, %v2618
          %v2682 = vadd.f32 %v2681, %v2619
          %v2683 = vadd.f32 %v2682, %v2620
          %v2684 = vadd.f32 %v2683, %v2621
          %v2685 = vadd.f32 %v2684, %v2622
          %v2686 = vadd.f32 %v2685, %v2623
          %v2687 = vadd.f32 %v2686, %v2624
          %v2688 = vadd.f32 %v2687, %v2625
          %v2689 = vadd.f32 %v2688, %v2626
          %v2690 = vadd.f32 %v2689, %v2627
          %v2691 = vadd.f32 %v2690, %v2628
          %v2692 = vadd.f32 %v2691, %v2629
          %v2693 = vadd.f32 %v2692, %v2630
          %v2694 = vadd.f32 %v2693, %v2631
          %v2695 = vadd.f32 %v2694, %v2632
          %v2696 = vadd.f32 %v2695, %v2633
          %v2697 = vadd.f32 %v2696, %v2634
          %v2698 = vadd.f32 %v2697, %v2635
          %v2699 = vadd.f32 %v2698, %v2636
          %v2700 = vadd.f32 %v2699, %v2637
          %v2701 = vadd.f32 %v2700, %v2638
          %v2702 = vadd.f32 %v2701, %v2639
          %v2703 = vadd.f32 %v2702, %v2640
          %v2704 = vadd.f32 %v2703, %v2641
          %v2705 = vadd.f32 %v2704, %v2642
          %v2706 = vadd.f32 %v2705, %v2643
          %v2707 = vadd.f32 %v2706, %v2644
          %v2708 = vadd.f32 %v2707, %v2645
          %v2709 = vadd.f32 %v2708, %v2646
          %v2710 = vadd.f32 %v2709, %v2647
          %v2711 = vadd.f32 %v2710, %v2648
          %v2712 = vadd.f32 %v2711, %v2649
          %v2713 = vadd.f32 %v2712, %v2650
          %v2714 = vadd.f32 %v2713, %v2651
          %v2715 = vadd.f32 %v2714, %v2652
          %v2716 = vadd.f32 %v2715, %v2653
          %v2717 = vadd.f32 %v2716, %v2654
          %v2718 = vadd.f32 %v2717, %v2655
          %v2719 = vadd.f32 %v2718, %v2656
          %v2720 = vadd.f32 %v2719, %v2657
          %v2721 = vadd.f32 %v2720, %v2658
          %v2722 = vadd.f32 %v2721, %v2659
          %v2723 = vadd.f32 %v2722, %v2660
          %v2724 = vadd.f32 %v2723, %v2661
          %v2725 = vadd.f32 %v2724, %v2662
          %v2726 = vadd.f32 %v2725, %v2663
          %v2727 = vadd.f32 %v2726, %v2664
          %v2728 = vadd.f32 %v2727, %v2665
          %v2729 = vadd.f32 %v2728, %v2666
          %v2730 = vadd.f32 %v2729, %v2667
          %v2731 = vadd.f32 %v2730, %v2668
          %v2732 = vadd.f32 %v2731, %v2669
          %v2733 = vadd.f32 %v2732, %v2670
          %v2734 = vadd.f32 %v2733, %v2671
          %v2735 = vadd.f32 %v2734, %v2672
          %v2736 = vadd.f32 %v2735, %v2673
          %v2737 = vrot.slane %v2736, 4
          %v2738 = vadd.f32 %v2736, %v2737
          %v2739 = vrot.slane %v2738, 2
          %v2740 = vadd.f32 %v2738, %v2739
          %v2741 = vrot.slane %v2740, 1
          %v2742 = vadd.f32 %v2740, %v2741
          %v2743 = vmul.f32 %v2742, %v2544
          %v2744 = vld [vmem:[%s536] sm:$0x1]
          %v2745 = vadd.f32 %v2743, 1e-05
          %v2746 = vrsqrt.pop %v2745
          %v2747 = vmul.f32 %v2744, %v2746
          %v2748 = vld [vmem:[%s539] sm:$0x1]
          %v2749 = vmul.f32 %v2545, %v2747
          %v2750 = vsub.f32 %v2748, %v2749
          %v2752 = vlaneseq
          %v2753 = vshrl.u32 %v2752, 7
          %v2754 = vsub.s32 0, %v2753
          %v2755 = vrot.slane %v2747, %v2754
          %v2757 = vmul.f32 %v2411, %v2755
          %v2758 = vmul.f32 %v2412, %v2755
          %v2759 = vmul.f32 %v2413, %v2755
          %v2760 = vmul.f32 %v2414, %v2755
          %v2761 = vmul.f32 %v2415, %v2755
          %v2762 = vmul.f32 %v2416, %v2755
          %v2763 = vmul.f32 %v2417, %v2755
          %v2764 = vmul.f32 %v2418, %v2755
          %v2765 = vmul.f32 %v2419, %v2755
          %v2766 = vmul.f32 %v2420, %v2755
          %v2767 = vmul.f32 %v2421, %v2755
          %v2768 = vmul.f32 %v2422, %v2755
          %v2769 = vmul.f32 %v2423, %v2755
          %v2770 = vmul.f32 %v2424, %v2755
          %v2771 = vmul.f32 %v2425, %v2755
          %v2772 = vmul.f32 %v2426, %v2755
          %v2773 = vmul.f32 %v2427, %v2755
          %v2774 = vmul.f32 %v2428, %v2755
          %v2775 = vmul.f32 %v2429, %v2755
          %v2776 = vmul.f32 %v2430, %v2755
          %v2777 = vmul.f32 %v2431, %v2755
          %v2778 = vmul.f32 %v2432, %v2755
          %v2779 = vmul.f32 %v2433, %v2755
          %v2780 = vmul.f32 %v2434, %v2755
          %v2781 = vmul.f32 %v2435, %v2755
          %v2782 = vmul.f32 %v2436, %v2755
          %v2783 = vmul.f32 %v2437, %v2755
          %v2784 = vmul.f32 %v2438, %v2755
          %v2785 = vmul.f32 %v2439, %v2755
          %v2786 = vmul.f32 %v2440, %v2755
          %v2787 = vmul.f32 %v2441, %v2755
          %v2788 = vmul.f32 %v2442, %v2755
          %v2789 = vmul.f32 %v2443, %v2755
          %v2790 = vmul.f32 %v2444, %v2755
          %v2791 = vmul.f32 %v2445, %v2755
          %v2792 = vmul.f32 %v2446, %v2755
          %v2793 = vmul.f32 %v2447, %v2755
          %v2794 = vmul.f32 %v2448, %v2755
          %v2795 = vmul.f32 %v2449, %v2755
          %v2796 = vmul.f32 %v2450, %v2755
          %v2797 = vmul.f32 %v2451, %v2755
          %v2798 = vmul.f32 %v2452, %v2755
          %v2799 = vmul.f32 %v2453, %v2755
          %v2800 = vmul.f32 %v2454, %v2755
          %v2801 = vmul.f32 %v2455, %v2755
          %v2802 = vmul.f32 %v2456, %v2755
          %v2803 = vmul.f32 %v2457, %v2755
          %v2804 = vmul.f32 %v2458, %v2755
          %v2805 = vmul.f32 %v2459, %v2755
          %v2806 = vmul.f32 %v2460, %v2755
          %v2807 = vmul.f32 %v2461, %v2755
          %v2808 = vmul.f32 %v2462, %v2755
          %v2809 = vmul.f32 %v2463, %v2755
          %v2810 = vmul.f32 %v2464, %v2755
          %v2811 = vmul.f32 %v2465, %v2755
          %v2812 = vmul.f32 %v2466, %v2755
          %v2813 = vmul.f32 %v2467, %v2755
          %v2814 = vmul.f32 %v2468, %v2755
          %v2815 = vmul.f32 %v2469, %v2755
          %v2816 = vmul.f32 %v2470, %v2755
          %v2817 = vmul.f32 %v2471, %v2755
          %v2818 = vmul.f32 %v2472, %v2755
          %v2819 = vmul.f32 %v2473, %v2755
          %v2820 = vmul.f32 %v2474, %v2755
          %v2822 = vlaneseq
          %v2823 = vshrl.u32 %v2822, 7
          %v2824 = vsub.s32 0, %v2823
          %v2825 = vrot.slane %v2750, %v2824
          %v2827 = vadd.f32 %v2757, %v2825
          %v2828 = vadd.f32 %v2758, %v2825
          %v2829 = vadd.f32 %v2759, %v2825
          %v2830 = vadd.f32 %v2760, %v2825
          %v2831 = vadd.f32 %v2761, %v2825
          %v2832 = vadd.f32 %v2762, %v2825
          %v2833 = vadd.f32 %v2763, %v2825
          %v2834 = vadd.f32 %v2764, %v2825
          %v2835 = vadd.f32 %v2765, %v2825
          %v2836 = vadd.f32 %v2766, %v2825
          %v2837 = vadd.f32 %v2767, %v2825
          %v2838 = vadd.f32 %v2768, %v2825
          %v2839 = vadd.f32 %v2769, %v2825
          %v2840 = vadd.f32 %v2770, %v2825
          %v2841 = vadd.f32 %v2771, %v2825
          %v2842 = vadd.f32 %v2772, %v2825
          %v2843 = vadd.f32 %v2773, %v2825
          %v2844 = vadd.f32 %v2774, %v2825
          %v2845 = vadd.f32 %v2775, %v2825
          %v2846 = vadd.f32 %v2776, %v2825
          %v2847 = vadd.f32 %v2777, %v2825
          %v2848 = vadd.f32 %v2778, %v2825
          %v2849 = vadd.f32 %v2779, %v2825
          %v2850 = vadd.f32 %v2780, %v2825
          %v2851 = vadd.f32 %v2781, %v2825
          %v2852 = vadd.f32 %v2782, %v2825
          %v2853 = vadd.f32 %v2783, %v2825
          %v2854 = vadd.f32 %v2784, %v2825
          %v2855 = vadd.f32 %v2785, %v2825
          %v2856 = vadd.f32 %v2786, %v2825
          %v2857 = vadd.f32 %v2787, %v2825
          %v2858 = vadd.f32 %v2788, %v2825
          %v2859 = vadd.f32 %v2789, %v2825
          %v2860 = vadd.f32 %v2790, %v2825
          %v2861 = vadd.f32 %v2791, %v2825
          %v2862 = vadd.f32 %v2792, %v2825
          %v2863 = vadd.f32 %v2793, %v2825
          %v2864 = vadd.f32 %v2794, %v2825
          %v2865 = vadd.f32 %v2795, %v2825
          %v2866 = vadd.f32 %v2796, %v2825
          %v2867 = vadd.f32 %v2797, %v2825
          %v2868 = vadd.f32 %v2798, %v2825
          %v2869 = vadd.f32 %v2799, %v2825
          %v2870 = vadd.f32 %v2800, %v2825
          %v2871 = vadd.f32 %v2801, %v2825
          %v2872 = vadd.f32 %v2802, %v2825
          %v2873 = vadd.f32 %v2803, %v2825
          %v2874 = vadd.f32 %v2804, %v2825
          %v2875 = vadd.f32 %v2805, %v2825
          %v2876 = vadd.f32 %v2806, %v2825
          %v2877 = vadd.f32 %v2807, %v2825
          %v2878 = vadd.f32 %v2808, %v2825
          %v2879 = vadd.f32 %v2809, %v2825
          %v2880 = vadd.f32 %v2810, %v2825
          %v2881 = vadd.f32 %v2811, %v2825
          %v2882 = vadd.f32 %v2812, %v2825
          %v2883 = vadd.f32 %v2813, %v2825
          %v2884 = vadd.f32 %v2814, %v2825
          %v2885 = vadd.f32 %v2815, %v2825
          %v2886 = vadd.f32 %v2816, %v2825
          %v2887 = vadd.f32 %v2817, %v2825
          %v2888 = vadd.f32 %v2818, %v2825
          %v2889 = vadd.f32 %v2819, %v2825
          %v2890 = vadd.f32 %v2820, %v2825
          %vm2891 = vcmp.gt.f32.partialorder %v2827, 0.0
          %vm2892 = vcmp.gt.f32.partialorder %v2828, 0.0
          %vm2893 = vcmp.gt.f32.partialorder %v2829, 0.0
          %vm2894 = vcmp.gt.f32.partialorder %v2830, 0.0
          %vm2895 = vcmp.gt.f32.partialorder %v2831, 0.0
          %vm2896 = vcmp.gt.f32.partialorder %v2832, 0.0
          %vm2897 = vcmp.gt.f32.partialorder %v2833, 0.0
          %vm2898 = vcmp.gt.f32.partialorder %v2834, 0.0
          %vm2899 = vcmp.gt.f32.partialorder %v2835, 0.0
          %vm2900 = vcmp.gt.f32.partialorder %v2836, 0.0
          %vm2901 = vcmp.gt.f32.partialorder %v2837, 0.0
          %vm2902 = vcmp.gt.f32.partialorder %v2838, 0.0
          %vm2903 = vcmp.gt.f32.partialorder %v2839, 0.0
          %vm2904 = vcmp.gt.f32.partialorder %v2840, 0.0
          %vm2905 = vcmp.gt.f32.partialorder %v2841, 0.0
          %vm2906 = vcmp.gt.f32.partialorder %v2842, 0.0
          %vm2907 = vcmp.gt.f32.partialorder %v2843, 0.0
          %vm2908 = vcmp.gt.f32.partialorder %v2844, 0.0
          %vm2909 = vcmp.gt.f32.partialorder %v2845, 0.0
          %vm2910 = vcmp.gt.f32.partialorder %v2846, 0.0
          %vm2911 = vcmp.gt.f32.partialorder %v2847, 0.0
          %vm2912 = vcmp.gt.f32.partialorder %v2848, 0.0
          %vm2913 = vcmp.gt.f32.partialorder %v2849, 0.0
          %vm2914 = vcmp.gt.f32.partialorder %v2850, 0.0
          %vm2915 = vcmp.gt.f32.partialorder %v2851, 0.0
          %vm2916 = vcmp.gt.f32.partialorder %v2852, 0.0
          %vm2917 = vcmp.gt.f32.partialorder %v2853, 0.0
          %vm2918 = vcmp.gt.f32.partialorder %v2854, 0.0
          %vm2919 = vcmp.gt.f32.partialorder %v2855, 0.0
          %vm2920 = vcmp.gt.f32.partialorder %v2856, 0.0
          %vm2921 = vcmp.gt.f32.partialorder %v2857, 0.0
          %vm2922 = vcmp.gt.f32.partialorder %v2858, 0.0
          %vm2923 = vcmp.gt.f32.partialorder %v2859, 0.0
          %vm2924 = vcmp.gt.f32.partialorder %v2860, 0.0
          %vm2925 = vcmp.gt.f32.partialorder %v2861, 0.0
          %vm2926 = vcmp.gt.f32.partialorder %v2862, 0.0
          %vm2927 = vcmp.gt.f32.partialorder %v2863, 0.0
          %vm2928 = vcmp.gt.f32.partialorder %v2864, 0.0
          %vm2929 = vcmp.gt.f32.partialorder %v2865, 0.0
          %vm2930 = vcmp.gt.f32.partialorder %v2866, 0.0
          %vm2931 = vcmp.gt.f32.partialorder %v2867, 0.0
          %vm2932 = vcmp.gt.f32.partialorder %v2868, 0.0
          %vm2933 = vcmp.gt.f32.partialorder %v2869, 0.0
          %vm2934 = vcmp.gt.f32.partialorder %v2870, 0.0
          %vm2935 = vcmp.gt.f32.partialorder %v2871, 0.0
          %vm2936 = vcmp.gt.f32.partialorder %v2872, 0.0
          %vm2937 = vcmp.gt.f32.partialorder %v2873, 0.0
          %vm2938 = vcmp.gt.f32.partialorder %v2874, 0.0
          %vm2939 = vcmp.gt.f32.partialorder %v2875, 0.0
          %vm2940 = vcmp.gt.f32.partialorder %v2876, 0.0
          %vm2941 = vcmp.gt.f32.partialorder %v2877, 0.0
          %vm2942 = vcmp.gt.f32.partialorder %v2878, 0.0
          %vm2943 = vcmp.gt.f32.partialorder %v2879, 0.0
          %vm2944 = vcmp.gt.f32.partialorder %v2880, 0.0
          %vm2945 = vcmp.gt.f32.partialorder %v2881, 0.0
          %vm2946 = vcmp.gt.f32.partialorder %v2882, 0.0
          %vm2947 = vcmp.gt.f32.partialorder %v2883, 0.0
          %vm2948 = vcmp.gt.f32.partialorder %v2884, 0.0
          %vm2949 = vcmp.gt.f32.partialorder %v2885, 0.0
          %vm2950 = vcmp.gt.f32.partialorder %v2886, 0.0
          %vm2951 = vcmp.gt.f32.partialorder %v2887, 0.0
          %vm2952 = vcmp.gt.f32.partialorder %v2888, 0.0
          %vm2953 = vcmp.gt.f32.partialorder %v2889, 0.0
          %vm2954 = vcmp.gt.f32.partialorder %v2890, 0.0
          %v2955 = vmul.f32 %v2827, 0.2
          %v2956 = vmul.f32 %v2828, 0.2
          %v2957 = vmul.f32 %v2829, 0.2
          %v2958 = vmul.f32 %v2830, 0.2
          %v2959 = vmul.f32 %v2831, 0.2
          %v2960 = vmul.f32 %v2832, 0.2
          %v2961 = vmul.f32 %v2833, 0.2
          %v2962 = vmul.f32 %v2834, 0.2
          %v2963 = vmul.f32 %v2835, 0.2
          %v2964 = vmul.f32 %v2836, 0.2
          %v2965 = vmul.f32 %v2837, 0.2
          %v2966 = vmul.f32 %v2838, 0.2
          %v2967 = vmul.f32 %v2839, 0.2
          %v2968 = vmul.f32 %v2840, 0.2
          %v2969 = vmul.f32 %v2841, 0.2
          %v2970 = vmul.f32 %v2842, 0.2
          %v2971 = vmul.f32 %v2843, 0.2
          %v2972 = vmul.f32 %v2844, 0.2
          %v2973 = vmul.f32 %v2845, 0.2
          %v2974 = vmul.f32 %v2846, 0.2
          %v2975 = vmul.f32 %v2847, 0.2
          %v2976 = vmul.f32 %v2848, 0.2
          %v2977 = vmul.f32 %v2849, 0.2
          %v2978 = vmul.f32 %v2850, 0.2
          %v2979 = vmul.f32 %v2851, 0.2
          %v2980 = vmul.f32 %v2852, 0.2
          %v2981 = vmul.f32 %v2853, 0.2
          %v2982 = vmul.f32 %v2854, 0.2
          %v2983 = vmul.f32 %v2855, 0.2
          %v2984 = vmul.f32 %v2856, 0.2
          %v2985 = vmul.f32 %v2857, 0.2
          %v2986 = vmul.f32 %v2858, 0.2
          %v2987 = vmul.f32 %v2859, 0.2
          %v2988 = vmul.f32 %v2860, 0.2
          %v2989 = vmul.f32 %v2861, 0.2
          %v2990 = vmul.f32 %v2862, 0.2
          %v2991 = vmul.f32 %v2863, 0.2
          %v2992 = vmul.f32 %v2864, 0.2
          %v2993 = vmul.f32 %v2865, 0.2
          %v2994 = vmul.f32 %v2866, 0.2
          %v2995 = vmul.f32 %v2867, 0.2
          %v2996 = vmul.f32 %v2868, 0.2
          %v2997 = vmul.f32 %v2869, 0.2
          %v2998 = vmul.f32 %v2870, 0.2
          %v2999 = vmul.f32 %v2871, 0.2
          %v3000 = vmul.f32 %v2872, 0.2
          %v3001 = vmul.f32 %v2873, 0.2
          %v3002 = vmul.f32 %v2874, 0.2
          %v3003 = vmul.f32 %v2875, 0.2
          %v3004 = vmul.f32 %v2876, 0.2
          %v3005 = vmul.f32 %v2877, 0.2
          %v3006 = vmul.f32 %v2878, 0.2
          %v3007 = vmul.f32 %v2879, 0.2
          %v3008 = vmul.f32 %v2880, 0.2
          %v3009 = vmul.f32 %v2881, 0.2
          %v3010 = vmul.f32 %v2882, 0.2
          %v3011 = vmul.f32 %v2883, 0.2
          %v3012 = vmul.f32 %v2884, 0.2
          %v3013 = vmul.f32 %v2885, 0.2
          %v3014 = vmul.f32 %v2886, 0.2
          %v3015 = vmul.f32 %v2887, 0.2
          %v3016 = vmul.f32 %v2888, 0.2
          %v3017 = vmul.f32 %v2889, 0.2
          %v3018 = vmul.f32 %v2890, 0.2
          %v3019 = vsel %vm2891, %v2827, %v2955
          %v3020 = vsel %vm2892, %v2828, %v2956
          %v3021 = vsel %vm2893, %v2829, %v2957
          %v3022 = vsel %vm2894, %v2830, %v2958
          %v3023 = vsel %vm2895, %v2831, %v2959
          %v3024 = vsel %vm2896, %v2832, %v2960
          %v3025 = vsel %vm2897, %v2833, %v2961
          %v3026 = vsel %vm2898, %v2834, %v2962
          %v3027 = vsel %vm2899, %v2835, %v2963
          %v3028 = vsel %vm2900, %v2836, %v2964
          %v3029 = vsel %vm2901, %v2837, %v2965
          %v3030 = vsel %vm2902, %v2838, %v2966
          %v3031 = vsel %vm2903, %v2839, %v2967
          %v3032 = vsel %vm2904, %v2840, %v2968
          %v3033 = vsel %vm2905, %v2841, %v2969
          %v3034 = vsel %vm2906, %v2842, %v2970
          %v3035 = vsel %vm2907, %v2843, %v2971
          %v3036 = vsel %vm2908, %v2844, %v2972
          %v3037 = vsel %vm2909, %v2845, %v2973
          %v3038 = vsel %vm2910, %v2846, %v2974
          %v3039 = vsel %vm2911, %v2847, %v2975
          %v3040 = vsel %vm2912, %v2848, %v2976
          %v3041 = vsel %vm2913, %v2849, %v2977
          %v3042 = vsel %vm2914, %v2850, %v2978
          %v3043 = vsel %vm2915, %v2851, %v2979
          %v3044 = vsel %vm2916, %v2852, %v2980
          %v3045 = vsel %vm2917, %v2853, %v2981
          %v3046 = vsel %vm2918, %v2854, %v2982
          %v3047 = vsel %vm2919, %v2855, %v2983
          %v3048 = vsel %vm2920, %v2856, %v2984
          %v3049 = vsel %vm2921, %v2857, %v2985
          %v3050 = vsel %vm2922, %v2858, %v2986
          %v3051 = vsel %vm2923, %v2859, %v2987
          %v3052 = vsel %vm2924, %v2860, %v2988
          %v3053 = vsel %vm2925, %v2861, %v2989
          %v3054 = vsel %vm2926, %v2862, %v2990
          %v3055 = vsel %vm2927, %v2863, %v2991
          %v3056 = vsel %vm2928, %v2864, %v2992
          %v3057 = vsel %vm2929, %v2865, %v2993
          %v3058 = vsel %vm2930, %v2866, %v2994
          %v3059 = vsel %vm2931, %v2867, %v2995
          %v3060 = vsel %vm2932, %v2868, %v2996
          %v3061 = vsel %vm2933, %v2869, %v2997
          %v3062 = vsel %vm2934, %v2870, %v2998
          %v3063 = vsel %vm2935, %v2871, %v2999
          %v3064 = vsel %vm2936, %v2872, %v3000
          %v3065 = vsel %vm2937, %v2873, %v3001
          %v3066 = vsel %vm2938, %v2874, %v3002
          %v3067 = vsel %vm2939, %v2875, %v3003
          %v3068 = vsel %vm2940, %v2876, %v3004
          %v3069 = vsel %vm2941, %v2877, %v3005
          %v3070 = vsel %vm2942, %v2878, %v3006
          %v3071 = vsel %vm2943, %v2879, %v3007
          %v3072 = vsel %vm2944, %v2880, %v3008
          %v3073 = vsel %vm2945, %v2881, %v3009
          %v3074 = vsel %vm2946, %v2882, %v3010
          %v3075 = vsel %vm2947, %v2883, %v3011
          %v3076 = vsel %vm2948, %v2884, %v3012
          %v3077 = vsel %vm2949, %v2885, %v3013
          %v3078 = vsel %vm2950, %v2886, %v3014
          %v3079 = vsel %vm2951, %v2887, %v3015
          %v3080 = vsel %vm2952, %v2888, %v3016
          %v3081 = vsel %vm2953, %v2889, %v3017
          %v3082 = vsel %vm2954, %v2890, %v3018
          %v3083 = vpack.c.bf16 %v3020, %v3019
          %v3084 = vpack.c.bf16 %v3022, %v3021
          %v3085 = vpack.c.bf16 %v3024, %v3023
          %v3086 = vpack.c.bf16 %v3026, %v3025
          %v3087 = vpack.c.bf16 %v3028, %v3027
          %v3088 = vpack.c.bf16 %v3030, %v3029
          %v3089 = vpack.c.bf16 %v3032, %v3031
          %v3090 = vpack.c.bf16 %v3034, %v3033
          %v3091 = vpack.c.bf16 %v3036, %v3035
          %v3092 = vpack.c.bf16 %v3038, %v3037
          %v3093 = vpack.c.bf16 %v3040, %v3039
          %v3094 = vpack.c.bf16 %v3042, %v3041
          %v3095 = vpack.c.bf16 %v3044, %v3043
          %v3096 = vpack.c.bf16 %v3046, %v3045
          %v3097 = vpack.c.bf16 %v3048, %v3047
          %v3098 = vpack.c.bf16 %v3050, %v3049
          %v3099 = vpack.c.bf16 %v3052, %v3051
          %v3100 = vpack.c.bf16 %v3054, %v3053
          %v3101 = vpack.c.bf16 %v3056, %v3055
          %v3102 = vpack.c.bf16 %v3058, %v3057
          %v3103 = vpack.c.bf16 %v3060, %v3059
          %v3104 = vpack.c.bf16 %v3062, %v3061
          %v3105 = vpack.c.bf16 %v3064, %v3063
          %v3106 = vpack.c.bf16 %v3066, %v3065
          %v3107 = vpack.c.bf16 %v3068, %v3067
          %v3108 = vpack.c.bf16 %v3070, %v3069
          %v3109 = vpack.c.bf16 %v3072, %v3071
          %v3110 = vpack.c.bf16 %v3074, %v3073
          %v3111 = vpack.c.bf16 %v3076, %v3075
          %v3112 = vpack.c.bf16 %v3078, %v3077
          %v3113 = vpack.c.bf16 %v3080, %v3079
          %v3114 = vpack.c.bf16 %v3082, %v3081
          %v3147 = vunpack.c.l.b16 %v3083
          %v3148 = vunpack.c.h.b16 %v3083
          %v3149 = vunpack.c.l.b16 %v3084
          %v3150 = vunpack.c.h.b16 %v3084
          %v3151 = vunpack.c.l.b16 %v3085
          %v3152 = vunpack.c.h.b16 %v3085
          %v3153 = vunpack.c.l.b16 %v3086
          %v3154 = vunpack.c.h.b16 %v3086
          %v3155 = vunpack.c.l.b16 %v3087
          %v3156 = vunpack.c.h.b16 %v3087
          %v3157 = vunpack.c.l.b16 %v3088
          %v3158 = vunpack.c.h.b16 %v3088
          %v3159 = vunpack.c.l.b16 %v3089
          %v3160 = vunpack.c.h.b16 %v3089
          %v3161 = vunpack.c.l.b16 %v3090
          %v3162 = vunpack.c.h.b16 %v3090
          %v3163 = vunpack.c.l.b16 %v3091
          %v3164 = vunpack.c.h.b16 %v3091
          %v3165 = vunpack.c.l.b16 %v3092
          %v3166 = vunpack.c.h.b16 %v3092
          %v3167 = vunpack.c.l.b16 %v3093
          %v3168 = vunpack.c.h.b16 %v3093
          %v3169 = vunpack.c.l.b16 %v3094
          %v3170 = vunpack.c.h.b16 %v3094
          %v3171 = vunpack.c.l.b16 %v3095
          %v3172 = vunpack.c.h.b16 %v3095
          %v3173 = vunpack.c.l.b16 %v3096
          %v3174 = vunpack.c.h.b16 %v3096
          %v3175 = vunpack.c.l.b16 %v3097
          %v3176 = vunpack.c.h.b16 %v3097
          %v3177 = vunpack.c.l.b16 %v3098
          %v3178 = vunpack.c.h.b16 %v3098
          %v3179 = vunpack.c.l.b16 %v3099
          %v3180 = vunpack.c.h.b16 %v3099
          %v3181 = vunpack.c.l.b16 %v3100
          %v3182 = vunpack.c.h.b16 %v3100
          %v3183 = vunpack.c.l.b16 %v3101
          %v3184 = vunpack.c.h.b16 %v3101
          %v3185 = vunpack.c.l.b16 %v3102
          %v3186 = vunpack.c.h.b16 %v3102
          %v3187 = vunpack.c.l.b16 %v3103
          %v3188 = vunpack.c.h.b16 %v3103
          %v3189 = vunpack.c.l.b16 %v3104
          %v3190 = vunpack.c.h.b16 %v3104
          %v3191 = vunpack.c.l.b16 %v3105
          %v3192 = vunpack.c.h.b16 %v3105
          %v3193 = vunpack.c.l.b16 %v3106
          %v3194 = vunpack.c.h.b16 %v3106
          %v3195 = vunpack.c.l.b16 %v3107
          %v3196 = vunpack.c.h.b16 %v3107
          %v3197 = vunpack.c.l.b16 %v3108
          %v3198 = vunpack.c.h.b16 %v3108
          %v3199 = vunpack.c.l.b16 %v3109
          %v3200 = vunpack.c.h.b16 %v3109
          %v3201 = vunpack.c.l.b16 %v3110
          %v3202 = vunpack.c.h.b16 %v3110
          %v3203 = vunpack.c.l.b16 %v3111
          %v3204 = vunpack.c.h.b16 %v3111
          %v3205 = vunpack.c.l.b16 %v3112
          %v3206 = vunpack.c.h.b16 %v3112
          %v3207 = vunpack.c.l.b16 %v3113
          %v3208 = vunpack.c.h.b16 %v3113
          %v3209 = vunpack.c.l.b16 %v3114
          %v3210 = vunpack.c.h.b16 %v3114
          %v3211 = vpack.c.b16 %v3147, %v3147
          %v3212 = vpack.c.b16 %v3148, %v3148
          %v3213 = vpack.c.b16 %v3149, %v3149
          %v3214 = vpack.c.b16 %v3150, %v3150
          %v3215 = vpack.c.b16 %v3151, %v3151
          %v3216 = vpack.c.b16 %v3152, %v3152
          %v3217 = vpack.c.b16 %v3153, %v3153
          %v3218 = vpack.c.b16 %v3154, %v3154
          %v3219 = vpack.c.b16 %v3155, %v3155
          %v3220 = vpack.c.b16 %v3156, %v3156
          %v3221 = vpack.c.b16 %v3157, %v3157
          %v3222 = vpack.c.b16 %v3158, %v3158
          %v3223 = vpack.c.b16 %v3159, %v3159
          %v3224 = vpack.c.b16 %v3160, %v3160
          %v3225 = vpack.c.b16 %v3161, %v3161
          %v3226 = vpack.c.b16 %v3162, %v3162
          %v3227 = vpack.c.b16 %v3163, %v3163
          %v3228 = vpack.c.b16 %v3164, %v3164
          %v3229 = vpack.c.b16 %v3165, %v3165
          %v3230 = vpack.c.b16 %v3166, %v3166
          %v3231 = vpack.c.b16 %v3167, %v3167
          %v3232 = vpack.c.b16 %v3168, %v3168
          %v3233 = vpack.c.b16 %v3169, %v3169
          %v3234 = vpack.c.b16 %v3170, %v3170
          %v3235 = vpack.c.b16 %v3171, %v3171
          %v3236 = vpack.c.b16 %v3172, %v3172
          %v3237 = vpack.c.b16 %v3173, %v3173
          %v3238 = vpack.c.b16 %v3174, %v3174
          %v3239 = vpack.c.b16 %v3175, %v3175
          %v3240 = vpack.c.b16 %v3176, %v3176
          %v3241 = vpack.c.b16 %v3177, %v3177
          %v3242 = vpack.c.b16 %v3178, %v3178
          %v3243 = vpack.c.b16 %v3179, %v3179
          %v3244 = vpack.c.b16 %v3180, %v3180
          %v3245 = vpack.c.b16 %v3181, %v3181
          %v3246 = vpack.c.b16 %v3182, %v3182
          %v3247 = vpack.c.b16 %v3183, %v3183
          %v3248 = vpack.c.b16 %v3184, %v3184
          %v3249 = vpack.c.b16 %v3185, %v3185
          %v3250 = vpack.c.b16 %v3186, %v3186
          %v3251 = vpack.c.b16 %v3187, %v3187
          %v3252 = vpack.c.b16 %v3188, %v3188
          %v3253 = vpack.c.b16 %v3189, %v3189
          %v3254 = vpack.c.b16 %v3190, %v3190
          %v3255 = vpack.c.b16 %v3191, %v3191
          %v3256 = vpack.c.b16 %v3192, %v3192
          %v3257 = vpack.c.b16 %v3193, %v3193
          %v3258 = vpack.c.b16 %v3194, %v3194
          %v3259 = vpack.c.b16 %v3195, %v3195
          %v3260 = vpack.c.b16 %v3196, %v3196
          %v3261 = vpack.c.b16 %v3197, %v3197
          %v3262 = vpack.c.b16 %v3198, %v3198
          %v3263 = vpack.c.b16 %v3199, %v3199
          %v3264 = vpack.c.b16 %v3200, %v3200
          %v3265 = vpack.c.b16 %v3201, %v3201
          %v3266 = vpack.c.b16 %v3202, %v3202
          %v3267 = vpack.c.b16 %v3203, %v3203
          %v3268 = vpack.c.b16 %v3204, %v3204
          %v3269 = vpack.c.b16 %v3205, %v3205
          %v3270 = vpack.c.b16 %v3206, %v3206
          %v3271 = vpack.c.b16 %v3207, %v3207
          %v3272 = vpack.c.b16 %v3208, %v3208
          %v3273 = vpack.c.b16 %v3209, %v3209
          %v3274 = vpack.c.b16 %v3210, %v3210
          %3339 = vst [vmem:[%s543] sm:$0xf] %v3211
          %3340 = vst [vmem:[%s543 + $0x4] sm:$0xf] %v3212
          %3341 = vst [vmem:[%s543 + $0x8] sm:$0xf] %v3213
          %3342 = vst [vmem:[%s543 + $0xc] sm:$0xf] %v3214
          %3343 = vst [vmem:[%s543 + $0x10] sm:$0xf] %v3215
          %3344 = vst [vmem:[%s543 + $0x14] sm:$0xf] %v3216
          %3345 = vst [vmem:[%s543 + $0x18] sm:$0xf] %v3217
          %3346 = vst [vmem:[%s543 + $0x1c] sm:$0xf] %v3218
          %3347 = vst [vmem:[%s543 + $0x20] sm:$0xf] %v3219
          %3348 = vst [vmem:[%s543 + $0x24] sm:$0xf] %v3220
          %3349 = vst [vmem:[%s543 + $0x28] sm:$0xf] %v3221
          %3350 = vst [vmem:[%s543 + $0x2c] sm:$0xf] %v3222
          %3351 = vst [vmem:[%s543 + $0x30] sm:$0xf] %v3223
          %3352 = vst [vmem:[%s543 + $0x34] sm:$0xf] %v3224
          %3353 = vst [vmem:[%s543 + $0x38] sm:$0xf] %v3225
          %3354 = vst [vmem:[%s543 + $0x3c] sm:$0xf] %v3226
          %3355 = vst [vmem:[%s543 + $0x40] sm:$0xf] %v3227
          %3356 = vst [vmem:[%s543 + $0x44] sm:$0xf] %v3228
          %3357 = vst [vmem:[%s543 + $0x48] sm:$0xf] %v3229
          %3358 = vst [vmem:[%s543 + $0x4c] sm:$0xf] %v3230
          %3359 = vst [vmem:[%s543 + $0x50] sm:$0xf] %v3231
          %3360 = vst [vmem:[%s543 + $0x54] sm:$0xf] %v3232
          %3361 = vst [vmem:[%s543 + $0x58] sm:$0xf] %v3233
          %3362 = vst [vmem:[%s543 + $0x5c] sm:$0xf] %v3234
          %3363 = vst [vmem:[%s543 + $0x60] sm:$0xf] %v3235
          %3364 = vst [vmem:[%s543 + $0x64] sm:$0xf] %v3236
          %3365 = vst [vmem:[%s543 + $0x68] sm:$0xf] %v3237
          %3366 = vst [vmem:[%s543 + $0x6c] sm:$0xf] %v3238
          %3367 = vst [vmem:[%s543 + $0x70] sm:$0xf] %v3239
          %3368 = vst [vmem:[%s543 + $0x74] sm:$0xf] %v3240
          %3369 = vst [vmem:[%s543 + $0x78] sm:$0xf] %v3241
          %3370 = vst [vmem:[%s543 + $0x7c] sm:$0xf] %v3242
          %3371 = vst [vmem:[%s543 + $0x80] sm:$0xf] %v3243
          %3372 = vst [vmem:[%s543 + $0x84] sm:$0xf] %v3244
          %3373 = vst [vmem:[%s543 + $0x88] sm:$0xf] %v3245
          %3374 = vst [vmem:[%s543 + $0x8c] sm:$0xf] %v3246
          %3375 = vst [vmem:[%s543 + $0x90] sm:$0xf] %v3247
          %3376 = vst [vmem:[%s543 + $0x94] sm:$0xf] %v3248
          %3377 = vst [vmem:[%s543 + $0x98] sm:$0xf] %v3249
          %3378 = vst [vmem:[%s543 + $0x9c] sm:$0xf] %v3250
          %3379 = vst [vmem:[%s543 + $0xa0] sm:$0xf] %v3251
          %3380 = vst [vmem:[%s543 + $0xa4] sm:$0xf] %v3252
          %3381 = vst [vmem:[%s543 + $0xa8] sm:$0xf] %v3253
          %3382 = vst [vmem:[%s543 + $0xac] sm:$0xf] %v3254
          %3383 = vst [vmem:[%s543 + $0xb0] sm:$0xf] %v3255
          %3384 = vst [vmem:[%s543 + $0xb4] sm:$0xf] %v3256
          %3385 = vst [vmem:[%s543 + $0xb8] sm:$0xf] %v3257
          %3386 = vst [vmem:[%s543 + $0xbc] sm:$0xf] %v3258
          %3387 = vst [vmem:[%s543 + $0xc0] sm:$0xf] %v3259
          %3388 = vst [vmem:[%s543 + $0xc4] sm:$0xf] %v3260
          %3389 = vst [vmem:[%s543 + $0xc8] sm:$0xf] %v3261
          %3390 = vst [vmem:[%s543 + $0xcc] sm:$0xf] %v3262
          %3391 = vst [vmem:[%s543 + $0xd0] sm:$0xf] %v3263
          %3392 = vst [vmem:[%s543 + $0xd4] sm:$0xf] %v3264
          %3393 = vst [vmem:[%s543 + $0xd8] sm:$0xf] %v3265
          %3394 = vst [vmem:[%s543 + $0xdc] sm:$0xf] %v3266
          %3395 = vst [vmem:[%s543 + $0xe0] sm:$0xf] %v3267
          %3396 = vst [vmem:[%s543 + $0xe4] sm:$0xf] %v3268
          %3397 = vst [vmem:[%s543 + $0xe8] sm:$0xf] %v3269
          %3398 = vst [vmem:[%s543 + $0xec] sm:$0xf] %v3270
          %3399 = vst [vmem:[%s543 + $0xf0] sm:$0xf] %v3271
          %3400 = vst [vmem:[%s543 + $0xf4] sm:$0xf] %v3272
          %3401 = vst [vmem:[%s543 + $0xf8] sm:$0xf] %v3273
          %3402 = vst [vmem:[%s543 + $0xfc] sm:$0xf] %v3274
        $region67: #{discriminator_forward.5} parent=54 // pred_fallthru
          _
        %p3403 = scmp.lt.s32.totalorder %s19, 0
        %s3404 = scalar_select %p3403, %s19, 0
        %s3405 = smul.addr %s3404, 4
        %s3406 = scalar_lea.vmem %s4, %s3405
        // Predicated region
        $region68: #{discriminator_forward.5} parent=54 // pred_check
          %p3407 = pneg %p151
        $region69: #{discriminator_forward.5} parent=54 // pred_check_branch
          %3409 = sbr.rel (%p3407) target = $region71
        $region70: #{discriminator_forward.5} parent=54 // pred_region
          _
        $region71: #{discriminator_forward.5} parent=54 // pred_fallthru
          _
        // Predicated region
        $region72: #{discriminator_forward.5} parent=54 // pred_check
          %p3410 = pneg %p151
        $region73: #{discriminator_forward.5} parent=54 // pred_check_branch
          %3412 = sbr.rel (%p3410) target = $region75
        $region74: #{discriminator_forward.5} parent=54 // pred_region
          %p3413 = scmp.lt.s32.totalorder %s19, 0
          %s3414 = scalar_select %p3413, %s19, 0
          %s3415 = smul.addr %s3414, 4
          %s3416 = scalar_lea.vmem %s4, %s3415
        $region75: #{discriminator_forward.5} parent=54 // pred_fallthru
          _
      $region55: #{discriminator_forward.5} parent=5 // pred_fallthru
        _
      %p3417 = scmp.le.s32.totalorder 2, %s10
      // Predicated region
      $region76: #{discriminator_forward.5} parent=5 // pred_check
        %p3418 = pneg %p3417
      $region77: #{discriminator_forward.5} parent=5 // pred_check_branch
        %3420 = sbr.rel (%p3418) target = $region79
      $region78: #{discriminator_forward.5} parent=5 // pred_region
        %s3421 = ssub.s32 %s10, 2
      $region79: #{discriminator_forward.5} parent=5 // pred_fallthru
        _
    $region6: #{discriminator_forward.5} parent=1 // loop_footer
      %s14 = sadd.s32 1, %s10
    $region7: #{discriminator_forward.5} parent=1 // loop_footer_branch
      %9 = sbr.rel target = $region3
    $region8: #{discriminator_forward.5} parent=1 // loop_exit
      _

// kernel: discriminator_forward.6
$region0: #{discriminator_forward.6}
  #allocation0 [shape = 'u32[]', space=smem, size = 0x4, offset = 0x4, fixed_abs, tag = 'smem constant byte address 0x4 - core index']
  #allocation1 [shape = 'u32[144,128]{1,0:T(1,128)}', space=vmem, size = 0x12000, scoped, tag = 'internal scratch']
  #allocation2 [shape = 'f32[128,128]{1,0:T(8,128)}', space=vmem, size = 0x10000, scoped, tag = 'scratch operand']
  %s0 = inlined_call_operand.vmem [shape: bf16[128,2048], index: 0, kind: input, shape index: {}]
  %s1 = inlined_call_operand.vmem [shape: bf16[2048,256], index: 1, kind: input, shape index: {}]
  %s2 = inlined_call_operand.vmem [shape: f32[1,256], index: 2, kind: input, shape index: {}]
  %s3 = inlined_call_operand.vmem [shape: f32[1,256], index: 3, kind: input, shape index: {}]
  %s4 = inlined_call_operand.vmem [shape: bf16[128,256], index: 4, kind: output, shape index: {}]
  %s5 = sld [smem:[#allocation0]]
  $region158: #{discriminator_forward.6} parent=0
    _
  %s7 = ssub.s32 1, %s5
  %s8 = scalar_select 0, %s7, %s5
  $region1: #{discriminator_forward.6} parent=0
    #allocation3 [shape = 'u8[524288]{0}', space=vmem, size = 0x80000, scoped, tag = 'input window, operand 0']
    #allocation4 [shape = 'u8[524288]{0}', space=vmem, size = 0x80000, scoped, tag = 'input window, operand 1']
    #allocation5 [shape = 'u8[65536]{0}', space=vmem, size = 0x10000, scoped, tag = 'output window, operand 0']
    loop: start=0, step=1, limit=6
    $region2: #{discriminator_forward.6} parent=1 // loop_pre_header
      _
    $region3: #{discriminator_forward.6} parent=1 // loop_header
      %s10 = sphi 0, %s14
      %p11 = scmp.ge.s32.totalorder %s10, 6
      %s17 = sphi 0, %s29
      %s18 = sphi 0, %s25
      %s19 = sphi 0, %s17
      %s20 = sphi 0, %s18
      %s21 = sphi 0, %s19
      %s22 = sphi 0, %s20
      %s32 = sphi 0, %s34
      %s35 = sphi 0, %s32
      %s36 = sphi 0, %s35
      %s52 = sphi 0, %s36
      %s60 = sphi 0, %s62
      %s63 = sphi 0, %s60
      %s64 = sphi 0, %s63
      %s80 = sphi 0, %s64
      %s86 = sphi 0, %s88
      %s89 = sphi 0, %s86
      %s90 = sphi 0, %s89
      %s106 = sphi 0, %s90
      %s112 = sphi 0, %s114
      %s115 = sphi 0, %s112
      %s116 = sphi 0, %s115
      %s132 = sphi 0, %s116
      %s138 = sphi 0, %s140
      %s141 = sphi 0, %s138
      %s142 = sphi 0, %s141
      %s158 = sphi 0, %s142
    $region4: #{discriminator_forward.6} parent=1 // loop_header_branch
      %13 = sbr.rel (%p11) target = $region8
    $region5: #{discriminator_forward.6} parent=1 // loop_body
      %s15 = ssub.s32 %s10, 1
      %s16 = ssub.s32 %s10, 2
      %s23 = sadd.s32 1, %s18
      %p24 = scmp.ge.s32.totalorder %s23, 2
      %s25 = scalar_select %p24, 0, %s23
      %s26 = sadd.s32 1, %s17
      %s27 = scalar_select %p24, %s26, %s17
      %p28 = scmp.ge.s32.totalorder %s27, 2
      %s29 = scalar_select %p28, 0, %s27
      %s30 = ssub.s32 %s18, %s25
      %p31 = scmp.eq.s32.totalorder %s30, 0
      %s33 = sadd.s32 %s32, 1
      %s34 = scalar_select %p31, %s32, %s33
      %p37 = pneg %p31
      %p38 = scmp.eq.s32.totalorder %s10, 3
      %p39 = por %p37, %p38
      %p40 = scmp.ne.s32.totalorder %s32, %s35
      %p41 = scmp.eq.s32.totalorder %s10, 0
      %p42 = por %p40, %p41
      %p43 = scmp.ne.s32.totalorder %s32, %s35
      %p44 = scmp.eq.s32.totalorder %s15, 3
      %p45 = por %p43, %p44
      %p46 = scmp.ne.s32.totalorder %s35, %s36
      %p47 = scmp.eq.s32.totalorder %s15, 0
      %p48 = por %p46, %p47
      %p49 = scmp.ne.s32.totalorder %s35, %s36
      %p50 = scmp.eq.s32.totalorder %s16, 3
      %p51 = por %p49, %p50
      %p53 = scmp.ne.s32.totalorder %s36, %s52
      %p54 = scmp.eq.s32.totalorder %s16, 0
      %p55 = por %p53, %p54
      %s56 = ssub.s32 %s18, %s25
      %s57 = ssub.s32 %s17, %s29
      %s58 = sor.u32 %s56, %s57
      %p59 = scmp.eq.s32.totalorder %s58, 0
      %s61 = sadd.s32 %s60, 1
      %s62 = scalar_select %p59, %s60, %s61
      %p65 = pneg %p59
      %p66 = scmp.eq.s32.totalorder %s10, 3
      %p67 = por %p65, %p66
      %p68 = scmp.ne.s32.totalorder %s60, %s63
      %p69 = scmp.eq.s32.totalorder %s10, 0
      %p70 = por %p68, %p69
      %p71 = scmp.ne.s32.totalorder %s60, %s63
      %p72 = scmp.eq.s32.totalorder %s15, 3
      %p73 = por %p71, %p72
      %p74 = scmp.ne.s32.totalorder %s63, %s64
      %p75 = scmp.eq.s32.totalorder %s15, 0
      %p76 = por %p74, %p75
      %p77 = scmp.ne.s32.totalorder %s63, %s64
      %p78 = scmp.eq.s32.totalorder %s16, 3
      %p79 = por %p77, %p78
      %p81 = scmp.ne.s32.totalorder %s64, %s80
      %p82 = scmp.eq.s32.totalorder %s16, 0
      %p83 = por %p81, %p82
      %s84 = ssub.s32 %s17, %s29
      %p85 = scmp.eq.s32.totalorder %s84, 0
      %s87 = sadd.s32 %s86, 1
      %s88 = scalar_select %p85, %s86, %s87
      %p91 = pneg %p85
      %p92 = scmp.eq.s32.totalorder %s10, 3
      %p93 = por %p91, %p92
      %p94 = scmp.ne.s32.totalorder %s86, %s89
      %p95 = scmp.eq.s32.totalorder %s10, 0
      %p96 = por %p94, %p95
      %p97 = scmp.ne.s32.totalorder %s86, %s89
      %p98 = scmp.eq.s32.totalorder %s15, 3
      %p99 = por %p97, %p98
      %p100 = scmp.ne.s32.totalorder %s89, %s90
      %p101 = scmp.eq.s32.totalorder %s15, 0
      %p102 = por %p100, %p101
      %p103 = scmp.ne.s32.totalorder %s89, %s90
      %p104 = scmp.eq.s32.totalorder %s16, 3
      %p105 = por %p103, %p104
      %p107 = scmp.ne.s32.totalorder %s90, %s106
      %p108 = scmp.eq.s32.totalorder %s16, 0
      %p109 = por %p107, %p108
      %s110 = ssub.s32 %s17, %s29
      %p111 = scmp.eq.s32.totalorder %s110, 0
      %s113 = sadd.s32 %s112, 1
      %s114 = scalar_select %p111, %s112, %s113
      %p117 = pneg %p111
      %p118 = scmp.eq.s32.totalorder %s10, 3
      %p119 = por %p117, %p118
      %p120 = scmp.ne.s32.totalorder %s112, %s115
      %p121 = scmp.eq.s32.totalorder %s10, 0
      %p122 = por %p120, %p121
      %p123 = scmp.ne.s32.totalorder %s112, %s115
      %p124 = scmp.eq.s32.totalorder %s15, 3
      %p125 = por %p123, %p124
      %p126 = scmp.ne.s32.totalorder %s115, %s116
      %p127 = scmp.eq.s32.totalorder %s15, 0
      %p128 = por %p126, %p127
      %p129 = scmp.ne.s32.totalorder %s115, %s116
      %p130 = scmp.eq.s32.totalorder %s16, 3
      %p131 = por %p129, %p130
      %p133 = scmp.ne.s32.totalorder %s116, %s132
      %p134 = scmp.eq.s32.totalorder %s16, 0
      %p135 = por %p133, %p134
      %s136 = ssub.s32 %s17, %s29
      %p137 = scmp.eq.s32.totalorder %s136, 0
      %s139 = sadd.s32 %s138, 1
      %s140 = scalar_select %p137, %s138, %s139
      %p143 = pneg %p137
      %p144 = scmp.eq.s32.totalorder %s10, 3
      %p145 = por %p143, %p144
      %p146 = scmp.ne.s32.totalorder %s138, %s141
      %p147 = scmp.eq.s32.totalorder %s10, 0
      %p148 = por %p146, %p147
      %p149 = scmp.ne.s32.totalorder %s138, %s141
      %p150 = scmp.eq.s32.totalorder %s15, 3
      %p151 = por %p149, %p150
      %p152 = scmp.ne.s32.totalorder %s141, %s142
      %p153 = scmp.eq.s32.totalorder %s15, 0
      %p154 = por %p152, %p153
      %p155 = scmp.ne.s32.totalorder %s141, %s142
      %p156 = scmp.eq.s32.totalorder %s16, 3
      %p157 = por %p155, %p156
      %p159 = scmp.ne.s32.totalorder %s142, %s158
      %p160 = scmp.eq.s32.totalorder %s16, 0
      %p161 = por %p159, %p160
      %p162 = scmp.le.s32.totalorder 1, %s10
      %p163 = scmp.lt.s32.totalorder %s10, 5
      %p164 = pnand %p162, %p163
      %p165 = pneg %p164
      // Predicated region
      $region9: #{discriminator_forward.6} parent=5 // pred_check
        _
      $region10: #{discriminator_forward.6} parent=5 // pred_check_branch
        %167 = sbr.rel (%p164) target = $region12
      $region11: #{discriminator_forward.6} parent=5 // pred_region
        %s168 = ssub.s32 %s10, 1
      $region12: #{discriminator_forward.6} parent=5 // pred_fallthru
        _
      %p169 = scmp.lt.s32.totalorder %s10, 4
      // Predicated region
      $region13: #{discriminator_forward.6} parent=5 // pred_check
        %p170 = pneg %p169
      $region14: #{discriminator_forward.6} parent=5 // pred_check_branch
        %172 = sbr.rel (%p170) target = $region16
      $region15: #{discriminator_forward.6} parent=5 // pred_region
        // Predicated region
        $region17: #{discriminator_forward.6} parent=15 // pred_check
          %p173 = pneg %p42
        $region18: #{discriminator_forward.6} parent=15 // pred_check_branch
          %175 = sbr.rel (%p173) target = $region20
        $region19: #{discriminator_forward.6} parent=15 // pred_region
          %s176 = sand.u32 %s32, 1
          %s177 = sand.u32 %s32, 1
          %s178 = smul.addr %s177, 512
          %s179 = scalar_lea.vmem [#allocation3], %s178
          %s180 = smul.u32 8, %s18
          %s181 = smul.addr %s180, 4
          %s182 = scalar_lea.vmem %s0, %s181
          // Predicated region
          $region21: #{discriminator_forward.6} parent=19 // pred_check
            _
          $region22: #{discriminator_forward.6} parent=19 // pred_check_branch
            %184 = sbr.rel (0) target = $region24
          $region23: #{discriminator_forward.6} parent=19 // pred_region
            // Predicated region
            $region25: #{discriminator_forward.6} parent=23 // pred_check
              _
            $region26: #{discriminator_forward.6} parent=23 // pred_check_branch
              %186 = sbr.rel (0) target = $region28
            $region27: #{discriminator_forward.6} parent=23 // pred_region
              loop: start=0, step=1, limit=1
              $region29: #{discriminator_forward.6} parent=27 // loop_pre_header
                _
              $region30: #{discriminator_forward.6} parent=27 // loop_header
                %s188 = sphi 0, %s192
                %p189 = scmp.ge.s32.totalorder %s188, 1
                %s193 = sphi %s182, %s182
                %s194 = sphi %s179, %s179
              $region31: #{discriminator_forward.6} parent=27 // loop_header_branch
                %191 = sbr.rel (%p189) target = $region35
              $region32: #{discriminator_forward.6} parent=27 // loop_body
                %v195 = vld [vmem:[%s193] sm:$0xff]
                %196 = vst [vmem:[%s194] sm:$0xff] %v195
                %v197 = vld [vmem:[%s193 + $0x8] sm:$0xff]
                %198 = vst [vmem:[%s194 + $0x8] sm:$0xff] %v197
                %v199 = vld [vmem:[%s193 + $0x10] sm:$0xff]
                %200 = vst [vmem:[%s194 + $0x10] sm:$0xff] %v199
                %v201 = vld [vmem:[%s193 + $0x18] sm:$0xff]
                %202 = vst [vmem:[%s194 + $0x18] sm:$0xff] %v201
                %v203 = vld [vmem:[%s193 + $0x40] sm:$0xff]
                %204 = vst [vmem:[%s194 + $0x20] sm:$0xff] %v203
                %v205 = vld [vmem:[%s193 + $0x48] sm:$0xff]
                %206 = vst [vmem:[%s194 + $0x28] sm:$0xff] %v205
                %v207 = vld [vmem:[%s193 + $0x50] sm:$0xff]
                %208 = vst [vmem:[%s194 + $0x30] sm:$0xff] %v207
                %v209 = vld [vmem:[%s193 + $0x58] sm:$0xff]
                %210 = vst [vmem:[%s194 + $0x38] sm:$0xff] %v209
                %v211 = vld [vmem:[%s193 + $0x80] sm:$0xff]
                %212 = vst [vmem:[%s194 + $0x40] sm:$0xff] %v211
                %v213 = vld [vmem:[%s193 + $0x88] sm:$0xff]
                %214 = vst [vmem:[%s194 + $0x48] sm:$0xff] %v213
                %v215 = vld [vmem:[%s193 + $0x90] sm:$0xff]
                %216 = vst [vmem:[%s194 + $0x50] sm:$0xff] %v215
                %v217 = vld [vmem:[%s193 + $0x98] sm:$0xff]
                %218 = vst [vmem:[%s194 + $0x58] sm:$0xff] %v217
                %v219 = vld [vmem:[%s193 + $0xc0] sm:$0xff]
                %220 = vst [vmem:[%s194 + $0x60] sm:$0xff] %v219
                %v221 = vld [vmem:[%s193 + $0xc8] sm:$0xff]
                %222 = vst [vmem:[%s194 + $0x68] sm:$0xff] %v221
                %v223 = vld [vmem:[%s193 + $0xd0] sm:$0xff]
                %224 = vst [vmem:[%s194 + $0x70] sm:$0xff] %v223
                %v225 = vld [vmem:[%s193 + $0xd8] sm:$0xff]
                %226 = vst [vmem:[%s194 + $0x78] sm:$0xff] %v225
                %v227 = vld [vmem:[%s193 + $0x100] sm:$0xff]
                %228 = vst [vmem:[%s194 + $0x80] sm:$0xff] %v227
                %v229 = vld [vmem:[%s193 + $0x108] sm:$0xff]
                %230 = vst [vmem:[%s194 + $0x88] sm:$0xff] %v229
                %v231 = vld [vmem:[%s193 + $0x110] sm:$0xff]
                %232 = vst [vmem:[%s194 + $0x90] sm:$0xff] %v231
                %v233 = vld [vmem:[%s193 + $0x118] sm:$0xff]
                %234 = vst [vmem:[%s194 + $0x98] sm:$0xff] %v233
                %v235 = vld [vmem:[%s193 + $0x140] sm:$0xff]
                %236 = vst [vmem:[%s194 + $0xa0] sm:$0xff] %v235
                %v237 = vld [vmem:[%s193 + $0x148] sm:$0xff]
                %238 = vst [vmem:[%s194 + $0xa8] sm:$0xff] %v237
                %v239 = vld [vmem:[%s193 + $0x150] sm:$0xff]
                %240 = vst [vmem:[%s194 + $0xb0] sm:$0xff] %v239
                %v241 = vld [vmem:[%s193 + $0x158] sm:$0xff]
                %242 = vst [vmem:[%s194 + $0xb8] sm:$0xff] %v241
                %v243 = vld [vmem:[%s193 + $0x180] sm:$0xff]
                %244 = vst [vmem:[%s194 + $0xc0] sm:$0xff] %v243
                %v245 = vld [vmem:[%s193 + $0x188] sm:$0xff]
                %246 = vst [vmem:[%s194 + $0xc8] sm:$0xff] %v245
                %v247 = vld [vmem:[%s193 + $0x190] sm:$0xff]
                %248 = vst [vmem:[%s194 + $0xd0] sm:$0xff] %v247
                %v249 = vld [vmem:[%s193 + $0x198] sm:$0xff]
                %250 = vst [vmem:[%s194 + $0xd8] sm:$0xff] %v249
                %v251 = vld [vmem:[%s193 + $0x1c0] sm:$0xff]
                %252 = vst [vmem:[%s194 + $0xe0] sm:$0xff] %v251
                %v253 = vld [vmem:[%s193 + $0x1c8] sm:$0xff]
                %254 = vst [vmem:[%s194 + $0xe8] sm:$0xff] %v253
                %v255 = vld [vmem:[%s193 + $0x1d0] sm:$0xff]
                %256 = vst [vmem:[%s194 + $0xf0] sm:$0xff] %v255
                %v257 = vld [vmem:[%s193 + $0x1d8] sm:$0xff]
                %258 = vst [vmem:[%s194 + $0xf8] sm:$0xff] %v257
                %v259 = vld [vmem:[%s193 + $0x200] sm:$0xff]
                %260 = vst [vmem:[%s194 + $0x100] sm:$0xff] %v259
                %v261 = vld [vmem:[%s193 + $0x208] sm:$0xff]
                %262 = vst [vmem:[%s194 + $0x108] sm:$0xff] %v261
                %v263 = vld [vmem:[%s193 + $0x210] sm:$0xff]
                %264 = vst [vmem:[%s194 + $0x110] sm:$0xff] %v263
                %v265 = vld [vmem:[%s193 + $0x218] sm:$0xff]
                %266 = vst [vmem:[%s194 + $0x118] sm:$0xff] %v265
                %v267 = vld [vmem:[%s193 + $0x240] sm:$0xff]
                %268 = vst [vmem:[%s194 + $0x120] sm:$0xff] %v267
                %v269 = vld [vmem:[%s193 + $0x248] sm:$0xff]
                %270 = vst [vmem:[%s194 + $0x128] sm:$0xff] %v269
                %v271 = vld [vmem:[%s193 + $0x250] sm:$0xff]
                %272 = vst [vmem:[%s194 + $0x130] sm:$0xff] %v271
                %v273 = vld [vmem:[%s193 + $0x258] sm:$0xff]
                %274 = vst [vmem:[%s194 + $0x138] sm:$0xff] %v273
                %v275 = vld [vmem:[%s193 + $0x280] sm:$0xff]
                %276 = vst [vmem:[%s194 + $0x140] sm:$0xff] %v275
                %v277 = vld [vmem:[%s193 + $0x288] sm:$0xff]
                %278 = vst [vmem:[%s194 + $0x148] sm:$0xff] %v277
                %v279 = vld [vmem:[%s193 + $0x290] sm:$0xff]
                %280 = vst [vmem:[%s194 + $0x150] sm:$0xff] %v279
                %v281 = vld [vmem:[%s193 + $0x298] sm:$0xff]
                %282 = vst [vmem:[%s194 + $0x158] sm:$0xff] %v281
                %v283 = vld [vmem:[%s193 + $0x2c0] sm:$0xff]
                %284 = vst [vmem:[%s194 + $0x160] sm:$0xff] %v283
                %v285 = vld [vmem:[%s193 + $0x2c8] sm:$0xff]
                %286 = vst [vmem:[%s194 + $0x168] sm:$0xff] %v285
                %v287 = vld [vmem:[%s193 + $0x2d0] sm:$0xff]
                %288 = vst [vmem:[%s194 + $0x170] sm:$0xff] %v287
                %v289 = vld [vmem:[%s193 + $0x2d8] sm:$0xff]
                %290 = vst [vmem:[%s194 + $0x178] sm:$0xff] %v289
                %v291 = vld [vmem:[%s193 + $0x300] sm:$0xff]
                %292 = vst [vmem:[%s194 + $0x180] sm:$0xff] %v291
                %v293 = vld [vmem:[%s193 + $0x308] sm:$0xff]
                %294 = vst [vmem:[%s194 + $0x188] sm:$0xff] %v293
                %v295 = vld [vmem:[%s193 + $0x310] sm:$0xff]
                %296 = vst [vmem:[%s194 + $0x190] sm:$0xff] %v295
                %v297 = vld [vmem:[%s193 + $0x318] sm:$0xff]
                %298 = vst [vmem:[%s194 + $0x198] sm:$0xff] %v297
                %v299 = vld [vmem:[%s193 + $0x340] sm:$0xff]
                %300 = vst [vmem:[%s194 + $0x1a0] sm:$0xff] %v299
                %v301 = vld [vmem:[%s193 + $0x348] sm:$0xff]
                %302 = vst [vmem:[%s194 + $0x1a8] sm:$0xff] %v301
                %v303 = vld [vmem:[%s193 + $0x350] sm:$0xff]
                %304 = vst [vmem:[%s194 + $0x1b0] sm:$0xff] %v303
                %v305 = vld [vmem:[%s193 + $0x358] sm:$0xff]
                %306 = vst [vmem:[%s194 + $0x1b8] sm:$0xff] %v305
                %v307 = vld [vmem:[%s193 + $0x380] sm:$0xff]
                %308 = vst [vmem:[%s194 + $0x1c0] sm:$0xff] %v307
                %v309 = vld [vmem:[%s193 + $0x388] sm:$0xff]
                %310 = vst [vmem:[%s194 + $0x1c8] sm:$0xff] %v309
                %v311 = vld [vmem:[%s193 + $0x390] sm:$0xff]
                %312 = vst [vmem:[%s194 + $0x1d0] sm:$0xff] %v311
                %v313 = vld [vmem:[%s193 + $0x398] sm:$0xff]
                %314 = vst [vmem:[%s194 + $0x1d8] sm:$0xff] %v313
                %v315 = vld [vmem:[%s193 + $0x3c0] sm:$0xff]
                %316 = vst [vmem:[%s194 + $0x1e0] sm:$0xff] %v315
                %v317 = vld [vmem:[%s193 + $0x3c8] sm:$0xff]
                %318 = vst [vmem:[%s194 + $0x1e8] sm:$0xff] %v317
                %v319 = vld [vmem:[%s193 + $0x3d0] sm:$0xff]
                %320 = vst [vmem:[%s194 + $0x1f0] sm:$0xff] %v319
                %v321 = vld [vmem:[%s193 + $0x3d8] sm:$0xff]
                %322 = vst [vmem:[%s194 + $0x1f8] sm:$0xff] %v321
              $region33: #{discriminator_forward.6} parent=27 // loop_footer
                %s192 = sadd.s32 1, %s188
              $region34: #{discriminator_forward.6} parent=27 // loop_footer_branch
                %187 = sbr.rel target = $region30
              $region35: #{discriminator_forward.6} parent=27 // loop_exit
                _
            $region28: #{discriminator_forward.6} parent=23 // pred_fallthru
              _
            // Predicated region
            $region36: #{discriminator_forward.6} parent=23 // pred_check
              _
            $region37: #{discriminator_forward.6} parent=23 // pred_check_branch
              %324 = sbr.rel target = $region39
            $region38: #{discriminator_forward.6} parent=23 // pred_region
              _
            $region39: #{discriminator_forward.6} parent=23 // pred_fallthru
              _
          $region24: #{discriminator_forward.6} parent=19 // pred_fallthru
            _
          %325 = vnop
        $region20: #{discriminator_forward.6} parent=15 // pred_fallthru
          _
        // Predicated region
        $region40: #{discriminator_forward.6} parent=15 // pred_check
          %p326 = pneg %p70
        $region41: #{discriminator_forward.6} parent=15 // pred_check_branch
          %328 = sbr.rel (%p326) target = $region43
        $region42: #{discriminator_forward.6} parent=15 // pred_region
          %s329 = sand.u32 %s60, 1
          %s330 = sand.u32 %s60, 1
          %s331 = smul.addr %s330, 512
          %s332 = scalar_lea.vmem [#allocation4], %s331
          %s333 = smul.u32 128, %s18
          %s334 = smul.addr %s333, 2
          %s335 = sadd.s32 %s17, %s334
          %s336 = smul.addr %s335, 4
          %s337 = scalar_lea.vmem %s1, %s336
          // Predicated region
          $region44: #{discriminator_forward.6} parent=42 // pred_check
            _
          $region45: #{discriminator_forward.6} parent=42 // pred_check_branch
            %339 = sbr.rel (0) target = $region47
          $region46: #{discriminator_forward.6} parent=42 // pred_region
            // Predicated region
            $region48: #{discriminator_forward.6} parent=46 // pred_check
              _
            $region49: #{discriminator_forward.6} parent=46 // pred_check_branch
              %341 = sbr.rel target = $region51
            $region50: #{discriminator_forward.6} parent=46 // pred_region
              // Predicated region
              $region63: #{discriminator_forward.6} parent=50 // pred_check
                _
              $region64: #{discriminator_forward.6} parent=50 // pred_check_branch
                %611 = sbr.rel (0) target = $region66
              $region65: #{discriminator_forward.6} parent=50 // pred_region
                loop: start=0, step=1, limit=1
                $region67: #{discriminator_forward.6} parent=65 // loop_pre_header
                  _
                $region68: #{discriminator_forward.6} parent=65 // loop_header
                  %s613 = sphi 0, %s617
                  %p614 = scmp.ge.s32.totalorder %s613, 1
                  %s618 = sphi %s337, %s337
                  %s619 = sphi %s332, %s332
                $region69: #{discriminator_forward.6} parent=65 // loop_header_branch
                  %616 = sbr.rel (%p614) target = $region73
                $region70: #{discriminator_forward.6} parent=65 // loop_body
                  _
                $region71: #{discriminator_forward.6} parent=65 // loop_footer
                  %s617 = sadd.s32 1, %s613
                $region72: #{discriminator_forward.6} parent=65 // loop_footer_branch
                  %612 = sbr.rel target = $region68
                $region73: #{discriminator_forward.6} parent=65 // loop_exit
                  _
                %s621 = ssub.s32 16, 1
                loop: start=0, step=1, limit=1
                $region74: #{discriminator_forward.6} parent=65 // loop_pre_header
                  _
                $region75: #{discriminator_forward.6} parent=65 // loop_header
                  %s623 = sphi 0, %s627
                  %p624 = scmp.ge.s32.totalorder %s623, 1
                  %s628 = sphi %s337, %s337
                  %s629 = sphi %s332, %s332
                $region76: #{discriminator_forward.6} parent=65 // loop_header_branch
                  %626 = sbr.rel (%p624) target = $region80
                $region77: #{discriminator_forward.6} parent=65 // loop_body
                  %v630 = vld [vmem:[%s628] sm:%s621]
                  %631 = vst [vmem:[%s629] sm:%s621] %v630
                  %v632 = vld [vmem:[%s628 + $0x8] sm:%s621]
                  %633 = vst [vmem:[%s629 + $0x4] sm:%s621] %v632
                  %v634 = vld [vmem:[%s628 + $0x10] sm:%s621]
                  %635 = vst [vmem:[%s629 + $0x8] sm:%s621] %v634
                  %v636 = vld [vmem:[%s628 + $0x18] sm:%s621]
                  %637 = vst [vmem:[%s629 + $0xc] sm:%s621] %v636
                  %v638 = vld [vmem:[%s628 + $0x20] sm:%s621]
                  %639 = vst [vmem:[%s629 + $0x10] sm:%s621] %v638
                  %v640 = vld [vmem:[%s628 + $0x28] sm:%s621]
                  %641 = vst [vmem:[%s629 + $0x14] sm:%s621] %v640
                  %v642 = vld [vmem:[%s628 + $0x30] sm:%s621]
                  %643 = vst [vmem:[%s629 + $0x18] sm:%s621] %v642
                  %v644 = vld [vmem:[%s628 + $0x38] sm:%s621]
                  %645 = vst [vmem:[%s629 + $0x1c] sm:%s621] %v644
                  %v646 = vld [vmem:[%s628 + $0x40] sm:%s621]
                  %647 = vst [vmem:[%s629 + $0x20] sm:%s621] %v646
                  %v648 = vld [vmem:[%s628 + $0x48] sm:%s621]
                  %649 = vst [vmem:[%s629 + $0x24] sm:%s621] %v648
                  %v650 = vld [vmem:[%s628 + $0x50] sm:%s621]
                  %651 = vst [vmem:[%s629 + $0x28] sm:%s621] %v650
                  %v652 = vld [vmem:[%s628 + $0x58] sm:%s621]
                  %653 = vst [vmem:[%s629 + $0x2c] sm:%s621] %v652
                  %v654 = vld [vmem:[%s628 + $0x60] sm:%s621]
                  %655 = vst [vmem:[%s629 + $0x30] sm:%s621] %v654
                  %v656 = vld [vmem:[%s628 + $0x68] sm:%s621]
                  %657 = vst [vmem:[%s629 + $0x34] sm:%s621] %v656
                  %v658 = vld [vmem:[%s628 + $0x70] sm:%s621]
                  %659 = vst [vmem:[%s629 + $0x38] sm:%s621] %v658
                  %v660 = vld [vmem:[%s628 + $0x78] sm:%s621]
                  %661 = vst [vmem:[%s629 + $0x3c] sm:%s621] %v660
                  %v662 = vld [vmem:[%s628 + $0x80] sm:%s621]
                  %663 = vst [vmem:[%s629 + $0x40] sm:%s621] %v662
                  %v664 = vld [vmem:[%s628 + $0x88] sm:%s621]
                  %665 = vst [vmem:[%s629 + $0x44] sm:%s621] %v664
                  %v666 = vld [vmem:[%s628 + $0x90] sm:%s621]
                  %667 = vst [vmem:[%s629 + $0x48] sm:%s621] %v666
                  %v668 = vld [vmem:[%s628 + $0x98] sm:%s621]
                  %669 = vst [vmem:[%s629 + $0x4c] sm:%s621] %v668
                  %v670 = vld [vmem:[%s628 + $0xa0] sm:%s621]
                  %671 = vst [vmem:[%s629 + $0x50] sm:%s621] %v670
                  %v672 = vld [vmem:[%s628 + $0xa8] sm:%s621]
                  %673 = vst [vmem:[%s629 + $0x54] sm:%s621] %v672
                  %v674 = vld [vmem:[%s628 + $0xb0] sm:%s621]
                  %675 = vst [vmem:[%s629 + $0x58] sm:%s621] %v674
                  %v676 = vld [vmem:[%s628 + $0xb8] sm:%s621]
                  %677 = vst [vmem:[%s629 + $0x5c] sm:%s621] %v676
                  %v678 = vld [vmem:[%s628 + $0xc0] sm:%s621]
                  %679 = vst [vmem:[%s629 + $0x60] sm:%s621] %v678
                  %v680 = vld [vmem:[%s628 + $0xc8] sm:%s621]
                  %681 = vst [vmem:[%s629 + $0x64] sm:%s621] %v680
                  %v682 = vld [vmem:[%s628 + $0xd0] sm:%s621]
                  %683 = vst [vmem:[%s629 + $0x68] sm:%s621] %v682
                  %v684 = vld [vmem:[%s628 + $0xd8] sm:%s621]
                  %685 = vst [vmem:[%s629 + $0x6c] sm:%s621] %v684
                  %v686 = vld [vmem:[%s628 + $0xe0] sm:%s621]
                  %687 = vst [vmem:[%s629 + $0x70] sm:%s621] %v686
                  %v688 = vld [vmem:[%s628 + $0xe8] sm:%s621]
                  %689 = vst [vmem:[%s629 + $0x74] sm:%s621] %v688
                  %v690 = vld [vmem:[%s628 + $0xf0] sm:%s621]
                  %691 = vst [vmem:[%s629 + $0x78] sm:%s621] %v690
                  %v692 = vld [vmem:[%s628 + $0xf8] sm:%s621]
                  %693 = vst [vmem:[%s629 + $0x7c] sm:%s621] %v692
                  %v694 = vld [vmem:[%s628 + $0x100] sm:%s621]
                  %695 = vst [vmem:[%s629 + $0x80] sm:%s621] %v694
                  %v696 = vld [vmem:[%s628 + $0x108] sm:%s621]
                  %697 = vst [vmem:[%s629 + $0x84] sm:%s621] %v696
                  %v698 = vld [vmem:[%s628 + $0x110] sm:%s621]
                  %699 = vst [vmem:[%s629 + $0x88] sm:%s621] %v698
                  %v700 = vld [vmem:[%s628 + $0x118] sm:%s621]
                  %701 = vst [vmem:[%s629 + $0x8c] sm:%s621] %v700
                  %v702 = vld [vmem:[%s628 + $0x120] sm:%s621]
                  %703 = vst [vmem:[%s629 + $0x90] sm:%s621] %v702
                  %v704 = vld [vmem:[%s628 + $0x128] sm:%s621]
                  %705 = vst [vmem:[%s629 + $0x94] sm:%s621] %v704
                  %v706 = vld [vmem:[%s628 + $0x130] sm:%s621]
                  %707 = vst [vmem:[%s629 + $0x98] sm:%s621] %v706
                  %v708 = vld [vmem:[%s628 + $0x138] sm:%s621]
                  %709 = vst [vmem:[%s629 + $0x9c] sm:%s621] %v708
                  %v710 = vld [vmem:[%s628 + $0x140] sm:%s621]
                  %711 = vst [vmem:[%s629 + $0xa0] sm:%s621] %v710
                  %v712 = vld [vmem:[%s628 + $0x148] sm:%s621]
                  %713 = vst [vmem:[%s629 + $0xa4] sm:%s621] %v712
                  %v714 = vld [vmem:[%s628 + $0x150] sm:%s621]
                  %715 = vst [vmem:[%s629 + $0xa8] sm:%s621] %v714
                  %v716 = vld [vmem:[%s628 + $0x158] sm:%s621]
                  %717 = vst [vmem:[%s629 + $0xac] sm:%s621] %v716
                  %v718 = vld [vmem:[%s628 + $0x160] sm:%s621]
                  %719 = vst [vmem:[%s629 + $0xb0] sm:%s621] %v718
                  %v720 = vld [vmem:[%s628 + $0x168] sm:%s621]
                  %721 = vst [vmem:[%s629 + $0xb4] sm:%s621] %v720
                  %v722 = vld [vmem:[%s628 + $0x170] sm:%s621]
                  %723 = vst [vmem:[%s629 + $0xb8] sm:%s621] %v722
                  %v724 = vld [vmem:[%s628 + $0x178] sm:%s621]
                  %725 = vst [vmem:[%s629 + $0xbc] sm:%s621] %v724
                  %v726 = vld [vmem:[%s628 + $0x180] sm:%s621]
                  %727 = vst [vmem:[%s629 + $0xc0] sm:%s621] %v726
                  %v728 = vld [vmem:[%s628 + $0x188] sm:%s621]
                  %729 = vst [vmem:[%s629 + $0xc4] sm:%s621] %v728
                  %v730 = vld [vmem:[%s628 + $0x190] sm:%s621]
                  %731 = vst [vmem:[%s629 + $0xc8] sm:%s621] %v730
                  %v732 = vld [vmem:[%s628 + $0x198] sm:%s621]
                  %733 = vst [vmem:[%s629 + $0xcc] sm:%s621] %v732
                  %v734 = vld [vmem:[%s628 + $0x1a0] sm:%s621]
                  %735 = vst [vmem:[%s629 + $0xd0] sm:%s621] %v734
                  %v736 = vld [vmem:[%s628 + $0x1a8] sm:%s621]
                  %737 = vst [vmem:[%s629 + $0xd4] sm:%s621] %v736
                  %v738 = vld [vmem:[%s628 + $0x1b0] sm:%s621]
                  %739 = vst [vmem:[%s629 + $0xd8] sm:%s621] %v738
                  %v740 = vld [vmem:[%s628 + $0x1b8] sm:%s621]
                  %741 = vst [vmem:[%s629 + $0xdc] sm:%s621] %v740
                  %v742 = vld [vmem:[%s628 + $0x1c0] sm:%s621]
                  %743 = vst [vmem:[%s629 + $0xe0] sm:%s621] %v742
                  %v744 = vld [vmem:[%s628 + $0x1c8] sm:%s621]
                  %745 = vst [vmem:[%s629 + $0xe4] sm:%s621] %v744
                  %v746 = vld [vmem:[%s628 + $0x1d0] sm:%s621]
                  %747 = vst [vmem:[%s629 + $0xe8] sm:%s621] %v746
                  %v748 = vld [vmem:[%s628 + $0x1d8] sm:%s621]
                  %749 = vst [vmem:[%s629 + $0xec] sm:%s621] %v748
                  %v750 = vld [vmem:[%s628 + $0x1e0] sm:%s621]
                  %751 = vst [vmem:[%s629 + $0xf0] sm:%s621] %v750
                  %v752 = vld [vmem:[%s628 + $0x1e8] sm:%s621]
                  %753 = vst [vmem:[%s629 + $0xf4] sm:%s621] %v752
                  %v754 = vld [vmem:[%s628 + $0x1f0] sm:%s621]
                  %755 = vst [vmem:[%s629 + $0xf8] sm:%s621] %v754
                  %v756 = vld [vmem:[%s628 + $0x1f8] sm:%s621]
                  %757 = vst [vmem:[%s629 + $0xfc] sm:%s621] %v756
                  %v758 = vld [vmem:[%s628 + $0x200] sm:%s621]
                  %759 = vst [vmem:[%s629 + $0x100] sm:%s621] %v758
                  %v760 = vld [vmem:[%s628 + $0x208] sm:%s621]
                  %761 = vst [vmem:[%s629 + $0x104] sm:%s621] %v760
                  %v762 = vld [vmem:[%s628 + $0x210] sm:%s621]
                  %763 = vst [vmem:[%s629 + $0x108] sm:%s621] %v762
                  %v764 = vld [vmem:[%s628 + $0x218] sm:%s621]
                  %765 = vst [vmem:[%s629 + $0x10c] sm:%s621] %v764
                  %v766 = vld [vmem:[%s628 + $0x220] sm:%s621]
                  %767 = vst [vmem:[%s629 + $0x110] sm:%s621] %v766
                  %v768 = vld [vmem:[%s628 + $0x228] sm:%s621]
                  %769 = vst [vmem:[%s629 + $0x114] sm:%s621] %v768
                  %v770 = vld [vmem:[%s628 + $0x230] sm:%s621]
                  %771 = vst [vmem:[%s629 + $0x118] sm:%s621] %v770
                  %v772 = vld [vmem:[%s628 + $0x238] sm:%s621]
                  %773 = vst [vmem:[%s629 + $0x11c] sm:%s621] %v772
                  %v774 = vld [vmem:[%s628 + $0x240] sm:%s621]
                  %775 = vst [vmem:[%s629 + $0x120] sm:%s621] %v774
                  %v776 = vld [vmem:[%s628 + $0x248] sm:%s621]
                  %777 = vst [vmem:[%s629 + $0x124] sm:%s621] %v776
                  %v778 = vld [vmem:[%s628 + $0x250] sm:%s621]
                  %779 = vst [vmem:[%s629 + $0x128] sm:%s621] %v778
                  %v780 = vld [vmem:[%s628 + $0x258] sm:%s621]
                  %781 = vst [vmem:[%s629 + $0x12c] sm:%s621] %v780
                  %v782 = vld [vmem:[%s628 + $0x260] sm:%s621]
                  %783 = vst [vmem:[%s629 + $0x130] sm:%s621] %v782
                  %v784 = vld [vmem:[%s628 + $0x268] sm:%s621]
                  %785 = vst [vmem:[%s629 + $0x134] sm:%s621] %v784
                  %v786 = vld [vmem:[%s628 + $0x270] sm:%s621]
                  %787 = vst [vmem:[%s629 + $0x138] sm:%s621] %v786
                  %v788 = vld [vmem:[%s628 + $0x278] sm:%s621]
                  %789 = vst [vmem:[%s629 + $0x13c] sm:%s621] %v788
                  %v790 = vld [vmem:[%s628 + $0x280] sm:%s621]
                  %791 = vst [vmem:[%s629 + $0x140] sm:%s621] %v790
                  %v792 = vld [vmem:[%s628 + $0x288] sm:%s621]
                  %793 = vst [vmem:[%s629 + $0x144] sm:%s621] %v792
                  %v794 = vld [vmem:[%s628 + $0x290] sm:%s621]
                  %795 = vst [vmem:[%s629 + $0x148] sm:%s621] %v794
                  %v796 = vld [vmem:[%s628 + $0x298] sm:%s621]
                  %797 = vst [vmem:[%s629 + $0x14c] sm:%s621] %v796
                  %v798 = vld [vmem:[%s628 + $0x2a0] sm:%s621]
                  %799 = vst [vmem:[%s629 + $0x150] sm:%s621] %v798
                  %v800 = vld [vmem:[%s628 + $0x2a8] sm:%s621]
                  %801 = vst [vmem:[%s629 + $0x154] sm:%s621] %v800
                  %v802 = vld [vmem:[%s628 + $0x2b0] sm:%s621]
                  %803 = vst [vmem:[%s629 + $0x158] sm:%s621] %v802
                  %v804 = vld [vmem:[%s628 + $0x2b8] sm:%s621]
                  %805 = vst [vmem:[%s629 + $0x15c] sm:%s621] %v804
                  %v806 = vld [vmem:[%s628 + $0x2c0] sm:%s621]
                  %807 = vst [vmem:[%s629 + $0x160] sm:%s621] %v806
                  %v808 = vld [vmem:[%s628 + $0x2c8] sm:%s621]
                  %809 = vst [vmem:[%s629 + $0x164] sm:%s621] %v808
                  %v810 = vld [vmem:[%s628 + $0x2d0] sm:%s621]
                  %811 = vst [vmem:[%s629 + $0x168] sm:%s621] %v810
                  %v812 = vld [vmem:[%s628 + $0x2d8] sm:%s621]
                  %813 = vst [vmem:[%s629 + $0x16c] sm:%s621] %v812
                  %v814 = vld [vmem:[%s628 + $0x2e0] sm:%s621]
                  %815 = vst [vmem:[%s629 + $0x170] sm:%s621] %v814
                  %v816 = vld [vmem:[%s628 + $0x2e8] sm:%s621]
                  %817 = vst [vmem:[%s629 + $0x174] sm:%s621] %v816
                  %v818 = vld [vmem:[%s628 + $0x2f0] sm:%s621]
                  %819 = vst [vmem:[%s629 + $0x178] sm:%s621] %v818
                  %v820 = vld [vmem:[%s628 + $0x2f8] sm:%s621]
                  %821 = vst [vmem:[%s629 + $0x17c] sm:%s621] %v820
                  %v822 = vld [vmem:[%s628 + $0x300] sm:%s621]
                  %823 = vst [vmem:[%s629 + $0x180] sm:%s621] %v822
                  %v824 = vld [vmem:[%s628 + $0x308] sm:%s621]
                  %825 = vst [vmem:[%s629 + $0x184] sm:%s621] %v824
                  %v826 = vld [vmem:[%s628 + $0x310] sm:%s621]
                  %827 = vst [vmem:[%s629 + $0x188] sm:%s621] %v826
                  %v828 = vld [vmem:[%s628 + $0x318] sm:%s621]
                  %829 = vst [vmem:[%s629 + $0x18c] sm:%s621] %v828
                  %v830 = vld [vmem:[%s628 + $0x320] sm:%s621]
                  %831 = vst [vmem:[%s629 + $0x190] sm:%s621] %v830
                  %v832 = vld [vmem:[%s628 + $0x328] sm:%s621]
                  %833 = vst [vmem:[%s629 + $0x194] sm:%s621] %v832
                  %v834 = vld [vmem:[%s628 + $0x330] sm:%s621]
                  %835 = vst [vmem:[%s629 + $0x198] sm:%s621] %v834
                  %v836 = vld [vmem:[%s628 + $0x338] sm:%s621]
                  %837 = vst [vmem:[%s629 + $0x19c] sm:%s621] %v836
                  %v838 = vld [vmem:[%s628 + $0x340] sm:%s621]
                  %839 = vst [vmem:[%s629 + $0x1a0] sm:%s621] %v838
                  %v840 = vld [vmem:[%s628 + $0x348] sm:%s621]
                  %841 = vst [vmem:[%s629 + $0x1a4] sm:%s621] %v840
                  %v842 = vld [vmem:[%s628 + $0x350] sm:%s621]
                  %843 = vst [vmem:[%s629 + $0x1a8] sm:%s621] %v842
                  %v844 = vld [vmem:[%s628 + $0x358] sm:%s621]
                  %845 = vst [vmem:[%s629 + $0x1ac] sm:%s621] %v844
                  %v846 = vld [vmem:[%s628 + $0x360] sm:%s621]
                  %847 = vst [vmem:[%s629 + $0x1b0] sm:%s621] %v846
                  %v848 = vld [vmem:[%s628 + $0x368] sm:%s621]
                  %849 = vst [vmem:[%s629 + $0x1b4] sm:%s621] %v848
                  %v850 = vld [vmem:[%s628 + $0x370] sm:%s621]
                  %851 = vst [vmem:[%s629 + $0x1b8] sm:%s621] %v850
                  %v852 = vld [vmem:[%s628 + $0x378] sm:%s621]
                  %853 = vst [vmem:[%s629 + $0x1bc] sm:%s621] %v852
                  %v854 = vld [vmem:[%s628 + $0x380] sm:%s621]
                  %855 = vst [vmem:[%s629 + $0x1c0] sm:%s621] %v854
                  %v856 = vld [vmem:[%s628 + $0x388] sm:%s621]
                  %857 = vst [vmem:[%s629 + $0x1c4] sm:%s621] %v856
                  %v858 = vld [vmem:[%s628 + $0x390] sm:%s621]
                  %859 = vst [vmem:[%s629 + $0x1c8] sm:%s621] %v858
                  %v860 = vld [vmem:[%s628 + $0x398] sm:%s621]
                  %861 = vst [vmem:[%s629 + $0x1cc] sm:%s621] %v860
                  %v862 = vld [vmem:[%s628 + $0x3a0] sm:%s621]
                  %863 = vst [vmem:[%s629 + $0x1d0] sm:%s621] %v862
                  %v864 = vld [vmem:[%s628 + $0x3a8] sm:%s621]
                  %865 = vst [vmem:[%s629 + $0x1d4] sm:%s621] %v864
                  %v866 = vld [vmem:[%s628 + $0x3b0] sm:%s621]
                  %867 = vst [vmem:[%s629 + $0x1d8] sm:%s621] %v866
                  %v868 = vld [vmem:[%s628 + $0x3b8] sm:%s621]
                  %869 = vst [vmem:[%s629 + $0x1dc] sm:%s621] %v868
                  %v870 = vld [vmem:[%s628 + $0x3c0] sm:%s621]
                  %871 = vst [vmem:[%s629 + $0x1e0] sm:%s621] %v870
                  %v872 = vld [vmem:[%s628 + $0x3c8] sm:%s621]
                  %873 = vst [vmem:[%s629 + $0x1e4] sm:%s621] %v872
                  %v874 = vld [vmem:[%s628 + $0x3d0] sm:%s621]
                  %875 = vst [vmem:[%s629 + $0x1e8] sm:%s621] %v874
                  %v876 = vld [vmem:[%s628 + $0x3d8] sm:%s621]
                  %877 = vst [vmem:[%s629 + $0x1ec] sm:%s621] %v876
                  %v878 = vld [vmem:[%s628 + $0x3e0] sm:%s621]
                  %879 = vst [vmem:[%s629 + $0x1f0] sm:%s621] %v878
                  %v880 = vld [vmem:[%s628 + $0x3e8] sm:%s621]
                  %881 = vst [vmem:[%s629 + $0x1f4] sm:%s621] %v880
                  %v882 = vld [vmem:[%s628 + $0x3f0] sm:%s621]
                  %883 = vst [vmem:[%s629 + $0x1f8] sm:%s621] %v882
                  %v884 = vld [vmem:[%s628 + $0x3f8] sm:%s621]
                  %885 = vst [vmem:[%s629 + $0x1fc] sm:%s621] %v884
                $region78: #{discriminator_forward.6} parent=65 // loop_footer
                  %s627 = sadd.s32 1, %s623
                $region79: #{discriminator_forward.6} parent=65 // loop_footer_branch
                  %622 = sbr.rel target = $region75
                $region80: #{discriminator_forward.6} parent=65 // loop_exit
                  _
              $region66: #{discriminator_forward.6} parent=50 // pred_fallthru
                _
            $region51: #{discriminator_forward.6} parent=46 // pred_fallthru
              _
            // Predicated region
            $region52: #{discriminator_forward.6} parent=46 // pred_check
              _
            $region53: #{discriminator_forward.6} parent=46 // pred_check_branch
              %343 = sbr.rel (0) target = $region55
            $region54: #{discriminator_forward.6} parent=46 // pred_region
              %s345 = ssub.s32 16, 1
              loop: start=0, step=1, limit=1
              $region56: #{discriminator_forward.6} parent=54 // loop_pre_header
                _
              $region57: #{discriminator_forward.6} parent=54 // loop_header
                %s347 = sphi 0, %s351
                %p348 = scmp.ge.s32.totalorder %s347, 1
                %s352 = sphi %s337, %s337
                %s353 = sphi %s332, %s332
              $region58: #{discriminator_forward.6} parent=54 // loop_header_branch
                %350 = sbr.rel (%p348) target = $region62
              $region59: #{discriminator_forward.6} parent=54 // loop_body
                %v354 = vld [vmem:[%s352] sm:%s345]
                %355 = vst [vmem:[%s353] sm:%s345] %v354
                %v356 = vld [vmem:[%s352 + $0x8] sm:%s345]
                %357 = vst [vmem:[%s353 + $0x4] sm:%s345] %v356
                %v358 = vld [vmem:[%s352 + $0x10] sm:%s345]
                %359 = vst [vmem:[%s353 + $0x8] sm:%s345] %v358
                %v360 = vld [vmem:[%s352 + $0x18] sm:%s345]
                %361 = vst [vmem:[%s353 + $0xc] sm:%s345] %v360
                %v362 = vld [vmem:[%s352 + $0x20] sm:%s345]
                %363 = vst [vmem:[%s353 + $0x10] sm:%s345] %v362
                %v364 = vld [vmem:[%s352 + $0x28] sm:%s345]
                %365 = vst [vmem:[%s353 + $0x14] sm:%s345] %v364
                %v366 = vld [vmem:[%s352 + $0x30] sm:%s345]
                %367 = vst [vmem:[%s353 + $0x18] sm:%s345] %v366
                %v368 = vld [vmem:[%s352 + $0x38] sm:%s345]
                %369 = vst [vmem:[%s353 + $0x1c] sm:%s345] %v368
                %v370 = vld [vmem:[%s352 + $0x40] sm:%s345]
                %371 = vst [vmem:[%s353 + $0x20] sm:%s345] %v370
                %v372 = vld [vmem:[%s352 + $0x48] sm:%s345]
                %373 = vst [vmem:[%s353 + $0x24] sm:%s345] %v372
                %v374 = vld [vmem:[%s352 + $0x50] sm:%s345]
                %375 = vst [vmem:[%s353 + $0x28] sm:%s345] %v374
                %v376 = vld [vmem:[%s352 + $0x58] sm:%s345]
                %377 = vst [vmem:[%s353 + $0x2c] sm:%s345] %v376
                %v378 = vld [vmem:[%s352 + $0x60] sm:%s345]
                %379 = vst [vmem:[%s353 + $0x30] sm:%s345] %v378
                %v380 = vld [vmem:[%s352 + $0x68] sm:%s345]
                %381 = vst [vmem:[%s353 + $0x34] sm:%s345] %v380
                %v382 = vld [vmem:[%s352 + $0x70] sm:%s345]
                %383 = vst [vmem:[%s353 + $0x38] sm:%s345] %v382
                %v384 = vld [vmem:[%s352 + $0x78] sm:%s345]
                %385 = vst [vmem:[%s353 + $0x3c] sm:%s345] %v384
                %v386 = vld [vmem:[%s352 + $0x80] sm:%s345]
                %387 = vst [vmem:[%s353 + $0x40] sm:%s345] %v386
                %v388 = vld [vmem:[%s352 + $0x88] sm:%s345]
                %389 = vst [vmem:[%s353 + $0x44] sm:%s345] %v388
                %v390 = vld [vmem:[%s352 + $0x90] sm:%s345]
                %391 = vst [vmem:[%s353 + $0x48] sm:%s345] %v390
                %v392 = vld [vmem:[%s352 + $0x98] sm:%s345]
                %393 = vst [vmem:[%s353 + $0x4c] sm:%s345] %v392
                %v394 = vld [vmem:[%s352 + $0xa0] sm:%s345]
                %395 = vst [vmem:[%s353 + $0x50] sm:%s345] %v394
                %v396 = vld [vmem:[%s352 + $0xa8] sm:%s345]
                %397 = vst [vmem:[%s353 + $0x54] sm:%s345] %v396
                %v398 = vld [vmem:[%s352 + $0xb0] sm:%s345]
                %399 = vst [vmem:[%s353 + $0x58] sm:%s345] %v398
                %v400 = vld [vmem:[%s352 + $0xb8] sm:%s345]
                %401 = vst [vmem:[%s353 + $0x5c] sm:%s345] %v400
                %v402 = vld [vmem:[%s352 + $0xc0] sm:%s345]
                %403 = vst [vmem:[%s353 + $0x60] sm:%s345] %v402
                %v404 = vld [vmem:[%s352 + $0xc8] sm:%s345]
                %405 = vst [vmem:[%s353 + $0x64] sm:%s345] %v404
                %v406 = vld [vmem:[%s352 + $0xd0] sm:%s345]
                %407 = vst [vmem:[%s353 + $0x68] sm:%s345] %v406
                %v408 = vld [vmem:[%s352 + $0xd8] sm:%s345]
                %409 = vst [vmem:[%s353 + $0x6c] sm:%s345] %v408
                %v410 = vld [vmem:[%s352 + $0xe0] sm:%s345]
                %411 = vst [vmem:[%s353 + $0x70] sm:%s345] %v410
                %v412 = vld [vmem:[%s352 + $0xe8] sm:%s345]
                %413 = vst [vmem:[%s353 + $0x74] sm:%s345] %v412
                %v414 = vld [vmem:[%s352 + $0xf0] sm:%s345]
                %415 = vst [vmem:[%s353 + $0x78] sm:%s345] %v414
                %v416 = vld [vmem:[%s352 + $0xf8] sm:%s345]
                %417 = vst [vmem:[%s353 + $0x7c] sm:%s345] %v416
                %v418 = vld [vmem:[%s352 + $0x100] sm:%s345]
                %419 = vst [vmem:[%s353 + $0x80] sm:%s345] %v418
                %v420 = vld [vmem:[%s352 + $0x108] sm:%s345]
                %421 = vst [vmem:[%s353 + $0x84] sm:%s345] %v420
                %v422 = vld [vmem:[%s352 + $0x110] sm:%s345]
                %423 = vst [vmem:[%s353 + $0x88] sm:%s345] %v422
                %v424 = vld [vmem:[%s352 + $0x118] sm:%s345]
                %425 = vst [vmem:[%s353 + $0x8c] sm:%s345] %v424
                %v426 = vld [vmem:[%s352 + $0x120] sm:%s345]
                %427 = vst [vmem:[%s353 + $0x90] sm:%s345] %v426
                %v428 = vld [vmem:[%s352 + $0x128] sm:%s345]
                %429 = vst [vmem:[%s353 + $0x94] sm:%s345] %v428
                %v430 = vld [vmem:[%s352 + $0x130] sm:%s345]
                %431 = vst [vmem:[%s353 + $0x98] sm:%s345] %v430
                %v432 = vld [vmem:[%s352 + $0x138] sm:%s345]
                %433 = vst [vmem:[%s353 + $0x9c] sm:%s345] %v432
                %v434 = vld [vmem:[%s352 + $0x140] sm:%s345]
                %435 = vst [vmem:[%s353 + $0xa0] sm:%s345] %v434
                %v436 = vld [vmem:[%s352 + $0x148] sm:%s345]
                %437 = vst [vmem:[%s353 + $0xa4] sm:%s345] %v436
                %v438 = vld [vmem:[%s352 + $0x150] sm:%s345]
                %439 = vst [vmem:[%s353 + $0xa8] sm:%s345] %v438
                %v440 = vld [vmem:[%s352 + $0x158] sm:%s345]
                %441 = vst [vmem:[%s353 + $0xac] sm:%s345] %v440
                %v442 = vld [vmem:[%s352 + $0x160] sm:%s345]
                %443 = vst [vmem:[%s353 + $0xb0] sm:%s345] %v442
                %v444 = vld [vmem:[%s352 + $0x168] sm:%s345]
                %445 = vst [vmem:[%s353 + $0xb4] sm:%s345] %v444
                %v446 = vld [vmem:[%s352 + $0x170] sm:%s345]
                %447 = vst [vmem:[%s353 + $0xb8] sm:%s345] %v446
                %v448 = vld [vmem:[%s352 + $0x178] sm:%s345]
                %449 = vst [vmem:[%s353 + $0xbc] sm:%s345] %v448
                %v450 = vld [vmem:[%s352 + $0x180] sm:%s345]
                %451 = vst [vmem:[%s353 + $0xc0] sm:%s345] %v450
                %v452 = vld [vmem:[%s352 + $0x188] sm:%s345]
                %453 = vst [vmem:[%s353 + $0xc4] sm:%s345] %v452
                %v454 = vld [vmem:[%s352 + $0x190] sm:%s345]
                %455 = vst [vmem:[%s353 + $0xc8] sm:%s345] %v454
                %v456 = vld [vmem:[%s352 + $0x198] sm:%s345]
                %457 = vst [vmem:[%s353 + $0xcc] sm:%s345] %v456
                %v458 = vld [vmem:[%s352 + $0x1a0] sm:%s345]
                %459 = vst [vmem:[%s353 + $0xd0] sm:%s345] %v458
                %v460 = vld [vmem:[%s352 + $0x1a8] sm:%s345]
                %461 = vst [vmem:[%s353 + $0xd4] sm:%s345] %v460
                %v462 = vld [vmem:[%s352 + $0x1b0] sm:%s345]
                %463 = vst [vmem:[%s353 + $0xd8] sm:%s345] %v462
                %v464 = vld [vmem:[%s352 + $0x1b8] sm:%s345]
                %465 = vst [vmem:[%s353 + $0xdc] sm:%s345] %v464
                %v466 = vld [vmem:[%s352 + $0x1c0] sm:%s345]
                %467 = vst [vmem:[%s353 + $0xe0] sm:%s345] %v466
                %v468 = vld [vmem:[%s352 + $0x1c8] sm:%s345]
                %469 = vst [vmem:[%s353 + $0xe4] sm:%s345] %v468
                %v470 = vld [vmem:[%s352 + $0x1d0] sm:%s345]
                %471 = vst [vmem:[%s353 + $0xe8] sm:%s345] %v470
                %v472 = vld [vmem:[%s352 + $0x1d8] sm:%s345]
                %473 = vst [vmem:[%s353 + $0xec] sm:%s345] %v472
                %v474 = vld [vmem:[%s352 + $0x1e0] sm:%s345]
                %475 = vst [vmem:[%s353 + $0xf0] sm:%s345] %v474
                %v476 = vld [vmem:[%s352 + $0x1e8] sm:%s345]
                %477 = vst [vmem:[%s353 + $0xf4] sm:%s345] %v476
                %v478 = vld [vmem:[%s352 + $0x1f0] sm:%s345]
                %479 = vst [vmem:[%s353 + $0xf8] sm:%s345] %v478
                %v480 = vld [vmem:[%s352 + $0x1f8] sm:%s345]
                %481 = vst [vmem:[%s353 + $0xfc] sm:%s345] %v480
                %v482 = vld [vmem:[%s352 + $0x200] sm:%s345]
                %483 = vst [vmem:[%s353 + $0x100] sm:%s345] %v482
                %v484 = vld [vmem:[%s352 + $0x208] sm:%s345]
                %485 = vst [vmem:[%s353 + $0x104] sm:%s345] %v484
                %v486 = vld [vmem:[%s352 + $0x210] sm:%s345]
                %487 = vst [vmem:[%s353 + $0x108] sm:%s345] %v486
                %v488 = vld [vmem:[%s352 + $0x218] sm:%s345]
                %489 = vst [vmem:[%s353 + $0x10c] sm:%s345] %v488
                %v490 = vld [vmem:[%s352 + $0x220] sm:%s345]
                %491 = vst [vmem:[%s353 + $0x110] sm:%s345] %v490
                %v492 = vld [vmem:[%s352 + $0x228] sm:%s345]
                %493 = vst [vmem:[%s353 + $0x114] sm:%s345] %v492
                %v494 = vld [vmem:[%s352 + $0x230] sm:%s345]
                %495 = vst [vmem:[%s353 + $0x118] sm:%s345] %v494
                %v496 = vld [vmem:[%s352 + $0x238] sm:%s345]
                %497 = vst [vmem:[%s353 + $0x11c] sm:%s345] %v496
                %v498 = vld [vmem:[%s352 + $0x240] sm:%s345]
                %499 = vst [vmem:[%s353 + $0x120] sm:%s345] %v498
                %v500 = vld [vmem:[%s352 + $0x248] sm:%s345]
                %501 = vst [vmem:[%s353 + $0x124] sm:%s345] %v500
                %v502 = vld [vmem:[%s352 + $0x250] sm:%s345]
                %503 = vst [vmem:[%s353 + $0x128] sm:%s345] %v502
                %v504 = vld [vmem:[%s352 + $0x258] sm:%s345]
                %505 = vst [vmem:[%s353 + $0x12c] sm:%s345] %v504
                %v506 = vld [vmem:[%s352 + $0x260] sm:%s345]
                %507 = vst [vmem:[%s353 + $0x130] sm:%s345] %v506
                %v508 = vld [vmem:[%s352 + $0x268] sm:%s345]
                %509 = vst [vmem:[%s353 + $0x134] sm:%s345] %v508
                %v510 = vld [vmem:[%s352 + $0x270] sm:%s345]
                %511 = vst [vmem:[%s353 + $0x138] sm:%s345] %v510
                %v512 = vld [vmem:[%s352 + $0x278] sm:%s345]
                %513 = vst [vmem:[%s353 + $0x13c] sm:%s345] %v512
                %v514 = vld [vmem:[%s352 + $0x280] sm:%s345]
                %515 = vst [vmem:[%s353 + $0x140] sm:%s345] %v514
                %v516 = vld [vmem:[%s352 + $0x288] sm:%s345]
                %517 = vst [vmem:[%s353 + $0x144] sm:%s345] %v516
                %v518 = vld [vmem:[%s352 + $0x290] sm:%s345]
                %519 = vst [vmem:[%s353 + $0x148] sm:%s345] %v518
                %v520 = vld [vmem:[%s352 + $0x298] sm:%s345]
                %521 = vst [vmem:[%s353 + $0x14c] sm:%s345] %v520
                %v522 = vld [vmem:[%s352 + $0x2a0] sm:%s345]
                %523 = vst [vmem:[%s353 + $0x150] sm:%s345] %v522
                %v524 = vld [vmem:[%s352 + $0x2a8] sm:%s345]
                %525 = vst [vmem:[%s353 + $0x154] sm:%s345] %v524
                %v526 = vld [vmem:[%s352 + $0x2b0] sm:%s345]
                %527 = vst [vmem:[%s353 + $0x158] sm:%s345] %v526
                %v528 = vld [vmem:[%s352 + $0x2b8] sm:%s345]
                %529 = vst [vmem:[%s353 + $0x15c] sm:%s345] %v528
                %v530 = vld [vmem:[%s352 + $0x2c0] sm:%s345]
                %531 = vst [vmem:[%s353 + $0x160] sm:%s345] %v530
                %v532 = vld [vmem:[%s352 + $0x2c8] sm:%s345]
                %533 = vst [vmem:[%s353 + $0x164] sm:%s345] %v532
                %v534 = vld [vmem:[%s352 + $0x2d0] sm:%s345]
                %535 = vst [vmem:[%s353 + $0x168] sm:%s345] %v534
                %v536 = vld [vmem:[%s352 + $0x2d8] sm:%s345]
                %537 = vst [vmem:[%s353 + $0x16c] sm:%s345] %v536
                %v538 = vld [vmem:[%s352 + $0x2e0] sm:%s345]
                %539 = vst [vmem:[%s353 + $0x170] sm:%s345] %v538
                %v540 = vld [vmem:[%s352 + $0x2e8] sm:%s345]
                %541 = vst [vmem:[%s353 + $0x174] sm:%s345] %v540
                %v542 = vld [vmem:[%s352 + $0x2f0] sm:%s345]
                %543 = vst [vmem:[%s353 + $0x178] sm:%s345] %v542
                %v544 = vld [vmem:[%s352 + $0x2f8] sm:%s345]
                %545 = vst [vmem:[%s353 + $0x17c] sm:%s345] %v544
                %v546 = vld [vmem:[%s352 + $0x300] sm:%s345]
                %547 = vst [vmem:[%s353 + $0x180] sm:%s345] %v546
                %v548 = vld [vmem:[%s352 + $0x308] sm:%s345]
                %549 = vst [vmem:[%s353 + $0x184] sm:%s345] %v548
                %v550 = vld [vmem:[%s352 + $0x310] sm:%s345]
                %551 = vst [vmem:[%s353 + $0x188] sm:%s345] %v550
                %v552 = vld [vmem:[%s352 + $0x318] sm:%s345]
                %553 = vst [vmem:[%s353 + $0x18c] sm:%s345] %v552
                %v554 = vld [vmem:[%s352 + $0x320] sm:%s345]
                %555 = vst [vmem:[%s353 + $0x190] sm:%s345] %v554
                %v556 = vld [vmem:[%s352 + $0x328] sm:%s345]
                %557 = vst [vmem:[%s353 + $0x194] sm:%s345] %v556
                %v558 = vld [vmem:[%s352 + $0x330] sm:%s345]
                %559 = vst [vmem:[%s353 + $0x198] sm:%s345] %v558
                %v560 = vld [vmem:[%s352 + $0x338] sm:%s345]
                %561 = vst [vmem:[%s353 + $0x19c] sm:%s345] %v560
                %v562 = vld [vmem:[%s352 + $0x340] sm:%s345]
                %563 = vst [vmem:[%s353 + $0x1a0] sm:%s345] %v562
                %v564 = vld [vmem:[%s352 + $0x348] sm:%s345]
                %565 = vst [vmem:[%s353 + $0x1a4] sm:%s345] %v564
                %v566 = vld [vmem:[%s352 + $0x350] sm:%s345]
                %567 = vst [vmem:[%s353 + $0x1a8] sm:%s345] %v566
                %v568 = vld [vmem:[%s352 + $0x358] sm:%s345]
                %569 = vst [vmem:[%s353 + $0x1ac] sm:%s345] %v568
                %v570 = vld [vmem:[%s352 + $0x360] sm:%s345]
                %571 = vst [vmem:[%s353 + $0x1b0] sm:%s345] %v570
                %v572 = vld [vmem:[%s352 + $0x368] sm:%s345]
                %573 = vst [vmem:[%s353 + $0x1b4] sm:%s345] %v572
                %v574 = vld [vmem:[%s352 + $0x370] sm:%s345]
                %575 = vst [vmem:[%s353 + $0x1b8] sm:%s345] %v574
                %v576 = vld [vmem:[%s352 + $0x378] sm:%s345]
                %577 = vst [vmem:[%s353 + $0x1bc] sm:%s345] %v576
                %v578 = vld [vmem:[%s352 + $0x380] sm:%s345]
                %579 = vst [vmem:[%s353 + $0x1c0] sm:%s345] %v578
                %v580 = vld [vmem:[%s352 + $0x388] sm:%s345]
                %581 = vst [vmem:[%s353 + $0x1c4] sm:%s345] %v580
                %v582 = vld [vmem:[%s352 + $0x390] sm:%s345]
                %583 = vst [vmem:[%s353 + $0x1c8] sm:%s345] %v582
                %v584 = vld [vmem:[%s352 + $0x398] sm:%s345]
                %585 = vst [vmem:[%s353 + $0x1cc] sm:%s345] %v584
                %v586 = vld [vmem:[%s352 + $0x3a0] sm:%s345]
                %587 = vst [vmem:[%s353 + $0x1d0] sm:%s345] %v586
                %v588 = vld [vmem:[%s352 + $0x3a8] sm:%s345]
                %589 = vst [vmem:[%s353 + $0x1d4] sm:%s345] %v588
                %v590 = vld [vmem:[%s352 + $0x3b0] sm:%s345]
                %591 = vst [vmem:[%s353 + $0x1d8] sm:%s345] %v590
                %v592 = vld [vmem:[%s352 + $0x3b8] sm:%s345]
                %593 = vst [vmem:[%s353 + $0x1dc] sm:%s345] %v592
                %v594 = vld [vmem:[%s352 + $0x3c0] sm:%s345]
                %595 = vst [vmem:[%s353 + $0x1e0] sm:%s345] %v594
                %v596 = vld [vmem:[%s352 + $0x3c8] sm:%s345]
                %597 = vst [vmem:[%s353 + $0x1e4] sm:%s345] %v596
                %v598 = vld [vmem:[%s352 + $0x3d0] sm:%s345]
                %599 = vst [vmem:[%s353 + $0x1e8] sm:%s345] %v598
                %v600 = vld [vmem:[%s352 + $0x3d8] sm:%s345]
                %601 = vst [vmem:[%s353 + $0x1ec] sm:%s345] %v600
                %v602 = vld [vmem:[%s352 + $0x3e0] sm:%s345]
                %603 = vst [vmem:[%s353 + $0x1f0] sm:%s345] %v602
                %v604 = vld [vmem:[%s352 + $0x3e8] sm:%s345]
                %605 = vst [vmem:[%s353 + $0x1f4] sm:%s345] %v604
                %v606 = vld [vmem:[%s352 + $0x3f0] sm:%s345]
                %607 = vst [vmem:[%s353 + $0x1f8] sm:%s345] %v606
                %v608 = vld [vmem:[%s352 + $0x3f8] sm:%s345]
                %609 = vst [vmem:[%s353 + $0x1fc] sm:%s345] %v608
              $region60: #{discriminator_forward.6} parent=54 // loop_footer
                %s351 = sadd.s32 1, %s347
              $region61: #{discriminator_forward.6} parent=54 // loop_footer_branch
                %346 = sbr.rel target = $region57
              $region62: #{discriminator_forward.6} parent=54 // loop_exit
                _
            $region55: #{discriminator_forward.6} parent=46 // pred_fallthru
              _
          $region47: #{discriminator_forward.6} parent=42 // pred_fallthru
            _
          %886 = vnop
        $region43: #{discriminator_forward.6} parent=15 // pred_fallthru
          _
        // Predicated region
        $region81: #{discriminator_forward.6} parent=15 // pred_check
          %p887 = pneg %p96
        $region82: #{discriminator_forward.6} parent=15 // pred_check_branch
          %889 = sbr.rel (%p887) target = $region84
        $region83: #{discriminator_forward.6} parent=15 // pred_region
          %p890 = scmp.lt.s32.totalorder %s17, 1
          %s891 = scalar_select %p890, %s17, 1
          %s892 = scalar_lea.vmem %s2, %s891
        $region84: #{discriminator_forward.6} parent=15 // pred_fallthru
          _
        // Predicated region
        $region85: #{discriminator_forward.6} parent=15 // pred_check
          %p893 = pneg %p122
        $region86: #{discriminator_forward.6} parent=15 // pred_check_branch
          %895 = sbr.rel (%p893) target = $region88
        $region87: #{discriminator_forward.6} parent=15 // pred_region
          %p896 = scmp.lt.s32.totalorder %s17, 1
          %s897 = scalar_select %p896, %s17, 1
          %s898 = scalar_lea.vmem %s3, %s897
        $region88: #{discriminator_forward.6} parent=15 // pred_fallthru
          _
      $region16: #{discriminator_forward.6} parent=5 // pred_fallthru
        _
      %p899 = scmp.le.s32.totalorder 1, %s10
      %p900 = scmp.lt.s32.totalorder %s10, 5
      %p901 = pnand %p899, %p900
      %p902 = pneg %p901
      // Predicated region
      $region89: #{discriminator_forward.6} parent=5 // pred_check
        _
      $region90: #{discriminator_forward.6} parent=5 // pred_check_branch
        %904 = sbr.rel (%p901) target = $region92
      $region91: #{discriminator_forward.6} parent=5 // pred_region
        %s905 = ssub.s32 %s10, 1
        %s906 = sand.u32 %s35, 1
        %s907 = sand.u32 %s35, 1
        %s908 = smul.addr %s907, 512
        %s909 = scalar_lea.vmem [#allocation3], %s908
        // Predicated region
        $region93: #{discriminator_forward.6} parent=91 // pred_check
          %p910 = pneg %p48
        $region94: #{discriminator_forward.6} parent=91 // pred_check_branch
          %912 = sbr.rel (%p910) target = $region96
        $region95: #{discriminator_forward.6} parent=91 // pred_region
          _
        $region96: #{discriminator_forward.6} parent=91 // pred_fallthru
          _
        %s913 = sand.u32 %s63, 1
        %s914 = sand.u32 %s63, 1
        %s915 = smul.addr %s914, 512
        %s916 = scalar_lea.vmem [#allocation4], %s915
        // Predicated region
        $region97: #{discriminator_forward.6} parent=91 // pred_check
          %p917 = pneg %p76
        $region98: #{discriminator_forward.6} parent=91 // pred_check_branch
          %919 = sbr.rel (%p917) target = $region100
        $region99: #{discriminator_forward.6} parent=91 // pred_region
          _
        $region100: #{discriminator_forward.6} parent=91 // pred_fallthru
          _
        %s920 = sand.u32 %s35, 1
        %s921 = sand.u32 %s35, 1
        %s922 = smul.addr %s921, 512
        %s923 = scalar_lea.vmem [#allocation3], %s922
        %p924 = pneg %p48
        %p925 = pneg %p45
        %s926 = sand.u32 %s63, 1
        %s927 = sand.u32 %s63, 1
        %s928 = smul.addr %s927, 512
        %s929 = scalar_lea.vmem [#allocation4], %s928
        %p930 = pneg %p76
        %p931 = pneg %p73
        %p932 = scmp.lt.s32.totalorder %s19, 1
        %s933 = scalar_select %p932, %s19, 1
        %s934 = scalar_lea.vmem %s2, %s933
        %p935 = pneg %p102
        %p936 = pneg %p99
        %p937 = scmp.lt.s32.totalorder %s19, 1
        %s938 = scalar_select %p937, %s19, 1
        %s939 = scalar_lea.vmem %s3, %s938
        %p940 = pneg %p128
        %p941 = pneg %p125
        %p942 = pneg %p154
        %p943 = pneg %p151
        %s944 = sand.u32 %s141, 1
        %s945 = sand.u32 %s141, 1
        %s946 = smul.addr %s945, 64
        %s947 = scalar_lea.vmem [#allocation5], %s946
        %s948 = smul.u32 8, %s20
        %s949 = smul.u32 128, %s20
        %p950 = scmp.lt.s32.totalorder %s19, 1
        %s951 = scalar_select %p950, %s19, 1
        %s952 = scalar_lea.vmem %s2, %s951
        %p953 = scmp.lt.s32.totalorder %s19, 1
        %s954 = scalar_select %p953, %s19, 1
        %s955 = scalar_lea.vmem %s3, %s954
        %p957 = scmp.eq.s32.totalorder %s20, 0
        // Predicated region
        $region101: #{discriminator_forward.6} parent=91 // pred_check
          %p958 = pneg %p957
        $region102: #{discriminator_forward.6} parent=91 // pred_check_branch
          %960 = sbr.rel (%p958) target = $region104
        $region103: #{discriminator_forward.6} parent=91 // pred_region
          %961 = vst [vmem:[#allocation2] sm:$0xff] 0.0
          %962 = vst [vmem:[#allocation2 + $0x8] sm:$0xff] 0.0
          %963 = vst [vmem:[#allocation2 + $0x10] sm:$0xff] 0.0
          %964 = vst [vmem:[#allocation2 + $0x18] sm:$0xff] 0.0
          %965 = vst [vmem:[#allocation2 + $0x20] sm:$0xff] 0.0
          %966 = vst [vmem:[#allocation2 + $0x28] sm:$0xff] 0.0
          %967 = vst [vmem:[#allocation2 + $0x30] sm:$0xff] 0.0
          %968 = vst [vmem:[#allocation2 + $0x38] sm:$0xff] 0.0
          %969 = vst [vmem:[#allocation2 + $0x40] sm:$0xff] 0.0
          %970 = vst [vmem:[#allocation2 + $0x48] sm:$0xff] 0.0
          %971 = vst [vmem:[#allocation2 + $0x50] sm:$0xff] 0.0
          %972 = vst [vmem:[#allocation2 + $0x58] sm:$0xff] 0.0
          %973 = vst [vmem:[#allocation2 + $0x60] sm:$0xff] 0.0
          %974 = vst [vmem:[#allocation2 + $0x68] sm:$0xff] 0.0
          %975 = vst [vmem:[#allocation2 + $0x70] sm:$0xff] 0.0
          %976 = vst [vmem:[#allocation2 + $0x78] sm:$0xff] 0.0
        $region104: #{discriminator_forward.6} parent=91 // pred_fallthru
          _
        %v977 = vld [vmem:[#allocation2] sm:$0xff]
        %v978 = vld [vmem:[#allocation2 + $0x8] sm:$0xff]
        %v979 = vld [vmem:[#allocation2 + $0x10] sm:$0xff]
        %v980 = vld [vmem:[#allocation2 + $0x18] sm:$0xff]
        %v981 = vld [vmem:[#allocation2 + $0x20] sm:$0xff]
        %v982 = vld [vmem:[#allocation2 + $0x28] sm:$0xff]
        %v983 = vld [vmem:[#allocation2 + $0x30] sm:$0xff]
        %v984 = vld [vmem:[#allocation2 + $0x38] sm:$0xff]
        %v985 = vld [vmem:[#allocation2 + $0x40] sm:$0xff]
        %v986 = vld [vmem:[#allocation2 + $0x48] sm:$0xff]
        %v987 = vld [vmem:[#allocation2 + $0x50] sm:$0xff]
        %v988 = vld [vmem:[#allocation2 + $0x58] sm:$0xff]
        %v989 = vld [vmem:[#allocation2 + $0x60] sm:$0xff]
        %v990 = vld [vmem:[#allocation2 + $0x68] sm:$0xff]
        %v991 = vld [vmem:[#allocation2 + $0x70] sm:$0xff]
        %v992 = vld [vmem:[#allocation2 + $0x78] sm:$0xff]
        %v993 = vld [vmem:[%s909] sm:$0xff]
        %v994 = vld [vmem:[%s909 + $0x8] sm:$0xff]
        %v995 = vld [vmem:[%s909 + $0x10] sm:$0xff]
        %v996 = vld [vmem:[%s909 + $0x18] sm:$0xff]
        %v997 = vld [vmem:[%s909 + $0x20] sm:$0xff]
        %v998 = vld [vmem:[%s909 + $0x28] sm:$0xff]
        %v999 = vld [vmem:[%s909 + $0x30] sm:$0xff]
        %v1000 = vld [vmem:[%s909 + $0x38] sm:$0xff]
        %v1001 = vld [vmem:[%s909 + $0x40] sm:$0xff]
        %v1002 = vld [vmem:[%s909 + $0x48] sm:$0xff]
        %v1003 = vld [vmem:[%s909 + $0x50] sm:$0xff]
        %v1004 = vld [vmem:[%s909 + $0x58] sm:$0xff]
        %v1005 = vld [vmem:[%s909 + $0x60] sm:$0xff]
        %v1006 = vld [vmem:[%s909 + $0x68] sm:$0xff]
        %v1007 = vld [vmem:[%s909 + $0x70] sm:$0xff]
        %v1008 = vld [vmem:[%s909 + $0x78] sm:$0xff]
        %v1009 = vld [vmem:[%s909 + $0x80] sm:$0xff]
        %v1010 = vld [vmem:[%s909 + $0x88] sm:$0xff]
        %v1011 = vld [vmem:[%s909 + $0x90] sm:$0xff]
        %v1012 = vld [vmem:[%s909 + $0x98] sm:$0xff]
        %v1013 = vld [vmem:[%s909 + $0xa0] sm:$0xff]
        %v1014 = vld [vmem:[%s909 + $0xa8] sm:$0xff]
        %v1015 = vld [vmem:[%s909 + $0xb0] sm:$0xff]
        %v1016 = vld [vmem:[%s909 + $0xb8] sm:$0xff]
        %v1017 = vld [vmem:[%s909 + $0xc0] sm:$0xff]
        %v1018 = vld [vmem:[%s909 + $0xc8] sm:$0xff]
        %v1019 = vld [vmem:[%s909 + $0xd0] sm:$0xff]
        %v1020 = vld [vmem:[%s909 + $0xd8] sm:$0xff]
        %v1021 = vld [vmem:[%s909 + $0xe0] sm:$0xff]
        %v1022 = vld [vmem:[%s909 + $0xe8] sm:$0xff]
        %v1023 = vld [vmem:[%s909 + $0xf0] sm:$0xff]
        %v1024 = vld [vmem:[%s909 + $0xf8] sm:$0xff]
        %v1025 = vld [vmem:[%s909 + $0x100] sm:$0xff]
        %v1026 = vld [vmem:[%s909 + $0x108] sm:$0xff]
        %v1027 = vld [vmem:[%s909 + $0x110] sm:$0xff]
        %v1028 = vld [vmem:[%s909 + $0x118] sm:$0xff]
        %v1029 = vld [vmem:[%s909 + $0x120] sm:$0xff]
        %v1030 = vld [vmem:[%s909 + $0x128] sm:$0xff]
        %v1031 = vld [vmem:[%s909 + $0x130] sm:$0xff]
        %v1032 = vld [vmem:[%s909 + $0x138] sm:$0xff]
        %v1033 = vld [vmem:[%s909 + $0x140] sm:$0xff]
        %v1034 = vld [vmem:[%s909 + $0x148] sm:$0xff]
        %v1035 = vld [vmem:[%s909 + $0x150] sm:$0xff]
        %v1036 = vld [vmem:[%s909 + $0x158] sm:$0xff]
        %v1037 = vld [vmem:[%s909 + $0x160] sm:$0xff]
        %v1038 = vld [vmem:[%s909 + $0x168] sm:$0xff]
        %v1039 = vld [vmem:[%s909 + $0x170] sm:$0xff]
        %v1040 = vld [vmem:[%s909 + $0x178] sm:$0xff]
        %v1041 = vld [vmem:[%s909 + $0x180] sm:$0xff]
        %v1042 = vld [vmem:[%s909 + $0x188] sm:$0xff]
        %v1043 = vld [vmem:[%s909 + $0x190] sm:$0xff]
        %v1044 = vld [vmem:[%s909 + $0x198] sm:$0xff]
        %v1045 = vld [vmem:[%s909 + $0x1a0] sm:$0xff]
        %v1046 = vld [vmem:[%s909 + $0x1a8] sm:$0xff]
        %v1047 = vld [vmem:[%s909 + $0x1b0] sm:$0xff]
        %v1048 = vld [vmem:[%s909 + $0x1b8] sm:$0xff]
        %v1049 = vld [vmem:[%s909 + $0x1c0] sm:$0xff]
        %v1050 = vld [vmem:[%s909 + $0x1c8] sm:$0xff]
        %v1051 = vld [vmem:[%s909 + $0x1d0] sm:$0xff]
        %v1052 = vld [vmem:[%s909 + $0x1d8] sm:$0xff]
        %v1053 = vld [vmem:[%s909 + $0x1e0] sm:$0xff]
        %v1054 = vld [vmem:[%s909 + $0x1e8] sm:$0xff]
        %v1055 = vld [vmem:[%s909 + $0x1f0] sm:$0xff]
        %v1056 = vld [vmem:[%s909 + $0x1f8] sm:$0xff]
        %v1057 = vld [vmem:[%s916] sm:$0xf]
        %v1058 = vld [vmem:[%s916 + $0x4] sm:$0xf]
        %v1059 = vld [vmem:[%s916 + $0x8] sm:$0xf]
        %v1060 = vld [vmem:[%s916 + $0xc] sm:$0xf]
        %v1061 = vld [vmem:[%s916 + $0x10] sm:$0xf]
        %v1062 = vld [vmem:[%s916 + $0x14] sm:$0xf]
        %v1063 = vld [vmem:[%s916 + $0x18] sm:$0xf]
        %v1064 = vld [vmem:[%s916 + $0x1c] sm:$0xf]
        %v1065 = vld [vmem:[%s916 + $0x20] sm:$0xf]
        %v1066 = vld [vmem:[%s916 + $0x24] sm:$0xf]
        %v1067 = vld [vmem:[%s916 + $0x28] sm:$0xf]
        %v1068 = vld [vmem:[%s916 + $0x2c] sm:$0xf]
        %v1069 = vld [vmem:[%s916 + $0x30] sm:$0xf]
        %v1070 = vld [vmem:[%s916 + $0x34] sm:$0xf]
        %v1071 = vld [vmem:[%s916 + $0x38] sm:$0xf]
        %v1072 = vld [vmem:[%s916 + $0x3c] sm:$0xf]
        %v1073 = vld [vmem:[%s916 + $0x40] sm:$0xf]
        %v1074 = vld [vmem:[%s916 + $0x44] sm:$0xf]
        %v1075 = vld [vmem:[%s916 + $0x48] sm:$0xf]
        %v1076 = vld [vmem:[%s916 + $0x4c] sm:$0xf]
        %v1077 = vld [vmem:[%s916 + $0x50] sm:$0xf]
        %v1078 = vld [vmem:[%s916 + $0x54] sm:$0xf]
        %v1079 = vld [vmem:[%s916 + $0x58] sm:$0xf]
        %v1080 = vld [vmem:[%s916 + $0x5c] sm:$0xf]
        %v1081 = vld [vmem:[%s916 + $0x60] sm:$0xf]
        %v1082 = vld [vmem:[%s916 + $0x64] sm:$0xf]
        %v1083 = vld [vmem:[%s916 + $0x68] sm:$0xf]
        %v1084 = vld [vmem:[%s916 + $0x6c] sm:$0xf]
        %v1085 = vld [vmem:[%s916 + $0x70] sm:$0xf]
        %v1086 = vld [vmem:[%s916 + $0x74] sm:$0xf]
        %v1087 = vld [vmem:[%s916 + $0x78] sm:$0xf]
        %v1088 = vld [vmem:[%s916 + $0x7c] sm:$0xf]
        %v1089 = vld [vmem:[%s916 + $0x80] sm:$0xf]
        %v1090 = vld [vmem:[%s916 + $0x84] sm:$0xf]
        %v1091 = vld [vmem:[%s916 + $0x88] sm:$0xf]
        %v1092 = vld [vmem:[%s916 + $0x8c] sm:$0xf]
        %v1093 = vld [vmem:[%s916 + $0x90] sm:$0xf]
        %v1094 = vld [vmem:[%s916 + $0x94] sm:$0xf]
        %v1095 = vld [vmem:[%s916 + $0x98] sm:$0xf]
        %v1096 = vld [vmem:[%s916 + $0x9c] sm:$0xf]
        %v1097 = vld [vmem:[%s916 + $0xa0] sm:$0xf]
        %v1098 = vld [vmem:[%s916 + $0xa4] sm:$0xf]
        %v1099 = vld [vmem:[%s916 + $0xa8] sm:$0xf]
        %v1100 = vld [vmem:[%s916 + $0xac] sm:$0xf]
        %v1101 = vld [vmem:[%s916 + $0xb0] sm:$0xf]
        %v1102 = vld [vmem:[%s916 + $0xb4] sm:$0xf]
        %v1103 = vld [vmem:[%s916 + $0xb8] sm:$0xf]
        %v1104 = vld [vmem:[%s916 + $0xbc] sm:$0xf]
        %v1105 = vld [vmem:[%s916 + $0xc0] sm:$0xf]
        %v1106 = vld [vmem:[%s916 + $0xc4] sm:$0xf]
        %v1107 = vld [vmem:[%s916 + $0xc8] sm:$0xf]
        %v1108 = vld [vmem:[%s916 + $0xcc] sm:$0xf]
        %v1109 = vld [vmem:[%s916 + $0xd0] sm:$0xf]
        %v1110 = vld [vmem:[%s916 + $0xd4] sm:$0xf]
        %v1111 = vld [vmem:[%s916 + $0xd8] sm:$0xf]
        %v1112 = vld [vmem:[%s916 + $0xdc] sm:$0xf]
        %v1113 = vld [vmem:[%s916 + $0xe0] sm:$0xf]
        %v1114 = vld [vmem:[%s916 + $0xe4] sm:$0xf]
        %v1115 = vld [vmem:[%s916 + $0xe8] sm:$0xf]
        %v1116 = vld [vmem:[%s916 + $0xec] sm:$0xf]
        %v1117 = vld [vmem:[%s916 + $0xf0] sm:$0xf]
        %v1118 = vld [vmem:[%s916 + $0xf4] sm:$0xf]
        %v1119 = vld [vmem:[%s916 + $0xf8] sm:$0xf]
        %v1120 = vld [vmem:[%s916 + $0xfc] sm:$0xf]
        %v1121 = vld [vmem:[%s916 + $0x100] sm:$0xf]
        %v1122 = vld [vmem:[%s916 + $0x104] sm:$0xf]
        %v1123 = vld [vmem:[%s916 + $0x108] sm:$0xf]
        %v1124 = vld [vmem:[%s916 + $0x10c] sm:$0xf]
        %v1125 = vld [vmem:[%s916 + $0x110] sm:$0xf]
        %v1126 = vld [vmem:[%s916 + $0x114] sm:$0xf]
        %v1127 = vld [vmem:[%s916 + $0x118] sm:$0xf]
        %v1128 = vld [vmem:[%s916 + $0x11c] sm:$0xf]
        %v1129 = vld [vmem:[%s916 + $0x120] sm:$0xf]
        %v1130 = vld [vmem:[%s916 + $0x124] sm:$0xf]
        %v1131 = vld [vmem:[%s916 + $0x128] sm:$0xf]
        %v1132 = vld [vmem:[%s916 + $0x12c] sm:$0xf]
        %v1133 = vld [vmem:[%s916 + $0x130] sm:$0xf]
        %v1134 = vld [vmem:[%s916 + $0x134] sm:$0xf]
        %v1135 = vld [vmem:[%s916 + $0x138] sm:$0xf]
        %v1136 = vld [vmem:[%s916 + $0x13c] sm:$0xf]
        %v1137 = vld [vmem:[%s916 + $0x140] sm:$0xf]
        %v1138 = vld [vmem:[%s916 + $0x144] sm:$0xf]
        %v1139 = vld [vmem:[%s916 + $0x148] sm:$0xf]
        %v1140 = vld [vmem:[%s916 + $0x14c] sm:$0xf]
        %v1141 = vld [vmem:[%s916 + $0x150] sm:$0xf]
        %v1142 = vld [vmem:[%s916 + $0x154] sm:$0xf]
        %v1143 = vld [vmem:[%s916 + $0x158] sm:$0xf]
        %v1144 = vld [vmem:[%s916 + $0x15c] sm:$0xf]
        %v1145 = vld [vmem:[%s916 + $0x160] sm:$0xf]
        %v1146 = vld [vmem:[%s916 + $0x164] sm:$0xf]
        %v1147 = vld [vmem:[%s916 + $0x168] sm:$0xf]
        %v1148 = vld [vmem:[%s916 + $0x16c] sm:$0xf]
        %v1149 = vld [vmem:[%s916 + $0x170] sm:$0xf]
        %v1150 = vld [vmem:[%s916 + $0x174] sm:$0xf]
        %v1151 = vld [vmem:[%s916 + $0x178] sm:$0xf]
        %v1152 = vld [vmem:[%s916 + $0x17c] sm:$0xf]
        %v1153 = vld [vmem:[%s916 + $0x180] sm:$0xf]
        %v1154 = vld [vmem:[%s916 + $0x184] sm:$0xf]
        %v1155 = vld [vmem:[%s916 + $0x188] sm:$0xf]
        %v1156 = vld [vmem:[%s916 + $0x18c] sm:$0xf]
        %v1157 = vld [vmem:[%s916 + $0x190] sm:$0xf]
        %v1158 = vld [vmem:[%s916 + $0x194] sm:$0xf]
        %v1159 = vld [vmem:[%s916 + $0x198] sm:$0xf]
        %v1160 = vld [vmem:[%s916 + $0x19c] sm:$0xf]
        %v1161 = vld [vmem:[%s916 + $0x1a0] sm:$0xf]
        %v1162 = vld [vmem:[%s916 + $0x1a4] sm:$0xf]
        %v1163 = vld [vmem:[%s916 + $0x1a8] sm:$0xf]
        %v1164 = vld [vmem:[%s916 + $0x1ac] sm:$0xf]
        %v1165 = vld [vmem:[%s916 + $0x1b0] sm:$0xf]
        %v1166 = vld [vmem:[%s916 + $0x1b4] sm:$0xf]
        %v1167 = vld [vmem:[%s916 + $0x1b8] sm:$0xf]
        %v1168 = vld [vmem:[%s916 + $0x1bc] sm:$0xf]
        %v1169 = vld [vmem:[%s916 + $0x1c0] sm:$0xf]
        %v1170 = vld [vmem:[%s916 + $0x1c4] sm:$0xf]
        %v1171 = vld [vmem:[%s916 + $0x1c8] sm:$0xf]
        %v1172 = vld [vmem:[%s916 + $0x1cc] sm:$0xf]
        %v1173 = vld [vmem:[%s916 + $0x1d0] sm:$0xf]
        %v1174 = vld [vmem:[%s916 + $0x1d4] sm:$0xf]
        %v1175 = vld [vmem:[%s916 + $0x1d8] sm:$0xf]
        %v1176 = vld [vmem:[%s916 + $0x1dc] sm:$0xf]
        %v1177 = vld [vmem:[%s916 + $0x1e0] sm:$0xf]
        %v1178 = vld [vmem:[%s916 + $0x1e4] sm:$0xf]
        %v1179 = vld [vmem:[%s916 + $0x1e8] sm:$0xf]
        %v1180 = vld [vmem:[%s916 + $0x1ec] sm:$0xf]
        %v1181 = vld [vmem:[%s916 + $0x1f0] sm:$0xf]
        %v1182 = vld [vmem:[%s916 + $0x1f4] sm:$0xf]
        %v1183 = vld [vmem:[%s916 + $0x1f8] sm:$0xf]
        %v1184 = vld [vmem:[%s916 + $0x1fc] sm:$0xf]
        %v1249 = vunpack.c.l.b16 %v993
        %v1250 = vunpack.c.h.b16 %v993
        %v1251 = vunpack.c.l.b16 %v994
        %v1252 = vunpack.c.h.b16 %v994
        %v1253 = vunpack.c.l.b16 %v995
        %v1254 = vunpack.c.h.b16 %v995
        %v1255 = vunpack.c.l.b16 %v996
        %v1256 = vunpack.c.h.b16 %v996
        %v1257 = vunpack.c.l.b16 %v997
        %v1258 = vunpack.c.h.b16 %v997
        %v1259 = vunpack.c.l.b16 %v998
        %v1260 = vunpack.c.h.b16 %v998
        %v1261 = vunpack.c.l.b16 %v999
        %v1262 = vunpack.c.h.b16 %v999
        %v1263 = vunpack.c.l.b16 %v1000
        %v1264 = vunpack.c.h.b16 %v1000
        %v1265 = vunpack.c.l.b16 %v1001
        %v1266 = vunpack.c.h.b16 %v1001
        %v1267 = vunpack.c.l.b16 %v1002
        %v1268 = vunpack.c.h.b16 %v1002
        %v1269 = vunpack.c.l.b16 %v1003
        %v1270 = vunpack.c.h.b16 %v1003
        %v1271 = vunpack.c.l.b16 %v1004
        %v1272 = vunpack.c.h.b16 %v1004
        %v1273 = vunpack.c.l.b16 %v1005
        %v1274 = vunpack.c.h.b16 %v1005
        %v1275 = vunpack.c.l.b16 %v1006
        %v1276 = vunpack.c.h.b16 %v1006
        %v1277 = vunpack.c.l.b16 %v1007
        %v1278 = vunpack.c.h.b16 %v1007
        %v1279 = vunpack.c.l.b16 %v1008
        %v1280 = vunpack.c.h.b16 %v1008
        %v1281 = vunpack.c.l.b16 %v1009
        %v1282 = vunpack.c.h.b16 %v1009
        %v1283 = vunpack.c.l.b16 %v1010
        %v1284 = vunpack.c.h.b16 %v1010
        %v1285 = vunpack.c.l.b16 %v1011
        %v1286 = vunpack.c.h.b16 %v1011
        %v1287 = vunpack.c.l.b16 %v1012
        %v1288 = vunpack.c.h.b16 %v1012
        %v1289 = vunpack.c.l.b16 %v1013
        %v1290 = vunpack.c.h.b16 %v1013
        %v1291 = vunpack.c.l.b16 %v1014
        %v1292 = vunpack.c.h.b16 %v1014
        %v1293 = vunpack.c.l.b16 %v1015
        %v1294 = vunpack.c.h.b16 %v1015
        %v1295 = vunpack.c.l.b16 %v1016
        %v1296 = vunpack.c.h.b16 %v1016
        %v1297 = vunpack.c.l.b16 %v1017
        %v1298 = vunpack.c.h.b16 %v1017
        %v1299 = vunpack.c.l.b16 %v1018
        %v1300 = vunpack.c.h.b16 %v1018
        %v1301 = vunpack.c.l.b16 %v1019
        %v1302 = vunpack.c.h.b16 %v1019
        %v1303 = vunpack.c.l.b16 %v1020
        %v1304 = vunpack.c.h.b16 %v1020
        %v1305 = vunpack.c.l.b16 %v1021
        %v1306 = vunpack.c.h.b16 %v1021
        %v1307 = vunpack.c.l.b16 %v1022
        %v1308 = vunpack.c.h.b16 %v1022
        %v1309 = vunpack.c.l.b16 %v1023
        %v1310 = vunpack.c.h.b16 %v1023
        %v1311 = vunpack.c.l.b16 %v1024
        %v1312 = vunpack.c.h.b16 %v1024
        %v1313 = vunpack.c.l.b16 %v1025
        %v1314 = vunpack.c.h.b16 %v1025
        %v1315 = vunpack.c.l.b16 %v1026
        %v1316 = vunpack.c.h.b16 %v1026
        %v1317 = vunpack.c.l.b16 %v1027
        %v1318 = vunpack.c.h.b16 %v1027
        %v1319 = vunpack.c.l.b16 %v1028
        %v1320 = vunpack.c.h.b16 %v1028
        %v1321 = vunpack.c.l.b16 %v1029
        %v1322 = vunpack.c.h.b16 %v1029
        %v1323 = vunpack.c.l.b16 %v1030
        %v1324 = vunpack.c.h.b16 %v1030
        %v1325 = vunpack.c.l.b16 %v1031
        %v1326 = vunpack.c.h.b16 %v1031
        %v1327 = vunpack.c.l.b16 %v1032
        %v1328 = vunpack.c.h.b16 %v1032
        %v1329 = vunpack.c.l.b16 %v1033
        %v1330 = vunpack.c.h.b16 %v1033
        %v1331 = vunpack.c.l.b16 %v1034
        %v1332 = vunpack.c.h.b16 %v1034
        %v1333 = vunpack.c.l.b16 %v1035
        %v1334 = vunpack.c.h.b16 %v1035
        %v1335 = vunpack.c.l.b16 %v1036
        %v1336 = vunpack.c.h.b16 %v1036
        %v1337 = vunpack.c.l.b16 %v1037
        %v1338 = vunpack.c.h.b16 %v1037
        %v1339 = vunpack.c.l.b16 %v1038
        %v1340 = vunpack.c.h.b16 %v1038
        %v1341 = vunpack.c.l.b16 %v1039
        %v1342 = vunpack.c.h.b16 %v1039
        %v1343 = vunpack.c.l.b16 %v1040
        %v1344 = vunpack.c.h.b16 %v1040
        %v1345 = vunpack.c.l.b16 %v1041
        %v1346 = vunpack.c.h.b16 %v1041
        %v1347 = vunpack.c.l.b16 %v1042
        %v1348 = vunpack.c.h.b16 %v1042
        %v1349 = vunpack.c.l.b16 %v1043
        %v1350 = vunpack.c.h.b16 %v1043
        %v1351 = vunpack.c.l.b16 %v1044
        %v1352 = vunpack.c.h.b16 %v1044
        %v1353 = vunpack.c.l.b16 %v1045
        %v1354 = vunpack.c.h.b16 %v1045
        %v1355 = vunpack.c.l.b16 %v1046
        %v1356 = vunpack.c.h.b16 %v1046
        %v1357 = vunpack.c.l.b16 %v1047
        %v1358 = vunpack.c.h.b16 %v1047
        %v1359 = vunpack.c.l.b16 %v1048
        %v1360 = vunpack.c.h.b16 %v1048
        %v1361 = vunpack.c.l.b16 %v1049
        %v1362 = vunpack.c.h.b16 %v1049
        %v1363 = vunpack.c.l.b16 %v1050
        %v1364 = vunpack.c.h.b16 %v1050
        %v1365 = vunpack.c.l.b16 %v1051
        %v1366 = vunpack.c.h.b16 %v1051
        %v1367 = vunpack.c.l.b16 %v1052
        %v1368 = vunpack.c.h.b16 %v1052
        %v1369 = vunpack.c.l.b16 %v1053
        %v1370 = vunpack.c.h.b16 %v1053
        %v1371 = vunpack.c.l.b16 %v1054
        %v1372 = vunpack.c.h.b16 %v1054
        %v1373 = vunpack.c.l.b16 %v1055
        %v1374 = vunpack.c.h.b16 %v1055
        %v1375 = vunpack.c.l.b16 %v1056
        %v1376 = vunpack.c.h.b16 %v1056
        %v1377 = vpack.c.b16 %v1257, %v1249
        %v1378 = vpack.c.b16 %v1258, %v1250
        %v1379 = vpack.c.b16 %v1259, %v1251
        %v1380 = vpack.c.b16 %v1260, %v1252
        %v1381 = vpack.c.b16 %v1261, %v1253
        %v1382 = vpack.c.b16 %v1262, %v1254
        %v1383 = vpack.c.b16 %v1263, %v1255
        %v1384 = vpack.c.b16 %v1264, %v1256
        %v1385 = vpack.c.b16 %v1273, %v1265
        %v1386 = vpack.c.b16 %v1274, %v1266
        %v1387 = vpack.c.b16 %v1275, %v1267
        %v1388 = vpack.c.b16 %v1276, %v1268
        %v1389 = vpack.c.b16 %v1277, %v1269
        %v1390 = vpack.c.b16 %v1278, %v1270
        %v1391 = vpack.c.b16 %v1279, %v1271
        %v1392 = vpack.c.b16 %v1280, %v1272
        %v1393 = vpack.c.b16 %v1289, %v1281
        %v1394 = vpack.c.b16 %v1290, %v1282
        %v1395 = vpack.c.b16 %v1291, %v1283
        %v1396 = vpack.c.b16 %v1292, %v1284
        %v1397 = vpack.c.b16 %v1293, %v1285
        %v1398 = vpack.c.b16 %v1294, %v1286
        %v1399 = vpack.c.b16 %v1295, %v1287
        %v1400 = vpack.c.b16 %v1296, %v1288
        %v1401 = vpack.c.b16 %v1305, %v1297
        %v1402 = vpack.c.b16 %v1306, %v1298
        %v1403 = vpack.c.b16 %v1307, %v1299
        %v1404 = vpack.c.b16 %v1308, %v1300
        %v1405 = vpack.c.b16 %v1309, %v1301
        %v1406 = vpack.c.b16 %v1310, %v1302
        %v1407 = vpack.c.b16 %v1311, %v1303
        %v1408 = vpack.c.b16 %v1312, %v1304
        %v1409 = vpack.c.b16 %v1321, %v1313
        %v1410 = vpack.c.b16 %v1322, %v1314
        %v1411 = vpack.c.b16 %v1323, %v1315
        %v1412 = vpack.c.b16 %v1324, %v1316
        %v1413 = vpack.c.b16 %v1325, %v1317
        %v1414 = vpack.c.b16 %v1326, %v1318
        %v1415 = vpack.c.b16 %v1327, %v1319
        %v1416 = vpack.c.b16 %v1328, %v1320
        %v1417 = vpack.c.b16 %v1337, %v1329
        %v1418 = vpack.c.b16 %v1338, %v1330
        %v1419 = vpack.c.b16 %v1339, %v1331
        %v1420 = vpack.c.b16 %v1340, %v1332
        %v1421 = vpack.c.b16 %v1341, %v1333
        %v1422 = vpack.c.b16 %v1342, %v1334
        %v1423 = vpack.c.b16 %v1343, %v1335
        %v1424 = vpack.c.b16 %v1344, %v1336
        %v1425 = vpack.c.b16 %v1353, %v1345
        %v1426 = vpack.c.b16 %v1354, %v1346
        %v1427 = vpack.c.b16 %v1355, %v1347
        %v1428 = vpack.c.b16 %v1356, %v1348
        %v1429 = vpack.c.b16 %v1357, %v1349
        %v1430 = vpack.c.b16 %v1358, %v1350
        %v1431 = vpack.c.b16 %v1359, %v1351
        %v1432 = vpack.c.b16 %v1360, %v1352
        %v1433 = vpack.c.b16 %v1369, %v1361
        %v1434 = vpack.c.b16 %v1370, %v1362
        %v1435 = vpack.c.b16 %v1371, %v1363
        %v1436 = vpack.c.b16 %v1372, %v1364
        %v1437 = vpack.c.b16 %v1373, %v1365
        %v1438 = vpack.c.b16 %v1374, %v1366
        %v1439 = vpack.c.b16 %v1375, %v1367
        %v1440 = vpack.c.b16 %v1376, %v1368
        %v1633 = vunpack.c.l.b16 %v1057
        %v1634 = vunpack.c.l.b16 %v1058
        %v1635 = vunpack.c.l.b16 %v1059
        %v1636 = vunpack.c.l.b16 %v1060
        %v1637 = vunpack.c.l.b16 %v1061
        %v1638 = vunpack.c.l.b16 %v1062
        %v1639 = vunpack.c.l.b16 %v1063
        %v1640 = vunpack.c.l.b16 %v1064
        %v1641 = vunpack.c.l.b16 %v1065
        %v1642 = vunpack.c.l.b16 %v1066
        %v1643 = vunpack.c.l.b16 %v1067
        %v1644 = vunpack.c.l.b16 %v1068
        %v1645 = vunpack.c.l.b16 %v1069
        %v1646 = vunpack.c.l.b16 %v1070
        %v1647 = vunpack.c.l.b16 %v1071
        %v1648 = vunpack.c.l.b16 %v1072
        %v1649 = vunpack.c.l.b16 %v1073
        %v1650 = vunpack.c.l.b16 %v1074
        %v1651 = vunpack.c.l.b16 %v1075
        %v1652 = vunpack.c.l.b16 %v1076
        %v1653 = vunpack.c.l.b16 %v1077
        %v1654 = vunpack.c.l.b16 %v1078
        %v1655 = vunpack.c.l.b16 %v1079
        %v1656 = vunpack.c.l.b16 %v1080
        %v1657 = vunpack.c.l.b16 %v1081
        %v1658 = vunpack.c.l.b16 %v1082
        %v1659 = vunpack.c.l.b16 %v1083
        %v1660 = vunpack.c.l.b16 %v1084
        %v1661 = vunpack.c.l.b16 %v1085
        %v1662 = vunpack.c.l.b16 %v1086
        %v1663 = vunpack.c.l.b16 %v1087
        %v1664 = vunpack.c.l.b16 %v1088
        %v1665 = vunpack.c.l.b16 %v1089
        %v1666 = vunpack.c.l.b16 %v1090
        %v1667 = vunpack.c.l.b16 %v1091
        %v1668 = vunpack.c.l.b16 %v1092
        %v1669 = vunpack.c.l.b16 %v1093
        %v1670 = vunpack.c.l.b16 %v1094
        %v1671 = vunpack.c.l.b16 %v1095
        %v1672 = vunpack.c.l.b16 %v1096
        %v1673 = vunpack.c.l.b16 %v1097
        %v1674 = vunpack.c.l.b16 %v1098
        %v1675 = vunpack.c.l.b16 %v1099
        %v1676 = vunpack.c.l.b16 %v1100
        %v1677 = vunpack.c.l.b16 %v1101
        %v1678 = vunpack.c.l.b16 %v1102
        %v1679 = vunpack.c.l.b16 %v1103
        %v1680 = vunpack.c.l.b16 %v1104
        %v1681 = vunpack.c.l.b16 %v1105
        %v1682 = vunpack.c.l.b16 %v1106
        %v1683 = vunpack.c.l.b16 %v1107
        %v1684 = vunpack.c.l.b16 %v1108
        %v1685 = vunpack.c.l.b16 %v1109
        %v1686 = vunpack.c.l.b16 %v1110
        %v1687 = vunpack.c.l.b16 %v1111
        %v1688 = vunpack.c.l.b16 %v1112
        %v1689 = vunpack.c.l.b16 %v1113
        %v1690 = vunpack.c.l.b16 %v1114
        %v1691 = vunpack.c.l.b16 %v1115
        %v1692 = vunpack.c.l.b16 %v1116
        %v1693 = vunpack.c.l.b16 %v1117
        %v1694 = vunpack.c.l.b16 %v1118
        %v1695 = vunpack.c.l.b16 %v1119
        %v1696 = vunpack.c.l.b16 %v1120
        %v1697 = vunpack.c.l.b16 %v1121
        %v1698 = vunpack.c.l.b16 %v1122
        %v1699 = vunpack.c.l.b16 %v1123
        %v1700 = vunpack.c.l.b16 %v1124
        %v1701 = vunpack.c.l.b16 %v1125
        %v1702 = vunpack.c.l.b16 %v1126
        %v1703 = vunpack.c.l.b16 %v1127
        %v1704 = vunpack.c.l.b16 %v1128
        %v1705 = vunpack.c.l.b16 %v1129
        %v1706 = vunpack.c.l.b16 %v1130
        %v1707 = vunpack.c.l.b16 %v1131
        %v1708 = vunpack.c.l.b16 %v1132
        %v1709 = vunpack.c.l.b16 %v1133
        %v1710 = vunpack.c.l.b16 %v1134
        %v1711 = vunpack.c.l.b16 %v1135
        %v1712 = vunpack.c.l.b16 %v1136
        %v1713 = vunpack.c.l.b16 %v1137
        %v1714 = vunpack.c.l.b16 %v1138
        %v1715 = vunpack.c.l.b16 %v1139
        %v1716 = vunpack.c.l.b16 %v1140
        %v1717 = vunpack.c.l.b16 %v1141
        %v1718 = vunpack.c.l.b16 %v1142
        %v1719 = vunpack.c.l.b16 %v1143
        %v1720 = vunpack.c.l.b16 %v1144
        %v1721 = vunpack.c.l.b16 %v1145
        %v1722 = vunpack.c.l.b16 %v1146
        %v1723 = vunpack.c.l.b16 %v1147
        %v1724 = vunpack.c.l.b16 %v1148
        %v1725 = vunpack.c.l.b16 %v1149
        %v1726 = vunpack.c.l.b16 %v1150
        %v1727 = vunpack.c.l.b16 %v1151
        %v1728 = vunpack.c.l.b16 %v1152
        %v1729 = vunpack.c.l.b16 %v1153
        %v1730 = vunpack.c.l.b16 %v1154
        %v1731 = vunpack.c.l.b16 %v1155
        %v1732 = vunpack.c.l.b16 %v1156
        %v1733 = vunpack.c.l.b16 %v1157
        %v1734 = vunpack.c.l.b16 %v1158
        %v1735 = vunpack.c.l.b16 %v1159
        %v1736 = vunpack.c.l.b16 %v1160
        %v1737 = vunpack.c.l.b16 %v1161
        %v1738 = vunpack.c.l.b16 %v1162
        %v1739 = vunpack.c.l.b16 %v1163
        %v1740 = vunpack.c.l.b16 %v1164
        %v1741 = vunpack.c.l.b16 %v1165
        %v1742 = vunpack.c.l.b16 %v1166
        %v1743 = vunpack.c.l.b16 %v1167
        %v1744 = vunpack.c.l.b16 %v1168
        %v1745 = vunpack.c.l.b16 %v1169
        %v1746 = vunpack.c.l.b16 %v1170
        %v1747 = vunpack.c.l.b16 %v1171
        %v1748 = vunpack.c.l.b16 %v1172
        %v1749 = vunpack.c.l.b16 %v1173
        %v1750 = vunpack.c.l.b16 %v1174
        %v1751 = vunpack.c.l.b16 %v1175
        %v1752 = vunpack.c.l.b16 %v1176
        %v1753 = vunpack.c.l.b16 %v1177
        %v1754 = vunpack.c.l.b16 %v1178
        %v1755 = vunpack.c.l.b16 %v1179
        %v1756 = vunpack.c.l.b16 %v1180
        %v1757 = vunpack.c.l.b16 %v1181
        %v1758 = vunpack.c.l.b16 %v1182
        %v1759 = vunpack.c.l.b16 %v1183
        %v1760 = vunpack.c.l.b16 %v1184
        %v1761 = vpack.c.b16 %v1634, %v1633
        %v1762 = vpack.c.b16 %v1636, %v1635
        %v1763 = vpack.c.b16 %v1638, %v1637
        %v1764 = vpack.c.b16 %v1640, %v1639
        %v1765 = vpack.c.b16 %v1642, %v1641
        %v1766 = vpack.c.b16 %v1644, %v1643
        %v1767 = vpack.c.b16 %v1646, %v1645
        %v1768 = vpack.c.b16 %v1648, %v1647
        %v1769 = vpack.c.b16 %v1650, %v1649
        %v1770 = vpack.c.b16 %v1652, %v1651
        %v1771 = vpack.c.b16 %v1654, %v1653
        %v1772 = vpack.c.b16 %v1656, %v1655
        %v1773 = vpack.c.b16 %v1658, %v1657
        %v1774 = vpack.c.b16 %v1660, %v1659
        %v1775 = vpack.c.b16 %v1662, %v1661
        %v1776 = vpack.c.b16 %v1664, %v1663
        %v1777 = vpack.c.b16 %v1666, %v1665
        %v1778 = vpack.c.b16 %v1668, %v1667
        %v1779 = vpack.c.b16 %v1670, %v1669
        %v1780 = vpack.c.b16 %v1672, %v1671
        %v1781 = vpack.c.b16 %v1674, %v1673
        %v1782 = vpack.c.b16 %v1676, %v1675
        %v1783 = vpack.c.b16 %v1678, %v1677
        %v1784 = vpack.c.b16 %v1680, %v1679
        %v1785 = vpack.c.b16 %v1682, %v1681
        %v1786 = vpack.c.b16 %v1684, %v1683
        %v1787 = vpack.c.b16 %v1686, %v1685
        %v1788 = vpack.c.b16 %v1688, %v1687
        %v1789 = vpack.c.b16 %v1690, %v1689
        %v1790 = vpack.c.b16 %v1692, %v1691
        %v1791 = vpack.c.b16 %v1694, %v1693
        %v1792 = vpack.c.b16 %v1696, %v1695
        %v1793 = vpack.c.b16 %v1698, %v1697
        %v1794 = vpack.c.b16 %v1700, %v1699
        %v1795 = vpack.c.b16 %v1702, %v1701
        %v1796 = vpack.c.b16 %v1704, %v1703
        %v1797 = vpack.c.b16 %v1706, %v1705
        %v1798 = vpack.c.b16 %v1708, %v1707
        %v1799 = vpack.c.b16 %v1710, %v1709
        %v1800 = vpack.c.b16 %v1712, %v1711
        %v1801 = vpack.c.b16 %v1714, %v1713
        %v1802 = vpack.c.b16 %v1716, %v1715
        %v1803 = vpack.c.b16 %v1718, %v1717
        %v1804 = vpack.c.b16 %v1720, %v1719
        %v1805 = vpack.c.b16 %v1722, %v1721
        %v1806 = vpack.c.b16 %v1724, %v1723
        %v1807 = vpack.c.b16 %v1726, %v1725
        %v1808 = vpack.c.b16 %v1728, %v1727
        %v1809 = vpack.c.b16 %v1730, %v1729
        %v1810 = vpack.c.b16 %v1732, %v1731
        %v1811 = vpack.c.b16 %v1734, %v1733
        %v1812 = vpack.c.b16 %v1736, %v1735
        %v1813 = vpack.c.b16 %v1738, %v1737
        %v1814 = vpack.c.b16 %v1740, %v1739
        %v1815 = vpack.c.b16 %v1742, %v1741
        %v1816 = vpack.c.b16 %v1744, %v1743
        %v1817 = vpack.c.b16 %v1746, %v1745
        %v1818 = vpack.c.b16 %v1748, %v1747
        %v1819 = vpack.c.b16 %v1750, %v1749
        %v1820 = vpack.c.b16 %v1752, %v1751
        %v1821 = vpack.c.b16 %v1754, %v1753
        %v1822 = vpack.c.b16 %v1756, %v1755
        %v1823 = vpack.c.b16 %v1758, %v1757
        %v1824 = vpack.c.b16 %v1760, %v1759
        %1889 = vmatprep.subr.bf16.mxu0 0
        %1890 = vmatpush1.bf16.msra.mxu0 %v1768
        %1891 = vmatprep.subr.bf16.mxu0 0
        %1892 = vmatpush1.bf16.msra.mxu0 %v1767
        %1893 = vmatprep.subr.bf16.mxu0 0
        %1894 = vmatpush1.bf16.msra.mxu0 %v1766
        %1895 = vmatprep.subr.bf16.mxu0 0
        %1896 = vmatpush1.bf16.msra.mxu0 %v1765
        %1897 = vmatprep.subr.bf16.mxu0 0
        %1898 = vmatpush1.bf16.msra.mxu0 %v1764
        %1899 = vmatprep.subr.bf16.mxu0 0
        %1900 = vmatpush1.bf16.msra.mxu0 %v1763
        %1901 = vmatprep.subr.bf16.mxu0 0
        %1902 = vmatpush1.bf16.msra.mxu0 %v1762
        %1903 = vmatprep.subr.bf16.mxu0 0
        %1904 = vmatpush1.bf16.msra.mxu0 %v1761
        %1905 = vmatprep.subr.bf16.mxu0 0
        %1906 = vmatpush2.bf16.msra.mxu0 %v1776
        %1907 = vmatprep.subr.bf16.mxu0 0
        %1908 = vmatpush2.bf16.msra.mxu0 %v1775
        %1909 = vmatprep.subr.bf16.mxu0 0
        %1910 = vmatpush2.bf16.msra.mxu0 %v1774
        %1911 = vmatprep.subr.bf16.mxu0 0
        %1912 = vmatpush2.bf16.msra.mxu0 %v1773
        %1913 = vmatprep.subr.bf16.mxu0 0
        %1914 = vmatpush2.bf16.msra.mxu0 %v1772
        %1915 = vmatprep.subr.bf16.mxu0 0
        %1916 = vmatpush2.bf16.msra.mxu0 %v1771
        %1917 = vmatprep.subr.bf16.mxu0 0
        %1918 = vmatpush2.bf16.msra.mxu0 %v1770
        %1919 = vmatprep.subr.bf16.mxu0 0
        %1920 = vmatpush2.bf16.msra.mxu0 %v1769
        %1921 = vmatprep.mubr.bf16.mxu0 %v1378
        %1922 = vmatmul.mubr.bf16.gmra.mxu0 %v1377
        %v1923 = vpop.f32.mrf.mxu0
        %v1924 = vadd.f32 0.0, %v1923
        %v1925 = vpop.f32.mrf.mxu0
        %v1926 = vpop.f32.mrf.mxu0
        %v1927 = vadd.f32 0.0, %v1926
        %v1928 = vpop.f32.mrf.mxu0
        %1929 = vmatprep.mubr.bf16.mxu0 %v1386
        %1930 = vmatmul.mubr.bf16.gmra.mxu0 %v1385
        %v1931 = vpop.f32.mrf.mxu0
        %v1932 = vadd.f32 0.0, %v1931
        %v1933 = vpop.f32.mrf.mxu0
        %v1934 = vpop.f32.mrf.mxu0
        %v1935 = vadd.f32 0.0, %v1934
        %v1936 = vpop.f32.mrf.mxu0
        %1937 = vmatprep.mubr.bf16.mxu0 %v1394
        %1938 = vmatmul.mubr.bf16.gmra.mxu0 %v1393
        %v1939 = vpop.f32.mrf.mxu0
        %v1940 = vadd.f32 0.0, %v1939
        %v1941 = vpop.f32.mrf.mxu0
        %v1942 = vpop.f32.mrf.mxu0
        %v1943 = vadd.f32 0.0, %v1942
        %v1944 = vpop.f32.mrf.mxu0
        %1945 = vmatprep.mubr.bf16.mxu0 %v1402
        %1946 = vmatmul.mubr.bf16.gmra.mxu0 %v1401
        %v1947 = vpop.f32.mrf.mxu0
        %v1948 = vadd.f32 0.0, %v1947
        %v1949 = vpop.f32.mrf.mxu0
        %v1950 = vpop.f32.mrf.mxu0
        %v1951 = vadd.f32 0.0, %v1950
        %v1952 = vpop.f32.mrf.mxu0
        %1953 = vmatprep.mubr.bf16.mxu0 %v1410
        %1954 = vmatmul.mubr.bf16.gmra.mxu0 %v1409
        %v1955 = vpop.f32.mrf.mxu0
        %v1956 = vadd.f32 0.0, %v1955
        %v1957 = vpop.f32.mrf.mxu0
        %v1958 = vpop.f32.mrf.mxu0
        %v1959 = vadd.f32 0.0, %v1958
        %v1960 = vpop.f32.mrf.mxu0
        %1961 = vmatprep.mubr.bf16.mxu0 %v1418
        %1962 = vmatmul.mubr.bf16.gmra.mxu0 %v1417
        %v1963 = vpop.f32.mrf.mxu0
        %v1964 = vadd.f32 0.0, %v1963
        %v1965 = vpop.f32.mrf.mxu0
        %v1966 = vpop.f32.mrf.mxu0
        %v1967 = vadd.f32 0.0, %v1966
        %v1968 = vpop.f32.mrf.mxu0
        %1969 = vmatprep.mubr.bf16.mxu0 %v1426
        %1970 = vmatmul.mubr.bf16.gmra.mxu0 %v1425
        %v1971 = vpop.f32.mrf.mxu0
        %v1972 = vadd.f32 0.0, %v1971
        %v1973 = vpop.f32.mrf.mxu0
        %v1974 = vpop.f32.mrf.mxu0
        %v1975 = vadd.f32 0.0, %v1974
        %v1976 = vpop.f32.mrf.mxu0
        %1977 = vmatprep.mubr.bf16.mxu0 %v1434
        %1978 = vmatmul.mubr.bf16.gmra.mxu0 %v1433
        %v1979 = vpop.f32.mrf.mxu0
        %v1980 = vadd.f32 0.0, %v1979
        %v1981 = vpop.f32.mrf.mxu0
        %v1982 = vpop.f32.mrf.mxu0
        %v1983 = vadd.f32 0.0, %v1982
        %v1984 = vpop.f32.mrf.mxu0
        %1985 = vdwg.mxu0
        %1986 = vmatprep.subr.bf16.mxu0 0
        %1987 = vmatpush1.bf16.msra.mxu0 %v1784
        %1988 = vmatprep.subr.bf16.mxu0 0
        %1989 = vmatpush1.bf16.msra.mxu0 %v1783
        %1990 = vmatprep.subr.bf16.mxu0 0
        %1991 = vmatpush1.bf16.msra.mxu0 %v1782
        %1992 = vmatprep.subr.bf16.mxu0 0
        %1993 = vmatpush1.bf16.msra.mxu0 %v1781
        %1994 = vmatprep.subr.bf16.mxu0 0
        %1995 = vmatpush1.bf16.msra.mxu0 %v1780
        %1996 = vmatprep.subr.bf16.mxu0 0
        %1997 = vmatpush1.bf16.msra.mxu0 %v1779
        %1998 = vmatprep.subr.bf16.mxu0 0
        %1999 = vmatpush1.bf16.msra.mxu0 %v1778
        %2000 = vmatprep.subr.bf16.mxu0 0
        %2001 = vmatpush1.bf16.msra.mxu0 %v1777
        %2002 = vmatprep.subr.bf16.mxu0 0
        %2003 = vmatpush2.bf16.msra.mxu0 %v1792
        %2004 = vmatprep.subr.bf16.mxu0 0
        %2005 = vmatpush2.bf16.msra.mxu0 %v1791
        %2006 = vmatprep.subr.bf16.mxu0 0
        %2007 = vmatpush2.bf16.msra.mxu0 %v1790
        %2008 = vmatprep.subr.bf16.mxu0 0
        %2009 = vmatpush2.bf16.msra.mxu0 %v1789
        %2010 = vmatprep.subr.bf16.mxu0 0
        %2011 = vmatpush2.bf16.msra.mxu0 %v1788
        %2012 = vmatprep.subr.bf16.mxu0 0
        %2013 = vmatpush2.bf16.msra.mxu0 %v1787
        %2014 = vmatprep.subr.bf16.mxu0 0
        %2015 = vmatpush2.bf16.msra.mxu0 %v1786
        %2016 = vmatprep.subr.bf16.mxu0 0
        %2017 = vmatpush2.bf16.msra.mxu0 %v1785
        %2018 = vmatprep.mubr.bf16.mxu0 %v1380
        %2019 = vmatmul.mubr.bf16.gmra.mxu0 %v1379
        %v2020 = vpop.f32.mrf.mxu0
        %v2021 = vadd.f32 %v1924, %v2020
        %v2022 = vpop.f32.mrf.mxu0
        %v2023 = vpop.f32.mrf.mxu0
        %v2024 = vadd.f32 %v1927, %v2023
        %v2025 = vpop.f32.mrf.mxu0
        %2026 = vmatprep.mubr.bf16.mxu0 %v1388
        %2027 = vmatmul.mubr.bf16.gmra.mxu0 %v1387
        %v2028 = vpop.f32.mrf.mxu0
        %v2029 = vadd.f32 %v1932, %v2028
        %v2030 = vpop.f32.mrf.mxu0
        %v2031 = vpop.f32.mrf.mxu0
        %v2032 = vadd.f32 %v1935, %v2031
        %v2033 = vpop.f32.mrf.mxu0
        %2034 = vmatprep.mubr.bf16.mxu0 %v1396
        %2035 = vmatmul.mubr.bf16.gmra.mxu0 %v1395
        %v2036 = vpop.f32.mrf.mxu0
        %v2037 = vadd.f32 %v1940, %v2036
        %v2038 = vpop.f32.mrf.mxu0
        %v2039 = vpop.f32.mrf.mxu0
        %v2040 = vadd.f32 %v1943, %v2039
        %v2041 = vpop.f32.mrf.mxu0
        %2042 = vmatprep.mubr.bf16.mxu0 %v1404
        %2043 = vmatmul.mubr.bf16.gmra.mxu0 %v1403
        %v2044 = vpop.f32.mrf.mxu0
        %v2045 = vadd.f32 %v1948, %v2044
        %v2046 = vpop.f32.mrf.mxu0
        %v2047 = vpop.f32.mrf.mxu0
        %v2048 = vadd.f32 %v1951, %v2047
        %v2049 = vpop.f32.mrf.mxu0
        %2050 = vmatprep.mubr.bf16.mxu0 %v1412
        %2051 = vmatmul.mubr.bf16.gmra.mxu0 %v1411
        %v2052 = vpop.f32.mrf.mxu0
        %v2053 = vadd.f32 %v1956, %v2052
        %v2054 = vpop.f32.mrf.mxu0
        %v2055 = vpop.f32.mrf.mxu0
        %v2056 = vadd.f32 %v1959, %v2055
        %v2057 = vpop.f32.mrf.mxu0
        %2058 = vmatprep.mubr.bf16.mxu0 %v1420
        %2059 = vmatmul.mubr.bf16.gmra.mxu0 %v1419
        %v2060 = vpop.f32.mrf.mxu0
        %v2061 = vadd.f32 %v1964, %v2060
        %v2062 = vpop.f32.mrf.mxu0
        %v2063 = vpop.f32.mrf.mxu0
        %v2064 = vadd.f32 %v1967, %v2063
        %v2065 = vpop.f32.mrf.mxu0
        %2066 = vmatprep.mubr.bf16.mxu0 %v1428
        %2067 = vmatmul.mubr.bf16.gmra.mxu0 %v1427
        %v2068 = vpop.f32.mrf.mxu0
        %v2069 = vadd.f32 %v1972, %v2068
        %v2070 = vpop.f32.mrf.mxu0
        %v2071 = vpop.f32.mrf.mxu0
        %v2072 = vadd.f32 %v1975, %v2071
        %v2073 = vpop.f32.mrf.mxu0
        %2074 = vmatprep.mubr.bf16.mxu0 %v1436
        %2075 = vmatmul.mubr.bf16.gmra.mxu0 %v1435
        %v2076 = vpop.f32.mrf.mxu0
        %v2077 = vadd.f32 %v1980, %v2076
        %v2078 = vpop.f32.mrf.mxu0
        %v2079 = vpop.f32.mrf.mxu0
        %v2080 = vadd.f32 %v1983, %v2079
        %v2081 = vpop.f32.mrf.mxu0
        %2082 = vdwg.mxu0
        %2083 = vmatprep.subr.bf16.mxu0 0
        %2084 = vmatpush1.bf16.msra.mxu0 %v1800
        %2085 = vmatprep.subr.bf16.mxu0 0
        %2086 = vmatpush1.bf16.msra.mxu0 %v1799
        %2087 = vmatprep.subr.bf16.mxu0 0
        %2088 = vmatpush1.bf16.msra.mxu0 %v1798
        %2089 = vmatprep.subr.bf16.mxu0 0
        %2090 = vmatpush1.bf16.msra.mxu0 %v1797
        %2091 = vmatprep.subr.bf16.mxu0 0
        %2092 = vmatpush1.bf16.msra.mxu0 %v1796
        %2093 = vmatprep.subr.bf16.mxu0 0
        %2094 = vmatpush1.bf16.msra.mxu0 %v1795
        %2095 = vmatprep.subr.bf16.mxu0 0
        %2096 = vmatpush1.bf16.msra.mxu0 %v1794
        %2097 = vmatprep.subr.bf16.mxu0 0
        %2098 = vmatpush1.bf16.msra.mxu0 %v1793
        %2099 = vmatprep.subr.bf16.mxu0 0
        %2100 = vmatpush2.bf16.msra.mxu0 %v1808
        %2101 = vmatprep.subr.bf16.mxu0 0
        %2102 = vmatpush2.bf16.msra.mxu0 %v1807
        %2103 = vmatprep.subr.bf16.mxu0 0
        %2104 = vmatpush2.bf16.msra.mxu0 %v1806
        %2105 = vmatprep.subr.bf16.mxu0 0
        %2106 = vmatpush2.bf16.msra.mxu0 %v1805
        %2107 = vmatprep.subr.bf16.mxu0 0
        %2108 = vmatpush2.bf16.msra.mxu0 %v1804
        %2109 = vmatprep.subr.bf16.mxu0 0
        %2110 = vmatpush2.bf16.msra.mxu0 %v1803
        %2111 = vmatprep.subr.bf16.mxu0 0
        %2112 = vmatpush2.bf16.msra.mxu0 %v1802
        %2113 = vmatprep.subr.bf16.mxu0 0
        %2114 = vmatpush2.bf16.msra.mxu0 %v1801
        %2115 = vmatprep.mubr.bf16.mxu0 %v1382
        %2116 = vmatmul.mubr.bf16.gmra.mxu0 %v1381
        %v2117 = vpop.f32.mrf.mxu0
        %v2118 = vadd.f32 %v2021, %v2117
        %v2119 = vpop.f32.mrf.mxu0
        %v2120 = vpop.f32.mrf.mxu0
        %v2121 = vadd.f32 %v2024, %v2120
        %v2122 = vpop.f32.mrf.mxu0
        %2123 = vmatprep.mubr.bf16.mxu0 %v1390
        %2124 = vmatmul.mubr.bf16.gmra.mxu0 %v1389
        %v2125 = vpop.f32.mrf.mxu0
        %v2126 = vadd.f32 %v2029, %v2125
        %v2127 = vpop.f32.mrf.mxu0
        %v2128 = vpop.f32.mrf.mxu0
        %v2129 = vadd.f32 %v2032, %v2128
        %v2130 = vpop.f32.mrf.mxu0
        %2131 = vmatprep.mubr.bf16.mxu0 %v1398
        %2132 = vmatmul.mubr.bf16.gmra.mxu0 %v1397
        %v2133 = vpop.f32.mrf.mxu0
        %v2134 = vadd.f32 %v2037, %v2133
        %v2135 = vpop.f32.mrf.mxu0
        %v2136 = vpop.f32.mrf.mxu0
        %v2137 = vadd.f32 %v2040, %v2136
        %v2138 = vpop.f32.mrf.mxu0
        %2139 = vmatprep.mubr.bf16.mxu0 %v1406
        %2140 = vmatmul.mubr.bf16.gmra.mxu0 %v1405
        %v2141 = vpop.f32.mrf.mxu0
        %v2142 = vadd.f32 %v2045, %v2141
        %v2143 = vpop.f32.mrf.mxu0
        %v2144 = vpop.f32.mrf.mxu0
        %v2145 = vadd.f32 %v2048, %v2144
        %v2146 = vpop.f32.mrf.mxu0
        %2147 = vmatprep.mubr.bf16.mxu0 %v1414
        %2148 = vmatmul.mubr.bf16.gmra.mxu0 %v1413
        %v2149 = vpop.f32.mrf.mxu0
        %v2150 = vadd.f32 %v2053, %v2149
        %v2151 = vpop.f32.mrf.mxu0
        %v2152 = vpop.f32.mrf.mxu0
        %v2153 = vadd.f32 %v2056, %v2152
        %v2154 = vpop.f32.mrf.mxu0
        %2155 = vmatprep.mubr.bf16.mxu0 %v1422
        %2156 = vmatmul.mubr.bf16.gmra.mxu0 %v1421
        %v2157 = vpop.f32.mrf.mxu0
        %v2158 = vadd.f32 %v2061, %v2157
        %v2159 = vpop.f32.mrf.mxu0
        %v2160 = vpop.f32.mrf.mxu0
        %v2161 = vadd.f32 %v2064, %v2160
        %v2162 = vpop.f32.mrf.mxu0
        %2163 = vmatprep.mubr.bf16.mxu0 %v1430
        %2164 = vmatmul.mubr.bf16.gmra.mxu0 %v1429
        %v2165 = vpop.f32.mrf.mxu0
        %v2166 = vadd.f32 %v2069, %v2165
        %v2167 = vpop.f32.mrf.mxu0
        %v2168 = vpop.f32.mrf.mxu0
        %v2169 = vadd.f32 %v2072, %v2168
        %v2170 = vpop.f32.mrf.mxu0
        %2171 = vmatprep.mubr.bf16.mxu0 %v1438
        %2172 = vmatmul.mubr.bf16.gmra.mxu0 %v1437
        %v2173 = vpop.f32.mrf.mxu0
        %v2174 = vadd.f32 %v2077, %v2173
        %v2175 = vpop.f32.mrf.mxu0
        %v2176 = vpop.f32.mrf.mxu0
        %v2177 = vadd.f32 %v2080, %v2176
        %v2178 = vpop.f32.mrf.mxu0
        %2179 = vdwg.mxu0
        %2180 = vmatprep.subr.bf16.mxu0 0
        %2181 = vmatpush1.bf16.msra.mxu0 %v1816
        %2182 = vmatprep.subr.bf16.mxu0 0
        %2183 = vmatpush1.bf16.msra.mxu0 %v1815
        %2184 = vmatprep.subr.bf16.mxu0 0
        %2185 = vmatpush1.bf16.msra.mxu0 %v1814
        %2186 = vmatprep.subr.bf16.mxu0 0
        %2187 = vmatpush1.bf16.msra.mxu0 %v1813
        %2188 = vmatprep.subr.bf16.mxu0 0
        %2189 = vmatpush1.bf16.msra.mxu0 %v1812
        %2190 = vmatprep.subr.bf16.mxu0 0
        %2191 = vmatpush1.bf16.msra.mxu0 %v1811
        %2192 = vmatprep.subr.bf16.mxu0 0
        %2193 = vmatpush1.bf16.msra.mxu0 %v1810
        %2194 = vmatprep.subr.bf16.mxu0 0
        %2195 = vmatpush1.bf16.msra.mxu0 %v1809
        %2196 = vmatprep.subr.bf16.mxu0 0
        %2197 = vmatpush2.bf16.msra.mxu0 %v1824
        %2198 = vmatprep.subr.bf16.mxu0 0
        %2199 = vmatpush2.bf16.msra.mxu0 %v1823
        %2200 = vmatprep.subr.bf16.mxu0 0
        %2201 = vmatpush2.bf16.msra.mxu0 %v1822
        %2202 = vmatprep.subr.bf16.mxu0 0
        %2203 = vmatpush2.bf16.msra.mxu0 %v1821
        %2204 = vmatprep.subr.bf16.mxu0 0
        %2205 = vmatpush2.bf16.msra.mxu0 %v1820
        %2206 = vmatprep.subr.bf16.mxu0 0
        %2207 = vmatpush2.bf16.msra.mxu0 %v1819
        %2208 = vmatprep.subr.bf16.mxu0 0
        %2209 = vmatpush2.bf16.msra.mxu0 %v1818
        %2210 = vmatprep.subr.bf16.mxu0 0
        %2211 = vmatpush2.bf16.msra.mxu0 %v1817
        %2212 = vmatprep.mubr.bf16.mxu0 %v1384
        %2213 = vmatmul.mubr.bf16.gmra.mxu0 %v1383
        %v2214 = vpop.f32.mrf.mxu0
        %v2215 = vadd.f32 %v2118, %v2214
        %v2216 = vpop.f32.mrf.mxu0
        %v2217 = vpop.f32.mrf.mxu0
        %v2218 = vadd.f32 %v2121, %v2217
        %v2219 = vpop.f32.mrf.mxu0
        %2220 = vmatprep.mubr.bf16.mxu0 %v1392
        %2221 = vmatmul.mubr.bf16.gmra.mxu0 %v1391
        %v2222 = vpop.f32.mrf.mxu0
        %v2223 = vadd.f32 %v2126, %v2222
        %v2224 = vpop.f32.mrf.mxu0
        %v2225 = vpop.f32.mrf.mxu0
        %v2226 = vadd.f32 %v2129, %v2225
        %v2227 = vpop.f32.mrf.mxu0
        %2228 = vmatprep.mubr.bf16.mxu0 %v1400
        %2229 = vmatmul.mubr.bf16.gmra.mxu0 %v1399
        %v2230 = vpop.f32.mrf.mxu0
        %v2231 = vadd.f32 %v2134, %v2230
        %v2232 = vpop.f32.mrf.mxu0
        %v2233 = vpop.f32.mrf.mxu0
        %v2234 = vadd.f32 %v2137, %v2233
        %v2235 = vpop.f32.mrf.mxu0
        %2236 = vmatprep.mubr.bf16.mxu0 %v1408
        %2237 = vmatmul.mubr.bf16.gmra.mxu0 %v1407
        %v2238 = vpop.f32.mrf.mxu0
        %v2239 = vadd.f32 %v2142, %v2238
        %v2240 = vpop.f32.mrf.mxu0
        %v2241 = vpop.f32.mrf.mxu0
        %v2242 = vadd.f32 %v2145, %v2241
        %v2243 = vpop.f32.mrf.mxu0
        %2244 = vmatprep.mubr.bf16.mxu0 %v1416
        %2245 = vmatmul.mubr.bf16.gmra.mxu0 %v1415
        %v2246 = vpop.f32.mrf.mxu0
        %v2247 = vadd.f32 %v2150, %v2246
        %v2248 = vpop.f32.mrf.mxu0
        %v2249 = vpop.f32.mrf.mxu0
        %v2250 = vadd.f32 %v2153, %v2249
        %v2251 = vpop.f32.mrf.mxu0
        %2252 = vmatprep.mubr.bf16.mxu0 %v1424
        %2253 = vmatmul.mubr.bf16.gmra.mxu0 %v1423
        %v2254 = vpop.f32.mrf.mxu0
        %v2255 = vadd.f32 %v2158, %v2254
        %v2256 = vpop.f32.mrf.mxu0
        %v2257 = vpop.f32.mrf.mxu0
        %v2258 = vadd.f32 %v2161, %v2257
        %v2259 = vpop.f32.mrf.mxu0
        %2260 = vmatprep.mubr.bf16.mxu0 %v1432
        %2261 = vmatmul.mubr.bf16.gmra.mxu0 %v1431
        %v2262 = vpop.f32.mrf.mxu0
        %v2263 = vadd.f32 %v2166, %v2262
        %v2264 = vpop.f32.mrf.mxu0
        %v2265 = vpop.f32.mrf.mxu0
        %v2266 = vadd.f32 %v2169, %v2265
        %v2267 = vpop.f32.mrf.mxu0
        %2268 = vmatprep.mubr.bf16.mxu0 %v1440
        %2269 = vmatmul.mubr.bf16.gmra.mxu0 %v1439
        %v2270 = vpop.f32.mrf.mxu0
        %v2271 = vadd.f32 %v2174, %v2270
        %v2272 = vpop.f32.mrf.mxu0
        %v2273 = vpop.f32.mrf.mxu0
        %v2274 = vadd.f32 %v2177, %v2273
        %v2275 = vpop.f32.mrf.mxu0
        %2276 = vdwg.mxu0
        %v2277 = vadd.f32 %v977, %v2215
        %v2278 = vadd.f32 %v978, %v2218
        %v2279 = vadd.f32 %v979, %v2223
        %v2280 = vadd.f32 %v980, %v2226
        %v2281 = vadd.f32 %v981, %v2231
        %v2282 = vadd.f32 %v982, %v2234
        %v2283 = vadd.f32 %v983, %v2239
        %v2284 = vadd.f32 %v984, %v2242
        %v2285 = vadd.f32 %v985, %v2247
        %v2286 = vadd.f32 %v986, %v2250
        %v2287 = vadd.f32 %v987, %v2255
        %v2288 = vadd.f32 %v988, %v2258
        %v2289 = vadd.f32 %v989, %v2263
        %v2290 = vadd.f32 %v990, %v2266
        %v2291 = vadd.f32 %v991, %v2271
        %v2292 = vadd.f32 %v992, %v2274
        %2293 = vst [vmem:[#allocation2] sm:$0xff] %v2277
        %2294 = vst [vmem:[#allocation2 + $0x8] sm:$0xff] %v2278
        %2295 = vst [vmem:[#allocation2 + $0x10] sm:$0xff] %v2279
        %2296 = vst [vmem:[#allocation2 + $0x18] sm:$0xff] %v2280
        %2297 = vst [vmem:[#allocation2 + $0x20] sm:$0xff] %v2281
        %2298 = vst [vmem:[#allocation2 + $0x28] sm:$0xff] %v2282
        %2299 = vst [vmem:[#allocation2 + $0x30] sm:$0xff] %v2283
        %2300 = vst [vmem:[#allocation2 + $0x38] sm:$0xff] %v2284
        %2301 = vst [vmem:[#allocation2 + $0x40] sm:$0xff] %v2285
        %2302 = vst [vmem:[#allocation2 + $0x48] sm:$0xff] %v2286
        %2303 = vst [vmem:[#allocation2 + $0x50] sm:$0xff] %v2287
        %2304 = vst [vmem:[#allocation2 + $0x58] sm:$0xff] %v2288
        %2305 = vst [vmem:[#allocation2 + $0x60] sm:$0xff] %v2289
        %2306 = vst [vmem:[#allocation2 + $0x68] sm:$0xff] %v2290
        %2307 = vst [vmem:[#allocation2 + $0x70] sm:$0xff] %v2291
        %2308 = vst [vmem:[#allocation2 + $0x78] sm:$0xff] %v2292
        %p2309 = scmp.eq.s32.totalorder %s20, 1
        // Predicated region
        $region105: #{discriminator_forward.6} parent=91 // pred_check
          %p2310 = pneg %p2309
        $region106: #{discriminator_forward.6} parent=91 // pred_check_branch
          %2312 = sbr.rel (%p2310) target = $region108
        $region107: #{discriminator_forward.6} parent=91 // pred_region
          %v2313 = vld [vmem:[#allocation2] sm:$0xff]
          %v2314 = vld [vmem:[#allocation2 + $0x8] sm:$0xff]
          %v2315 = vld [vmem:[#allocation2 + $0x10] sm:$0xff]
          %v2316 = vld [vmem:[#allocation2 + $0x18] sm:$0xff]
          %v2317 = vld [vmem:[#allocation2 + $0x20] sm:$0xff]
          %v2318 = vld [vmem:[#allocation2 + $0x28] sm:$0xff]
          %v2319 = vld [vmem:[#allocation2 + $0x30] sm:$0xff]
          %v2320 = vld [vmem:[#allocation2 + $0x38] sm:$0xff]
          %v2321 = vld [vmem:[#allocation2 + $0x40] sm:$0xff]
          %v2322 = vld [vmem:[#allocation2 + $0x48] sm:$0xff]
          %v2323 = vld [vmem:[#allocation2 + $0x50] sm:$0xff]
          %v2324 = vld [vmem:[#allocation2 + $0x58] sm:$0xff]
          %v2325 = vld [vmem:[#allocation2 + $0x60] sm:$0xff]
          %v2326 = vld [vmem:[#allocation2 + $0x68] sm:$0xff]
          %v2327 = vld [vmem:[#allocation2 + $0x70] sm:$0xff]
          %v2328 = vld [vmem:[#allocation2 + $0x78] sm:$0xff]
          %v2329 = vadd.f32 %v2313, %v2314
          %v2330 = vadd.f32 %v2329, %v2315
          %v2331 = vadd.f32 %v2330, %v2316
          %v2332 = vadd.f32 %v2331, %v2317
          %v2333 = vadd.f32 %v2332, %v2318
          %v2334 = vadd.f32 %v2333, %v2319
          %v2335 = vadd.f32 %v2334, %v2320
          %v2336 = vadd.f32 %v2335, %v2321
          %v2337 = vadd.f32 %v2336, %v2322
          %v2338 = vadd.f32 %v2337, %v2323
          %v2339 = vadd.f32 %v2338, %v2324
          %v2340 = vadd.f32 %v2339, %v2325
          %v2341 = vadd.f32 %v2340, %v2326
          %v2342 = vadd.f32 %v2341, %v2327
          %v2343 = vadd.f32 %v2342, %v2328
          %v2344 = vrot.slane %v2343, 4
          %v2345 = vadd.f32 %v2343, %v2344
          %v2346 = vrot.slane %v2345, 2
          %v2347 = vadd.f32 %v2345, %v2346
          %v2348 = vrot.slane %v2347, 1
          %v2349 = vadd.f32 %v2347, %v2348
          %v2350 = vrcp.pop 128.0
          %v2351 = vmul.f32 %v2349, %v2350
          %v2352 = vsub.f32 %v2313, %v2351
          %v2353 = vsub.f32 %v2314, %v2351
          %v2354 = vsub.f32 %v2315, %v2351
          %v2355 = vsub.f32 %v2316, %v2351
          %v2356 = vsub.f32 %v2317, %v2351
          %v2357 = vsub.f32 %v2318, %v2351
          %v2358 = vsub.f32 %v2319, %v2351
          %v2359 = vsub.f32 %v2320, %v2351
          %v2360 = vsub.f32 %v2321, %v2351
          %v2361 = vsub.f32 %v2322, %v2351
          %v2362 = vsub.f32 %v2323, %v2351
          %v2363 = vsub.f32 %v2324, %v2351
          %v2364 = vsub.f32 %v2325, %v2351
          %v2365 = vsub.f32 %v2326, %v2351
          %v2366 = vsub.f32 %v2327, %v2351
          %v2367 = vsub.f32 %v2328, %v2351
          %v2368 = vmul.f32 %v2352, %v2352
          %v2369 = vmul.f32 %v2353, %v2353
          %v2370 = vmul.f32 %v2354, %v2354
          %v2371 = vmul.f32 %v2355, %v2355
          %v2372 = vmul.f32 %v2356, %v2356
          %v2373 = vmul.f32 %v2357, %v2357
          %v2374 = vmul.f32 %v2358, %v2358
          %v2375 = vmul.f32 %v2359, %v2359
          %v2376 = vmul.f32 %v2360, %v2360
          %v2377 = vmul.f32 %v2361, %v2361
          %v2378 = vmul.f32 %v2362, %v2362
          %v2379 = vmul.f32 %v2363, %v2363
          %v2380 = vmul.f32 %v2364, %v2364
          %v2381 = vmul.f32 %v2365, %v2365
          %v2382 = vmul.f32 %v2366, %v2366
          %v2383 = vmul.f32 %v2367, %v2367
          %v2384 = vadd.f32 %v2368, %v2369
          %v2385 = vadd.f32 %v2384, %v2370
          %v2386 = vadd.f32 %v2385, %v2371
          %v2387 = vadd.f32 %v2386, %v2372
          %v2388 = vadd.f32 %v2387, %v2373
          %v2389 = vadd.f32 %v2388, %v2374
          %v2390 = vadd.f32 %v2389, %v2375
          %v2391 = vadd.f32 %v2390, %v2376
          %v2392 = vadd.f32 %v2391, %v2377
          %v2393 = vadd.f32 %v2392, %v2378
          %v2394 = vadd.f32 %v2393, %v2379
          %v2395 = vadd.f32 %v2394, %v2380
          %v2396 = vadd.f32 %v2395, %v2381
          %v2397 = vadd.f32 %v2396, %v2382
          %v2398 = vadd.f32 %v2397, %v2383
          %v2399 = vrot.slane %v2398, 4
          %v2400 = vadd.f32 %v2398, %v2399
          %v2401 = vrot.slane %v2400, 2
          %v2402 = vadd.f32 %v2400, %v2401
          %v2403 = vrot.slane %v2402, 1
          %v2404 = vadd.f32 %v2402, %v2403
          %v2405 = vmul.f32 %v2404, %v2350
          %v2406 = vld [vmem:[%s952] sm:$0x1]
          %v2407 = vadd.f32 %v2405, 1e-05
          %v2408 = vrsqrt.pop %v2407
          %v2409 = vmul.f32 %v2406, %v2408
          %v2410 = vld [vmem:[%s955] sm:$0x1]
          %v2411 = vmul.f32 %v2351, %v2409
          %v2412 = vsub.f32 %v2410, %v2411
          %v2414 = vlaneseq
          %v2415 = vshrl.u32 %v2414, 7
          %v2416 = vsub.s32 0, %v2415
          %v2417 = vrot.slane %v2409, %v2416
          %v2419 = vmul.f32 %v2313, %v2417
          %v2420 = vmul.f32 %v2314, %v2417
          %v2421 = vmul.f32 %v2315, %v2417
          %v2422 = vmul.f32 %v2316, %v2417
          %v2423 = vmul.f32 %v2317, %v2417
          %v2424 = vmul.f32 %v2318, %v2417
          %v2425 = vmul.f32 %v2319, %v2417
          %v2426 = vmul.f32 %v2320, %v2417
          %v2427 = vmul.f32 %v2321, %v2417
          %v2428 = vmul.f32 %v2322, %v2417
          %v2429 = vmul.f32 %v2323, %v2417
          %v2430 = vmul.f32 %v2324, %v2417
          %v2431 = vmul.f32 %v2325, %v2417
          %v2432 = vmul.f32 %v2326, %v2417
          %v2433 = vmul.f32 %v2327, %v2417
          %v2434 = vmul.f32 %v2328, %v2417
          %v2436 = vlaneseq
          %v2437 = vshrl.u32 %v2436, 7
          %v2438 = vsub.s32 0, %v2437
          %v2439 = vrot.slane %v2412, %v2438
          %v2441 = vadd.f32 %v2419, %v2439
          %v2442 = vadd.f32 %v2420, %v2439
          %v2443 = vadd.f32 %v2421, %v2439
          %v2444 = vadd.f32 %v2422, %v2439
          %v2445 = vadd.f32 %v2423, %v2439
          %v2446 = vadd.f32 %v2424, %v2439
          %v2447 = vadd.f32 %v2425, %v2439
          %v2448 = vadd.f32 %v2426, %v2439
          %v2449 = vadd.f32 %v2427, %v2439
          %v2450 = vadd.f32 %v2428, %v2439
          %v2451 = vadd.f32 %v2429, %v2439
          %v2452 = vadd.f32 %v2430, %v2439
          %v2453 = vadd.f32 %v2431, %v2439
          %v2454 = vadd.f32 %v2432, %v2439
          %v2455 = vadd.f32 %v2433, %v2439
          %v2456 = vadd.f32 %v2434, %v2439
          %vm2457 = vcmp.gt.f32.partialorder %v2441, 0.0
          %vm2458 = vcmp.gt.f32.partialorder %v2442, 0.0
          %vm2459 = vcmp.gt.f32.partialorder %v2443, 0.0
          %vm2460 = vcmp.gt.f32.partialorder %v2444, 0.0
          %vm2461 = vcmp.gt.f32.partialorder %v2445, 0.0
          %vm2462 = vcmp.gt.f32.partialorder %v2446, 0.0
          %vm2463 = vcmp.gt.f32.partialorder %v2447, 0.0
          %vm2464 = vcmp.gt.f32.partialorder %v2448, 0.0
          %vm2465 = vcmp.gt.f32.partialorder %v2449, 0.0
          %vm2466 = vcmp.gt.f32.partialorder %v2450, 0.0
          %vm2467 = vcmp.gt.f32.partialorder %v2451, 0.0
          %vm2468 = vcmp.gt.f32.partialorder %v2452, 0.0
          %vm2469 = vcmp.gt.f32.partialorder %v2453, 0.0
          %vm2470 = vcmp.gt.f32.partialorder %v2454, 0.0
          %vm2471 = vcmp.gt.f32.partialorder %v2455, 0.0
          %vm2472 = vcmp.gt.f32.partialorder %v2456, 0.0
          %v2473 = vmul.f32 %v2441, 0.2
          %v2474 = vmul.f32 %v2442, 0.2
          %v2475 = vmul.f32 %v2443, 0.2
          %v2476 = vmul.f32 %v2444, 0.2
          %v2477 = vmul.f32 %v2445, 0.2
          %v2478 = vmul.f32 %v2446, 0.2
          %v2479 = vmul.f32 %v2447, 0.2
          %v2480 = vmul.f32 %v2448, 0.2
          %v2481 = vmul.f32 %v2449, 0.2
          %v2482 = vmul.f32 %v2450, 0.2
          %v2483 = vmul.f32 %v2451, 0.2
          %v2484 = vmul.f32 %v2452, 0.2
          %v2485 = vmul.f32 %v2453, 0.2
          %v2486 = vmul.f32 %v2454, 0.2
          %v2487 = vmul.f32 %v2455, 0.2
          %v2488 = vmul.f32 %v2456, 0.2
          %v2489 = vsel %vm2457, %v2441, %v2473
          %v2490 = vsel %vm2458, %v2442, %v2474
          %v2491 = vsel %vm2459, %v2443, %v2475
          %v2492 = vsel %vm2460, %v2444, %v2476
          %v2493 = vsel %vm2461, %v2445, %v2477
          %v2494 = vsel %vm2462, %v2446, %v2478
          %v2495 = vsel %vm2463, %v2447, %v2479
          %v2496 = vsel %vm2464, %v2448, %v2480
          %v2497 = vsel %vm2465, %v2449, %v2481
          %v2498 = vsel %vm2466, %v2450, %v2482
          %v2499 = vsel %vm2467, %v2451, %v2483
          %v2500 = vsel %vm2468, %v2452, %v2484
          %v2501 = vsel %vm2469, %v2453, %v2485
          %v2502 = vsel %vm2470, %v2454, %v2486
          %v2503 = vsel %vm2471, %v2455, %v2487
          %v2504 = vsel %vm2472, %v2456, %v2488
          %v2505 = vpack.c.bf16 %v2490, %v2489
          %v2506 = vpack.c.bf16 %v2492, %v2491
          %v2507 = vpack.c.bf16 %v2494, %v2493
          %v2508 = vpack.c.bf16 %v2496, %v2495
          %v2509 = vpack.c.bf16 %v2498, %v2497
          %v2510 = vpack.c.bf16 %v2500, %v2499
          %v2511 = vpack.c.bf16 %v2502, %v2501
          %v2512 = vpack.c.bf16 %v2504, %v2503
          %v2521 = vunpack.c.l.b16 %v2505
          %v2522 = vunpack.c.h.b16 %v2505
          %v2523 = vunpack.c.l.b16 %v2506
          %v2524 = vunpack.c.h.b16 %v2506
          %v2525 = vunpack.c.l.b16 %v2507
          %v2526 = vunpack.c.h.b16 %v2507
          %v2527 = vunpack.c.l.b16 %v2508
          %v2528 = vunpack.c.h.b16 %v2508
          %v2529 = vunpack.c.l.b16 %v2509
          %v2530 = vunpack.c.h.b16 %v2509
          %v2531 = vunpack.c.l.b16 %v2510
          %v2532 = vunpack.c.h.b16 %v2510
          %v2533 = vunpack.c.l.b16 %v2511
          %v2534 = vunpack.c.h.b16 %v2511
          %v2535 = vunpack.c.l.b16 %v2512
          %v2536 = vunpack.c.h.b16 %v2512
          %v2537 = vpack.c.b16 %v2521, %v2521
          %v2538 = vpack.c.b16 %v2522, %v2522
          %v2539 = vpack.c.b16 %v2523, %v2523
          %v2540 = vpack.c.b16 %v2524, %v2524
          %v2541 = vpack.c.b16 %v2525, %v2525
          %v2542 = vpack.c.b16 %v2526, %v2526
          %v2543 = vpack.c.b16 %v2527, %v2527
          %v2544 = vpack.c.b16 %v2528, %v2528
          %v2545 = vpack.c.b16 %v2529, %v2529
          %v2546 = vpack.c.b16 %v2530, %v2530
          %v2547 = vpack.c.b16 %v2531, %v2531
          %v2548 = vpack.c.b16 %v2532, %v2532
          %v2549 = vpack.c.b16 %v2533, %v2533
          %v2550 = vpack.c.b16 %v2534, %v2534
          %v2551 = vpack.c.b16 %v2535, %v2535
          %v2552 = vpack.c.b16 %v2536, %v2536
          %2569 = vst [vmem:[%s947] sm:$0xf] %v2537
          %2570 = vst [vmem:[%s947 + $0x4] sm:$0xf] %v2538
          %2571 = vst [vmem:[%s947 + $0x8] sm:$0xf] %v2539
          %2572 = vst [vmem:[%s947 + $0xc] sm:$0xf] %v2540
          %2573 = vst [vmem:[%s947 + $0x10] sm:$0xf] %v2541
          %2574 = vst [vmem:[%s947 + $0x14] sm:$0xf] %v2542
          %2575 = vst [vmem:[%s947 + $0x18] sm:$0xf] %v2543
          %2576 = vst [vmem:[%s947 + $0x1c] sm:$0xf] %v2544
          %2577 = vst [vmem:[%s947 + $0x20] sm:$0xf] %v2545
          %2578 = vst [vmem:[%s947 + $0x24] sm:$0xf] %v2546
          %2579 = vst [vmem:[%s947 + $0x28] sm:$0xf] %v2547
          %2580 = vst [vmem:[%s947 + $0x2c] sm:$0xf] %v2548
          %2581 = vst [vmem:[%s947 + $0x30] sm:$0xf] %v2549
          %2582 = vst [vmem:[%s947 + $0x34] sm:$0xf] %v2550
          %2583 = vst [vmem:[%s947 + $0x38] sm:$0xf] %v2551
          %2584 = vst [vmem:[%s947 + $0x3c] sm:$0xf] %v2552
        $region108: #{discriminator_forward.6} parent=91 // pred_fallthru
          _
        %s2585 = sand.u32 %s141, 1
        %s2586 = sand.u32 %s141, 1
        %s2587 = smul.addr %s2586, 64
        %s2588 = scalar_lea.vmem [#allocation5], %s2587
        // Predicated region
        $region109: #{discriminator_forward.6} parent=91 // pred_check
          %p2589 = pneg %p151
        $region110: #{discriminator_forward.6} parent=91 // pred_check_branch
          %2591 = sbr.rel (%p2589) target = $region112
        $region111: #{discriminator_forward.6} parent=91 // pred_region
          %s2592 = smul.addr %s19, 4
          %s2593 = scalar_lea.vmem %s4, %s2592
          // Predicated region
          $region113: #{discriminator_forward.6} parent=111 // pred_check
            _
          $region114: #{discriminator_forward.6} parent=111 // pred_check_branch
            %2595 = sbr.rel (0) target = $region116
          $region115: #{discriminator_forward.6} parent=111 // pred_region
            // Predicated region
            $region117: #{discriminator_forward.6} parent=115 // pred_check
              _
            $region118: #{discriminator_forward.6} parent=115 // pred_check_branch
              %2597 = sbr.rel target = $region120
            $region119: #{discriminator_forward.6} parent=115 // pred_region
              // Predicated region
              $region132: #{discriminator_forward.6} parent=119 // pred_check
                _
              $region133: #{discriminator_forward.6} parent=119 // pred_check_branch
                %2643 = sbr.rel (0) target = $region135
              $region134: #{discriminator_forward.6} parent=119 // pred_region
                loop: start=0, step=1, limit=1
                $region136: #{discriminator_forward.6} parent=134 // loop_pre_header
                  _
                $region137: #{discriminator_forward.6} parent=134 // loop_header
                  %s2645 = sphi 0, %s2649
                  %p2646 = scmp.ge.s32.totalorder %s2645, 1
                  %s2650 = sphi %s2588, %s2588
                  %s2651 = sphi %s2593, %s2593
                $region138: #{discriminator_forward.6} parent=134 // loop_header_branch
                  %2648 = sbr.rel (%p2646) target = $region142
                $region139: #{discriminator_forward.6} parent=134 // loop_body
                  _
                $region140: #{discriminator_forward.6} parent=134 // loop_footer
                  %s2649 = sadd.s32 1, %s2645
                $region141: #{discriminator_forward.6} parent=134 // loop_footer_branch
                  %2644 = sbr.rel target = $region137
                $region142: #{discriminator_forward.6} parent=134 // loop_exit
                  _
                %s2653 = ssub.s32 16, 1
                loop: start=0, step=1, limit=1
                $region143: #{discriminator_forward.6} parent=134 // loop_pre_header
                  _
                $region144: #{discriminator_forward.6} parent=134 // loop_header
                  %s2655 = sphi 0, %s2659
                  %p2656 = scmp.ge.s32.totalorder %s2655, 1
                  %s2660 = sphi %s2588, %s2588
                  %s2661 = sphi %s2593, %s2593
                $region145: #{discriminator_forward.6} parent=134 // loop_header_branch
                  %2658 = sbr.rel (%p2656) target = $region149
                $region146: #{discriminator_forward.6} parent=134 // loop_body
                  %v2662 = vld [vmem:[%s2660] sm:%s2653]
                  %2663 = vst [vmem:[%s2661] sm:%s2653] %v2662
                  %v2664 = vld [vmem:[%s2660 + $0x4] sm:%s2653]
                  %2665 = vst [vmem:[%s2661 + $0x8] sm:%s2653] %v2664
                  %v2666 = vld [vmem:[%s2660 + $0x8] sm:%s2653]
                  %2667 = vst [vmem:[%s2661 + $0x10] sm:%s2653] %v2666
                  %v2668 = vld [vmem:[%s2660 + $0xc] sm:%s2653]
                  %2669 = vst [vmem:[%s2661 + $0x18] sm:%s2653] %v2668
                  %v2670 = vld [vmem:[%s2660 + $0x10] sm:%s2653]
                  %2671 = vst [vmem:[%s2661 + $0x20] sm:%s2653] %v2670
                  %v2672 = vld [vmem:[%s2660 + $0x14] sm:%s2653]
                  %2673 = vst [vmem:[%s2661 + $0x28] sm:%s2653] %v2672
                  %v2674 = vld [vmem:[%s2660 + $0x18] sm:%s2653]
                  %2675 = vst [vmem:[%s2661 + $0x30] sm:%s2653] %v2674
                  %v2676 = vld [vmem:[%s2660 + $0x1c] sm:%s2653]
                  %2677 = vst [vmem:[%s2661 + $0x38] sm:%s2653] %v2676
                  %v2678 = vld [vmem:[%s2660 + $0x20] sm:%s2653]
                  %2679 = vst [vmem:[%s2661 + $0x40] sm:%s2653] %v2678
                  %v2680 = vld [vmem:[%s2660 + $0x24] sm:%s2653]
                  %2681 = vst [vmem:[%s2661 + $0x48] sm:%s2653] %v2680
                  %v2682 = vld [vmem:[%s2660 + $0x28] sm:%s2653]
                  %2683 = vst [vmem:[%s2661 + $0x50] sm:%s2653] %v2682
                  %v2684 = vld [vmem:[%s2660 + $0x2c] sm:%s2653]
                  %2685 = vst [vmem:[%s2661 + $0x58] sm:%s2653] %v2684
                  %v2686 = vld [vmem:[%s2660 + $0x30] sm:%s2653]
                  %2687 = vst [vmem:[%s2661 + $0x60] sm:%s2653] %v2686
                  %v2688 = vld [vmem:[%s2660 + $0x34] sm:%s2653]
                  %2689 = vst [vmem:[%s2661 + $0x68] sm:%s2653] %v2688
                  %v2690 = vld [vmem:[%s2660 + $0x38] sm:%s2653]
                  %2691 = vst [vmem:[%s2661 + $0x70] sm:%s2653] %v2690
                  %v2692 = vld [vmem:[%s2660 + $0x3c] sm:%s2653]
                  %2693 = vst [vmem:[%s2661 + $0x78] sm:%s2653] %v2692
                $region147: #{discriminator_forward.6} parent=134 // loop_footer
                  %s2659 = sadd.s32 1, %s2655
                $region148: #{discriminator_forward.6} parent=134 // loop_footer_branch
                  %2654 = sbr.rel target = $region144
                $region149: #{discriminator_forward.6} parent=134 // loop_exit
                  _
              $region135: #{discriminator_forward.6} parent=119 // pred_fallthru
                _
            $region120: #{discriminator_forward.6} parent=115 // pred_fallthru
              _
            // Predicated region
            $region121: #{discriminator_forward.6} parent=115 // pred_check
              _
            $region122: #{discriminator_forward.6} parent=115 // pred_check_branch
              %2599 = sbr.rel (0) target = $region124
            $region123: #{discriminator_forward.6} parent=115 // pred_region
              %s2601 = ssub.s32 16, 1
              loop: start=0, step=1, limit=1
              $region125: #{discriminator_forward.6} parent=123 // loop_pre_header
                _
              $region126: #{discriminator_forward.6} parent=123 // loop_header
                %s2603 = sphi 0, %s2607
                %p2604 = scmp.ge.s32.totalorder %s2603, 1
                %s2608 = sphi %s2588, %s2588
                %s2609 = sphi %s2593, %s2593
              $region127: #{discriminator_forward.6} parent=123 // loop_header_branch
                %2606 = sbr.rel (%p2604) target = $region131
              $region128: #{discriminator_forward.6} parent=123 // loop_body
                %v2610 = vld [vmem:[%s2608] sm:%s2601]
                %2611 = vst [vmem:[%s2609] sm:%s2601] %v2610
                %v2612 = vld [vmem:[%s2608 + $0x4] sm:%s2601]
                %2613 = vst [vmem:[%s2609 + $0x8] sm:%s2601] %v2612
                %v2614 = vld [vmem:[%s2608 + $0x8] sm:%s2601]
                %2615 = vst [vmem:[%s2609 + $0x10] sm:%s2601] %v2614
                %v2616 = vld [vmem:[%s2608 + $0xc] sm:%s2601]
                %2617 = vst [vmem:[%s2609 + $0x18] sm:%s2601] %v2616
                %v2618 = vld [vmem:[%s2608 + $0x10] sm:%s2601]
                %2619 = vst [vmem:[%s2609 + $0x20] sm:%s2601] %v2618
                %v2620 = vld [vmem:[%s2608 + $0x14] sm:%s2601]
                %2621 = vst [vmem:[%s2609 + $0x28] sm:%s2601] %v2620
                %v2622 = vld [vmem:[%s2608 + $0x18] sm:%s2601]
                %2623 = vst [vmem:[%s2609 + $0x30] sm:%s2601] %v2622
                %v2624 = vld [vmem:[%s2608 + $0x1c] sm:%s2601]
                %2625 = vst [vmem:[%s2609 + $0x38] sm:%s2601] %v2624
                %v2626 = vld [vmem:[%s2608 + $0x20] sm:%s2601]
                %2627 = vst [vmem:[%s2609 + $0x40] sm:%s2601] %v2626
                %v2628 = vld [vmem:[%s2608 + $0x24] sm:%s2601]
                %2629 = vst [vmem:[%s2609 + $0x48] sm:%s2601] %v2628
                %v2630 = vld [vmem:[%s2608 + $0x28] sm:%s2601]
                %2631 = vst [vmem:[%s2609 + $0x50] sm:%s2601] %v2630
                %v2632 = vld [vmem:[%s2608 + $0x2c] sm:%s2601]
                %2633 = vst [vmem:[%s2609 + $0x58] sm:%s2601] %v2632
                %v2634 = vld [vmem:[%s2608 + $0x30] sm:%s2601]
                %2635 = vst [vmem:[%s2609 + $0x60] sm:%s2601] %v2634
                %v2636 = vld [vmem:[%s2608 + $0x34] sm:%s2601]
                %2637 = vst [vmem:[%s2609 + $0x68] sm:%s2601] %v2636
                %v2638 = vld [vmem:[%s2608 + $0x38] sm:%s2601]
                %2639 = vst [vmem:[%s2609 + $0x70] sm:%s2601] %v2638
                %v2640 = vld [vmem:[%s2608 + $0x3c] sm:%s2601]
                %2641 = vst [vmem:[%s2609 + $0x78] sm:%s2601] %v2640
              $region129: #{discriminator_forward.6} parent=123 // loop_footer
                %s2607 = sadd.s32 1, %s2603
              $region130: #{discriminator_forward.6} parent=123 // loop_footer_branch
                %2602 = sbr.rel target = $region126
              $region131: #{discriminator_forward.6} parent=123 // loop_exit
                _
            $region124: #{discriminator_forward.6} parent=115 // pred_fallthru
              _
          $region116: #{discriminator_forward.6} parent=111 // pred_fallthru
            _
          %2694 = vnop
        $region112: #{discriminator_forward.6} parent=91 // pred_fallthru
          _
      $region92: #{discriminator_forward.6} parent=5 // pred_fallthru
        _
      %p2695 = scmp.le.s32.totalorder 2, %s10
      // Predicated region
      $region150: #{discriminator_forward.6} parent=5 // pred_check
        %p2696 = pneg %p2695
      $region151: #{discriminator_forward.6} parent=5 // pred_check_branch
        %2698 = sbr.rel (%p2696) target = $region153
      $region152: #{discriminator_forward.6} parent=5 // pred_region
        %s2699 = ssub.s32 %s10, 2
        // Predicated region
        $region154: #{discriminator_forward.6} parent=152 // pred_check
          %p2700 = pneg %p157
        $region155: #{discriminator_forward.6} parent=152 // pred_check_branch
          %2702 = sbr.rel (%p2700) target = $region157
        $region156: #{discriminator_forward.6} parent=152 // pred_region
          %s2703 = sand.u32 %s142, 1
          %s2704 = sand.u32 %s142, 1
          %s2705 = smul.addr %s2704, 64
          %s2706 = scalar_lea.vmem [#allocation5], %s2705
        $region157: #{discriminator_forward.6} parent=152 // pred_fallthru
          _
      $region153: #{discriminator_forward.6} parent=5 // pred_fallthru
        _
    $region6: #{discriminator_forward.6} parent=1 // loop_footer
      %s14 = sadd.s32 1, %s10
    $region7: #{discriminator_forward.6} parent=1 // loop_footer_branch
      %9 = sbr.rel target = $region3
    $region8: #{discriminator_forward.6} parent=1 // loop_exit
      _

// kernel: discriminator_forward.7
$region0: #{discriminator_forward.7}
  #allocation0 [shape = 'u32[]', space=smem, size = 0x4, offset = 0x4, fixed_abs, tag = 'smem constant byte address 0x4 - core index']
  #allocation1 [shape = 'u32[144,128]{1,0:T(1,128)}', space=vmem, size = 0x12000, scoped, tag = 'internal scratch']
  #allocation2 [shape = 'f32[32,512]{1,0:T(8,128)}', space=vmem, size = 0x10000, scoped, tag = 'scratch operand']
  %s0 = inlined_call_operand.vmem [shape: bf16[32,4096], index: 0, kind: input, shape index: {}]
  %s1 = inlined_call_operand.vmem [shape: bf16[4096,512], index: 1, kind: input, shape index: {}]
  %s2 = inlined_call_operand.vmem [shape: f32[1,512], index: 2, kind: input, shape index: {}]
  %s3 = inlined_call_operand.vmem [shape: f32[1,512], index: 3, kind: input, shape index: {}]
  %s4 = inlined_call_operand.vmem [shape: f32[32,512], index: 4, kind: input, shape index: {}]
  %s5 = inlined_call_operand.vmem [shape: f32[2,32], index: 5, kind: input, shape index: {}]
  %s6 = inlined_call_operand.vmem [shape: f32[2,1], index: 6, kind: output, shape index: {}]
  %s7 = sld [smem:[#allocation0]]
  $region88: #{discriminator_forward.7} parent=0
    _
  %s9 = ssub.s32 1, %s7
  %s10 = scalar_select 0, %s9, %s7
  $region1: #{discriminator_forward.7} parent=0
    #allocation3 [shape = 'u8[131072]{0}', space=vmem, size = 0x20000, scoped, tag = 'input window, operand 0']
    loop: start=0, step=1, limit=6
    $region2: #{discriminator_forward.7} parent=1 // loop_pre_header
      _
    $region3: #{discriminator_forward.7} parent=1 // loop_header
      %s12 = sphi 0, %s16
      %p13 = scmp.ge.s32.totalorder %s12, 6
      %s22 = sphi 0, %s24
      %s25 = sphi 0, %s22
      %s26 = sphi 0, %s25
      %s42 = sphi 0, %s26
      %s48 = sphi 0, %s50
      %s51 = sphi 0, %s48
      %s52 = sphi 0, %s51
      %s68 = sphi 0, %s52
      %s72 = sphi 0, %s72
      %s74 = sphi 0, %s72
      %s75 = sphi 0, %s74
      %s89 = sphi 0, %s75
      %s93 = sphi 0, %s93
      %s95 = sphi 0, %s93
      %s96 = sphi 0, %s95
      %s110 = sphi 0, %s96
      %s114 = sphi 0, %s114
      %s116 = sphi 0, %s114
      %s117 = sphi 0, %s116
      %s131 = sphi 0, %s117
      %s135 = sphi 0, %s135
      %s137 = sphi 0, %s135
      %s138 = sphi 0, %s137
      %s152 = sphi 0, %s138
      %s156 = sphi 0, %s156
      %s158 = sphi 0, %s156
      %s159 = sphi 0, %s158
      %s173 = sphi 0, %s159
    $region4: #{discriminator_forward.7} parent=1 // loop_header_branch
      %15 = sbr.rel (%p13) target = $region8
    $region5: #{discriminator_forward.7} parent=1 // loop_body
      %s17 = ssub.s32 %s12, 1
      %s18 = ssub.s32 %s12, 2
      %s19 = sadd.s32 %s12, 1
      %s20 = ssub.s32 %s12, %s19
      %p21 = scmp.eq.s32.totalorder %s20, 0
      %s23 = sadd.s32 %s22, 1
      %s24 = scalar_select %p21, %s22, %s23
      %p27 = pneg %p21
      %p28 = scmp.eq.s32.totalorder %s12, 3
      %p29 = por %p27, %p28
      %p30 = scmp.ne.s32.totalorder %s22, %s25
      %p31 = scmp.eq.s32.totalorder %s12, 0
      %p32 = por %p30, %p31
      %p33 = scmp.ne.s32.totalorder %s22, %s25
      %p34 = scmp.eq.s32.totalorder %s17, 3
      %p35 = por %p33, %p34
      %p36 = scmp.ne.s32.totalorder %s25, %s26
      %p37 = scmp.eq.s32.totalorder %s17, 0
      %p38 = por %p36, %p37
      %p39 = scmp.ne.s32.totalorder %s25, %s26
      %p40 = scmp.eq.s32.totalorder %s18, 3
      %p41 = por %p39, %p40
      %p43 = scmp.ne.s32.totalorder %s26, %s42
      %p44 = scmp.eq.s32.totalorder %s18, 0
      %p45 = por %p43, %p44
      %s46 = ssub.s32 %s12, %s19
      %p47 = scmp.eq.s32.totalorder %s46, 0
      %s49 = sadd.s32 %s48, 1
      %s50 = scalar_select %p47, %s48, %s49
      %p53 = pneg %p47
      %p54 = scmp.eq.s32.totalorder %s12, 3
      %p55 = por %p53, %p54
      %p56 = scmp.ne.s32.totalorder %s48, %s51
      %p57 = scmp.eq.s32.totalorder %s12, 0
      %p58 = por %p56, %p57
      %p59 = scmp.ne.s32.totalorder %s48, %s51
      %p60 = scmp.eq.s32.totalorder %s17, 3
      %p61 = por %p59, %p60
      %p62 = scmp.ne.s32.totalorder %s51, %s52
      %p63 = scmp.eq.s32.totalorder %s17, 0
      %p64 = por %p62, %p63
      %p65 = scmp.ne.s32.totalorder %s51, %s52
      %p66 = scmp.eq.s32.totalorder %s18, 3
      %p67 = por %p65, %p66
      %p69 = scmp.ne.s32.totalorder %s52, %s68
      %p70 = scmp.eq.s32.totalorder %s18, 0
      %p71 = por %p69, %p70
      %s73 = sadd.s32 %s72, 1
      %p76 = scmp.eq.s32.totalorder %s12, 3
      %p77 = scmp.ne.s32.totalorder %s72, %s74
      %p78 = scmp.eq.s32.totalorder %s12, 0
      %p79 = por %p77, %p78
      %p80 = scmp.ne.s32.totalorder %s72, %s74
      %p81 = scmp.eq.s32.totalorder %s17, 3
      %p82 = por %p80, %p81
      %p83 = scmp.ne.s32.totalorder %s74, %s75
      %p84 = scmp.eq.s32.totalorder %s17, 0
      %p85 = por %p83, %p84
      %p86 = scmp.ne.s32.totalorder %s74, %s75
      %p87 = scmp.eq.s32.totalorder %s18, 3
      %p88 = por %p86, %p87
      %p90 = scmp.ne.s32.totalorder %s75, %s89
      %p91 = scmp.eq.s32.totalorder %s18, 0
      %p92 = por %p90, %p91
      %s94 = sadd.s32 %s93, 1
      %p97 = scmp.eq.s32.totalorder %s12, 3
      %p98 = scmp.ne.s32.totalorder %s93, %s95
      %p99 = scmp.eq.s32.totalorder %s12, 0
      %p100 = por %p98, %p99
      %p101 = scmp.ne.s32.totalorder %s93, %s95
      %p102 = scmp.eq.s32.totalorder %s17, 3
      %p103 = por %p101, %p102
      %p104 = scmp.ne.s32.totalorder %s95, %s96
      %p105 = scmp.eq.s32.totalorder %s17, 0
      %p106 = por %p104, %p105
      %p107 = scmp.ne.s32.totalorder %s95, %s96
      %p108 = scmp.eq.s32.totalorder %s18, 3
      %p109 = por %p107, %p108
      %p111 = scmp.ne.s32.totalorder %s96, %s110
      %p112 = scmp.eq.s32.totalorder %s18, 0
      %p113 = por %p111, %p112
      %s115 = sadd.s32 %s114, 1
      %p118 = scmp.eq.s32.totalorder %s12, 3
      %p119 = scmp.ne.s32.totalorder %s114, %s116
      %p120 = scmp.eq.s32.totalorder %s12, 0
      %p121 = por %p119, %p120
      %p122 = scmp.ne.s32.totalorder %s114, %s116
      %p123 = scmp.eq.s32.totalorder %s17, 3
      %p124 = por %p122, %p123
      %p125 = scmp.ne.s32.totalorder %s116, %s117
      %p126 = scmp.eq.s32.totalorder %s17, 0
      %p127 = por %p125, %p126
      %p128 = scmp.ne.s32.totalorder %s116, %s117
      %p129 = scmp.eq.s32.totalorder %s18, 3
      %p130 = por %p128, %p129
      %p132 = scmp.ne.s32.totalorder %s117, %s131
      %p133 = scmp.eq.s32.totalorder %s18, 0
      %p134 = por %p132, %p133
      %s136 = sadd.s32 %s135, 1
      %p139 = scmp.eq.s32.totalorder %s12, 3
      %p140 = scmp.ne.s32.totalorder %s135, %s137
      %p141 = scmp.eq.s32.totalorder %s12, 0
      %p142 = por %p140, %p141
      %p143 = scmp.ne.s32.totalorder %s135, %s137
      %p144 = scmp.eq.s32.totalorder %s17, 3
      %p145 = por %p143, %p144
      %p146 = scmp.ne.s32.totalorder %s137, %s138
      %p147 = scmp.eq.s32.totalorder %s17, 0
      %p148 = por %p146, %p147
      %p149 = scmp.ne.s32.totalorder %s137, %s138
      %p150 = scmp.eq.s32.totalorder %s18, 3
      %p151 = por %p149, %p150
      %p153 = scmp.ne.s32.totalorder %s138, %s152
      %p154 = scmp.eq.s32.totalorder %s18, 0
      %p155 = por %p153, %p154
      %s157 = sadd.s32 %s156, 1
      %p160 = scmp.eq.s32.totalorder %s12, 3
      %p161 = scmp.ne.s32.totalorder %s156, %s158
      %p162 = scmp.eq.s32.totalorder %s12, 0
      %p163 = por %p161, %p162
      %p164 = scmp.ne.s32.totalorder %s156, %s158
      %p165 = scmp.eq.s32.totalorder %s17, 3
      %p166 = por %p164, %p165
      %p167 = scmp.ne.s32.totalorder %s158, %s159
      %p168 = scmp.eq.s32.totalorder %s17, 0
      %p169 = por %p167, %p168
      %p170 = scmp.ne.s32.totalorder %s158, %s159
      %p171 = scmp.eq.s32.totalorder %s18, 3
      %p172 = por %p170, %p171
      %p174 = scmp.ne.s32.totalorder %s159, %s173
      %p175 = scmp.eq.s32.totalorder %s18, 0
      %p176 = por %p174, %p175
      %p177 = scmp.le.s32.totalorder 1, %s12
      %p178 = scmp.lt.s32.totalorder %s12, 5
      %p179 = pnand %p177, %p178
      %p180 = pneg %p179
      // Predicated region
      $region9: #{discriminator_forward.7} parent=5 // pred_check
        _
      $region10: #{discriminator_forward.7} parent=5 // pred_check_branch
        %182 = sbr.rel (%p179) target = $region12
      $region11: #{discriminator_forward.7} parent=5 // pred_region
        %s183 = ssub.s32 %s12, 1
        // Predicated region
        $region13: #{discriminator_forward.7} parent=11 // pred_check
          %p184 = pneg %p85
        $region14: #{discriminator_forward.7} parent=11 // pred_check_branch
          %186 = sbr.rel (%p184) target = $region16
        $region15: #{discriminator_forward.7} parent=11 // pred_region
          _
        $region16: #{discriminator_forward.7} parent=11 // pred_fallthru
          _
        // Predicated region
        $region17: #{discriminator_forward.7} parent=11 // pred_check
          %p187 = pneg %p106
        $region18: #{discriminator_forward.7} parent=11 // pred_check_branch
          %189 = sbr.rel (%p187) target = $region20
        $region19: #{discriminator_forward.7} parent=11 // pred_region
          _
        $region20: #{discriminator_forward.7} parent=11 // pred_fallthru
          _
        // Predicated region
        $region21: #{discriminator_forward.7} parent=11 // pred_check
          %p190 = pneg %p127
        $region22: #{discriminator_forward.7} parent=11 // pred_check_branch
          %192 = sbr.rel (%p190) target = $region24
        $region23: #{discriminator_forward.7} parent=11 // pred_region
          _
        $region24: #{discriminator_forward.7} parent=11 // pred_fallthru
          _
        // Predicated region
        $region25: #{discriminator_forward.7} parent=11 // pred_check
          %p193 = pneg %p148
        $region26: #{discriminator_forward.7} parent=11 // pred_check_branch
          %195 = sbr.rel (%p193) target = $region28
        $region27: #{discriminator_forward.7} parent=11 // pred_region
          _
        $region28: #{discriminator_forward.7} parent=11 // pred_fallthru
          _
      $region12: #{discriminator_forward.7} parent=5 // pred_fallthru
        _
      %p196 = scmp.lt.s32.totalorder %s12, 4
      // Predicated region
      $region29: #{discriminator_forward.7} parent=5 // pred_check
        %p197 = pneg %p196
      $region30: #{discriminator_forward.7} parent=5 // pred_check_branch
        %199 = sbr.rel (%p197) target = $region32
      $region31: #{discriminator_forward.7} parent=5 // pred_region
        // Predicated region
        $region33: #{discriminator_forward.7} parent=31 // pred_check
          %p200 = pneg %p32
        $region34: #{discriminator_forward.7} parent=31 // pred_check_branch
          %202 = sbr.rel (%p200) target = $region36
        $region35: #{discriminator_forward.7} parent=31 // pred_region
          %s203 = sand.u32 %s22, 1
          %s204 = sand.u32 %s22, 1
          %s205 = smul.addr %s204, 128
          %s206 = scalar_lea.vmem [#allocation3], %s205
          %s207 = smul.u32 8, %s12
          %s208 = smul.addr %s207, 4
          %s209 = scalar_lea.vmem %s0, %s208
          // Predicated region
          $region37: #{discriminator_forward.7} parent=35 // pred_check
            _
          $region38: #{discriminator_forward.7} parent=35 // pred_check_branch
            %211 = sbr.rel (0) target = $region40
          $region39: #{discriminator_forward.7} parent=35 // pred_region
            // Predicated region
            $region41: #{discriminator_forward.7} parent=39 // pred_check
              _
            $region42: #{discriminator_forward.7} parent=39 // pred_check_branch
              %213 = sbr.rel (0) target = $region44
            $region43: #{discriminator_forward.7} parent=39 // pred_region
              loop: start=0, step=1, limit=1
              $region45: #{discriminator_forward.7} parent=43 // loop_pre_header
                _
              $region46: #{discriminator_forward.7} parent=43 // loop_header
                %s215 = sphi 0, %s219
                %p216 = scmp.ge.s32.totalorder %s215, 1
                %s220 = sphi %s209, %s209
                %s221 = sphi %s206, %s206
              $region47: #{discriminator_forward.7} parent=43 // loop_header_branch
                %218 = sbr.rel (%p216) target = $region51
              $region48: #{discriminator_forward.7} parent=43 // loop_body
                %v222 = vld [vmem:[%s220] sm:$0xff]
                %223 = vst [vmem:[%s221] sm:$0xff] %v222
                %v224 = vld [vmem:[%s220 + $0x8] sm:$0xff]
                %225 = vst [vmem:[%s221 + $0x8] sm:$0xff] %v224
                %v226 = vld [vmem:[%s220 + $0x10] sm:$0xff]
                %227 = vst [vmem:[%s221 + $0x10] sm:$0xff] %v226
                %v228 = vld [vmem:[%s220 + $0x18] sm:$0xff]
                %229 = vst [vmem:[%s221 + $0x18] sm:$0xff] %v228
                %v230 = vld [vmem:[%s220 + $0x80] sm:$0xff]
                %231 = vst [vmem:[%s221 + $0x20] sm:$0xff] %v230
                %v232 = vld [vmem:[%s220 + $0x88] sm:$0xff]
                %233 = vst [vmem:[%s221 + $0x28] sm:$0xff] %v232
                %v234 = vld [vmem:[%s220 + $0x90] sm:$0xff]
                %235 = vst [vmem:[%s221 + $0x30] sm:$0xff] %v234
                %v236 = vld [vmem:[%s220 + $0x98] sm:$0xff]
                %237 = vst [vmem:[%s221 + $0x38] sm:$0xff] %v236
                %v238 = vld [vmem:[%s220 + $0x100] sm:$0xff]
                %239 = vst [vmem:[%s221 + $0x40] sm:$0xff] %v238
                %v240 = vld [vmem:[%s220 + $0x108] sm:$0xff]
                %241 = vst [vmem:[%s221 + $0x48] sm:$0xff] %v240
                %v242 = vld [vmem:[%s220 + $0x110] sm:$0xff]
                %243 = vst [vmem:[%s221 + $0x50] sm:$0xff] %v242
                %v244 = vld [vmem:[%s220 + $0x118] sm:$0xff]
                %245 = vst [vmem:[%s221 + $0x58] sm:$0xff] %v244
                %v246 = vld [vmem:[%s220 + $0x180] sm:$0xff]
                %247 = vst [vmem:[%s221 + $0x60] sm:$0xff] %v246
                %v248 = vld [vmem:[%s220 + $0x188] sm:$0xff]
                %249 = vst [vmem:[%s221 + $0x68] sm:$0xff] %v248
                %v250 = vld [vmem:[%s220 + $0x190] sm:$0xff]
                %251 = vst [vmem:[%s221 + $0x70] sm:$0xff] %v250
                %v252 = vld [vmem:[%s220 + $0x198] sm:$0xff]
                %253 = vst [vmem:[%s221 + $0x78] sm:$0xff] %v252
              $region49: #{discriminator_forward.7} parent=43 // loop_footer
                %s219 = sadd.s32 1, %s215
              $region50: #{discriminator_forward.7} parent=43 // loop_footer_branch
                %214 = sbr.rel target = $region46
              $region51: #{discriminator_forward.7} parent=43 // loop_exit
                _
            $region44: #{discriminator_forward.7} parent=39 // pred_fallthru
              _
            // Predicated region
            $region52: #{discriminator_forward.7} parent=39 // pred_check
              _
            $region53: #{discriminator_forward.7} parent=39 // pred_check_branch
              %255 = sbr.rel target = $region55
            $region54: #{discriminator_forward.7} parent=39 // pred_region
              _
            $region55: #{discriminator_forward.7} parent=39 // pred_fallthru
              _
          $region40: #{discriminator_forward.7} parent=35 // pred_fallthru
            _
          %256 = vnop
        $region36: #{discriminator_forward.7} parent=31 // pred_fallthru
          _
        // Predicated region
        $region56: #{discriminator_forward.7} parent=31 // pred_check
          %p257 = pneg %p58
        $region57: #{discriminator_forward.7} parent=31 // pred_check_branch
          %259 = sbr.rel (%p257) target = $region59
        $region58: #{discriminator_forward.7} parent=31 // pred_region
          %s260 = smul.u32 128, %s12
          %p261 = scmp.lt.s32.totalorder %s260, 511
          %s262 = scalar_select %p261, %s260, 511
          %s263 = smul.addr %s262, 4
          %s264 = smul.addr %s263, 4
          %s265 = scalar_lea.vmem %s1, %s264
          %s266 = smul.u32 128, %s12
        $region59: #{discriminator_forward.7} parent=31 // pred_fallthru
          _
      $region32: #{discriminator_forward.7} parent=5 // pred_fallthru
        _
      %p267 = scmp.le.s32.totalorder 1, %s12
      %p268 = scmp.lt.s32.totalorder %s12, 5
      %p269 = pnand %p267, %p268
      %p270 = pneg %p269
      // Predicated region
      $region60: #{discriminator_forward.7} parent=5 // pred_check
        _
      $region61: #{discriminator_forward.7} parent=5 // pred_check_branch
        %272 = sbr.rel (%p269) target = $region63
      $region62: #{discriminator_forward.7} parent=5 // pred_region
        %s273 = ssub.s32 %s12, 1
        %s274 = sand.u32 %s25, 1
        %s275 = sand.u32 %s25, 1
        %s276 = smul.addr %s275, 128
        %s277 = scalar_lea.vmem [#allocation3], %s276
        // Predicated region
        $region64: #{discriminator_forward.7} parent=62 // pred_check
          %p278 = pneg %p38
        $region65: #{discriminator_forward.7} parent=62 // pred_check_branch
          %280 = sbr.rel (%p278) target = $region67
        $region66: #{discriminator_forward.7} parent=62 // pred_region
          _
        $region67: #{discriminator_forward.7} parent=62 // pred_fallthru
          _
        %s281 = sand.u32 %s25, 1
        %s282 = sand.u32 %s25, 1
        %s283 = smul.addr %s282, 128
        %s284 = scalar_lea.vmem [#allocation3], %s283
        %p285 = pneg %p38
        %p286 = pneg %p35
        %s287 = smul.u32 128, %s17
        %p288 = scmp.lt.s32.totalorder %s287, 511
        %s289 = scalar_select %p288, %s287, 511
        %s290 = smul.addr %s289, 4
        %s291 = smul.addr %s290, 4
        %s292 = scalar_lea.vmem %s1, %s291
        %p293 = pneg %p64
        %p294 = pneg %p61
        %p295 = pneg %p85
        %p296 = pneg %p82
        %p297 = pneg %p106
        %p298 = pneg %p103
        %p299 = pneg %p127
        %p300 = pneg %p124
        %p301 = pneg %p148
        %p302 = pneg %p145
        %p303 = pneg %p169
        %p304 = pneg %p166
        %s305 = smul.u32 8, %s17
        %s306 = smul.u32 128, %s17
        %p307 = scmp.lt.s32.totalorder %s306, 511
        %s308 = scalar_select %p307, %s306, 511
        %s309 = smul.addr %s308, 4
        %s310 = smul.addr %s309, 4
        %s311 = scalar_lea.vmem %s1, %s310
        %s312 = smul.u32 128, %s17
        %p313 = scmp.eq.s32.totalorder %s17, 0
        // Predicated region
        $region68: #{discriminator_forward.7} parent=62 // pred_check
          %p314 = pneg %p313
        $region69: #{discriminator_forward.7} parent=62 // pred_check_branch
          %316 = sbr.rel (%p314) target = $region71
        $region70: #{discriminator_forward.7} parent=62 // pred_region
          %317 = vst [vmem:[#allocation2] sm:$0xff] 0.0
          %318 = vst [vmem:[#allocation2 + $0x8] sm:$0xff] 0.0
          %319 = vst [vmem:[#allocation2 + $0x10] sm:$0xff] 0.0
          %320 = vst [vmem:[#allocation2 + $0x18] sm:$0xff] 0.0
          %321 = vst [vmem:[#allocation2 + $0x20] sm:$0xff] 0.0
          %322 = vst [vmem:[#allocation2 + $0x28] sm:$0xff] 0.0
          %323 = vst [vmem:[#allocation2 + $0x30] sm:$0xff] 0.0
          %324 = vst [vmem:[#allocation2 + $0x38] sm:$0xff] 0.0
          %325 = vst [vmem:[#allocation2 + $0x40] sm:$0xff] 0.0
          %326 = vst [vmem:[#allocation2 + $0x48] sm:$0xff] 0.0
          %327 = vst [vmem:[#allocation2 + $0x50] sm:$0xff] 0.0
          %328 = vst [vmem:[#allocation2 + $0x58] sm:$0xff] 0.0
          %329 = vst [vmem:[#allocation2 + $0x60] sm:$0xff] 0.0
          %330 = vst [vmem:[#allocation2 + $0x68] sm:$0xff] 0.0
          %331 = vst [vmem:[#allocation2 + $0x70] sm:$0xff] 0.0
          %332 = vst [vmem:[#allocation2 + $0x78] sm:$0xff] 0.0
        $region71: #{discriminator_forward.7} parent=62 // pred_fallthru
          _
        %v333 = vld [vmem:[#allocation2] sm:$0xff]
        %v334 = vld [vmem:[#allocation2 + $0x8] sm:$0xff]
        %v335 = vld [vmem:[#allocation2 + $0x10] sm:$0xff]
        %v336 = vld [vmem:[#allocation2 + $0x18] sm:$0xff]
        %v337 = vld [vmem:[#allocation2 + $0x20] sm:$0xff]
        %v338 = vld [vmem:[#allocation2 + $0x28] sm:$0xff]
        %v339 = vld [vmem:[#allocation2 + $0x30] sm:$0xff]
        %v340 = vld [vmem:[#allocation2 + $0x38] sm:$0xff]
        %v341 = vld [vmem:[#allocation2 + $0x40] sm:$0xff]
        %v342 = vld [vmem:[#allocation2 + $0x48] sm:$0xff]
        %v343 = vld [vmem:[#allocation2 + $0x50] sm:$0xff]
        %v344 = vld [vmem:[#allocation2 + $0x58] sm:$0xff]
        %v345 = vld [vmem:[#allocation2 + $0x60] sm:$0xff]
        %v346 = vld [vmem:[#allocation2 + $0x68] sm:$0xff]
        %v347 = vld [vmem:[#allocation2 + $0x70] sm:$0xff]
        %v348 = vld [vmem:[#allocation2 + $0x78] sm:$0xff]
        %v349 = vld [vmem:[%s277] sm:$0xff]
        %v350 = vld [vmem:[%s277 + $0x8] sm:$0xff]
        %v351 = vld [vmem:[%s277 + $0x10] sm:$0xff]
        %v352 = vld [vmem:[%s277 + $0x18] sm:$0xff]
        %v353 = vld [vmem:[%s277 + $0x20] sm:$0xff]
        %v354 = vld [vmem:[%s277 + $0x28] sm:$0xff]
        %v355 = vld [vmem:[%s277 + $0x30] sm:$0xff]
        %v356 = vld [vmem:[%s277 + $0x38] sm:$0xff]
        %v357 = vld [vmem:[%s277 + $0x40] sm:$0xff]
        %v358 = vld [vmem:[%s277 + $0x48] sm:$0xff]
        %v359 = vld [vmem:[%s277 + $0x50] sm:$0xff]
        %v360 = vld [vmem:[%s277 + $0x58] sm:$0xff]
        %v361 = vld [vmem:[%s277 + $0x60] sm:$0xff]
        %v362 = vld [vmem:[%s277 + $0x68] sm:$0xff]
        %v363 = vld [vmem:[%s277 + $0x70] sm:$0xff]
        %v364 = vld [vmem:[%s277 + $0x78] sm:$0xff]
        %v365 = vld [vmem:[%s311] sm:$0xff]
        %v366 = vld [vmem:[%s311 + $0x8] sm:$0xff]
        %v367 = vld [vmem:[%s311 + $0x10] sm:$0xff]
        %v368 = vld [vmem:[%s311 + $0x18] sm:$0xff]
        %v369 = vld [vmem:[%s311 + $0x20] sm:$0xff]
        %v370 = vld [vmem:[%s311 + $0x28] sm:$0xff]
        %v371 = vld [vmem:[%s311 + $0x30] sm:$0xff]
        %v372 = vld [vmem:[%s311 + $0x38] sm:$0xff]
        %v373 = vld [vmem:[%s311 + $0x40] sm:$0xff]
        %v374 = vld [vmem:[%s311 + $0x48] sm:$0xff]
        %v375 = vld [vmem:[%s311 + $0x50] sm:$0xff]
        %v376 = vld [vmem:[%s311 + $0x58] sm:$0xff]
        %v377 = vld [vmem:[%s311 + $0x60] sm:$0xff]
        %v378 = vld [vmem:[%s311 + $0x68] sm:$0xff]
        %v379 = vld [vmem:[%s311 + $0x70] sm:$0xff]
        %v380 = vld [vmem:[%s311 + $0x78] sm:$0xff]
        %v381 = vld [vmem:[%s311 + $0x80] sm:$0xff]
        %v382 = vld [vmem:[%s311 + $0x88] sm:$0xff]
        %v383 = vld [vmem:[%s311 + $0x90] sm:$0xff]
        %v384 = vld [vmem:[%s311 + $0x98] sm:$0xff]
        %v385 = vld [vmem:[%s311 + $0xa0] sm:$0xff]
        %v386 = vld [vmem:[%s311 + $0xa8] sm:$0xff]
        %v387 = vld [vmem:[%s311 + $0xb0] sm:$0xff]
        %v388 = vld [vmem:[%s311 + $0xb8] sm:$0xff]
        %v389 = vld [vmem:[%s311 + $0xc0] sm:$0xff]
        %v390 = vld [vmem:[%s311 + $0xc8] sm:$0xff]
        %v391 = vld [vmem:[%s311 + $0xd0] sm:$0xff]
        %v392 = vld [vmem:[%s311 + $0xd8] sm:$0xff]
        %v393 = vld [vmem:[%s311 + $0xe0] sm:$0xff]
        %v394 = vld [vmem:[%s311 + $0xe8] sm:$0xff]
        %v395 = vld [vmem:[%s311 + $0xf0] sm:$0xff]
        %v396 = vld [vmem:[%s311 + $0xf8] sm:$0xff]
        %v397 = vld [vmem:[%s311 + $0x100] sm:$0xff]
        %v398 = vld [vmem:[%s311 + $0x108] sm:$0xff]
        %v399 = vld [vmem:[%s311 + $0x110] sm:$0xff]
        %v400 = vld [vmem:[%s311 + $0x118] sm:$0xff]
        %v401 = vld [vmem:[%s311 + $0x120] sm:$0xff]
        %v402 = vld [vmem:[%s311 + $0x128] sm:$0xff]
        %v403 = vld [vmem:[%s311 + $0x130] sm:$0xff]
        %v404 = vld [vmem:[%s311 + $0x138] sm:$0xff]
        %v405 = vld [vmem:[%s311 + $0x140] sm:$0xff]
        %v406 = vld [vmem:[%s311 + $0x148] sm:$0xff]
        %v407 = vld [vmem:[%s311 + $0x150] sm:$0xff]
        %v408 = vld [vmem:[%s311 + $0x158] sm:$0xff]
        %v409 = vld [vmem:[%s311 + $0x160] sm:$0xff]
        %v410 = vld [vmem:[%s311 + $0x168] sm:$0xff]
        %v411 = vld [vmem:[%s311 + $0x170] sm:$0xff]
        %v412 = vld [vmem:[%s311 + $0x178] sm:$0xff]
        %v413 = vld [vmem:[%s311 + $0x180] sm:$0xff]
        %v414 = vld [vmem:[%s311 + $0x188] sm:$0xff]
        %v415 = vld [vmem:[%s311 + $0x190] sm:$0xff]
        %v416 = vld [vmem:[%s311 + $0x198] sm:$0xff]
        %v417 = vld [vmem:[%s311 + $0x1a0] sm:$0xff]
        %v418 = vld [vmem:[%s311 + $0x1a8] sm:$0xff]
        %v419 = vld [vmem:[%s311 + $0x1b0] sm:$0xff]
        %v420 = vld [vmem:[%s311 + $0x1b8] sm:$0xff]
        %v421 = vld [vmem:[%s311 + $0x1c0] sm:$0xff]
        %v422 = vld [vmem:[%s311 + $0x1c8] sm:$0xff]
        %v423 = vld [vmem:[%s311 + $0x1d0] sm:$0xff]
        %v424 = vld [vmem:[%s311 + $0x1d8] sm:$0xff]
        %v425 = vld [vmem:[%s311 + $0x1e0] sm:$0xff]
        %v426 = vld [vmem:[%s311 + $0x1e8] sm:$0xff]
        %v427 = vld [vmem:[%s311 + $0x1f0] sm:$0xff]
        %v428 = vld [vmem:[%s311 + $0x1f8] sm:$0xff]
        %v429 = vld [vmem:[%s311 + $0x200] sm:$0xff]
        %v430 = vld [vmem:[%s311 + $0x208] sm:$0xff]
        %v431 = vld [vmem:[%s311 + $0x210] sm:$0xff]
        %v432 = vld [vmem:[%s311 + $0x218] sm:$0xff]
        %v433 = vld [vmem:[%s311 + $0x220] sm:$0xff]
        %v434 = vld [vmem:[%s311 + $0x228] sm:$0xff]
        %v435 = vld [vmem:[%s311 + $0x230] sm:$0xff]
        %v436 = vld [vmem:[%s311 + $0x238] sm:$0xff]
        %v437 = vld [vmem:[%s311 + $0x240] sm:$0xff]
        %v438 = vld [vmem:[%s311 + $0x248] sm:$0xff]
        %v439 = vld [vmem:[%s311 + $0x250] sm:$0xff]
        %v440 = vld [vmem:[%s311 + $0x258] sm:$0xff]
        %v441 = vld [vmem:[%s311 + $0x260] sm:$0xff]
        %v442 = vld [vmem:[%s311 + $0x268] sm:$0xff]
        %v443 = vld [vmem:[%s311 + $0x270] sm:$0xff]
        %v444 = vld [vmem:[%s311 + $0x278] sm:$0xff]
        %v445 = vld [vmem:[%s311 + $0x280] sm:$0xff]
        %v446 = vld [vmem:[%s311 + $0x288] sm:$0xff]
        %v447 = vld [vmem:[%s311 + $0x290] sm:$0xff]
        %v448 = vld [vmem:[%s311 + $0x298] sm:$0xff]
        %v449 = vld [vmem:[%s311 + $0x2a0] sm:$0xff]
        %v450 = vld [vmem:[%s311 + $0x2a8] sm:$0xff]
        %v451 = vld [vmem:[%s311 + $0x2b0] sm:$0xff]
        %v452 = vld [vmem:[%s311 + $0x2b8] sm:$0xff]
        %v453 = vld [vmem:[%s311 + $0x2c0] sm:$0xff]
        %v454 = vld [vmem:[%s311 + $0x2c8] sm:$0xff]
        %v455 = vld [vmem:[%s311 + $0x2d0] sm:$0xff]
        %v456 = vld [vmem:[%s311 + $0x2d8] sm:$0xff]
        %v457 = vld [vmem:[%s311 + $0x2e0] sm:$0xff]
        %v458 = vld [vmem:[%s311 + $0x2e8] sm:$0xff]
        %v459 = vld [vmem:[%s311 + $0x2f0] sm:$0xff]
        %v460 = vld [vmem:[%s311 + $0x2f8] sm:$0xff]
        %v461 = vld [vmem:[%s311 + $0x300] sm:$0xff]
        %v462 = vld [vmem:[%s311 + $0x308] sm:$0xff]
        %v463 = vld [vmem:[%s311 + $0x310] sm:$0xff]
        %v464 = vld [vmem:[%s311 + $0x318] sm:$0xff]
        %v465 = vld [vmem:[%s311 + $0x320] sm:$0xff]
        %v466 = vld [vmem:[%s311 + $0x328] sm:$0xff]
        %v467 = vld [vmem:[%s311 + $0x330] sm:$0xff]
        %v468 = vld [vmem:[%s311 + $0x338] sm:$0xff]
        %v469 = vld [vmem:[%s311 + $0x340] sm:$0xff]
        %v470 = vld [vmem:[%s311 + $0x348] sm:$0xff]
        %v471 = vld [vmem:[%s311 + $0x350] sm:$0xff]
        %v472 = vld [vmem:[%s311 + $0x358] sm:$0xff]
        %v473 = vld [vmem:[%s311 + $0x360] sm:$0xff]
        %v474 = vld [vmem:[%s311 + $0x368] sm:$0xff]
        %v475 = vld [vmem:[%s311 + $0x370] sm:$0xff]
        %v476 = vld [vmem:[%s311 + $0x378] sm:$0xff]
        %v477 = vld [vmem:[%s311 + $0x380] sm:$0xff]
        %v478 = vld [vmem:[%s311 + $0x388] sm:$0xff]
        %v479 = vld [vmem:[%s311 + $0x390] sm:$0xff]
        %v480 = vld [vmem:[%s311 + $0x398] sm:$0xff]
        %v481 = vld [vmem:[%s311 + $0x3a0] sm:$0xff]
        %v482 = vld [vmem:[%s311 + $0x3a8] sm:$0xff]
        %v483 = vld [vmem:[%s311 + $0x3b0] sm:$0xff]
        %v484 = vld [vmem:[%s311 + $0x3b8] sm:$0xff]
        %v485 = vld [vmem:[%s311 + $0x3c0] sm:$0xff]
        %v486 = vld [vmem:[%s311 + $0x3c8] sm:$0xff]
        %v487 = vld [vmem:[%s311 + $0x3d0] sm:$0xff]
        %v488 = vld [vmem:[%s311 + $0x3d8] sm:$0xff]
        %v489 = vld [vmem:[%s311 + $0x3e0] sm:$0xff]
        %v490 = vld [vmem:[%s311 + $0x3e8] sm:$0xff]
        %v491 = vld [vmem:[%s311 + $0x3f0] sm:$0xff]
        %v492 = vld [vmem:[%s311 + $0x3f8] sm:$0xff]
        %v493 = vld [vmem:[%s311 + $0x400] sm:$0xff]
        %v494 = vld [vmem:[%s311 + $0x408] sm:$0xff]
        %v495 = vld [vmem:[%s311 + $0x410] sm:$0xff]
        %v496 = vld [vmem:[%s311 + $0x418] sm:$0xff]
        %v497 = vld [vmem:[%s311 + $0x420] sm:$0xff]
        %v498 = vld [vmem:[%s311 + $0x428] sm:$0xff]
        %v499 = vld [vmem:[%s311 + $0x430] sm:$0xff]
        %v500 = vld [vmem:[%s311 + $0x438] sm:$0xff]
        %v501 = vld [vmem:[%s311 + $0x440] sm:$0xff]
        %v502 = vld [vmem:[%s311 + $0x448] sm:$0xff]
        %v503 = vld [vmem:[%s311 + $0x450] sm:$0xff]
        %v504 = vld [vmem:[%s311 + $0x458] sm:$0xff]
        %v505 = vld [vmem:[%s311 + $0x460] sm:$0xff]
        %v506 = vld [vmem:[%s311 + $0x468] sm:$0xff]
        %v507 = vld [vmem:[%s311 + $0x470] sm:$0xff]
        %v508 = vld [vmem:[%s311 + $0x478] sm:$0xff]
        %v509 = vld [vmem:[%s311 + $0x480] sm:$0xff]
        %v510 = vld [vmem:[%s311 + $0x488] sm:$0xff]
        %v511 = vld [vmem:[%s311 + $0x490] sm:$0xff]
        %v512 = vld [vmem:[%s311 + $0x498] sm:$0xff]
        %v513 = vld [vmem:[%s311 + $0x4a0] sm:$0xff]
        %v514 = vld [vmem:[%s311 + $0x4a8] sm:$0xff]
        %v515 = vld [vmem:[%s311 + $0x4b0] sm:$0xff]
        %v516 = vld [vmem:[%s311 + $0x4b8] sm:$0xff]
        %v517 = vld [vmem:[%s311 + $0x4c0] sm:$0xff]
        %v518 = vld [vmem:[%s311 + $0x4c8] sm:$0xff]
        %v519 = vld [vmem:[%s311 + $0x4d0] sm:$0xff]
        %v520 = vld [vmem:[%s311 + $0x4d8] sm:$0xff]
        %v521 = vld [vmem:[%s311 + $0x4e0] sm:$0xff]
        %v522 = vld [vmem:[%s311 + $0x4e8] sm:$0xff]
        %v523 = vld [vmem:[%s311 + $0x4f0] sm:$0xff]
        %v524 = vld [vmem:[%s311 + $0x4f8] sm:$0xff]
        %v525 = vld [vmem:[%s311 + $0x500] sm:$0xff]
        %v526 = vld [vmem:[%s311 + $0x508] sm:$0xff]
        %v527 = vld [vmem:[%s311 + $0x510] sm:$0xff]
        %v528 = vld [vmem:[%s311 + $0x518] sm:$0xff]
        %v529 = vld [vmem:[%s311 + $0x520] sm:$0xff]
        %v530 = vld [vmem:[%s311 + $0x528] sm:$0xff]
        %v531 = vld [vmem:[%s311 + $0x530] sm:$0xff]
        %v532 = vld [vmem:[%s311 + $0x538] sm:$0xff]
        %v533 = vld [vmem:[%s311 + $0x540] sm:$0xff]
        %v534 = vld [vmem:[%s311 + $0x548] sm:$0xff]
        %v535 = vld [vmem:[%s311 + $0x550] sm:$0xff]
        %v536 = vld [vmem:[%s311 + $0x558] sm:$0xff]
        %v537 = vld [vmem:[%s311 + $0x560] sm:$0xff]
        %v538 = vld [vmem:[%s311 + $0x568] sm:$0xff]
        %v539 = vld [vmem:[%s311 + $0x570] sm:$0xff]
        %v540 = vld [vmem:[%s311 + $0x578] sm:$0xff]
        %v541 = vld [vmem:[%s311 + $0x580] sm:$0xff]
        %v542 = vld [vmem:[%s311 + $0x588] sm:$0xff]
        %v543 = vld [vmem:[%s311 + $0x590] sm:$0xff]
        %v544 = vld [vmem:[%s311 + $0x598] sm:$0xff]
        %v545 = vld [vmem:[%s311 + $0x5a0] sm:$0xff]
        %v546 = vld [vmem:[%s311 + $0x5a8] sm:$0xff]
        %v547 = vld [vmem:[%s311 + $0x5b0] sm:$0xff]
        %v548 = vld [vmem:[%s311 + $0x5b8] sm:$0xff]
        %v549 = vld [vmem:[%s311 + $0x5c0] sm:$0xff]
        %v550 = vld [vmem:[%s311 + $0x5c8] sm:$0xff]
        %v551 = vld [vmem:[%s311 + $0x5d0] sm:$0xff]
        %v552 = vld [vmem:[%s311 + $0x5d8] sm:$0xff]
        %v553 = vld [vmem:[%s311 + $0x5e0] sm:$0xff]
        %v554 = vld [vmem:[%s311 + $0x5e8] sm:$0xff]
        %v555 = vld [vmem:[%s311 + $0x5f0] sm:$0xff]
        %v556 = vld [vmem:[%s311 + $0x5f8] sm:$0xff]
        %v557 = vld [vmem:[%s311 + $0x600] sm:$0xff]
        %v558 = vld [vmem:[%s311 + $0x608] sm:$0xff]
        %v559 = vld [vmem:[%s311 + $0x610] sm:$0xff]
        %v560 = vld [vmem:[%s311 + $0x618] sm:$0xff]
        %v561 = vld [vmem:[%s311 + $0x620] sm:$0xff]
        %v562 = vld [vmem:[%s311 + $0x628] sm:$0xff]
        %v563 = vld [vmem:[%s311 + $0x630] sm:$0xff]
        %v564 = vld [vmem:[%s311 + $0x638] sm:$0xff]
        %v565 = vld [vmem:[%s311 + $0x640] sm:$0xff]
        %v566 = vld [vmem:[%s311 + $0x648] sm:$0xff]
        %v567 = vld [vmem:[%s311 + $0x650] sm:$0xff]
        %v568 = vld [vmem:[%s311 + $0x658] sm:$0xff]
        %v569 = vld [vmem:[%s311 + $0x660] sm:$0xff]
        %v570 = vld [vmem:[%s311 + $0x668] sm:$0xff]
        %v571 = vld [vmem:[%s311 + $0x670] sm:$0xff]
        %v572 = vld [vmem:[%s311 + $0x678] sm:$0xff]
        %v573 = vld [vmem:[%s311 + $0x680] sm:$0xff]
        %v574 = vld [vmem:[%s311 + $0x688] sm:$0xff]
        %v575 = vld [vmem:[%s311 + $0x690] sm:$0xff]
        %v576 = vld [vmem:[%s311 + $0x698] sm:$0xff]
        %v577 = vld [vmem:[%s311 + $0x6a0] sm:$0xff]
        %v578 = vld [vmem:[%s311 + $0x6a8] sm:$0xff]
        %v579 = vld [vmem:[%s311 + $0x6b0] sm:$0xff]
        %v580 = vld [vmem:[%s311 + $0x6b8] sm:$0xff]
        %v581 = vld [vmem:[%s311 + $0x6c0] sm:$0xff]
        %v582 = vld [vmem:[%s311 + $0x6c8] sm:$0xff]
        %v583 = vld [vmem:[%s311 + $0x6d0] sm:$0xff]
        %v584 = vld [vmem:[%s311 + $0x6d8] sm:$0xff]
        %v585 = vld [vmem:[%s311 + $0x6e0] sm:$0xff]
        %v586 = vld [vmem:[%s311 + $0x6e8] sm:$0xff]
        %v587 = vld [vmem:[%s311 + $0x6f0] sm:$0xff]
        %v588 = vld [vmem:[%s311 + $0x6f8] sm:$0xff]
        %v589 = vld [vmem:[%s311 + $0x700] sm:$0xff]
        %v590 = vld [vmem:[%s311 + $0x708] sm:$0xff]
        %v591 = vld [vmem:[%s311 + $0x710] sm:$0xff]
        %v592 = vld [vmem:[%s311 + $0x718] sm:$0xff]
        %v593 = vld [vmem:[%s311 + $0x720] sm:$0xff]
        %v594 = vld [vmem:[%s311 + $0x728] sm:$0xff]
        %v595 = vld [vmem:[%s311 + $0x730] sm:$0xff]
        %v596 = vld [vmem:[%s311 + $0x738] sm:$0xff]
        %v597 = vld [vmem:[%s311 + $0x740] sm:$0xff]
        %v598 = vld [vmem:[%s311 + $0x748] sm:$0xff]
        %v599 = vld [vmem:[%s311 + $0x750] sm:$0xff]
        %v600 = vld [vmem:[%s311 + $0x758] sm:$0xff]
        %v601 = vld [vmem:[%s311 + $0x760] sm:$0xff]
        %v602 = vld [vmem:[%s311 + $0x768] sm:$0xff]
        %v603 = vld [vmem:[%s311 + $0x770] sm:$0xff]
        %v604 = vld [vmem:[%s311 + $0x778] sm:$0xff]
        %v605 = vld [vmem:[%s311 + $0x780] sm:$0xff]
        %v606 = vld [vmem:[%s311 + $0x788] sm:$0xff]
        %v607 = vld [vmem:[%s311 + $0x790] sm:$0xff]
        %v608 = vld [vmem:[%s311 + $0x798] sm:$0xff]
        %v609 = vld [vmem:[%s311 + $0x7a0] sm:$0xff]
        %v610 = vld [vmem:[%s311 + $0x7a8] sm:$0xff]
        %v611 = vld [vmem:[%s311 + $0x7b0] sm:$0xff]
        %v612 = vld [vmem:[%s311 + $0x7b8] sm:$0xff]
        %v613 = vld [vmem:[%s311 + $0x7c0] sm:$0xff]
        %v614 = vld [vmem:[%s311 + $0x7c8] sm:$0xff]
        %v615 = vld [vmem:[%s311 + $0x7d0] sm:$0xff]
        %v616 = vld [vmem:[%s311 + $0x7d8] sm:$0xff]
        %v617 = vld [vmem:[%s311 + $0x7e0] sm:$0xff]
        %v618 = vld [vmem:[%s311 + $0x7e8] sm:$0xff]
        %v619 = vld [vmem:[%s311 + $0x7f0] sm:$0xff]
        %v620 = vld [vmem:[%s311 + $0x7f8] sm:$0xff]
        %v637 = vunpack.c.l.b16 %v349
        %v638 = vunpack.c.h.b16 %v349
        %v639 = vunpack.c.l.b16 %v350
        %v640 = vunpack.c.h.b16 %v350
        %v641 = vunpack.c.l.b16 %v351
        %v642 = vunpack.c.h.b16 %v351
        %v643 = vunpack.c.l.b16 %v352
        %v644 = vunpack.c.h.b16 %v352
        %v645 = vunpack.c.l.b16 %v353
        %v646 = vunpack.c.h.b16 %v353
        %v647 = vunpack.c.l.b16 %v354
        %v648 = vunpack.c.h.b16 %v354
        %v649 = vunpack.c.l.b16 %v355
        %v650 = vunpack.c.h.b16 %v355
        %v651 = vunpack.c.l.b16 %v356
        %v652 = vunpack.c.h.b16 %v356
        %v653 = vunpack.c.l.b16 %v357
        %v654 = vunpack.c.h.b16 %v357
        %v655 = vunpack.c.l.b16 %v358
        %v656 = vunpack.c.h.b16 %v358
        %v657 = vunpack.c.l.b16 %v359
        %v658 = vunpack.c.h.b16 %v359
        %v659 = vunpack.c.l.b16 %v360
        %v660 = vunpack.c.h.b16 %v360
        %v661 = vunpack.c.l.b16 %v361
        %v662 = vunpack.c.h.b16 %v361
        %v663 = vunpack.c.l.b16 %v362
        %v664 = vunpack.c.h.b16 %v362
        %v665 = vunpack.c.l.b16 %v363
        %v666 = vunpack.c.h.b16 %v363
        %v667 = vunpack.c.l.b16 %v364
        %v668 = vunpack.c.h.b16 %v364
        %v669 = vpack.c.b16 %v645, %v637
        %v670 = vpack.c.b16 %v646, %v638
        %v671 = vpack.c.b16 %v647, %v639
        %v672 = vpack.c.b16 %v648, %v640
        %v673 = vpack.c.b16 %v649, %v641
        %v674 = vpack.c.b16 %v650, %v642
        %v675 = vpack.c.b16 %v651, %v643
        %v676 = vpack.c.b16 %v652, %v644
        %v677 = vpack.c.b16 %v661, %v653
        %v678 = vpack.c.b16 %v662, %v654
        %v679 = vpack.c.b16 %v663, %v655
        %v680 = vpack.c.b16 %v664, %v656
        %v681 = vpack.c.b16 %v665, %v657
        %v682 = vpack.c.b16 %v666, %v658
        %v683 = vpack.c.b16 %v667, %v659
        %v684 = vpack.c.b16 %v668, %v660
        %v957 = vunpack.c.l.b16 %v365
        %v958 = vunpack.c.h.b16 %v365
        %v959 = vunpack.c.l.b16 %v366
        %v960 = vunpack.c.h.b16 %v366
        %v961 = vunpack.c.l.b16 %v367
        %v962 = vunpack.c.h.b16 %v367
        %v963 = vunpack.c.l.b16 %v368
        %v964 = vunpack.c.h.b16 %v368
        %v965 = vunpack.c.l.b16 %v369
        %v966 = vunpack.c.h.b16 %v369
        %v967 = vunpack.c.l.b16 %v370
        %v968 = vunpack.c.h.b16 %v370
        %v969 = vunpack.c.l.b16 %v371
        %v970 = vunpack.c.h.b16 %v371
        %v971 = vunpack.c.l.b16 %v372
        %v972 = vunpack.c.h.b16 %v372
        %v973 = vunpack.c.l.b16 %v373
        %v974 = vunpack.c.h.b16 %v373
        %v975 = vunpack.c.l.b16 %v374
        %v976 = vunpack.c.h.b16 %v374
        %v977 = vunpack.c.l.b16 %v375
        %v978 = vunpack.c.h.b16 %v375
        %v979 = vunpack.c.l.b16 %v376
        %v980 = vunpack.c.h.b16 %v376
        %v981 = vunpack.c.l.b16 %v377
        %v982 = vunpack.c.h.b16 %v377
        %v983 = vunpack.c.l.b16 %v378
        %v984 = vunpack.c.h.b16 %v378
        %v985 = vunpack.c.l.b16 %v379
        %v986 = vunpack.c.h.b16 %v379
        %v987 = vunpack.c.l.b16 %v380
        %v988 = vunpack.c.h.b16 %v380
        %v989 = vunpack.c.l.b16 %v381
        %v990 = vunpack.c.h.b16 %v381
        %v991 = vunpack.c.l.b16 %v382
        %v992 = vunpack.c.h.b16 %v382
        %v993 = vunpack.c.l.b16 %v383
        %v994 = vunpack.c.h.b16 %v383
        %v995 = vunpack.c.l.b16 %v384
        %v996 = vunpack.c.h.b16 %v384
        %v997 = vunpack.c.l.b16 %v385
        %v998 = vunpack.c.h.b16 %v385
        %v999 = vunpack.c.l.b16 %v386
        %v1000 = vunpack.c.h.b16 %v386
        %v1001 = vunpack.c.l.b16 %v387
        %v1002 = vunpack.c.h.b16 %v387
        %v1003 = vunpack.c.l.b16 %v388
        %v1004 = vunpack.c.h.b16 %v388
        %v1005 = vunpack.c.l.b16 %v389
        %v1006 = vunpack.c.h.b16 %v389
        %v1007 = vunpack.c.l.b16 %v390
        %v1008 = vunpack.c.h.b16 %v390
        %v1009 = vunpack.c.l.b16 %v391
        %v1010 = vunpack.c.h.b16 %v391
        %v1011 = vunpack.c.l.b16 %v392
        %v1012 = vunpack.c.h.b16 %v392
        %v1013 = vunpack.c.l.b16 %v393
        %v1014 = vunpack.c.h.b16 %v393
        %v1015 = vunpack.c.l.b16 %v394
        %v1016 = vunpack.c.h.b16 %v394
        %v1017 = vunpack.c.l.b16 %v395
        %v1018 = vunpack.c.h.b16 %v395
        %v1019 = vunpack.c.l.b16 %v396
        %v1020 = vunpack.c.h.b16 %v396
        %v1021 = vunpack.c.l.b16 %v397
        %v1022 = vunpack.c.h.b16 %v397
        %v1023 = vunpack.c.l.b16 %v398
        %v1024 = vunpack.c.h.b16 %v398
        %v1025 = vunpack.c.l.b16 %v399
        %v1026 = vunpack.c.h.b16 %v399
        %v1027 = vunpack.c.l.b16 %v400
        %v1028 = vunpack.c.h.b16 %v400
        %v1029 = vunpack.c.l.b16 %v401
        %v1030 = vunpack.c.h.b16 %v401
        %v1031 = vunpack.c.l.b16 %v402
        %v1032 = vunpack.c.h.b16 %v402
        %v1033 = vunpack.c.l.b16 %v403
        %v1034 = vunpack.c.h.b16 %v403
        %v1035 = vunpack.c.l.b16 %v404
        %v1036 = vunpack.c.h.b16 %v404
        %v1037 = vunpack.c.l.b16 %v405
        %v1038 = vunpack.c.h.b16 %v405
        %v1039 = vunpack.c.l.b16 %v406
        %v1040 = vunpack.c.h.b16 %v406
        %v1041 = vunpack.c.l.b16 %v407
        %v1042 = vunpack.c.h.b16 %v407
        %v1043 = vunpack.c.l.b16 %v408
        %v1044 = vunpack.c.h.b16 %v408
        %v1045 = vunpack.c.l.b16 %v409
        %v1046 = vunpack.c.h.b16 %v409
        %v1047 = vunpack.c.l.b16 %v410
        %v1048 = vunpack.c.h.b16 %v410
        %v1049 = vunpack.c.l.b16 %v411
        %v1050 = vunpack.c.h.b16 %v411
        %v1051 = vunpack.c.l.b16 %v412
        %v1052 = vunpack.c.h.b16 %v412
        %v1053 = vunpack.c.l.b16 %v413
        %v1054 = vunpack.c.h.b16 %v413
        %v1055 = vunpack.c.l.b16 %v414
        %v1056 = vunpack.c.h.b16 %v414
        %v1057 = vunpack.c.l.b16 %v415
        %v1058 = vunpack.c.h.b16 %v415
        %v1059 = vunpack.c.l.b16 %v416
        %v1060 = vunpack.c.h.b16 %v416
        %v1061 = vunpack.c.l.b16 %v417
        %v1062 = vunpack.c.h.b16 %v417
        %v1063 = vunpack.c.l.b16 %v418
        %v1064 = vunpack.c.h.b16 %v418
        %v1065 = vunpack.c.l.b16 %v419
        %v1066 = vunpack.c.h.b16 %v419
        %v1067 = vunpack.c.l.b16 %v420
        %v1068 = vunpack.c.h.b16 %v420
        %v1069 = vunpack.c.l.b16 %v421
        %v1070 = vunpack.c.h.b16 %v421
        %v1071 = vunpack.c.l.b16 %v422
        %v1072 = vunpack.c.h.b16 %v422
        %v1073 = vunpack.c.l.b16 %v423
        %v1074 = vunpack.c.h.b16 %v423
        %v1075 = vunpack.c.l.b16 %v424
        %v1076 = vunpack.c.h.b16 %v424
        %v1077 = vunpack.c.l.b16 %v425
        %v1078 = vunpack.c.h.b16 %v425
        %v1079 = vunpack.c.l.b16 %v426
        %v1080 = vunpack.c.h.b16 %v426
        %v1081 = vunpack.c.l.b16 %v427
        %v1082 = vunpack.c.h.b16 %v427
        %v1083 = vunpack.c.l.b16 %v428
        %v1084 = vunpack.c.h.b16 %v428
        %v1085 = vunpack.c.l.b16 %v429
        %v1086 = vunpack.c.h.b16 %v429
        %v1087 = vunpack.c.l.b16 %v430
        %v1088 = vunpack.c.h.b16 %v430
        %v1089 = vunpack.c.l.b16 %v431
        %v1090 = vunpack.c.h.b16 %v431
        %v1091 = vunpack.c.l.b16 %v432
        %v1092 = vunpack.c.h.b16 %v432
        %v1093 = vunpack.c.l.b16 %v433
        %v1094 = vunpack.c.h.b16 %v433
        %v1095 = vunpack.c.l.b16 %v434
        %v1096 = vunpack.c.h.b16 %v434
        %v1097 = vunpack.c.l.b16 %v435
        %v1098 = vunpack.c.h.b16 %v435
        %v1099 = vunpack.c.l.b16 %v436
        %v1100 = vunpack.c.h.b16 %v436
        %v1101 = vunpack.c.l.b16 %v437
        %v1102 = vunpack.c.h.b16 %v437
        %v1103 = vunpack.c.l.b16 %v438
        %v1104 = vunpack.c.h.b16 %v438
        %v1105 = vunpack.c.l.b16 %v439
        %v1106 = vunpack.c.h.b16 %v439
        %v1107 = vunpack.c.l.b16 %v440
        %v1108 = vunpack.c.h.b16 %v440
        %v1109 = vunpack.c.l.b16 %v441
        %v1110 = vunpack.c.h.b16 %v441
        %v1111 = vunpack.c.l.b16 %v442
        %v1112 = vunpack.c.h.b16 %v442
        %v1113 = vunpack.c.l.b16 %v443
        %v1114 = vunpack.c.h.b16 %v443
        %v1115 = vunpack.c.l.b16 %v444
        %v1116 = vunpack.c.h.b16 %v444
        %v1117 = vunpack.c.l.b16 %v445
        %v1118 = vunpack.c.h.b16 %v445
        %v1119 = vunpack.c.l.b16 %v446
        %v1120 = vunpack.c.h.b16 %v446
        %v1121 = vunpack.c.l.b16 %v447
        %v1122 = vunpack.c.h.b16 %v447
        %v1123 = vunpack.c.l.b16 %v448
        %v1124 = vunpack.c.h.b16 %v448
        %v1125 = vunpack.c.l.b16 %v449
        %v1126 = vunpack.c.h.b16 %v449
        %v1127 = vunpack.c.l.b16 %v450
        %v1128 = vunpack.c.h.b16 %v450
        %v1129 = vunpack.c.l.b16 %v451
        %v1130 = vunpack.c.h.b16 %v451
        %v1131 = vunpack.c.l.b16 %v452
        %v1132 = vunpack.c.h.b16 %v452
        %v1133 = vunpack.c.l.b16 %v453
        %v1134 = vunpack.c.h.b16 %v453
        %v1135 = vunpack.c.l.b16 %v454
        %v1136 = vunpack.c.h.b16 %v454
        %v1137 = vunpack.c.l.b16 %v455
        %v1138 = vunpack.c.h.b16 %v455
        %v1139 = vunpack.c.l.b16 %v456
        %v1140 = vunpack.c.h.b16 %v456
        %v1141 = vunpack.c.l.b16 %v457
        %v1142 = vunpack.c.h.b16 %v457
        %v1143 = vunpack.c.l.b16 %v458
        %v1144 = vunpack.c.h.b16 %v458
        %v1145 = vunpack.c.l.b16 %v459
        %v1146 = vunpack.c.h.b16 %v459
        %v1147 = vunpack.c.l.b16 %v460
        %v1148 = vunpack.c.h.b16 %v460
        %v1149 = vunpack.c.l.b16 %v461
        %v1150 = vunpack.c.h.b16 %v461
        %v1151 = vunpack.c.l.b16 %v462
        %v1152 = vunpack.c.h.b16 %v462
        %v1153 = vunpack.c.l.b16 %v463
        %v1154 = vunpack.c.h.b16 %v463
        %v1155 = vunpack.c.l.b16 %v464
        %v1156 = vunpack.c.h.b16 %v464
        %v1157 = vunpack.c.l.b16 %v465
        %v1158 = vunpack.c.h.b16 %v465
        %v1159 = vunpack.c.l.b16 %v466
        %v1160 = vunpack.c.h.b16 %v466
        %v1161 = vunpack.c.l.b16 %v467
        %v1162 = vunpack.c.h.b16 %v467
        %v1163 = vunpack.c.l.b16 %v468
        %v1164 = vunpack.c.h.b16 %v468
        %v1165 = vunpack.c.l.b16 %v469
        %v1166 = vunpack.c.h.b16 %v469
        %v1167 = vunpack.c.l.b16 %v470
        %v1168 = vunpack.c.h.b16 %v470
        %v1169 = vunpack.c.l.b16 %v471
        %v1170 = vunpack.c.h.b16 %v471
        %v1171 = vunpack.c.l.b16 %v472
        %v1172 = vunpack.c.h.b16 %v472
        %v1173 = vunpack.c.l.b16 %v473
        %v1174 = vunpack.c.h.b16 %v473
        %v1175 = vunpack.c.l.b16 %v474
        %v1176 = vunpack.c.h.b16 %v474
        %v1177 = vunpack.c.l.b16 %v475
        %v1178 = vunpack.c.h.b16 %v475
        %v1179 = vunpack.c.l.b16 %v476
        %v1180 = vunpack.c.h.b16 %v476
        %v1181 = vunpack.c.l.b16 %v477
        %v1182 = vunpack.c.h.b16 %v477
        %v1183 = vunpack.c.l.b16 %v478
        %v1184 = vunpack.c.h.b16 %v478
        %v1185 = vunpack.c.l.b16 %v479
        %v1186 = vunpack.c.h.b16 %v479
        %v1187 = vunpack.c.l.b16 %v480
        %v1188 = vunpack.c.h.b16 %v480
        %v1189 = vunpack.c.l.b16 %v481
        %v1190 = vunpack.c.h.b16 %v481
        %v1191 = vunpack.c.l.b16 %v482
        %v1192 = vunpack.c.h.b16 %v482
        %v1193 = vunpack.c.l.b16 %v483
        %v1194 = vunpack.c.h.b16 %v483
        %v1195 = vunpack.c.l.b16 %v484
        %v1196 = vunpack.c.h.b16 %v484
        %v1197 = vunpack.c.l.b16 %v485
        %v1198 = vunpack.c.h.b16 %v485
        %v1199 = vunpack.c.l.b16 %v486
        %v1200 = vunpack.c.h.b16 %v486
        %v1201 = vunpack.c.l.b16 %v487
        %v1202 = vunpack.c.h.b16 %v487
        %v1203 = vunpack.c.l.b16 %v488
        %v1204 = vunpack.c.h.b16 %v488
        %v1205 = vunpack.c.l.b16 %v489
        %v1206 = vunpack.c.h.b16 %v489
        %v1207 = vunpack.c.l.b16 %v490
        %v1208 = vunpack.c.h.b16 %v490
        %v1209 = vunpack.c.l.b16 %v491
        %v1210 = vunpack.c.h.b16 %v491
        %v1211 = vunpack.c.l.b16 %v492
        %v1212 = vunpack.c.h.b16 %v492
        %v1213 = vunpack.c.l.b16 %v493
        %v1214 = vunpack.c.h.b16 %v493
        %v1215 = vunpack.c.l.b16 %v494
        %v1216 = vunpack.c.h.b16 %v494
        %v1217 = vunpack.c.l.b16 %v495
        %v1218 = vunpack.c.h.b16 %v495
        %v1219 = vunpack.c.l.b16 %v496
        %v1220 = vunpack.c.h.b16 %v496
        %v1221 = vunpack.c.l.b16 %v497
        %v1222 = vunpack.c.h.b16 %v497
        %v1223 = vunpack.c.l.b16 %v498
        %v1224 = vunpack.c.h.b16 %v498
        %v1225 = vunpack.c.l.b16 %v499
        %v1226 = vunpack.c.h.b16 %v499
        %v1227 = vunpack.c.l.b16 %v500
        %v1228 = vunpack.c.h.b16 %v500
        %v1229 = vunpack.c.l.b16 %v501
        %v1230 = vunpack.c.h.b16 %v501
        %v1231 = vunpack.c.l.b16 %v502
        %v1232 = vunpack.c.h.b16 %v502
        %v1233 = vunpack.c.l.b16 %v503
        %v1234 = vunpack.c.h.b16 %v503
        %v1235 = vunpack.c.l.b16 %v504
        %v1236 = vunpack.c.h.b16 %v504
        %v1237 = vunpack.c.l.b16 %v505
        %v1238 = vunpack.c.h.b16 %v505
        %v1239 = vunpack.c.l.b16 %v506
        %v1240 = vunpack.c.h.b16 %v506
        %v1241 = vunpack.c.l.b16 %v507
        %v1242 = vunpack.c.h.b16 %v507
        %v1243 = vunpack.c.l.b16 %v508
        %v1244 = vunpack.c.h.b16 %v508
        %v1245 = vunpack.c.l.b16 %v509
        %v1246 = vunpack.c.h.b16 %v509
        %v1247 = vunpack.c.l.b16 %v510
        %v1248 = vunpack.c.h.b16 %v510
        %v1249 = vunpack.c.l.b16 %v511
        %v1250 = vunpack.c.h.b16 %v511
        %v1251 = vunpack.c.l.b16 %v512
        %v1252 = vunpack.c.h.b16 %v512
        %v1253 = vunpack.c.l.b16 %v513
        %v1254 = vunpack.c.h.b16 %v513
        %v1255 = vunpack.c.l.b16 %v514
        %v1256 = vunpack.c.h.b16 %v514
        %v1257 = vunpack.c.l.b16 %v515
        %v1258 = vunpack.c.h.b16 %v515
        %v1259 = vunpack.c.l.b16 %v516
        %v1260 = vunpack.c.h.b16 %v516
        %v1261 = vunpack.c.l.b16 %v517
        %v1262 = vunpack.c.h.b16 %v517
        %v1263 = vunpack.c.l.b16 %v518
        %v1264 = vunpack.c.h.b16 %v518
        %v1265 = vunpack.c.l.b16 %v519
        %v1266 = vunpack.c.h.b16 %v519
        %v1267 = vunpack.c.l.b16 %v520
        %v1268 = vunpack.c.h.b16 %v520
        %v1269 = vunpack.c.l.b16 %v521
        %v1270 = vunpack.c.h.b16 %v521
        %v1271 = vunpack.c.l.b16 %v522
        %v1272 = vunpack.c.h.b16 %v522
        %v1273 = vunpack.c.l.b16 %v523
        %v1274 = vunpack.c.h.b16 %v523
        %v1275 = vunpack.c.l.b16 %v524
        %v1276 = vunpack.c.h.b16 %v524
        %v1277 = vunpack.c.l.b16 %v525
        %v1278 = vunpack.c.h.b16 %v525
        %v1279 = vunpack.c.l.b16 %v526
        %v1280 = vunpack.c.h.b16 %v526
        %v1281 = vunpack.c.l.b16 %v527
        %v1282 = vunpack.c.h.b16 %v527
        %v1283 = vunpack.c.l.b16 %v528
        %v1284 = vunpack.c.h.b16 %v528
        %v1285 = vunpack.c.l.b16 %v529
        %v1286 = vunpack.c.h.b16 %v529
        %v1287 = vunpack.c.l.b16 %v530
        %v1288 = vunpack.c.h.b16 %v530
        %v1289 = vunpack.c.l.b16 %v531
        %v1290 = vunpack.c.h.b16 %v531
        %v1291 = vunpack.c.l.b16 %v532
        %v1292 = vunpack.c.h.b16 %v532
        %v1293 = vunpack.c.l.b16 %v533
        %v1294 = vunpack.c.h.b16 %v533
        %v1295 = vunpack.c.l.b16 %v534
        %v1296 = vunpack.c.h.b16 %v534
        %v1297 = vunpack.c.l.b16 %v535
        %v1298 = vunpack.c.h.b16 %v535
        %v1299 = vunpack.c.l.b16 %v536
        %v1300 = vunpack.c.h.b16 %v536
        %v1301 = vunpack.c.l.b16 %v537
        %v1302 = vunpack.c.h.b16 %v537
        %v1303 = vunpack.c.l.b16 %v538
        %v1304 = vunpack.c.h.b16 %v538
        %v1305 = vunpack.c.l.b16 %v539
        %v1306 = vunpack.c.h.b16 %v539
        %v1307 = vunpack.c.l.b16 %v540
        %v1308 = vunpack.c.h.b16 %v540
        %v1309 = vunpack.c.l.b16 %v541
        %v1310 = vunpack.c.h.b16 %v541
        %v1311 = vunpack.c.l.b16 %v542
        %v1312 = vunpack.c.h.b16 %v542
        %v1313 = vunpack.c.l.b16 %v543
        %v1314 = vunpack.c.h.b16 %v543
        %v1315 = vunpack.c.l.b16 %v544
        %v1316 = vunpack.c.h.b16 %v544
        %v1317 = vunpack.c.l.b16 %v545
        %v1318 = vunpack.c.h.b16 %v545
        %v1319 = vunpack.c.l.b16 %v546
        %v1320 = vunpack.c.h.b16 %v546
        %v1321 = vunpack.c.l.b16 %v547
        %v1322 = vunpack.c.h.b16 %v547
        %v1323 = vunpack.c.l.b16 %v548
        %v1324 = vunpack.c.h.b16 %v548
        %v1325 = vunpack.c.l.b16 %v549
        %v1326 = vunpack.c.h.b16 %v549
        %v1327 = vunpack.c.l.b16 %v550
        %v1328 = vunpack.c.h.b16 %v550
        %v1329 = vunpack.c.l.b16 %v551
        %v1330 = vunpack.c.h.b16 %v551
        %v1331 = vunpack.c.l.b16 %v552
        %v1332 = vunpack.c.h.b16 %v552
        %v1333 = vunpack.c.l.b16 %v553
        %v1334 = vunpack.c.h.b16 %v553
        %v1335 = vunpack.c.l.b16 %v554
        %v1336 = vunpack.c.h.b16 %v554
        %v1337 = vunpack.c.l.b16 %v555
        %v1338 = vunpack.c.h.b16 %v555
        %v1339 = vunpack.c.l.b16 %v556
        %v1340 = vunpack.c.h.b16 %v556
        %v1341 = vunpack.c.l.b16 %v557
        %v1342 = vunpack.c.h.b16 %v557
        %v1343 = vunpack.c.l.b16 %v558
        %v1344 = vunpack.c.h.b16 %v558
        %v1345 = vunpack.c.l.b16 %v559
        %v1346 = vunpack.c.h.b16 %v559
        %v1347 = vunpack.c.l.b16 %v560
        %v1348 = vunpack.c.h.b16 %v560
        %v1349 = vunpack.c.l.b16 %v561
        %v1350 = vunpack.c.h.b16 %v561
        %v1351 = vunpack.c.l.b16 %v562
        %v1352 = vunpack.c.h.b16 %v562
        %v1353 = vunpack.c.l.b16 %v563
        %v1354 = vunpack.c.h.b16 %v563
        %v1355 = vunpack.c.l.b16 %v564
        %v1356 = vunpack.c.h.b16 %v564
        %v1357 = vunpack.c.l.b16 %v565
        %v1358 = vunpack.c.h.b16 %v565
        %v1359 = vunpack.c.l.b16 %v566
        %v1360 = vunpack.c.h.b16 %v566
        %v1361 = vunpack.c.l.b16 %v567
        %v1362 = vunpack.c.h.b16 %v567
        %v1363 = vunpack.c.l.b16 %v568
        %v1364 = vunpack.c.h.b16 %v568
        %v1365 = vunpack.c.l.b16 %v569
        %v1366 = vunpack.c.h.b16 %v569
        %v1367 = vunpack.c.l.b16 %v570
        %v1368 = vunpack.c.h.b16 %v570
        %v1369 = vunpack.c.l.b16 %v571
        %v1370 = vunpack.c.h.b16 %v571
        %v1371 = vunpack.c.l.b16 %v572
        %v1372 = vunpack.c.h.b16 %v572
        %v1373 = vunpack.c.l.b16 %v573
        %v1374 = vunpack.c.h.b16 %v573
        %v1375 = vunpack.c.l.b16 %v574
        %v1376 = vunpack.c.h.b16 %v574
        %v1377 = vunpack.c.l.b16 %v575
        %v1378 = vunpack.c.h.b16 %v575
        %v1379 = vunpack.c.l.b16 %v576
        %v1380 = vunpack.c.h.b16 %v576
        %v1381 = vunpack.c.l.b16 %v577
        %v1382 = vunpack.c.h.b16 %v577
        %v1383 = vunpack.c.l.b16 %v578
        %v1384 = vunpack.c.h.b16 %v578
        %v1385 = vunpack.c.l.b16 %v579
        %v1386 = vunpack.c.h.b16 %v579
        %v1387 = vunpack.c.l.b16 %v580
        %v1388 = vunpack.c.h.b16 %v580
        %v1389 = vunpack.c.l.b16 %v581
        %v1390 = vunpack.c.h.b16 %v581
        %v1391 = vunpack.c.l.b16 %v582
        %v1392 = vunpack.c.h.b16 %v582
        %v1393 = vunpack.c.l.b16 %v583
        %v1394 = vunpack.c.h.b16 %v583
        %v1395 = vunpack.c.l.b16 %v584
        %v1396 = vunpack.c.h.b16 %v584
        %v1397 = vunpack.c.l.b16 %v585
        %v1398 = vunpack.c.h.b16 %v585
        %v1399 = vunpack.c.l.b16 %v586
        %v1400 = vunpack.c.h.b16 %v586
        %v1401 = vunpack.c.l.b16 %v587
        %v1402 = vunpack.c.h.b16 %v587
        %v1403 = vunpack.c.l.b16 %v588
        %v1404 = vunpack.c.h.b16 %v588
        %v1405 = vunpack.c.l.b16 %v589
        %v1406 = vunpack.c.h.b16 %v589
        %v1407 = vunpack.c.l.b16 %v590
        %v1408 = vunpack.c.h.b16 %v590
        %v1409 = vunpack.c.l.b16 %v591
        %v1410 = vunpack.c.h.b16 %v591
        %v1411 = vunpack.c.l.b16 %v592
        %v1412 = vunpack.c.h.b16 %v592
        %v1413 = vunpack.c.l.b16 %v593
        %v1414 = vunpack.c.h.b16 %v593
        %v1415 = vunpack.c.l.b16 %v594
        %v1416 = vunpack.c.h.b16 %v594
        %v1417 = vunpack.c.l.b16 %v595
        %v1418 = vunpack.c.h.b16 %v595
        %v1419 = vunpack.c.l.b16 %v596
        %v1420 = vunpack.c.h.b16 %v596
        %v1421 = vunpack.c.l.b16 %v597
        %v1422 = vunpack.c.h.b16 %v597
        %v1423 = vunpack.c.l.b16 %v598
        %v1424 = vunpack.c.h.b16 %v598
        %v1425 = vunpack.c.l.b16 %v599
        %v1426 = vunpack.c.h.b16 %v599
        %v1427 = vunpack.c.l.b16 %v600
        %v1428 = vunpack.c.h.b16 %v600
        %v1429 = vunpack.c.l.b16 %v601
        %v1430 = vunpack.c.h.b16 %v601
        %v1431 = vunpack.c.l.b16 %v602
        %v1432 = vunpack.c.h.b16 %v602
        %v1433 = vunpack.c.l.b16 %v603
        %v1434 = vunpack.c.h.b16 %v603
        %v1435 = vunpack.c.l.b16 %v604
        %v1436 = vunpack.c.h.b16 %v604
        %v1437 = vunpack.c.l.b16 %v605
        %v1438 = vunpack.c.h.b16 %v605
        %v1439 = vunpack.c.l.b16 %v606
        %v1440 = vunpack.c.h.b16 %v606
        %v1441 = vunpack.c.l.b16 %v607
        %v1442 = vunpack.c.h.b16 %v607
        %v1443 = vunpack.c.l.b16 %v608
        %v1444 = vunpack.c.h.b16 %v608
        %v1445 = vunpack.c.l.b16 %v609
        %v1446 = vunpack.c.h.b16 %v609
        %v1447 = vunpack.c.l.b16 %v610
        %v1448 = vunpack.c.h.b16 %v610
        %v1449 = vunpack.c.l.b16 %v611
        %v1450 = vunpack.c.h.b16 %v611
        %v1451 = vunpack.c.l.b16 %v612
        %v1452 = vunpack.c.h.b16 %v612
        %v1453 = vunpack.c.l.b16 %v613
        %v1454 = vunpack.c.h.b16 %v613
        %v1455 = vunpack.c.l.b16 %v614
        %v1456 = vunpack.c.h.b16 %v614
        %v1457 = vunpack.c.l.b16 %v615
        %v1458 = vunpack.c.h.b16 %v615
        %v1459 = vunpack.c.l.b16 %v616
        %v1460 = vunpack.c.h.b16 %v616
        %v1461 = vunpack.c.l.b16 %v617
        %v1462 = vunpack.c.h.b16 %v617
        %v1463 = vunpack.c.l.b16 %v618
        %v1464 = vunpack.c.h.b16 %v618
        %v1465 = vunpack.c.l.b16 %v619
        %v1466 = vunpack.c.h.b16 %v619
        %v1467 = vunpack.c.l.b16 %v620
        %v1468 = vunpack.c.h.b16 %v620
        %v1469 = vpack.c.b16 %v961, %v957
        %v1470 = vpack.c.b16 %v962, %v958
        %v1471 = vpack.c.b16 %v963, %v959
        %v1472 = vpack.c.b16 %v964, %v960
        %v1473 = vpack.c.b16 %v969, %v965
        %v1474 = vpack.c.b16 %v970, %v966
        %v1475 = vpack.c.b16 %v971, %v967
        %v1476 = vpack.c.b16 %v972, %v968
        %v1477 = vpack.c.b16 %v977, %v973
        %v1478 = vpack.c.b16 %v978, %v974
        %v1479 = vpack.c.b16 %v979, %v975
        %v1480 = vpack.c.b16 %v980, %v976
        %v1481 = vpack.c.b16 %v985, %v981
        %v1482 = vpack.c.b16 %v986, %v982
        %v1483 = vpack.c.b16 %v987, %v983
        %v1484 = vpack.c.b16 %v988, %v984
        %v1485 = vpack.c.b16 %v993, %v989
        %v1486 = vpack.c.b16 %v994, %v990
        %v1487 = vpack.c.b16 %v995, %v991
        %v1488 = vpack.c.b16 %v996, %v992
        %v1489 = vpack.c.b16 %v1001, %v997
        %v1490 = vpack.c.b16 %v1002, %v998
        %v1491 = vpack.c.b16 %v1003, %v999
        %v1492 = vpack.c.b16 %v1004, %v1000
        %v1493 = vpack.c.b16 %v1009, %v1005
        %v1494 = vpack.c.b16 %v1010, %v1006
        %v1495 = vpack.c.b16 %v1011, %v1007
        %v1496 = vpack.c.b16 %v1012, %v1008
        %v1497 = vpack.c.b16 %v1017, %v1013
        %v1498 = vpack.c.b16 %v1018, %v1014
        %v1499 = vpack.c.b16 %v1019, %v1015
        %v1500 = vpack.c.b16 %v1020, %v1016
        %v1501 = vpack.c.b16 %v1025, %v1021
        %v1502 = vpack.c.b16 %v1026, %v1022
        %v1503 = vpack.c.b16 %v1027, %v1023
        %v1504 = vpack.c.b16 %v1028, %v1024
        %v1505 = vpack.c.b16 %v1033, %v1029
        %v1506 = vpack.c.b16 %v1034, %v1030
        %v1507 = vpack.c.b16 %v1035, %v1031
        %v1508 = vpack.c.b16 %v1036, %v1032
        %v1509 = vpack.c.b16 %v1041, %v1037
        %v1510 = vpack.c.b16 %v1042, %v1038
        %v1511 = vpack.c.b16 %v1043, %v1039
        %v1512 = vpack.c.b16 %v1044, %v1040
        %v1513 = vpack.c.b16 %v1049, %v1045
        %v1514 = vpack.c.b16 %v1050, %v1046
        %v1515 = vpack.c.b16 %v1051, %v1047
        %v1516 = vpack.c.b16 %v1052, %v1048
        %v1517 = vpack.c.b16 %v1057, %v1053
        %v1518 = vpack.c.b16 %v1058, %v1054
        %v1519 = vpack.c.b16 %v1059, %v1055
        %v1520 = vpack.c.b16 %v1060, %v1056
        %v1521 = vpack.c.b16 %v1065, %v1061
        %v1522 = vpack.c.b16 %v1066, %v1062
        %v1523 = vpack.c.b16 %v1067, %v1063
        %v1524 = vpack.c.b16 %v1068, %v1064
        %v1525 = vpack.c.b16 %v1073, %v1069
        %v1526 = vpack.c.b16 %v1074, %v1070
        %v1527 = vpack.c.b16 %v1075, %v1071
        %v1528 = vpack.c.b16 %v1076, %v1072
        %v1529 = vpack.c.b16 %v1081, %v1077
        %v1530 = vpack.c.b16 %v1082, %v1078
        %v1531 = vpack.c.b16 %v1083, %v1079
        %v1532 = vpack.c.b16 %v1084, %v1080
        %v1533 = vpack.c.b16 %v1089, %v1085
        %v1534 = vpack.c.b16 %v1090, %v1086
        %v1535 = vpack.c.b16 %v1091, %v1087
        %v1536 = vpack.c.b16 %v1092, %v1088
        %v1537 = vpack.c.b16 %v1097, %v1093
        %v1538 = vpack.c.b16 %v1098, %v1094
        %v1539 = vpack.c.b16 %v1099, %v1095
        %v1540 = vpack.c.b16 %v1100, %v1096
        %v1541 = vpack.c.b16 %v1105, %v1101
        %v1542 = vpack.c.b16 %v1106, %v1102
        %v1543 = vpack.c.b16 %v1107, %v1103
        %v1544 = vpack.c.b16 %v1108, %v1104
        %v1545 = vpack.c.b16 %v1113, %v1109
        %v1546 = vpack.c.b16 %v1114, %v1110
        %v1547 = vpack.c.b16 %v1115, %v1111
        %v1548 = vpack.c.b16 %v1116, %v1112
        %v1549 = vpack.c.b16 %v1121, %v1117
        %v1550 = vpack.c.b16 %v1122, %v1118
        %v1551 = vpack.c.b16 %v1123, %v1119
        %v1552 = vpack.c.b16 %v1124, %v1120
        %v1553 = vpack.c.b16 %v1129, %v1125
        %v1554 = vpack.c.b16 %v1130, %v1126
        %v1555 = vpack.c.b16 %v1131, %v1127
        %v1556 = vpack.c.b16 %v1132, %v1128
        %v1557 = vpack.c.b16 %v1137, %v1133
        %v1558 = vpack.c.b16 %v1138, %v1134
        %v1559 = vpack.c.b16 %v1139, %v1135
        %v1560 = vpack.c.b16 %v1140, %v1136
        %v1561 = vpack.c.b16 %v1145, %v1141
        %v1562 = vpack.c.b16 %v1146, %v1142
        %v1563 = vpack.c.b16 %v1147, %v1143
        %v1564 = vpack.c.b16 %v1148, %v1144
        %v1565 = vpack.c.b16 %v1153, %v1149
        %v1566 = vpack.c.b16 %v1154, %v1150
        %v1567 = vpack.c.b16 %v1155, %v1151
        %v1568 = vpack.c.b16 %v1156, %v1152
        %v1569 = vpack.c.b16 %v1161, %v1157
        %v1570 = vpack.c.b16 %v1162, %v1158
        %v1571 = vpack.c.b16 %v1163, %v1159
        %v1572 = vpack.c.b16 %v1164, %v1160
        %v1573 = vpack.c.b16 %v1169, %v1165
        %v1574 = vpack.c.b16 %v1170, %v1166
        %v1575 = vpack.c.b16 %v1171, %v1167
        %v1576 = vpack.c.b16 %v1172, %v1168
        %v1577 = vpack.c.b16 %v1177, %v1173
        %v1578 = vpack.c.b16 %v1178, %v1174
        %v1579 = vpack.c.b16 %v1179, %v1175
        %v1580 = vpack.c.b16 %v1180, %v1176
        %v1581 = vpack.c.b16 %v1185, %v1181
        %v1582 = vpack.c.b16 %v1186, %v1182
        %v1583 = vpack.c.b16 %v1187, %v1183
        %v1584 = vpack.c.b16 %v1188, %v1184
        %v1585 = vpack.c.b16 %v1193, %v1189
        %v1586 = vpack.c.b16 %v1194, %v1190
        %v1587 = vpack.c.b16 %v1195, %v1191
        %v1588 = vpack.c.b16 %v1196, %v1192
        %v1589 = vpack.c.b16 %v1201, %v1197
        %v1590 = vpack.c.b16 %v1202, %v1198
        %v1591 = vpack.c.b16 %v1203, %v1199
        %v1592 = vpack.c.b16 %v1204, %v1200
        %v1593 = vpack.c.b16 %v1209, %v1205
        %v1594 = vpack.c.b16 %v1210, %v1206
        %v1595 = vpack.c.b16 %v1211, %v1207
        %v1596 = vpack.c.b16 %v1212, %v1208
        %v1597 = vpack.c.b16 %v1217, %v1213
        %v1598 = vpack.c.b16 %v1218, %v1214
        %v1599 = vpack.c.b16 %v1219, %v1215
        %v1600 = vpack.c.b16 %v1220, %v1216
        %v1601 = vpack.c.b16 %v1225, %v1221
        %v1602 = vpack.c.b16 %v1226, %v1222
        %v1603 = vpack.c.b16 %v1227, %v1223
        %v1604 = vpack.c.b16 %v1228, %v1224
        %v1605 = vpack.c.b16 %v1233, %v1229
        %v1606 = vpack.c.b16 %v1234, %v1230
        %v1607 = vpack.c.b16 %v1235, %v1231
        %v1608 = vpack.c.b16 %v1236, %v1232
        %v1609 = vpack.c.b16 %v1241, %v1237
        %v1610 = vpack.c.b16 %v1242, %v1238
        %v1611 = vpack.c.b16 %v1243, %v1239
        %v1612 = vpack.c.b16 %v1244, %v1240
        %v1613 = vpack.c.b16 %v1249, %v1245
        %v1614 = vpack.c.b16 %v1250, %v1246
        %v1615 = vpack.c.b16 %v1251, %v1247
        %v1616 = vpack.c.b16 %v1252, %v1248
        %v1617 = vpack.c.b16 %v1257, %v1253
        %v1618 = vpack.c.b16 %v1258, %v1254
        %v1619 = vpack.c.b16 %v1259, %v1255
        %v1620 = vpack.c.b16 %v1260, %v1256
        %v1621 = vpack.c.b16 %v1265, %v1261
        %v1622 = vpack.c.b16 %v1266, %v1262
        %v1623 = vpack.c.b16 %v1267, %v1263
        %v1624 = vpack.c.b16 %v1268, %v1264
        %v1625 = vpack.c.b16 %v1273, %v1269
        %v1626 = vpack.c.b16 %v1274, %v1270
        %v1627 = vpack.c.b16 %v1275, %v1271
        %v1628 = vpack.c.b16 %v1276, %v1272
        %v1629 = vpack.c.b16 %v1281, %v1277
        %v1630 = vpack.c.b16 %v1282, %v1278
        %v1631 = vpack.c.b16 %v1283, %v1279
        %v1632 = vpack.c.b16 %v1284, %v1280
        %v1633 = vpack.c.b16 %v1289, %v1285
        %v1634 = vpack.c.b16 %v1290, %v1286
        %v1635 = vpack.c.b16 %v1291, %v1287
        %v1636 = vpack.c.b16 %v1292, %v1288
        %v1637 = vpack.c.b16 %v1297, %v1293
        %v1638 = vpack.c.b16 %v1298, %v1294
        %v1639 = vpack.c.b16 %v1299, %v1295
        %v1640 = vpack.c.b16 %v1300, %v1296
        %v1641 = vpack.c.b16 %v1305, %v1301
        %v1642 = vpack.c.b16 %v1306, %v1302
        %v1643 = vpack.c.b16 %v1307, %v1303
        %v1644 = vpack.c.b16 %v1308, %v1304
        %v1645 = vpack.c.b16 %v1313, %v1309
        %v1646 = vpack.c.b16 %v1314, %v1310
        %v1647 = vpack.c.b16 %v1315, %v1311
        %v1648 = vpack.c.b16 %v1316, %v1312
        %v1649 = vpack.c.b16 %v1321, %v1317
        %v1650 = vpack.c.b16 %v1322, %v1318
        %v1651 = vpack.c.b16 %v1323, %v1319
        %v1652 = vpack.c.b16 %v1324, %v1320
        %v1653 = vpack.c.b16 %v1329, %v1325
        %v1654 = vpack.c.b16 %v1330, %v1326
        %v1655 = vpack.c.b16 %v1331, %v1327
        %v1656 = vpack.c.b16 %v1332, %v1328
        %v1657 = vpack.c.b16 %v1337, %v1333
        %v1658 = vpack.c.b16 %v1338, %v1334
        %v1659 = vpack.c.b16 %v1339, %v1335
        %v1660 = vpack.c.b16 %v1340, %v1336
        %v1661 = vpack.c.b16 %v1345, %v1341
        %v1662 = vpack.c.b16 %v1346, %v1342
        %v1663 = vpack.c.b16 %v1347, %v1343
        %v1664 = vpack.c.b16 %v1348, %v1344
        %v1665 = vpack.c.b16 %v1353, %v1349
        %v1666 = vpack.c.b16 %v1354, %v1350
        %v1667 = vpack.c.b16 %v1355, %v1351
        %v1668 = vpack.c.b16 %v1356, %v1352
        %v1669 = vpack.c.b16 %v1361, %v1357
        %v1670 = vpack.c.b16 %v1362, %v1358
        %v1671 = vpack.c.b16 %v1363, %v1359
        %v1672 = vpack.c.b16 %v1364, %v1360
        %v1673 = vpack.c.b16 %v1369, %v1365
        %v1674 = vpack.c.b16 %v1370, %v1366
        %v1675 = vpack.c.b16 %v1371, %v1367
        %v1676 = vpack.c.b16 %v1372, %v1368
        %v1677 = vpack.c.b16 %v1377, %v1373
        %v1678 = vpack.c.b16 %v1378, %v1374
        %v1679 = vpack.c.b16 %v1379, %v1375
        %v1680 = vpack.c.b16 %v1380, %v1376
        %v1681 = vpack.c.b16 %v1385, %v1381
        %v1682 = vpack.c.b16 %v1386, %v1382
        %v1683 = vpack.c.b16 %v1387, %v1383
        %v1684 = vpack.c.b16 %v1388, %v1384
        %v1685 = vpack.c.b16 %v1393, %v1389
        %v1686 = vpack.c.b16 %v1394, %v1390
        %v1687 = vpack.c.b16 %v1395, %v1391
        %v1688 = vpack.c.b16 %v1396, %v1392
        %v1689 = vpack.c.b16 %v1401, %v1397
        %v1690 = vpack.c.b16 %v1402, %v1398
        %v1691 = vpack.c.b16 %v1403, %v1399
        %v1692 = vpack.c.b16 %v1404, %v1400
        %v1693 = vpack.c.b16 %v1409, %v1405
        %v1694 = vpack.c.b16 %v1410, %v1406
        %v1695 = vpack.c.b16 %v1411, %v1407
        %v1696 = vpack.c.b16 %v1412, %v1408
        %v1697 = vpack.c.b16 %v1417, %v1413
        %v1698 = vpack.c.b16 %v1418, %v1414
        %v1699 = vpack.c.b16 %v1419, %v1415
        %v1700 = vpack.c.b16 %v1420, %v1416
        %v1701 = vpack.c.b16 %v1425, %v1421
        %v1702 = vpack.c.b16 %v1426, %v1422
        %v1703 = vpack.c.b16 %v1427, %v1423
        %v1704 = vpack.c.b16 %v1428, %v1424
        %v1705 = vpack.c.b16 %v1433, %v1429
        %v1706 = vpack.c.b16 %v1434, %v1430
        %v1707 = vpack.c.b16 %v1435, %v1431
        %v1708 = vpack.c.b16 %v1436, %v1432
        %v1709 = vpack.c.b16 %v1441, %v1437
        %v1710 = vpack.c.b16 %v1442, %v1438
        %v1711 = vpack.c.b16 %v1443, %v1439
        %v1712 = vpack.c.b16 %v1444, %v1440
        %v1713 = vpack.c.b16 %v1449, %v1445
        %v1714 = vpack.c.b16 %v1450, %v1446
        %v1715 = vpack.c.b16 %v1451, %v1447
        %v1716 = vpack.c.b16 %v1452, %v1448
        %v1717 = vpack.c.b16 %v1457, %v1453
        %v1718 = vpack.c.b16 %v1458, %v1454
        %v1719 = vpack.c.b16 %v1459, %v1455
        %v1720 = vpack.c.b16 %v1460, %v1456
        %v1721 = vpack.c.b16 %v1465, %v1461
        %v1722 = vpack.c.b16 %v1466, %v1462
        %v1723 = vpack.c.b16 %v1467, %v1463
        %v1724 = vpack.c.b16 %v1468, %v1464
        %1981 = vmatprep.subr.bf16.mxu0 %v1498
        %1982 = vmatpush1.bf16.msra.mxu0 %v1497
        %1983 = vmatprep.subr.bf16.mxu0 %v1494
        %1984 = vmatpush1.bf16.msra.mxu0 %v1493
        %1985 = vmatprep.subr.bf16.mxu0 %v1490
        %1986 = vmatpush1.bf16.msra.mxu0 %v1489
        %1987 = vmatprep.subr.bf16.mxu0 %v1486
        %1988 = vmatpush1.bf16.msra.mxu0 %v1485
        %1989 = vmatprep.subr.bf16.mxu0 %v1482
        %1990 = vmatpush1.bf16.msra.mxu0 %v1481
        %1991 = vmatprep.subr.bf16.mxu0 %v1478
        %1992 = vmatpush1.bf16.msra.mxu0 %v1477
        %1993 = vmatprep.subr.bf16.mxu0 %v1474
        %1994 = vmatpush1.bf16.msra.mxu0 %v1473
        %1995 = vmatprep.subr.bf16.mxu0 %v1470
        %1996 = vmatpush1.bf16.msra.mxu0 %v1469
        %1997 = vmatprep.subr.bf16.mxu0 %v1530
        %1998 = vmatpush2.bf16.msra.mxu0 %v1529
        %1999 = vmatprep.subr.bf16.mxu0 %v1526
        %2000 = vmatpush2.bf16.msra.mxu0 %v1525
        %2001 = vmatprep.subr.bf16.mxu0 %v1522
        %2002 = vmatpush2.bf16.msra.mxu0 %v1521
        %2003 = vmatprep.subr.bf16.mxu0 %v1518
        %2004 = vmatpush2.bf16.msra.mxu0 %v1517
        %2005 = vmatprep.subr.bf16.mxu0 %v1514
        %2006 = vmatpush2.bf16.msra.mxu0 %v1513
        %2007 = vmatprep.subr.bf16.mxu0 %v1510
        %2008 = vmatpush2.bf16.msra.mxu0 %v1509
        %2009 = vmatprep.subr.bf16.mxu0 %v1506
        %2010 = vmatpush2.bf16.msra.mxu0 %v1505
        %2011 = vmatprep.subr.bf16.mxu0 %v1502
        %2012 = vmatpush2.bf16.msra.mxu0 %v1501
        %2013 = vmatprep.mubr.bf16.mxu0 %v670
        %2014 = vmatmul.mubr.bf16.gmra.mxu0 %v669
        %v2015 = vpop.f32.mrf.mxu0
        %v2016 = vadd.f32 0.0, %v2015
        %v2017 = vpop.f32.mrf.mxu0
        %v2018 = vadd.f32 0.0, %v2017
        %v2019 = vpop.f32.mrf.mxu0
        %v2020 = vadd.f32 0.0, %v2019
        %v2021 = vpop.f32.mrf.mxu0
        %v2022 = vadd.f32 0.0, %v2021
        %2023 = vmatprep.mubr.bf16.mxu0 %v678
        %2024 = vmatmul.mubr.bf16.gmra.mxu0 %v677
        %v2025 = vpop.f32.mrf.mxu0
        %v2026 = vadd.f32 0.0, %v2025
        %v2027 = vpop.f32.mrf.mxu0
        %v2028 = vadd.f32 0.0, %v2027
        %v2029 = vpop.f32.mrf.mxu0
        %v2030 = vadd.f32 0.0, %v2029
        %v2031 = vpop.f32.mrf.mxu0
        %v2032 = vadd.f32 0.0, %v2031
        %2033 = vdwg.mxu0
        %2034 = vmatprep.subr.bf16.mxu0 %v1562
        %2035 = vmatpush1.bf16.msra.mxu0 %v1561
        %2036 = vmatprep.subr.bf16.mxu0 %v1558
        %2037 = vmatpush1.bf16.msra.mxu0 %v1557
        %2038 = vmatprep.subr.bf16.mxu0 %v1554
        %2039 = vmatpush1.bf16.msra.mxu0 %v1553
        %2040 = vmatprep.subr.bf16.mxu0 %v1550
        %2041 = vmatpush1.bf16.msra.mxu0 %v1549
        %2042 = vmatprep.subr.bf16.mxu0 %v1546
        %2043 = vmatpush1.bf16.msra.mxu0 %v1545
        %2044 = vmatprep.subr.bf16.mxu0 %v1542
        %2045 = vmatpush1.bf16.msra.mxu0 %v1541
        %2046 = vmatprep.subr.bf16.mxu0 %v1538
        %2047 = vmatpush1.bf16.msra.mxu0 %v1537
        %2048 = vmatprep.subr.bf16.mxu0 %v1534
        %2049 = vmatpush1.bf16.msra.mxu0 %v1533
        %2050 = vmatprep.subr.bf16.mxu0 %v1594
        %2051 = vmatpush2.bf16.msra.mxu0 %v1593
        %2052 = vmatprep.subr.bf16.mxu0 %v1590
        %2053 = vmatpush2.bf16.msra.mxu0 %v1589
        %2054 = vmatprep.subr.bf16.mxu0 %v1586
        %2055 = vmatpush2.bf16.msra.mxu0 %v1585
        %2056 = vmatprep.subr.bf16.mxu0 %v1582
        %2057 = vmatpush2.bf16.msra.mxu0 %v1581
        %2058 = vmatprep.subr.bf16.mxu0 %v1578
        %2059 = vmatpush2.bf16.msra.mxu0 %v1577
        %2060 = vmatprep.subr.bf16.mxu0 %v1574
        %2061 = vmatpush2.bf16.msra.mxu0 %v1573
        %2062 = vmatprep.subr.bf16.mxu0 %v1570
        %2063 = vmatpush2.bf16.msra.mxu0 %v1569
        %2064 = vmatprep.subr.bf16.mxu0 %v1566
        %2065 = vmatpush2.bf16.msra.mxu0 %v1565
        %2066 = vmatprep.mubr.bf16.mxu0 %v672
        %2067 = vmatmul.mubr.bf16.gmra.mxu0 %v671
        %v2068 = vpop.f32.mrf.mxu0
        %v2069 = vadd.f32 %v2016, %v2068
        %v2070 = vpop.f32.mrf.mxu0
        %v2071 = vadd.f32 %v2018, %v2070
        %v2072 = vpop.f32.mrf.mxu0
        %v2073 = vadd.f32 %v2020, %v2072
        %v2074 = vpop.f32.mrf.mxu0
        %v2075 = vadd.f32 %v2022, %v2074
        %2076 = vmatprep.mubr.bf16.mxu0 %v680
        %2077 = vmatmul.mubr.bf16.gmra.mxu0 %v679
        %v2078 = vpop.f32.mrf.mxu0
        %v2079 = vadd.f32 %v2026, %v2078
        %v2080 = vpop.f32.mrf.mxu0
        %v2081 = vadd.f32 %v2028, %v2080
        %v2082 = vpop.f32.mrf.mxu0
        %v2083 = vadd.f32 %v2030, %v2082
        %v2084 = vpop.f32.mrf.mxu0
        %v2085 = vadd.f32 %v2032, %v2084
        %2086 = vdwg.mxu0
        %2087 = vmatprep.subr.bf16.mxu0 %v1626
        %2088 = vmatpush1.bf16.msra.mxu0 %v1625
        %2089 = vmatprep.subr.bf16.mxu0 %v1622
        %2090 = vmatpush1.bf16.msra.mxu0 %v1621
        %2091 = vmatprep.subr.bf16.mxu0 %v1618
        %2092 = vmatpush1.bf16.msra.mxu0 %v1617
        %2093 = vmatprep.subr.bf16.mxu0 %v1614
        %2094 = vmatpush1.bf16.msra.mxu0 %v1613
        %2095 = vmatprep.subr.bf16.mxu0 %v1610
        %2096 = vmatpush1.bf16.msra.mxu0 %v1609
        %2097 = vmatprep.subr.bf16.mxu0 %v1606
        %2098 = vmatpush1.bf16.msra.mxu0 %v1605
        %2099 = vmatprep.subr.bf16.mxu0 %v1602
        %2100 = vmatpush1.bf16.msra.mxu0 %v1601
        %2101 = vmatprep.subr.bf16.mxu0 %v1598
        %2102 = vmatpush1.bf16.msra.mxu0 %v1597
        %2103 = vmatprep.subr.bf16.mxu0 %v1658
        %2104 = vmatpush2.bf16.msra.mxu0 %v1657
        %2105 = vmatprep.subr.bf16.mxu0 %v1654
        %2106 = vmatpush2.bf16.msra.mxu0 %v1653
        %2107 = vmatprep.subr.bf16.mxu0 %v1650
        %2108 = vmatpush2.bf16.msra.mxu0 %v1649
        %2109 = vmatprep.subr.bf16.mxu0 %v1646
        %2110 = vmatpush2.bf16.msra.mxu0 %v1645
        %2111 = vmatprep.subr.bf16.mxu0 %v1642
        %2112 = vmatpush2.bf16.msra.mxu0 %v1641
        %2113 = vmatprep.subr.bf16.mxu0 %v1638
        %2114 = vmatpush2.bf16.msra.mxu0 %v1637
        %2115 = vmatprep.subr.bf16.mxu0 %v1634
        %2116 = vmatpush2.bf16.msra.mxu0 %v1633
        %2117 = vmatprep.subr.bf16.mxu0 %v1630
        %2118 = vmatpush2.bf16.msra.mxu0 %v1629
        %2119 = vmatprep.mubr.bf16.mxu0 %v674
        %2120 = vmatmul.mubr.bf16.gmra.mxu0 %v673
        %v2121 = vpop.f32.mrf.mxu0
        %v2122 = vadd.f32 %v2069, %v2121
        %v2123 = vpop.f32.mrf.mxu0
        %v2124 = vadd.f32 %v2071, %v2123
        %v2125 = vpop.f32.mrf.mxu0
        %v2126 = vadd.f32 %v2073, %v2125
        %v2127 = vpop.f32.mrf.mxu0
        %v2128 = vadd.f32 %v2075, %v2127
        %2129 = vmatprep.mubr.bf16.mxu0 %v682
        %2130 = vmatmul.mubr.bf16.gmra.mxu0 %v681
        %v2131 = vpop.f32.mrf.mxu0
        %v2132 = vadd.f32 %v2079, %v2131
        %v2133 = vpop.f32.mrf.mxu0
        %v2134 = vadd.f32 %v2081, %v2133
        %v2135 = vpop.f32.mrf.mxu0
        %v2136 = vadd.f32 %v2083, %v2135
        %v2137 = vpop.f32.mrf.mxu0
        %v2138 = vadd.f32 %v2085, %v2137
        %2139 = vdwg.mxu0
        %2140 = vmatprep.subr.bf16.mxu0 %v1690
        %2141 = vmatpush1.bf16.msra.mxu0 %v1689
        %2142 = vmatprep.subr.bf16.mxu0 %v1686
        %2143 = vmatpush1.bf16.msra.mxu0 %v1685
        %2144 = vmatprep.subr.bf16.mxu0 %v1682
        %2145 = vmatpush1.bf16.msra.mxu0 %v1681
        %2146 = vmatprep.subr.bf16.mxu0 %v1678
        %2147 = vmatpush1.bf16.msra.mxu0 %v1677
        %2148 = vmatprep.subr.bf16.mxu0 %v1674
        %2149 = vmatpush1.bf16.msra.mxu0 %v1673
        %2150 = vmatprep.subr.bf16.mxu0 %v1670
        %2151 = vmatpush1.bf16.msra.mxu0 %v1669
        %2152 = vmatprep.subr.bf16.mxu0 %v1666
        %2153 = vmatpush1.bf16.msra.mxu0 %v1665
        %2154 = vmatprep.subr.bf16.mxu0 %v1662
        %2155 = vmatpush1.bf16.msra.mxu0 %v1661
        %2156 = vmatprep.subr.bf16.mxu0 %v1722
        %2157 = vmatpush2.bf16.msra.mxu0 %v1721
        %2158 = vmatprep.subr.bf16.mxu0 %v1718
        %2159 = vmatpush2.bf16.msra.mxu0 %v1717
        %2160 = vmatprep.subr.bf16.mxu0 %v1714
        %2161 = vmatpush2.bf16.msra.mxu0 %v1713
        %2162 = vmatprep.subr.bf16.mxu0 %v1710
        %2163 = vmatpush2.bf16.msra.mxu0 %v1709
        %2164 = vmatprep.subr.bf16.mxu0 %v1706
        %2165 = vmatpush2.bf16.msra.mxu0 %v1705
        %2166 = vmatprep.subr.bf16.mxu0 %v1702
        %2167 = vmatpush2.bf16.msra.mxu0 %v1701
        %2168 = vmatprep.subr.bf16.mxu0 %v1698
        %2169 = vmatpush2.bf16.msra.mxu0 %v1697
        %2170 = vmatprep.subr.bf16.mxu0 %v1694
        %2171 = vmatpush2.bf16.msra.mxu0 %v1693
        %2172 = vmatprep.mubr.bf16.mxu0 %v676
        %2173 = vmatmul.mubr.bf16.gmra.mxu0 %v675
        %v2174 = vpop.f32.mrf.mxu0
        %v2175 = vadd.f32 %v2122, %v2174
        %v2176 = vpop.f32.mrf.mxu0
        %v2177 = vadd.f32 %v2124, %v2176
        %v2178 = vpop.f32.mrf.mxu0
        %v2179 = vadd.f32 %v2126, %v2178
        %v2180 = vpop.f32.mrf.mxu0
        %v2181 = vadd.f32 %v2128, %v2180
        %2182 = vmatprep.mubr.bf16.mxu0 %v684
        %2183 = vmatmul.mubr.bf16.gmra.mxu0 %v683
        %v2184 = vpop.f32.mrf.mxu0
        %v2185 = vadd.f32 %v2132, %v2184
        %v2186 = vpop.f32.mrf.mxu0
        %v2187 = vadd.f32 %v2134, %v2186
        %v2188 = vpop.f32.mrf.mxu0
        %v2189 = vadd.f32 %v2136, %v2188
        %v2190 = vpop.f32.mrf.mxu0
        %v2191 = vadd.f32 %v2138, %v2190
        %2192 = vdwg.mxu0
        %2193 = vmatprep.subr.bf16.mxu0 %v1500
        %2194 = vmatpush1.bf16.msra.mxu0 %v1499
        %2195 = vmatprep.subr.bf16.mxu0 %v1496
        %2196 = vmatpush1.bf16.msra.mxu0 %v1495
        %2197 = vmatprep.subr.bf16.mxu0 %v1492
        %2198 = vmatpush1.bf16.msra.mxu0 %v1491
        %2199 = vmatprep.subr.bf16.mxu0 %v1488
        %2200 = vmatpush1.bf16.msra.mxu0 %v1487
        %2201 = vmatprep.subr.bf16.mxu0 %v1484
        %2202 = vmatpush1.bf16.msra.mxu0 %v1483
        %2203 = vmatprep.subr.bf16.mxu0 %v1480
        %2204 = vmatpush1.bf16.msra.mxu0 %v1479
        %2205 = vmatprep.subr.bf16.mxu0 %v1476
        %2206 = vmatpush1.bf16.msra.mxu0 %v1475
        %2207 = vmatprep.subr.bf16.mxu0 %v1472
        %2208 = vmatpush1.bf16.msra.mxu0 %v1471
        %2209 = vmatprep.subr.bf16.mxu0 %v1532
        %2210 = vmatpush2.bf16.msra.mxu0 %v1531
        %2211 = vmatprep.subr.bf16.mxu0 %v1528
        %2212 = vmatpush2.bf16.msra.mxu0 %v1527
        %2213 = vmatprep.subr.bf16.mxu0 %v1524
        %2214 = vmatpush2.bf16.msra.mxu0 %v1523
        %2215 = vmatprep.subr.bf16.mxu0 %v1520
        %2216 = vmatpush2.bf16.msra.mxu0 %v1519
        %2217 = vmatprep.subr.bf16.mxu0 %v1516
        %2218 = vmatpush2.bf16.msra.mxu0 %v1515
        %2219 = vmatprep.subr.bf16.mxu0 %v1512
        %2220 = vmatpush2.bf16.msra.mxu0 %v1511
        %2221 = vmatprep.subr.bf16.mxu0 %v1508
        %2222 = vmatpush2.bf16.msra.mxu0 %v1507
        %2223 = vmatprep.subr.bf16.mxu0 %v1504
        %2224 = vmatpush2.bf16.msra.mxu0 %v1503
        %2225 = vmatprep.mubr.bf16.mxu0 %v670
        %2226 = vmatmul.mubr.bf16.gmra.mxu0 %v669
        %v2227 = vpop.f32.mrf.mxu0
        %v2228 = vadd.f32 0.0, %v2227
        %v2229 = vpop.f32.mrf.mxu0
        %v2230 = vadd.f32 0.0, %v2229
        %v2231 = vpop.f32.mrf.mxu0
        %v2232 = vadd.f32 0.0, %v2231
        %v2233 = vpop.f32.mrf.mxu0
        %v2234 = vadd.f32 0.0, %v2233
        %2235 = vmatprep.mubr.bf16.mxu0 %v678
        %2236 = vmatmul.mubr.bf16.gmra.mxu0 %v677
        %v2237 = vpop.f32.mrf.mxu0
        %v2238 = vadd.f32 0.0, %v2237
        %v2239 = vpop.f32.mrf.mxu0
        %v2240 = vadd.f32 0.0, %v2239
        %v2241 = vpop.f32.mrf.mxu0
        %v2242 = vadd.f32 0.0, %v2241
        %v2243 = vpop.f32.mrf.mxu0
        %v2244 = vadd.f32 0.0, %v2243
        %2245 = vdwg.mxu0
        %2246 = vmatprep.subr.bf16.mxu0 %v1564
        %2247 = vmatpush1.bf16.msra.mxu0 %v1563
        %2248 = vmatprep.subr.bf16.mxu0 %v1560
        %2249 = vmatpush1.bf16.msra.mxu0 %v1559
        %2250 = vmatprep.subr.bf16.mxu0 %v1556
        %2251 = vmatpush1.bf16.msra.mxu0 %v1555
        %2252 = vmatprep.subr.bf16.mxu0 %v1552
        %2253 = vmatpush1.bf16.msra.mxu0 %v1551
        %2254 = vmatprep.subr.bf16.mxu0 %v1548
        %2255 = vmatpush1.bf16.msra.mxu0 %v1547
        %2256 = vmatprep.subr.bf16.mxu0 %v1544
        %2257 = vmatpush1.bf16.msra.mxu0 %v1543
        %2258 = vmatprep.subr.bf16.mxu0 %v1540
        %2259 = vmatpush1.bf16.msra.mxu0 %v1539
        %2260 = vmatprep.subr.bf16.mxu0 %v1536
        %2261 = vmatpush1.bf16.msra.mxu0 %v1535
        %2262 = vmatprep.subr.bf16.mxu0 %v1596
        %2263 = vmatpush2.bf16.msra.mxu0 %v1595
        %2264 = vmatprep.subr.bf16.mxu0 %v1592
        %2265 = vmatpush2.bf16.msra.mxu0 %v1591
        %2266 = vmatprep.subr.bf16.mxu0 %v1588
        %2267 = vmatpush2.bf16.msra.mxu0 %v1587
        %2268 = vmatprep.subr.bf16.mxu0 %v1584
        %2269 = vmatpush2.bf16.msra.mxu0 %v1583
        %2270 = vmatprep.subr.bf16.mxu0 %v1580
        %2271 = vmatpush2.bf16.msra.mxu0 %v1579
        %2272 = vmatprep.subr.bf16.mxu0 %v1576
        %2273 = vmatpush2.bf16.msra.mxu0 %v1575
        %2274 = vmatprep.subr.bf16.mxu0 %v1572
        %2275 = vmatpush2.bf16.msra.mxu0 %v1571
        %2276 = vmatprep.subr.bf16.mxu0 %v1568
        %2277 = vmatpush2.bf16.msra.mxu0 %v1567
        %2278 = vmatprep.mubr.bf16.mxu0 %v672
        %2279 = vmatmul.mubr.bf16.gmra.mxu0 %v671
        %v2280 = vpop.f32.mrf.mxu0
        %v2281 = vadd.f32 %v2228, %v2280
        %v2282 = vpop.f32.mrf.mxu0
        %v2283 = vadd.f32 %v2230, %v2282
        %v2284 = vpop.f32.mrf.mxu0
        %v2285 = vadd.f32 %v2232, %v2284
        %v2286 = vpop.f32.mrf.mxu0
        %v2287 = vadd.f32 %v2234, %v2286
        %2288 = vmatprep.mubr.bf16.mxu0 %v680
        %2289 = vmatmul.mubr.bf16.gmra.mxu0 %v679
        %v2290 = vpop.f32.mrf.mxu0
        %v2291 = vadd.f32 %v2238, %v2290
        %v2292 = vpop.f32.mrf.mxu0
        %v2293 = vadd.f32 %v2240, %v2292
        %v2294 = vpop.f32.mrf.mxu0
        %v2295 = vadd.f32 %v2242, %v2294
        %v2296 = vpop.f32.mrf.mxu0
        %v2297 = vadd.f32 %v2244, %v2296
        %2298 = vdwg.mxu0
        %2299 = vmatprep.subr.bf16.mxu0 %v1628
        %2300 = vmatpush1.bf16.msra.mxu0 %v1627
        %2301 = vmatprep.subr.bf16.mxu0 %v1624
        %2302 = vmatpush1.bf16.msra.mxu0 %v1623
        %2303 = vmatprep.subr.bf16.mxu0 %v1620
        %2304 = vmatpush1.bf16.msra.mxu0 %v1619
        %2305 = vmatprep.subr.bf16.mxu0 %v1616
        %2306 = vmatpush1.bf16.msra.mxu0 %v1615
        %2307 = vmatprep.subr.bf16.mxu0 %v1612
        %2308 = vmatpush1.bf16.msra.mxu0 %v1611
        %2309 = vmatprep.subr.bf16.mxu0 %v1608
        %2310 = vmatpush1.bf16.msra.mxu0 %v1607
        %2311 = vmatprep.subr.bf16.mxu0 %v1604
        %2312 = vmatpush1.bf16.msra.mxu0 %v1603
        %2313 = vmatprep.subr.bf16.mxu0 %v1600
        %2314 = vmatpush1.bf16.msra.mxu0 %v1599
        %2315 = vmatprep.subr.bf16.mxu0 %v1660
        %2316 = vmatpush2.bf16.msra.mxu0 %v1659
        %2317 = vmatprep.subr.bf16.mxu0 %v1656
        %2318 = vmatpush2.bf16.msra.mxu0 %v1655
        %2319 = vmatprep.subr.bf16.mxu0 %v1652
        %2320 = vmatpush2.bf16.msra.mxu0 %v1651
        %2321 = vmatprep.subr.bf16.mxu0 %v1648
        %2322 = vmatpush2.bf16.msra.mxu0 %v1647
        %2323 = vmatprep.subr.bf16.mxu0 %v1644
        %2324 = vmatpush2.bf16.msra.mxu0 %v1643
        %2325 = vmatprep.subr.bf16.mxu0 %v1640
        %2326 = vmatpush2.bf16.msra.mxu0 %v1639
        %2327 = vmatprep.subr.bf16.mxu0 %v1636
        %2328 = vmatpush2.bf16.msra.mxu0 %v1635
        %2329 = vmatprep.subr.bf16.mxu0 %v1632
        %2330 = vmatpush2.bf16.msra.mxu0 %v1631
        %2331 = vmatprep.mubr.bf16.mxu0 %v674
        %2332 = vmatmul.mubr.bf16.gmra.mxu0 %v673
        %v2333 = vpop.f32.mrf.mxu0
        %v2334 = vadd.f32 %v2281, %v2333
        %v2335 = vpop.f32.mrf.mxu0
        %v2336 = vadd.f32 %v2283, %v2335
        %v2337 = vpop.f32.mrf.mxu0
        %v2338 = vadd.f32 %v2285, %v2337
        %v2339 = vpop.f32.mrf.mxu0
        %v2340 = vadd.f32 %v2287, %v2339
        %2341 = vmatprep.mubr.bf16.mxu0 %v682
        %2342 = vmatmul.mubr.bf16.gmra.mxu0 %v681
        %v2343 = vpop.f32.mrf.mxu0
        %v2344 = vadd.f32 %v2291, %v2343
        %v2345 = vpop.f32.mrf.mxu0
        %v2346 = vadd.f32 %v2293, %v2345
        %v2347 = vpop.f32.mrf.mxu0
        %v2348 = vadd.f32 %v2295, %v2347
        %v2349 = vpop.f32.mrf.mxu0
        %v2350 = vadd.f32 %v2297, %v2349
        %2351 = vdwg.mxu0
        %2352 = vmatprep.subr.bf16.mxu0 %v1692
        %2353 = vmatpush1.bf16.msra.mxu0 %v1691
        %2354 = vmatprep.subr.bf16.mxu0 %v1688
        %2355 = vmatpush1.bf16.msra.mxu0 %v1687
        %2356 = vmatprep.subr.bf16.mxu0 %v1684
        %2357 = vmatpush1.bf16.msra.mxu0 %v1683
        %2358 = vmatprep.subr.bf16.mxu0 %v1680
        %2359 = vmatpush1.bf16.msra.mxu0 %v1679
        %2360 = vmatprep.subr.bf16.mxu0 %v1676
        %2361 = vmatpush1.bf16.msra.mxu0 %v1675
        %2362 = vmatprep.subr.bf16.mxu0 %v1672
        %2363 = vmatpush1.bf16.msra.mxu0 %v1671
        %2364 = vmatprep.subr.bf16.mxu0 %v1668
        %2365 = vmatpush1.bf16.msra.mxu0 %v1667
        %2366 = vmatprep.subr.bf16.mxu0 %v1664
        %2367 = vmatpush1.bf16.msra.mxu0 %v1663
        %2368 = vmatprep.subr.bf16.mxu0 %v1724
        %2369 = vmatpush2.bf16.msra.mxu0 %v1723
        %2370 = vmatprep.subr.bf16.mxu0 %v1720
        %2371 = vmatpush2.bf16.msra.mxu0 %v1719
        %2372 = vmatprep.subr.bf16.mxu0 %v1716
        %2373 = vmatpush2.bf16.msra.mxu0 %v1715
        %2374 = vmatprep.subr.bf16.mxu0 %v1712
        %2375 = vmatpush2.bf16.msra.mxu0 %v1711
        %2376 = vmatprep.subr.bf16.mxu0 %v1708
        %2377 = vmatpush2.bf16.msra.mxu0 %v1707
        %2378 = vmatprep.subr.bf16.mxu0 %v1704
        %2379 = vmatpush2.bf16.msra.mxu0 %v1703
        %2380 = vmatprep.subr.bf16.mxu0 %v1700
        %2381 = vmatpush2.bf16.msra.mxu0 %v1699
        %2382 = vmatprep.subr.bf16.mxu0 %v1696
        %2383 = vmatpush2.bf16.msra.mxu0 %v1695
        %2384 = vmatprep.mubr.bf16.mxu0 %v676
        %2385 = vmatmul.mubr.bf16.gmra.mxu0 %v675
        %v2386 = vpop.f32.mrf.mxu0
        %v2387 = vadd.f32 %v2334, %v2386
        %v2388 = vpop.f32.mrf.mxu0
        %v2389 = vadd.f32 %v2336, %v2388
        %v2390 = vpop.f32.mrf.mxu0
        %v2391 = vadd.f32 %v2338, %v2390
        %v2392 = vpop.f32.mrf.mxu0
        %v2393 = vadd.f32 %v2340, %v2392
        %2394 = vmatprep.mubr.bf16.mxu0 %v684
        %2395 = vmatmul.mubr.bf16.gmra.mxu0 %v683
        %v2396 = vpop.f32.mrf.mxu0
        %v2397 = vadd.f32 %v2344, %v2396
        %v2398 = vpop.f32.mrf.mxu0
        %v2399 = vadd.f32 %v2346, %v2398
        %v2400 = vpop.f32.mrf.mxu0
        %v2401 = vadd.f32 %v2348, %v2400
        %v2402 = vpop.f32.mrf.mxu0
        %v2403 = vadd.f32 %v2350, %v2402
        %2404 = vdwg.mxu0
        %v2405 = vadd.f32 %v333, %v2175
        %v2406 = vadd.f32 %v334, %v2177
        %v2407 = vadd.f32 %v335, %v2387
        %v2408 = vadd.f32 %v336, %v2389
        %v2409 = vadd.f32 %v337, %v2179
        %v2410 = vadd.f32 %v338, %v2181
        %v2411 = vadd.f32 %v339, %v2391
        %v2412 = vadd.f32 %v340, %v2393
        %v2413 = vadd.f32 %v341, %v2185
        %v2414 = vadd.f32 %v342, %v2187
        %v2415 = vadd.f32 %v343, %v2397
        %v2416 = vadd.f32 %v344, %v2399
        %v2417 = vadd.f32 %v345, %v2189
        %v2418 = vadd.f32 %v346, %v2191
        %v2419 = vadd.f32 %v347, %v2401
        %v2420 = vadd.f32 %v348, %v2403
        %2421 = vst [vmem:[#allocation2] sm:$0xff] %v2405
        %2422 = vst [vmem:[#allocation2 + $0x8] sm:$0xff] %v2406
        %2423 = vst [vmem:[#allocation2 + $0x10] sm:$0xff] %v2407
        %2424 = vst [vmem:[#allocation2 + $0x18] sm:$0xff] %v2408
        %2425 = vst [vmem:[#allocation2 + $0x20] sm:$0xff] %v2409
        %2426 = vst [vmem:[#allocation2 + $0x28] sm:$0xff] %v2410
        %2427 = vst [vmem:[#allocation2 + $0x30] sm:$0xff] %v2411
        %2428 = vst [vmem:[#allocation2 + $0x38] sm:$0xff] %v2412
        %2429 = vst [vmem:[#allocation2 + $0x40] sm:$0xff] %v2413
        %2430 = vst [vmem:[#allocation2 + $0x48] sm:$0xff] %v2414
        %2431 = vst [vmem:[#allocation2 + $0x50] sm:$0xff] %v2415
        %2432 = vst [vmem:[#allocation2 + $0x58] sm:$0xff] %v2416
        %2433 = vst [vmem:[#allocation2 + $0x60] sm:$0xff] %v2417
        %2434 = vst [vmem:[#allocation2 + $0x68] sm:$0xff] %v2418
        %2435 = vst [vmem:[#allocation2 + $0x70] sm:$0xff] %v2419
        %2436 = vst [vmem:[#allocation2 + $0x78] sm:$0xff] %v2420
        %p2437 = scmp.eq.s32.totalorder %s17, 3
        // Predicated region
        $region72: #{discriminator_forward.7} parent=62 // pred_check
          %p2438 = pneg %p2437
        $region73: #{discriminator_forward.7} parent=62 // pred_check_branch
          %2440 = sbr.rel (%p2438) target = $region75
        $region74: #{discriminator_forward.7} parent=62 // pred_region
          %v2441 = vld [vmem:[#allocation2] sm:$0xff]
          %v2442 = vld [vmem:[#allocation2 + $0x8] sm:$0xff]
          %v2443 = vld [vmem:[#allocation2 + $0x10] sm:$0xff]
          %v2444 = vld [vmem:[#allocation2 + $0x18] sm:$0xff]
          %v2445 = vld [vmem:[#allocation2 + $0x20] sm:$0xff]
          %v2446 = vld [vmem:[#allocation2 + $0x28] sm:$0xff]
          %v2447 = vld [vmem:[#allocation2 + $0x30] sm:$0xff]
          %v2448 = vld [vmem:[#allocation2 + $0x38] sm:$0xff]
          %v2449 = vld [vmem:[#allocation2 + $0x40] sm:$0xff]
          %v2450 = vld [vmem:[#allocation2 + $0x48] sm:$0xff]
          %v2451 = vld [vmem:[#allocation2 + $0x50] sm:$0xff]
          %v2452 = vld [vmem:[#allocation2 + $0x58] sm:$0xff]
          %v2453 = vld [vmem:[#allocation2 + $0x60] sm:$0xff]
          %v2454 = vld [vmem:[#allocation2 + $0x68] sm:$0xff]
          %v2455 = vld [vmem:[#allocation2 + $0x70] sm:$0xff]
          %v2456 = vld [vmem:[#allocation2 + $0x78] sm:$0xff]
          %v2457 = vadd.f32 %v2441, %v2445
          %v2458 = vadd.f32 %v2457, %v2449
          %v2459 = vadd.f32 %v2458, %v2453
          %v2460 = vrot.slane %v2459, 4
          %v2461 = vadd.f32 %v2459, %v2460
          %v2462 = vrot.slane %v2461, 2
          %v2463 = vadd.f32 %v2461, %v2462
          %v2464 = vrot.slane %v2463, 1
          %v2465 = vadd.f32 %v2463, %v2464
          %v2466 = vadd.f32 %v2442, %v2446
          %v2467 = vadd.f32 %v2466, %v2450
          %v2468 = vadd.f32 %v2467, %v2454
          %v2469 = vrot.slane %v2468, 4
          %v2470 = vadd.f32 %v2468, %v2469
          %v2471 = vrot.slane %v2470, 2
          %v2472 = vadd.f32 %v2470, %v2471
          %v2473 = vrot.slane %v2472, 1
          %v2474 = vadd.f32 %v2472, %v2473
          %v2475 = vadd.f32 %v2443, %v2447
          %v2476 = vadd.f32 %v2475, %v2451
          %v2477 = vadd.f32 %v2476, %v2455
          %v2478 = vrot.slane %v2477, 4
          %v2479 = vadd.f32 %v2477, %v2478
          %v2480 = vrot.slane %v2479, 2
          %v2481 = vadd.f32 %v2479, %v2480
          %v2482 = vrot.slane %v2481, 1
          %v2483 = vadd.f32 %v2481, %v2482
          %v2484 = vadd.f32 %v2444, %v2448
          %v2485 = vadd.f32 %v2484, %v2452
          %v2486 = vadd.f32 %v2485, %v2456
          %v2487 = vrot.slane %v2486, 4
          %v2488 = vadd.f32 %v2486, %v2487
          %v2489 = vrot.slane %v2488, 2
          %v2490 = vadd.f32 %v2488, %v2489
          %v2491 = vrot.slane %v2490, 1
          %v2492 = vadd.f32 %v2490, %v2491
          %v2493 = vrcp.pop 32.0
          %v2494 = vmul.f32 %v2465, %v2493
          %v2495 = vmul.f32 %v2474, %v2493
          %v2496 = vmul.f32 %v2483, %v2493
          %v2497 = vmul.f32 %v2492, %v2493
          %v2498 = vsub.f32 %v2441, %v2494
          %v2499 = vsub.f32 %v2442, %v2495
          %v2500 = vsub.f32 %v2443, %v2496
          %v2501 = vsub.f32 %v2444, %v2497
          %v2502 = vsub.f32 %v2445, %v2494
          %v2503 = vsub.f32 %v2446, %v2495
          %v2504 = vsub.f32 %v2447, %v2496
          %v2505 = vsub.f32 %v2448, %v2497
          %v2506 = vsub.f32 %v2449, %v2494
          %v2507 = vsub.f32 %v2450, %v2495
          %v2508 = vsub.f32 %v2451, %v2496
          %v2509 = vsub.f32 %v2452, %v2497
          %v2510 = vsub.f32 %v2453, %v2494
          %v2511 = vsub.f32 %v2454, %v2495
          %v2512 = vsub.f32 %v2455, %v2496
          %v2513 = vsub.f32 %v2456, %v2497
          %v2514 = vmul.f32 %v2498, %v2498
          %v2515 = vmul.f32 %v2499, %v2499
          %v2516 = vmul.f32 %v2500, %v2500
          %v2517 = vmul.f32 %v2501, %v2501
          %v2518 = vmul.f32 %v2502, %v2502
          %v2519 = vmul.f32 %v2503, %v2503
          %v2520 = vmul.f32 %v2504, %v2504
          %v2521 = vmul.f32 %v2505, %v2505
          %v2522 = vmul.f32 %v2506, %v2506
          %v2523 = vmul.f32 %v2507, %v2507
          %v2524 = vmul.f32 %v2508, %v2508
          %v2525 = vmul.f32 %v2509, %v2509
          %v2526 = vmul.f32 %v2510, %v2510
          %v2527 = vmul.f32 %v2511, %v2511
          %v2528 = vmul.f32 %v2512, %v2512
          %v2529 = vmul.f32 %v2513, %v2513
          %v2530 = vadd.f32 %v2514, %v2518
          %v2531 = vadd.f32 %v2530, %v2522
          %v2532 = vadd.f32 %v2531, %v2526
          %v2533 = vrot.slane %v2532, 4
          %v2534 = vadd.f32 %v2532, %v2533
          %v2535 = vrot.slane %v2534, 2
          %v2536 = vadd.f32 %v2534, %v2535
          %v2537 = vrot.slane %v2536, 1
          %v2538 = vadd.f32 %v2536, %v2537
          %v2539 = vadd.f32 %v2515, %v2519
          %v2540 = vadd.f32 %v2539, %v2523
          %v2541 = vadd.f32 %v2540, %v2527
          %v2542 = vrot.slane %v2541, 4
          %v2543 = vadd.f32 %v2541, %v2542
          %v2544 = vrot.slane %v2543, 2
          %v2545 = vadd.f32 %v2543, %v2544
          %v2546 = vrot.slane %v2545, 1
          %v2547 = vadd.f32 %v2545, %v2546
          %v2548 = vadd.f32 %v2516, %v2520
          %v2549 = vadd.f32 %v2548, %v2524
          %v2550 = vadd.f32 %v2549, %v2528
          %v2551 = vrot.slane %v2550, 4
          %v2552 = vadd.f32 %v2550, %v2551
          %v2553 = vrot.slane %v2552, 2
          %v2554 = vadd.f32 %v2552, %v2553
          %v2555 = vrot.slane %v2554, 1
          %v2556 = vadd.f32 %v2554, %v2555
          %v2557 = vadd.f32 %v2517, %v2521
          %v2558 = vadd.f32 %v2557, %v2525
          %v2559 = vadd.f32 %v2558, %v2529
          %v2560 = vrot.slane %v2559, 4
          %v2561 = vadd.f32 %v2559, %v2560
          %v2562 = vrot.slane %v2561, 2
          %v2563 = vadd.f32 %v2561, %v2562
          %v2564 = vrot.slane %v2563, 1
          %v2565 = vadd.f32 %v2563, %v2564
          %v2566 = vmul.f32 %v2538, %v2493
          %v2567 = vmul.f32 %v2547, %v2493
          %v2568 = vmul.f32 %v2556, %v2493
          %v2569 = vmul.f32 %v2565, %v2493
          %v2570 = vld [vmem:[%s2] sm:$0xf]
          %v2571 = vadd.f32 %v2566, 1e-05
          %v2572 = vadd.f32 %v2567, 1e-05
          %v2573 = vadd.f32 %v2568, 1e-05
          %v2574 = vadd.f32 %v2569, 1e-05
          %v2575 = vrsqrt.pop %v2571
          %v2576 = vrsqrt.pop %v2572
          %v2577 = vrsqrt.pop %v2573
          %v2578 = vrsqrt.pop %v2574
          %v2583 = vcombine.low %v2575, %v2576
          %v2584 = vcombine.low %v2577, %v2578
          %v2586 = vunpack.c.l.s4 1966171168
          %v2587 = vunpack.c.0.s8 %v2586
          %v2588 = vlaneseq
          %v2589 = vshrl.u32 %v2588, 7
          %v2590 = vsub.s32 %v2587, %v2589
          %v2591 = vrot.slane %v2583, %v2590
          %v2593 = vunpack.c.l.s4 1966171168
          %v2594 = vunpack.c.0.s8 %v2593
          %v2595 = vlaneseq
          %v2596 = vshrl.u32 %v2595, 7
          %v2597 = vsub.s32 %v2594, %v2596
          %v2598 = vrot.slane %v2584, %v2597
          %v2599 = vcombine.low %v2591, %v2598
          %v2601 = vunpack.c.l.s4 1966171168
          %v2602 = vunpack.c.0.s8 %v2601
          %v2603 = vlaneseq
          %v2604 = vshrl.u32 %v2603, 7
          %v2605 = vsub.s32 %v2602, %v2604
          %v2606 = vrot.slane %v2599, %v2605
          %v2608 = vmul.f32 %v2570, %v2606
          %v2609 = vld [vmem:[%s3] sm:$0xf]
          %v2611 = vlaneseq
          %v2612 = vshrl.u32 %v2611, 7
          %v2613 = vsub.s32 0, %v2612
          %v2614 = vrot.slane %v2608, %v2613
          %v2615 = vlaneseq
          %v2616 = vshrl.u32 %v2615, 7
          %v2617 = vsub.s32 1, %v2616
          %v2618 = vrot.slane %v2608, %v2617
          %v2619 = vlaneseq
          %v2620 = vshrl.u32 %v2619, 7
          %v2621 = vsub.s32 2, %v2620
          %v2622 = vrot.slane %v2608, %v2621
          %v2623 = vlaneseq
          %v2624 = vshrl.u32 %v2623, 7
          %v2625 = vsub.s32 3, %v2624
          %v2626 = vrot.slane %v2608, %v2625
          %v2631 = vmul.f32 %v2494, %v2614
          %v2632 = vmul.f32 %v2495, %v2618
          %v2633 = vmul.f32 %v2496, %v2622
          %v2634 = vmul.f32 %v2497, %v2626
          %v2639 = vcombine.low %v2631, %v2632
          %v2640 = vcombine.low %v2633, %v2634
          %v2642 = vunpack.c.l.s4 1966171168
          %v2643 = vunpack.c.0.s8 %v2642
          %v2644 = vlaneseq
          %v2645 = vshrl.u32 %v2644, 7
          %v2646 = vsub.s32 %v2643, %v2645
          %v2647 = vrot.slane %v2639, %v2646
          %v2649 = vunpack.c.l.s4 1966171168
          %v2650 = vunpack.c.0.s8 %v2649
          %v2651 = vlaneseq
          %v2652 = vshrl.u32 %v2651, 7
          %v2653 = vsub.s32 %v2650, %v2652
          %v2654 = vrot.slane %v2640, %v2653
          %v2655 = vcombine.low %v2647, %v2654
          %v2657 = vunpack.c.l.s4 1966171168
          %v2658 = vunpack.c.0.s8 %v2657
          %v2659 = vlaneseq
          %v2660 = vshrl.u32 %v2659, 7
          %v2661 = vsub.s32 %v2658, %v2660
          %v2662 = vrot.slane %v2655, %v2661
          %v2664 = vsub.f32 %v2609, %v2662
          %v2665 = vmul.f32 %v2441, %v2614
          %v2666 = vmul.f32 %v2442, %v2618
          %v2667 = vmul.f32 %v2443, %v2622
          %v2668 = vmul.f32 %v2444, %v2626
          %v2669 = vmul.f32 %v2445, %v2614
          %v2670 = vmul.f32 %v2446, %v2618
          %v2671 = vmul.f32 %v2447, %v2622
          %v2672 = vmul.f32 %v2448, %v2626
          %v2673 = vmul.f32 %v2449, %v2614
          %v2674 = vmul.f32 %v2450, %v2618
          %v2675 = vmul.f32 %v2451, %v2622
          %v2676 = vmul.f32 %v2452, %v2626
          %v2677 = vmul.f32 %v2453, %v2614
          %v2678 = vmul.f32 %v2454, %v2618
          %v2679 = vmul.f32 %v2455, %v2622
          %v2680 = vmul.f32 %v2456, %v2626
          %v2682 = vlaneseq
          %v2683 = vshrl.u32 %v2682, 7
          %v2684 = vsub.s32 0, %v2683
          %v2685 = vrot.slane %v2664, %v2684
          %v2686 = vlaneseq
          %v2687 = vshrl.u32 %v2686, 7
          %v2688 = vsub.s32 1, %v2687
          %v2689 = vrot.slane %v2664, %v2688
          %v2690 = vlaneseq
          %v2691 = vshrl.u32 %v2690, 7
          %v2692 = vsub.s32 2, %v2691
          %v2693 = vrot.slane %v2664, %v2692
          %v2694 = vlaneseq
          %v2695 = vshrl.u32 %v2694, 7
          %v2696 = vsub.s32 3, %v2695
          %v2697 = vrot.slane %v2664, %v2696
          %v2702 = vadd.f32 %v2665, %v2685
          %v2703 = vadd.f32 %v2666, %v2689
          %v2704 = vadd.f32 %v2667, %v2693
          %v2705 = vadd.f32 %v2668, %v2697
          %v2706 = vadd.f32 %v2669, %v2685
          %v2707 = vadd.f32 %v2670, %v2689
          %v2708 = vadd.f32 %v2671, %v2693
          %v2709 = vadd.f32 %v2672, %v2697
          %v2710 = vadd.f32 %v2673, %v2685
          %v2711 = vadd.f32 %v2674, %v2689
          %v2712 = vadd.f32 %v2675, %v2693
          %v2713 = vadd.f32 %v2676, %v2697
          %v2714 = vadd.f32 %v2677, %v2685
          %v2715 = vadd.f32 %v2678, %v2689
          %v2716 = vadd.f32 %v2679, %v2693
          %v2717 = vadd.f32 %v2680, %v2697
          %vm2718 = vcmp.gt.f32.partialorder %v2702, 0.0
          %vm2719 = vcmp.gt.f32.partialorder %v2703, 0.0
          %vm2720 = vcmp.gt.f32.partialorder %v2704, 0.0
          %vm2721 = vcmp.gt.f32.partialorder %v2705, 0.0
          %vm2722 = vcmp.gt.f32.partialorder %v2706, 0.0
          %vm2723 = vcmp.gt.f32.partialorder %v2707, 0.0
          %vm2724 = vcmp.gt.f32.partialorder %v2708, 0.0
          %vm2725 = vcmp.gt.f32.partialorder %v2709, 0.0
          %vm2726 = vcmp.gt.f32.partialorder %v2710, 0.0
          %vm2727 = vcmp.gt.f32.partialorder %v2711, 0.0
          %vm2728 = vcmp.gt.f32.partialorder %v2712, 0.0
          %vm2729 = vcmp.gt.f32.partialorder %v2713, 0.0
          %vm2730 = vcmp.gt.f32.partialorder %v2714, 0.0
          %vm2731 = vcmp.gt.f32.partialorder %v2715, 0.0
          %vm2732 = vcmp.gt.f32.partialorder %v2716, 0.0
          %vm2733 = vcmp.gt.f32.partialorder %v2717, 0.0
          %v2734 = vmul.f32 %v2702, 0.2
          %v2735 = vmul.f32 %v2703, 0.2
          %v2736 = vmul.f32 %v2704, 0.2
          %v2737 = vmul.f32 %v2705, 0.2
          %v2738 = vmul.f32 %v2706, 0.2
          %v2739 = vmul.f32 %v2707, 0.2
          %v2740 = vmul.f32 %v2708, 0.2
          %v2741 = vmul.f32 %v2709, 0.2
          %v2742 = vmul.f32 %v2710, 0.2
          %v2743 = vmul.f32 %v2711, 0.2
          %v2744 = vmul.f32 %v2712, 0.2
          %v2745 = vmul.f32 %v2713, 0.2
          %v2746 = vmul.f32 %v2714, 0.2
          %v2747 = vmul.f32 %v2715, 0.2
          %v2748 = vmul.f32 %v2716, 0.2
          %v2749 = vmul.f32 %v2717, 0.2
          %v2750 = vsel %vm2718, %v2702, %v2734
          %v2751 = vsel %vm2719, %v2703, %v2735
          %v2752 = vsel %vm2720, %v2704, %v2736
          %v2753 = vsel %vm2721, %v2705, %v2737
          %v2754 = vsel %vm2722, %v2706, %v2738
          %v2755 = vsel %vm2723, %v2707, %v2739
          %v2756 = vsel %vm2724, %v2708, %v2740
          %v2757 = vsel %vm2725, %v2709, %v2741
          %v2758 = vsel %vm2726, %v2710, %v2742
          %v2759 = vsel %vm2727, %v2711, %v2743
          %v2760 = vsel %vm2728, %v2712, %v2744
          %v2761 = vsel %vm2729, %v2713, %v2745
          %v2762 = vsel %vm2730, %v2714, %v2746
          %v2763 = vsel %vm2731, %v2715, %v2747
          %v2764 = vsel %vm2732, %v2716, %v2748
          %v2765 = vsel %vm2733, %v2717, %v2749
          %v2766 = vld [vmem:[%s4] sm:$0xff]
          %v2767 = vld [vmem:[%s4 + $0x8] sm:$0xff]
          %v2768 = vld [vmem:[%s4 + $0x10] sm:$0xff]
          %v2769 = vld [vmem:[%s4 + $0x18] sm:$0xff]
          %v2770 = vld [vmem:[%s4 + $0x20] sm:$0xff]
          %v2771 = vld [vmem:[%s4 + $0x28] sm:$0xff]
          %v2772 = vld [vmem:[%s4 + $0x30] sm:$0xff]
          %v2773 = vld [vmem:[%s4 + $0x38] sm:$0xff]
          %v2774 = vld [vmem:[%s4 + $0x40] sm:$0xff]
          %v2775 = vld [vmem:[%s4 + $0x48] sm:$0xff]
          %v2776 = vld [vmem:[%s4 + $0x50] sm:$0xff]
          %v2777 = vld [vmem:[%s4 + $0x58] sm:$0xff]
          %v2778 = vld [vmem:[%s4 + $0x60] sm:$0xff]
          %v2779 = vld [vmem:[%s4 + $0x68] sm:$0xff]
          %v2780 = vld [vmem:[%s4 + $0x70] sm:$0xff]
          %v2781 = vld [vmem:[%s4 + $0x78] sm:$0xff]
          %v2782 = vmul.f32 %v2750, %v2766
          %v2783 = vmul.f32 %v2751, %v2767
          %v2784 = vmul.f32 %v2752, %v2768
          %v2785 = vmul.f32 %v2753, %v2769
          %v2786 = vmul.f32 %v2754, %v2770
          %v2787 = vmul.f32 %v2755, %v2771
          %v2788 = vmul.f32 %v2756, %v2772
          %v2789 = vmul.f32 %v2757, %v2773
          %v2790 = vmul.f32 %v2758, %v2774
          %v2791 = vmul.f32 %v2759, %v2775
          %v2792 = vmul.f32 %v2760, %v2776
          %v2793 = vmul.f32 %v2761, %v2777
          %v2794 = vmul.f32 %v2762, %v2778
          %v2795 = vmul.f32 %v2763, %v2779
          %v2796 = vmul.f32 %v2764, %v2780
          %v2797 = vmul.f32 %v2765, %v2781
          %v2798 = vld [vmem:[%s5] sm:$0x3]
          %vm2799 = vcmask 261120
          %v2801 = vsel %vm2799, %v2798, 0
          %2803 = vmatprep.subr.mxu0 0.0
          %2804 = vmatpush1.msra.mxu0 0.0
          %2805 = vmatprep.subr.mxu0 0.0
          %2806 = vmatpush1.msra.mxu0 0.0
          %2807 = vmatprep.subr.mxu0 0.0
          %2808 = vmatpush1.msra.mxu0 0.0
          %2809 = vmatprep.subr.mxu0 0.0
          %2810 = vmatpush1.msra.mxu0 0.0
          %2811 = vmatprep.subr.mxu0 0.0
          %2812 = vmatpush1.msra.mxu0 0.0
          %2813 = vmatprep.subr.mxu0 0.0
          %2814 = vmatpush1.msra.mxu0 0.0
          %2815 = vmatprep.subr.mxu0 0.0
          %2816 = vmatpush1.msra.mxu0 0.0
          %2817 = vmatprep.subr.mxu0 0.0
          %2818 = vmatpush1.msra.mxu0 0.0
          %2819 = vmatprep.subr.mxu0 0.0
          %2820 = vmatpush1.msra.mxu0 0.0
          %2821 = vmatprep.subr.mxu0 0.0
          %2822 = vmatpush1.msra.mxu0 0.0
          %2823 = vmatprep.subr.mxu0 0.0
          %2824 = vmatpush1.msra.mxu0 0.0
          %2825 = vmatprep.subr.mxu0 0.0
          %2826 = vmatpush1.msra.mxu0 0.0
          %2827 = vmatprep.subr.mxu0 %v2795
          %2828 = vmatpush1.msra.mxu0 %v2794
          %2829 = vmatprep.subr.mxu0 %v2791
          %2830 = vmatpush1.msra.mxu0 %v2790
          %2831 = vmatprep.subr.mxu0 %v2787
          %2832 = vmatpush1.msra.mxu0 %v2786
          %2833 = vmatprep.subr.mxu0 %v2783
          %2834 = vmatpush1.msra.mxu0 %v2782
          %2835 = vmatprep.subr.mxu0 0.0
          %2836 = vmatpush2.msra.mxu0 0.0
          %2837 = vmatprep.subr.mxu0 0.0
          %2838 = vmatpush2.msra.mxu0 0.0
          %2839 = vmatprep.subr.mxu0 0.0
          %2840 = vmatpush2.msra.mxu0 0.0
          %2841 = vmatprep.subr.mxu0 0.0
          %2842 = vmatpush2.msra.mxu0 0.0
          %2843 = vmatprep.subr.mxu0 0.0
          %2844 = vmatpush2.msra.mxu0 0.0
          %2845 = vmatprep.subr.mxu0 0.0
          %2846 = vmatpush2.msra.mxu0 0.0
          %2847 = vmatprep.subr.mxu0 0.0
          %2848 = vmatpush2.msra.mxu0 0.0
          %2849 = vmatprep.subr.mxu0 0.0
          %2850 = vmatpush2.msra.mxu0 0.0
          %2851 = vmatprep.subr.mxu0 0.0
          %2852 = vmatpush2.msra.mxu0 0.0
          %2853 = vmatprep.subr.mxu0 0.0
          %2854 = vmatpush2.msra.mxu0 0.0
          %2855 = vmatprep.subr.mxu0 0.0
          %2856 = vmatpush2.msra.mxu0 0.0
          %2857 = vmatprep.subr.mxu0 0.0
          %2858 = vmatpush2.msra.mxu0 0.0
          %2859 = vmatprep.subr.mxu0 0.0
          %2860 = vmatpush2.msra.mxu0 0.0
          %2861 = vmatprep.subr.mxu0 0.0
          %2862 = vmatpush2.msra.mxu0 0.0
          %2863 = vmatprep.subr.mxu0 0.0
          %2864 = vmatpush2.msra.mxu0 0.0
          %2865 = vmatprep.subr.mxu0 0.0
          %2866 = vmatpush2.msra.mxu0 0.0
          %2867 = vmatprep.mubr.f32.mxu0 0.0
          %2868 = vmatmul.mubr.f32.gmra.mxu0 %v2801
          %v2869 = vpop.f32.mrf.mxu0
          %v2870 = vadd.f32 0.0, %v2869
          %v2871 = vpop.f32.mrf.mxu0
          %v2872 = vadd.f32 0.0, %v2871
          %2873 = vdwg.mxu0
          %2874 = vmatprep.subr.mxu0 0.0
          %2875 = vmatpush1.msra.mxu0 0.0
          %2876 = vmatprep.subr.mxu0 0.0
          %2877 = vmatpush1.msra.mxu0 0.0
          %2878 = vmatprep.subr.mxu0 0.0
          %2879 = vmatpush1.msra.mxu0 0.0
          %2880 = vmatprep.subr.mxu0 0.0
          %2881 = vmatpush1.msra.mxu0 0.0
          %2882 = vmatprep.subr.mxu0 0.0
          %2883 = vmatpush1.msra.mxu0 0.0
          %2884 = vmatprep.subr.mxu0 0.0
          %2885 = vmatpush1.msra.mxu0 0.0
          %2886 = vmatprep.subr.mxu0 0.0
          %2887 = vmatpush1.msra.mxu0 0.0
          %2888 = vmatprep.subr.mxu0 0.0
          %2889 = vmatpush1.msra.mxu0 0.0
          %2890 = vmatprep.subr.mxu0 0.0
          %2891 = vmatpush1.msra.mxu0 0.0
          %2892 = vmatprep.subr.mxu0 0.0
          %2893 = vmatpush1.msra.mxu0 0.0
          %2894 = vmatprep.subr.mxu0 0.0
          %2895 = vmatpush1.msra.mxu0 0.0
          %2896 = vmatprep.subr.mxu0 0.0
          %2897 = vmatpush1.msra.mxu0 0.0
          %2898 = vmatprep.subr.mxu0 %v2797
          %2899 = vmatpush1.msra.mxu0 %v2796
          %2900 = vmatprep.subr.mxu0 %v2793
          %2901 = vmatpush1.msra.mxu0 %v2792
          %2902 = vmatprep.subr.mxu0 %v2789
          %2903 = vmatpush1.msra.mxu0 %v2788
          %2904 = vmatprep.subr.mxu0 %v2785
          %2905 = vmatpush1.msra.mxu0 %v2784
          %2906 = vmatprep.subr.mxu0 0.0
          %2907 = vmatpush2.msra.mxu0 0.0
          %2908 = vmatprep.subr.mxu0 0.0
          %2909 = vmatpush2.msra.mxu0 0.0
          %2910 = vmatprep.subr.mxu0 0.0
          %2911 = vmatpush2.msra.mxu0 0.0
          %2912 = vmatprep.subr.mxu0 0.0
          %2913 = vmatpush2.msra.mxu0 0.0
          %2914 = vmatprep.subr.mxu0 0.0
          %2915 = vmatpush2.msra.mxu0 0.0
          %2916 = vmatprep.subr.mxu0 0.0
          %2917 = vmatpush2.msra.mxu0 0.0
          %2918 = vmatprep.subr.mxu0 0.0
          %2919 = vmatpush2.msra.mxu0 0.0
          %2920 = vmatprep.subr.mxu0 0.0
          %2921 = vmatpush2.msra.mxu0 0.0
          %2922 = vmatprep.subr.mxu0 0.0
          %2923 = vmatpush2.msra.mxu0 0.0
          %2924 = vmatprep.subr.mxu0 0.0
          %2925 = vmatpush2.msra.mxu0 0.0
          %2926 = vmatprep.subr.mxu0 0.0
          %2927 = vmatpush2.msra.mxu0 0.0
          %2928 = vmatprep.subr.mxu0 0.0
          %2929 = vmatpush2.msra.mxu0 0.0
          %2930 = vmatprep.subr.mxu0 0.0
          %2931 = vmatpush2.msra.mxu0 0.0
          %2932 = vmatprep.subr.mxu0 0.0
          %2933 = vmatpush2.msra.mxu0 0.0
          %2934 = vmatprep.subr.mxu0 0.0
          %2935 = vmatpush2.msra.mxu0 0.0
          %2936 = vmatprep.subr.mxu0 0.0
          %2937 = vmatpush2.msra.mxu0 0.0
          %2938 = vmatprep.mubr.f32.mxu0 0.0
          %2939 = vmatmul.mubr.f32.gmra.mxu0 %v2801
          %v2940 = vpop.f32.mrf.mxu0
          %v2941 = vadd.f32 0.0, %v2940
          %v2942 = vpop.f32.mrf.mxu0
          %v2943 = vadd.f32 0.0, %v2942
          %2944 = vdwg.mxu0
          %vm2945 = vcmask 1041408
          %v2946 = vsel %vm2945, %v2870, 0.0
          %v2947 = vsel %vm2945, %v2872, 0.0
          %v2948 = vadd.f32 %v2946, %v2947
          %v2949 = vsel %vm2945, %v2941, 0.0
          %v2950 = vadd.f32 %v2948, %v2949
          %v2951 = vsel %vm2945, %v2943, 0.0
          %v2952 = vadd.f32 %v2950, %v2951
          %2953 = vadd.xlane.f32.xlu0 %v2952
          %v2954 = vpop.xlane.xlu0 %2953
          %v2955 = vxor.u32 %v2954, 2147483648
          %v2956 = vmul.f32 %v2955, 1.442695
          %v2957 = vpow.pop %v2956
          %v2958 = vadd.f32 %v2957, 1.0
          %v2959 = vrcp.pop %v2958
          %v2960 = vmul.f32 1.0, %v2959
          %vm2961 = vcmask 1024
          %2962 = vst.msk [vmem:[%s6] sm:$0x3] %vm2961, %v2960
        $region75: #{discriminator_forward.7} parent=62 // pred_fallthru
          _
        // Predicated region
        $region76: #{discriminator_forward.7} parent=62 // pred_check
          %p2963 = pneg %p166
        $region77: #{discriminator_forward.7} parent=62 // pred_check_branch
          %2965 = sbr.rel (%p2963) target = $region79
        $region78: #{discriminator_forward.7} parent=62 // pred_region
          _
        $region79: #{discriminator_forward.7} parent=62 // pred_fallthru
          _
        // Predicated region
        $region80: #{discriminator_forward.7} parent=62 // pred_check
          %p2966 = pneg %p166
        $region81: #{discriminator_forward.7} parent=62 // pred_check_branch
          %2968 = sbr.rel (%p2966) target = $region83
        $region82: #{discriminator_forward.7} parent=62 // pred_region
          _
        $region83: #{discriminator_forward.7} parent=62 // pred_fallthru
          _
      $region63: #{discriminator_forward.7} parent=5 // pred_fallthru
        _
      %p2969 = scmp.le.s32.totalorder 2, %s12
      // Predicated region
      $region84: #{discriminator_forward.7} parent=5 // pred_check
        %p2970 = pneg %p2969
      $region85: #{discriminator_forward.7} parent=5 // pred_check_branch
        %2972 = sbr.rel (%p2970) target = $region87
      $region86: #{discriminator_forward.7} parent=5 // pred_region
        %s2973 = ssub.s32 %s12, 2
      $region87: #{discriminator_forward.7} parent=5 // pred_fallthru
        _
    $region6: #{discriminator_forward.7} parent=1 // loop_footer
      %s16 = sadd.s32 1, %s12
    $region7: #{discriminator_forward.7} parent=1 // loop_footer_branch
      %11 = sbr.rel target = $region3
    $region8: #{discriminator_forward.7} parent=1 // loop_exit
      _

</llo_original>
